<compile_context>
chip_gen: v7x
topology: tpu7x:2x2x1
jax: 0.10.0
libtpu: 0.0.40
codegen_flags: <defaults>
</compile_context>

<pallas_src>
import functools
import math

import jax
import jax.numpy as jnp
from jax.experimental import pallas as pl
from jax.experimental.pallas import tpu as pltpu

EPS = 1e-5  # torch.nn.LayerNorm default


def _layernorm(x, gamma, beta):
    mu = jnp.mean(x, axis=-1, keepdims=True)
    var = jnp.mean(jnp.square(x - mu), axis=-1, keepdims=True)
    return (x - mu) * jax.lax.rsqrt(var + EPS) * gamma + beta


# -----------------------------------------------------------------------------
# Fused per-(batch-block, layer) kernel.  Grid = (B // block_b, depth), depth innermost.
# The activation slab stays resident in the output VMEM block across the depth axis.
# -----------------------------------------------------------------------------
def encoder_layer_kernel(x_ref, wqkv_ref, bqkv_ref, wo_ref, vd_ref,
                         w1_ref, w2_ref, w3_ref, vm_ref,
                         th1k_ref, th2k_ref, tile_ref, mk_ref, mv_ref, seg_ref,
                         o_ref, *, heads, dim_head, seq, block_b):
    d = pl.program_id(1)
    inner = heads * dim_head
    hn = heads * seq                       # packed head*seq lane width

    @pl.when(d == 0)
    def _():                               # load the fresh batch slab into the resident buffer
        o_ref[...] = x_ref[...]

    x = o_ref[...]                         # (M, D) f32; previous layer output (or input at d==0)

    vd = vd_ref[d]                         # (6, D)   rows: bo, g1, b1, fb3, g2, b2
    vm = vm_ref[d]                         # (4, mlp) rows: fb1, fb2, ln_g, ln_b
    th1k = th1k_ref[d]                     # (hn, hn) f32  kron(scale*th1^T, I_N)
    th2k = th2k_ref[d]                     # (hn, hn) f32  kron(th2^T, I_N)
    tile_l = tile_ref[...]                 # (N, hn)  bf16 lane-tiling selector
    mask_k = mk_ref[...]                   # (inner, hn) f32 block-diagonal mask for K operand
    mask_v = mv_ref[...]                   # (hn, inner) f32 block-diagonal mask for V operand
    seg_ones = seg_ref[...]                # (hn, hn) f32 per-head block-of-ones (seg-sum + bcast)

    # ---------------- QKV projection over all block_b*N rows (one MXU pass) ----------------
    x_bf = x.astype(jnp.bfloat16)
    qkv = jnp.dot(x_bf, wqkv_ref[d], preferred_element_type=jnp.float32) + bqkv_ref[d]
    qkv_bf = qkv.astype(jnp.bfloat16)

    # Transpose the whole K block once per step (review: one transpose, not per-head).
    k_t = qkv[:, inner:2 * inner].T.astype(jnp.bfloat16)          # (inner, M)

    outs = []
    for b in range(block_b):                                       # statically unrolled
        r0 = b * seq
        qb = qkv_bf[r0:r0 + seq, 0:inner]                          # (N, inner) bf16
        vb = qkv[r0:r0 + seq, 2 * inner:3 * inner]                 # (N, inner) f32

        # Block-diagonal K operand: all heads in ONE (N,inner)x(inner,hn) MXU pass.
        # Selection matmul + 0/1 mask keeps the values exactly bf16(k).
        kbt = k_t[:, r0:r0 + seq]                                  # (inner, N) bf16
        k_opd = (jnp.dot(kbt, tile_l, preferred_element_type=jnp.float32)
                 * mask_k).astype(jnp.bfloat16)                    # (inner, hn)
        s = jnp.dot(qb, k_opd, preferred_element_type=jnp.float32)  # packed per-head scores (N, hn)

        # Talking-heads 1 (scale folded in) as one f32 MXU matmul on the packed planes.
        s = jnp.dot(s, th1k, preferred_element_type=jnp.float32)

        # Segmented softmax over lane groups of `seq` (one head per group).  The row-wide
        # max is a valid stabilizer (it cancels exactly); per-head underflow would need a
        # cross-head logit spread > ~80, impossible for LayerNorm-scale activations.
        m = jnp.max(s, axis=-1, keepdims=True)
        e = jnp.exp(s - m)
        den = jnp.dot(e, seg_ones, preferred_element_type=jnp.float32)   # per-head sums, broadcast
        attn = e / jnp.maximum(den, 1e-30)

        # Talking-heads 2 (f32 MXU matmul), then block-diagonal attn @ V (one MXU pass).
        attn = jnp.dot(attn, th2k, preferred_element_type=jnp.float32)
        v_opd = (jnp.concatenate([vb] * heads, axis=0) * mask_v).astype(jnp.bfloat16)  # (hn, inner)
        outs.append(jnp.dot(attn.astype(jnp.bfloat16), v_opd,
                            preferred_element_type=jnp.float32))          # (N, inner)

    att = outs[0] if block_b == 1 else jnp.concatenate(outs, axis=0)      # (M, inner)

    # to_out projection + residual + norm1
    att = jnp.dot(att.astype(jnp.bfloat16), wo_ref[d],
                  preferred_element_type=jnp.float32) + vd[0:1]
    y = _layernorm(att + x, vd[1:2], vd[2:3])

    # FeedForward_GLU + residual + norm2
    y_bf = y.astype(jnp.bfloat16)
    x1 = jnp.dot(y_bf, w1_ref[d], preferred_element_type=jnp.float32) + vm[0:1]
    x2 = jnp.dot(y_bf, w2_ref[d], preferred_element_type=jnp.float32) + vm[1:2]
    h = jnp.maximum(x1, 0.0) * x2
    h = _layernorm(h, vm[2:3], vm[3:4])
    f = jnp.dot(h.astype(jnp.bfloat16), w3_ref[d],
                preferred_element_type=jnp.float32) + vd[3:4]
    o_ref[...] = _layernorm(f + y, vd[4:5], vd[5:6])


def _pick_block_b(batch, seq):
    """Largest batch block per grid step (MXU M = block_b*seq) while keeping at least
    two steps on the parallel grid axis (so both v7x TensorCores get work)."""
    best = 1
    min_steps = 2 if batch >= 2 else 1
    for cand in range(1, batch + 1):
        if batch % cand == 0 and batch // cand >= min_steps and cand * seq <= 512:
            best = cand
    return best


# -----------------------------------------------------------------------------
# Wrapper: packs the per-layer parameters and launches ONE fused pallas_call.
# -----------------------------------------------------------------------------
@functools.partial(jax.jit, static_argnums=(2, 3))
def transformer_forward(x, p, heads, dim_head):
    B, N, D = x.shape
    depth = p['wqkv'].shape[0]
    inner = heads * dim_head
    mlp = p['w1'].shape[-1]
    hn = heads * N
    scale = dim_head ** (-0.5)
    block_b = _pick_block_b(B, N)
    M = block_b * N

    bf = lambda w: w.astype(jnp.bfloat16)

    # packed per-layer vectors (cuts DMA descriptors / VMEM padding)
    vd = jnp.stack([p['bo'], p['g1'], p['b1'], p['fb3'], p['g2'], p['b2']], axis=1)   # (depth,6,D)
    vm = jnp.stack([p['fb1'], p['fb2'], p['lng'], p['lnb']], axis=1)                  # (depth,4,mlp)
    bqkv = p['bqkv'][:, None, :]                                                      # (depth,1,3I)

    # talking heads as kron(th^T, I_N): one MXU matmul per mix on the packed (N, hn) planes
    eye_n = jnp.eye(N, dtype=jnp.float32)
    th1k = (scale * jnp.einsum('lgh,jk->lhjgk', p['th1'], eye_n)).reshape(depth, hn, hn)
    th2k = jnp.einsum('lhg,jk->lgjhk', p['th2'], eye_n).reshape(depth, hn, hn)

    # static selection / masking constants for the block-diagonal attention
    lane = jnp.arange(hn)
    tile_l = (jnp.arange(N)[:, None] == (lane[None, :] % N)).astype(jnp.bfloat16)      # (N, hn)
    mask_k = ((jnp.arange(inner)[:, None] // dim_head) ==
              (lane[None, :] // N)).astype(jnp.float32)                                # (inner, hn)
    mask_v = mask_k.T                                                                  # (hn, inner)
    seg_ones = ((lane[:, None] // N) == (lane[None, :] // N)).astype(jnp.float32)      # (hn, hn)

    x2d = x.reshape(B * N, D)

    operands = (x2d, bf(p['wqkv']), bqkv, bf(p['wo']), vd,
                bf(p['w1']), bf(p['w2']), bf(p['w3']), vm,
                th1k, th2k, tile_l, mask_k, mask_v, seg_ones)

    # VMEM budget: depth-resident weights/constants (worst case double-buffered) +
    # double-buffered activation blocks + generous slack for spills/internal scratch.
    resident_bytes = sum(int(o.size) * o.dtype.itemsize for o in operands[1:])
    block_bytes = M * D * 4
    vmem_limit = int(min(64 * 1024 * 1024,
                         2 * resident_bytes + 8 * block_bytes + (8 << 20)))

    steps = (B // block_b) * depth
    dense_flops = 2 * M * (D * 3 * inner + inner * D + 2 * D * mlp + mlp * D) * steps
    attn_flops = 2 * steps * block_b * (
        inner * N * hn          # K-operand tiling matmul
        + N * inner * hn        # Q @ K_bd scores
        + 2 * N * hn * hn       # talking-heads mixes
        + N * hn * hn           # segmented softmax denominator
        + N * hn * inner)       # attn @ V_bd
    cost = pl.CostEstimate(
        flops=int(dense_flops + attn_flops),
        transcendentals=int(steps * block_b * N * hn),
        bytes_accessed=int(2 * B * N * D * 4 + resident_bytes))

    xmap = lambda b, d: (b, 0)       # batch-block indexed; constant across depth (resident)
    wmap = lambda b, d: (0, 0, 0)    # full-depth resident weights: fetched once per call
    cmap = lambda b, d: (0, 0)       # constants

    kernel = functools.partial(encoder_layer_kernel, heads=heads, dim_head=dim_head,
                               seq=N, block_b=block_b)

    out2d = pl.pallas_call(
        kernel,
        out_shape=jax.ShapeDtypeStruct((B * N, D), jnp.float32),
        grid=(B // block_b, depth),
        in_specs=[
            pl.BlockSpec((M, D), xmap),                       # x (2-D, rows = batch*seq)
            pl.BlockSpec((depth, D, 3 * inner), wmap),        # wqkv
            pl.BlockSpec((depth, 1, 3 * inner), wmap),        # bqkv
            pl.BlockSpec((depth, inner, D), wmap),            # wo
            pl.BlockSpec((depth, 6, D), wmap),                # packed D-sized vectors
            pl.BlockSpec((depth, D, mlp), wmap),              # w1
            pl.BlockSpec((depth, D, mlp), wmap),              # w2
            pl.BlockSpec((depth, mlp, D), wmap),              # w3
            pl.BlockSpec((depth, 4, mlp), wmap),              # packed mlp-sized vectors
            pl.BlockSpec((depth, hn, hn), wmap),              # talking-heads 1 kron
            pl.BlockSpec((depth, hn, hn), wmap),              # talking-heads 2 kron
            pl.BlockSpec((N, hn), cmap),                      # lane-tiling selector
            pl.BlockSpec((inner, hn), cmap),                  # K block-diag mask
            pl.BlockSpec((hn, inner), cmap),                  # V block-diag mask
            pl.BlockSpec((hn, hn), cmap),                     # segment block-of-ones
        ],
        out_specs=pl.BlockSpec((M, D), xmap),
        compiler_params=pltpu.CompilerParams(
            dimension_semantics=("parallel", "arbitrary"),
            vmem_limit_bytes=vmem_limit),
        cost_estimate=cost,
    )(*operands)
    return out2d.reshape(B, N, D)


# -----------------------------------------------------------------------------
# Deterministic parameter init (PyTorch-Linear-style uniform bounds), stacked over depth.
# -----------------------------------------------------------------------------
def init_params(key, dim, depth, heads, dim_head, mlp_dim):
    inner = heads * dim_head

    def u(k, shape, fan_in):
        bound = 1.0 / math.sqrt(fan_in)
        return jax.random.uniform(k, shape, jnp.float32, -bound, bound)

    ks = jax.random.split(key, 12)
    return dict(
        wqkv=u(ks[0], (depth, dim, 3 * inner), dim),
        bqkv=u(ks[1], (depth, 3 * inner), dim),
        th1=u(ks[2], (depth, heads, heads), heads),   # Conv2d(H,H,1,bias=False).weight squeezed
        th2=u(ks[3], (depth, heads, heads), heads),
        wo=u(ks[4], (depth, inner, dim), inner),
        bo=u(ks[5], (depth, dim), inner),
        g1=jnp.ones((depth, dim), jnp.float32),       # norm1
        b1=jnp.zeros((depth, dim), jnp.float32),
        w1=u(ks[6], (depth, dim, mlp_dim), dim),
        fb1=u(ks[7], (depth, mlp_dim), dim),
        w2=u(ks[8], (depth, dim, mlp_dim), dim),
        fb2=u(ks[9], (depth, mlp_dim), dim),
        lng=jnp.ones((depth, mlp_dim), jnp.float32),  # LayerNorm inside fc3
        lnb=jnp.zeros((depth, mlp_dim), jnp.float32),
        w3=u(ks[10], (depth, mlp_dim, dim), mlp_dim),
        fb3=u(ks[11], (depth, dim), mlp_dim),
        g2=jnp.ones((depth, dim), jnp.float32),       # norm2
        b2=jnp.zeros((depth, dim), jnp.float32),
    )


# -----------------------------------------------------------------------------
# Pure-JAX reference (mirrors the PyTorch forward; matmuls in bf16 with f32
# accumulation, exactly like the kernel, so the comparison isolates kernel logic).
# -----------------------------------------------------------------------------
def ref_forward(x, p, heads, dim_head):
    inner = heads * dim_head
    scale = dim_head ** (-0.5)
    depth = p['wqkv'].shape[0]
    bfd = jnp.bfloat16

    def mm(a, w):
        return jnp.einsum('...ij,jk->...ik', a.astype(bfd), w.astype(bfd),
                          preferred_element_type=jnp.float32)

    for l in range(depth):
        B, N, D = x.shape
        qkv = mm(x, p['wqkv'][l]) + p['bqkv'][l]
        qkv = qkv.astype(bfd)
        rearr = lambda t: t.reshape(B, N, heads, dim_head).transpose(0, 2, 1, 3)
        q = rearr(qkv[..., 0 * inner:1 * inner])
        k = rearr(qkv[..., 1 * inner:2 * inner])
        v = rearr(qkv[..., 2 * inner:3 * inner])
        dots = jnp.einsum('bhid,bhjd->bhij', q, k,
                          preferred_element_type=jnp.float32) * scale
        dots = jnp.einsum('gh,bhij->bgij', p['th1'][l], dots)
        attn = jax.nn.softmax(dots, axis=-1)
        attn = jnp.einsum('gh,bhij->bgij', p['th2'][l], attn)
        out = jnp.einsum('bhij,bhjd->bhid', attn.astype(bfd), v,
                         preferred_element_type=jnp.float32)
        out = out.transpose(0, 2, 1, 3).reshape(B, N, inner)
        out = mm(out, p['wo'][l]) + p['bo'][l]
        x = _layernorm(out + x, p['g1'][l], p['b1'][l])
        x1 = mm(x, p['w1'][l]) + p['fb1'][l]
        x2 = mm(x, p['w2'][l]) + p['fb2'][l]
        h = jnp.maximum(x1, 0.0) * x2
        h = _layernorm(h, p['lng'][l], p['lnb'][l])
        f = mm(h, p['w3'][l]) + p['fb3'][l]
        x = _layernorm(f + x, p['g2'][l], p['b2'][l])
    return x


if __name__ == "__main__":
    # Shapes consistent with TransformerLSTM defaults:
    # d_model=64, nhead=8 (dim_head=8), d_hid=128, nlayers=2; batch=16, seq=16
    # (batch sized so block_b*N=128 rows feed the MXU while keeping 2 parallel grid steps).
    B, N = 16, 16
    DIM, DEPTH, HEADS, DIM_HEAD, MLP_DIM = 64, 2, 8, 8, 128

    key = jax.random.PRNGKey(0)
    k_x, k_p = jax.random.split(key)
    x = jax.random.normal(k_x, (B, N, DIM), jnp.float32)
    params = init_params(k_p, DIM, DEPTH, HEADS, DIM_HEAD, MLP_DIM)

    y = transformer_forward(x, params, HEADS, DIM_HEAD)
    y = jax.block_until_ready(y)

    y_ref = ref_forward(x, params, HEADS, DIM_HEAD)
    assert y.shape == (B, N, DIM)
    assert bool(jnp.all(jnp.isfinite(y)))
    max_err = float(jnp.max(jnp.abs(y - y_ref)))
    assert jnp.allclose(y, y_ref, rtol=1e-2, atol=1e-2), f"max_err={max_err}"

    print("KERNEL_OK")
</pallas_src>

<mosaic_0001>
module attributes {stable_mosaic.version = 11 : i64} {
  func.func @encoder_layer_kernel(%arg0: i32, %arg1: i32, %arg2: memref<128x64xf32, #tpu.memory_space<vmem>>, %arg3: memref<2x64x192xbf16, #tpu.memory_space<vmem>>, %arg4: memref<2x1x192xf32, #tpu.memory_space<vmem>>, %arg5: memref<2x64x64xbf16, #tpu.memory_space<vmem>>, %arg6: memref<2x6x64xf32, #tpu.memory_space<vmem>>, %arg7: memref<2x64x128xbf16, #tpu.memory_space<vmem>>, %arg8: memref<2x64x128xbf16, #tpu.memory_space<vmem>>, %arg9: memref<2x128x64xbf16, #tpu.memory_space<vmem>>, %arg10: memref<2x4x128xf32, #tpu.memory_space<vmem>>, %arg11: memref<2x128x128xf32, #tpu.memory_space<vmem>>, %arg12: memref<2x128x128xf32, #tpu.memory_space<vmem>>, %arg13: memref<16x128xbf16, #tpu.memory_space<vmem>>, %arg14: memref<64x128xf32, #tpu.memory_space<vmem>>, %arg15: memref<128x64xf32, #tpu.memory_space<vmem>>, %arg16: memref<128x128xf32, #tpu.memory_space<vmem>>, %arg17: memref<128x64xf32, #tpu.memory_space<vmem>>) attributes {dimension_semantics = [#tpu.dimension_semantics<parallel>, #tpu.dimension_semantics<arbitrary>], iteration_bounds = array<i64: 2, 2>, scalar_prefetch = 0 : i64, scratch_operands = 0 : i64, tpu.core_type = #tpu.core_type<tc>, window_params = [{transform_indices = @transform_0, window_bounds = array<i64: 128, 64>}, {pipeline_mode = #tpu.pipeline_mode<synchronous>, transform_indices = @transform_1, window_bounds = array<i64: 2, 64, 192>}, {pipeline_mode = #tpu.pipeline_mode<synchronous>, transform_indices = @transform_2, window_bounds = array<i64: 2, 1, 192>}, {pipeline_mode = #tpu.pipeline_mode<synchronous>, transform_indices = @transform_3, window_bounds = array<i64: 2, 64, 64>}, {pipeline_mode = #tpu.pipeline_mode<synchronous>, transform_indices = @transform_4, window_bounds = array<i64: 2, 6, 64>}, {pipeline_mode = #tpu.pipeline_mode<synchronous>, transform_indices = @transform_5, window_bounds = array<i64: 2, 64, 128>}, {pipeline_mode = #tpu.pipeline_mode<synchronous>, transform_indices = @transform_6, window_bounds = array<i64: 2, 64, 128>}, {pipeline_mode = #tpu.pipeline_mode<synchronous>, transform_indices = @transform_7, window_bounds = array<i64: 2, 128, 64>}, {pipeline_mode = #tpu.pipeline_mode<synchronous>, transform_indices = @transform_8, window_bounds = array<i64: 2, 4, 128>}, {pipeline_mode = #tpu.pipeline_mode<synchronous>, transform_indices = @transform_9, window_bounds = array<i64: 2, 128, 128>}, {pipeline_mode = #tpu.pipeline_mode<synchronous>, transform_indices = @transform_10, window_bounds = array<i64: 2, 128, 128>}, {pipeline_mode = #tpu.pipeline_mode<synchronous>, transform_indices = @transform_11, window_bounds = array<i64: 16, 128>}, {pipeline_mode = #tpu.pipeline_mode<synchronous>, transform_indices = @transform_12, window_bounds = array<i64: 64, 128>}, {pipeline_mode = #tpu.pipeline_mode<synchronous>, transform_indices = @transform_13, window_bounds = array<i64: 128, 64>}, {pipeline_mode = #tpu.pipeline_mode<synchronous>, transform_indices = @transform_14, window_bounds = array<i64: 128, 128>}, {transform_indices = @transform_15, window_bounds = array<i64: 128, 64>}]} {
    %c0_i32 = arith.constant 0 : i32
    %0 = arith.cmpi eq, %arg1, %c0_i32 : i32
    %1 = arith.extui %0 : i1 to i32
    %c0_i32_0 = arith.constant 0 : i32
    %2 = arith.cmpi ne, %1, %c0_i32_0 : i32
    scf.if %2 {
      %c0_116 = arith.constant 0 : index
      %c0_117 = arith.constant 0 : index
      %328 = vector.load %arg2[%c0_116, %c0_117] : memref<128x64xf32, #tpu.memory_space<vmem>>, vector<128x64xf32>
      %c0_118 = arith.constant 0 : index
      %c0_119 = arith.constant 0 : index
      %329 = vector.load %arg17[%c0_118, %c0_119] : memref<128x64xf32, #tpu.memory_space<vmem>>, vector<128x64xf32>
      tpu.vector_store %arg17[%c0_118, %c0_119], %328 {strides = array<i32>} : memref<128x64xf32, #tpu.memory_space<vmem>>, vector<128x64xf32>,
    } else {
    }
    %c0 = arith.constant 0 : index
    %c0_1 = arith.constant 0 : index
    %3 = vector.load %arg17[%c0, %c0_1] : memref<128x64xf32, #tpu.memory_space<vmem>>, vector<128x64xf32>
    %4 = arith.index_cast %arg1 : i32 to index
    %c0_2 = arith.constant 0 : index
    %c0_3 = arith.constant 0 : index
    %5 = vector.load %arg6[%4, %c0_2, %c0_3] : memref<2x6x64xf32, #tpu.memory_space<vmem>>, vector<1x6x64xf32>
    %6 = vector.shape_cast %5 : vector<1x6x64xf32> to vector<6x64xf32>
    %7 = arith.index_cast %arg1 : i32 to index
    %c0_4 = arith.constant 0 : index
    %c0_5 = arith.constant 0 : index
    %8 = vector.load %arg10[%7, %c0_4, %c0_5] : memref<2x4x128xf32, #tpu.memory_space<vmem>>, vector<1x4x128xf32>
    %9 = vector.shape_cast %8 : vector<1x4x128xf32> to vector<4x128xf32>
    %10 = arith.index_cast %arg1 : i32 to index
    %c0_6 = arith.constant 0 : index
    %c0_7 = arith.constant 0 : index
    %11 = vector.load %arg11[%10, %c0_6, %c0_7] : memref<2x128x128xf32, #tpu.memory_space<vmem>>, vector<1x128x128xf32>
    %12 = vector.shape_cast %11 : vector<1x128x128xf32> to vector<128x128xf32>
    %13 = arith.index_cast %arg1 : i32 to index
    %c0_8 = arith.constant 0 : index
    %c0_9 = arith.constant 0 : index
    %14 = vector.load %arg12[%13, %c0_8, %c0_9] : memref<2x128x128xf32, #tpu.memory_space<vmem>>, vector<1x128x128xf32>
    %15 = vector.shape_cast %14 : vector<1x128x128xf32> to vector<128x128xf32>
    %c0_10 = arith.constant 0 : index
    %c0_11 = arith.constant 0 : index
    %16 = vector.load %arg13[%c0_10, %c0_11] : memref<16x128xbf16, #tpu.memory_space<vmem>>, vector<16x128xbf16>
    %c0_12 = arith.constant 0 : index
    %c0_13 = arith.constant 0 : index
    %17 = vector.load %arg14[%c0_12, %c0_13] : memref<64x128xf32, #tpu.memory_space<vmem>>, vector<64x128xf32>
    %c0_14 = arith.constant 0 : index
    %c0_15 = arith.constant 0 : index
    %18 = vector.load %arg15[%c0_14, %c0_15] : memref<128x64xf32, #tpu.memory_space<vmem>>, vector<128x64xf32>
    %c0_16 = arith.constant 0 : index
    %c0_17 = arith.constant 0 : index
    %19 = vector.load %arg16[%c0_16, %c0_17] : memref<128x128xf32, #tpu.memory_space<vmem>>, vector<128x128xf32>
    %20 = arith.truncf %3 : vector<128x64xf32> to vector<128x64xbf16>
    %21 = arith.index_cast %arg1 : i32 to index
    %c0_18 = arith.constant 0 : index
    %c0_19 = arith.constant 0 : index
    %22 = vector.load %arg3[%21, %c0_18, %c0_19] : memref<2x64x192xbf16, #tpu.memory_space<vmem>>, vector<1x64x192xbf16>
    %23 = vector.shape_cast %22 : vector<1x64x192xbf16> to vector<64x192xbf16>
    %cst = arith.constant dense<0.000000e+00> : vector<128x192xf32>
    %24 = tpu.matmul %20, %23, %cst {dimension_numbers = #tpu.dot_dimension_numbers<[1], [0], [0], [1], [0, 0, 1, 1], [], []>} : vector<128x64xbf16>, vector<64x192xbf16>, vector<128x192xf32> -> vector<128x192xf32>
    %25 = arith.index_cast %arg1 : i32 to index
    %c0_20 = arith.constant 0 : index
    %c0_21 = arith.constant 0 : index
    %26 = vector.load %arg4[%25, %c0_20, %c0_21] : memref<2x1x192xf32, #tpu.memory_space<vmem>>, vector<1x1x192xf32>
    %27 = vector.shape_cast %26 : vector<1x1x192xf32> to vector<1x192xf32>
    %28 = vector.broadcast %27 : vector<1x192xf32> to vector<128x192xf32>
    %29 = arith.addf %24, %28 : vector<128x192xf32>
    %30 = arith.truncf %29 : vector<128x192xf32> to vector<128x192xbf16>
    %31 = vector.extract_strided_slice %29 {offsets = [0, 64], sizes = [128, 64], strides = [1, 1]} : vector<128x192xf32> to vector<128x64xf32>
    %32 = tpu.transpose %31, [1, 0] : vector<128x64xf32> -> vector<64x128xf32>
    %33 = arith.truncf %32 : vector<64x128xf32> to vector<64x128xbf16>
    %34 = vector.extract_strided_slice %30 {offsets = [0, 0], sizes = [16, 64], strides = [1, 1]} : vector<128x192xbf16> to vector<16x64xbf16>
    %35 = vector.extract_strided_slice %29 {offsets = [0, 128], sizes = [16, 64], strides = [1, 1]} : vector<128x192xf32> to vector<16x64xf32>
    %36 = vector.extract_strided_slice %33 {offsets = [0, 0], sizes = [64, 16], strides = [1, 1]} : vector<64x128xbf16> to vector<64x16xbf16>
    %cst_22 = arith.constant dense<0.000000e+00> : vector<64x128xf32>
    %37 = tpu.matmul %36, %16, %cst_22 {dimension_numbers = #tpu.dot_dimension_numbers<[1], [0], [0], [1], [0, 0, 1, 1], [], []>} : vector<64x16xbf16>, vector<16x128xbf16>, vector<64x128xf32> -> vector<64x128xf32>
    %38 = arith.mulf %37, %17 : vector<64x128xf32>
    %39 = arith.truncf %38 : vector<64x128xf32> to vector<64x128xbf16>
    %cst_23 = arith.constant dense<0.000000e+00> : vector<16x128xf32>
    %40 = tpu.matmul %34, %39, %cst_23 {dimension_numbers = #tpu.dot_dimension_numbers<[1], [0], [0], [1], [0, 0, 1, 1], [], []>} : vector<16x64xbf16>, vector<64x128xbf16>, vector<16x128xf32> -> vector<16x128xf32>
    %cst_24 = arith.constant dense<0.000000e+00> : vector<16x128xf32>
    %41 = tpu.matmul %40, %12, %cst_24 {dimension_numbers = #tpu.dot_dimension_numbers<[1], [0], [0], [1], [0, 0, 1, 1], [], []>} : vector<16x128xf32>, vector<128x128xf32>, vector<16x128xf32> -> vector<16x128xf32>
    %cst_25 = arith.constant dense<0xFF800000> : vector<16xf32>
    %42 = vector.multi_reduction <maximumf>, %41, %cst_25 [1] : vector<16x128xf32> to vector<16xf32>
    %43 = vector.shape_cast %42 : vector<16xf32> to vector<16x1xf32>
    %44 = vector.broadcast %43 : vector<16x1xf32> to vector<16x128xf32>
    %45 = arith.subf %41, %44 : vector<16x128xf32>
    %46 = math.exp %45 : vector<16x128xf32>
    %cst_26 = arith.constant dense<0.000000e+00> : vector<16x128xf32>
    %47 = tpu.matmul %46, %19, %cst_26 {dimension_numbers = #tpu.dot_dimension_numbers<[1], [0], [0], [1], [0, 0, 1, 1], [], []>} : vector<16x128xf32>, vector<128x128xf32>, vector<16x128xf32> -> vector<16x128xf32>
    %cst_27 = arith.constant 1.000000e-30 : f32
    %48 = vector.broadcast %cst_27 : f32 to vector<16x128xf32>
    %49 = arith.maximumf %47, %48 : vector<16x128xf32>
    %50 = arith.divf %46, %49 : vector<16x128xf32>
    %cst_28 = arith.constant dense<0.000000e+00> : vector<16x128xf32>
    %51 = tpu.matmul %50, %15, %cst_28 {dimension_numbers = #tpu.dot_dimension_numbers<[1], [0], [0], [1], [0, 0, 1, 1], [], []>} : vector<16x128xf32>, vector<128x128xf32>, vector<16x128xf32> -> vector<16x128xf32>
    %52 = tpu.concatenate %35, %35, %35, %35, %35, %35, %35, %35 in 0 : vector<16x64xf32>, vector<16x64xf32>, vector<16x64xf32>, vector<16x64xf32>, vector<16x64xf32>, vector<16x64xf32>, vector<16x64xf32>, vector<16x64xf32> -> vector<128x64xf32>
    %53 = arith.mulf %52, %18 : vector<128x64xf32>
    %54 = arith.truncf %53 : vector<128x64xf32> to vector<128x64xbf16>
    %55 = arith.truncf %51 : vector<16x128xf32> to vector<16x128xbf16>
    %cst_29 = arith.constant dense<0.000000e+00> : vector<16x64xf32>
    %56 = tpu.matmul %55, %54, %cst_29 {dimension_numbers = #tpu.dot_dimension_numbers<[1], [0], [0], [1], [0, 0, 1, 1], [], []>} : vector<16x128xbf16>, vector<128x64xbf16>, vector<16x64xf32> -> vector<16x64xf32>
    %57 = vector.extract_strided_slice %30 {offsets = [16, 0], sizes = [16, 64], strides = [1, 1]} : vector<128x192xbf16> to vector<16x64xbf16>
    %58 = vector.extract_strided_slice %29 {offsets = [16, 128], sizes = [16, 64], strides = [1, 1]} : vector<128x192xf32> to vector<16x64xf32>
    %59 = vector.extract_strided_slice %33 {offsets = [0, 16], sizes = [64, 16], strides = [1, 1]} : vector<64x128xbf16> to vector<64x16xbf16>
    %cst_30 = arith.constant dense<0.000000e+00> : vector<64x128xf32>
    %60 = tpu.matmul %59, %16, %cst_30 {dimension_numbers = #tpu.dot_dimension_numbers<[1], [0], [0], [1], [0, 0, 1, 1], [], []>} : vector<64x16xbf16>, vector<16x128xbf16>, vector<64x128xf32> -> vector<64x128xf32>
    %61 = arith.mulf %60, %17 : vector<64x128xf32>
    %62 = arith.truncf %61 : vector<64x128xf32> to vector<64x128xbf16>
    %cst_31 = arith.constant dense<0.000000e+00> : vector<16x128xf32>
    %63 = tpu.matmul %57, %62, %cst_31 {dimension_numbers = #tpu.dot_dimension_numbers<[1], [0], [0], [1], [0, 0, 1, 1], [], []>} : vector<16x64xbf16>, vector<64x128xbf16>, vector<16x128xf32> -> vector<16x128xf32>
    %cst_32 = arith.constant dense<0.000000e+00> : vector<16x128xf32>
    %64 = tpu.matmul %63, %12, %cst_32 {dimension_numbers = #tpu.dot_dimension_numbers<[1], [0], [0], [1], [0, 0, 1, 1], [], []>} : vector<16x128xf32>, vector<128x128xf32>, vector<16x128xf32> -> vector<16x128xf32>
    %cst_33 = arith.constant dense<0xFF800000> : vector<16xf32>
    %65 = vector.multi_reduction <maximumf>, %64, %cst_33 [1] : vector<16x128xf32> to vector<16xf32>
    %66 = vector.shape_cast %65 : vector<16xf32> to vector<16x1xf32>
    %67 = vector.broadcast %66 : vector<16x1xf32> to vector<16x128xf32>
    %68 = arith.subf %64, %67 : vector<16x128xf32>
    %69 = math.exp %68 : vector<16x128xf32>
    %cst_34 = arith.constant dense<0.000000e+00> : vector<16x128xf32>
    %70 = tpu.matmul %69, %19, %cst_34 {dimension_numbers = #tpu.dot_dimension_numbers<[1], [0], [0], [1], [0, 0, 1, 1], [], []>} : vector<16x128xf32>, vector<128x128xf32>, vector<16x128xf32> -> vector<16x128xf32>
    %cst_35 = arith.constant 1.000000e-30 : f32
    %71 = vector.broadcast %cst_35 : f32 to vector<16x128xf32>
    %72 = arith.maximumf %70, %71 : vector<16x128xf32>
    %73 = arith.divf %69, %72 : vector<16x128xf32>
    %cst_36 = arith.constant dense<0.000000e+00> : vector<16x128xf32>
    %74 = tpu.matmul %73, %15, %cst_36 {dimension_numbers = #tpu.dot_dimension_numbers<[1], [0], [0], [1], [0, 0, 1, 1], [], []>} : vector<16x128xf32>, vector<128x128xf32>, vector<16x128xf32> -> vector<16x128xf32>
    %75 = tpu.concatenate %58, %58, %58, %58, %58, %58, %58, %58 in 0 : vector<16x64xf32>, vector<16x64xf32>, vector<16x64xf32>, vector<16x64xf32>, vector<16x64xf32>, vector<16x64xf32>, vector<16x64xf32>, vector<16x64xf32> -> vector<128x64xf32>
    %76 = arith.mulf %75, %18 : vector<128x64xf32>
    %77 = arith.truncf %76 : vector<128x64xf32> to vector<128x64xbf16>
    %78 = arith.truncf %74 : vector<16x128xf32> to vector<16x128xbf16>
    %cst_37 = arith.constant dense<0.000000e+00> : vector<16x64xf32>
    %79 = tpu.matmul %78, %77, %cst_37 {dimension_numbers = #tpu.dot_dimension_numbers<[1], [0], [0], [1], [0, 0, 1, 1], [], []>} : vector<16x128xbf16>, vector<128x64xbf16>, vector<16x64xf32> -> vector<16x64xf32>
    %80 = vector.extract_strided_slice %30 {offsets = [32, 0], sizes = [16, 64], strides = [1, 1]} : vector<128x192xbf16> to vector<16x64xbf16>
    %81 = vector.extract_strided_slice %29 {offsets = [32, 128], sizes = [16, 64], strides = [1, 1]} : vector<128x192xf32> to vector<16x64xf32>
    %82 = vector.extract_strided_slice %33 {offsets = [0, 32], sizes = [64, 16], strides = [1, 1]} : vector<64x128xbf16> to vector<64x16xbf16>
    %cst_38 = arith.constant dense<0.000000e+00> : vector<64x128xf32>
    %83 = tpu.matmul %82, %16, %cst_38 {dimension_numbers = #tpu.dot_dimension_numbers<[1], [0], [0], [1], [0, 0, 1, 1], [], []>} : vector<64x16xbf16>, vector<16x128xbf16>, vector<64x128xf32> -> vector<64x128xf32>
    %84 = arith.mulf %83, %17 : vector<64x128xf32>
    %85 = arith.truncf %84 : vector<64x128xf32> to vector<64x128xbf16>
    %cst_39 = arith.constant dense<0.000000e+00> : vector<16x128xf32>
    %86 = tpu.matmul %80, %85, %cst_39 {dimension_numbers = #tpu.dot_dimension_numbers<[1], [0], [0], [1], [0, 0, 1, 1], [], []>} : vector<16x64xbf16>, vector<64x128xbf16>, vector<16x128xf32> -> vector<16x128xf32>
    %cst_40 = arith.constant dense<0.000000e+00> : vector<16x128xf32>
    %87 = tpu.matmul %86, %12, %cst_40 {dimension_numbers = #tpu.dot_dimension_numbers<[1], [0], [0], [1], [0, 0, 1, 1], [], []>} : vector<16x128xf32>, vector<128x128xf32>, vector<16x128xf32> -> vector<16x128xf32>
    %cst_41 = arith.constant dense<0xFF800000> : vector<16xf32>
    %88 = vector.multi_reduction <maximumf>, %87, %cst_41 [1] : vector<16x128xf32> to vector<16xf32>
    %89 = vector.shape_cast %88 : vector<16xf32> to vector<16x1xf32>
    %90 = vector.broadcast %89 : vector<16x1xf32> to vector<16x128xf32>
    %91 = arith.subf %87, %90 : vector<16x128xf32>
    %92 = math.exp %91 : vector<16x128xf32>
    %cst_42 = arith.constant dense<0.000000e+00> : vector<16x128xf32>
    %93 = tpu.matmul %92, %19, %cst_42 {dimension_numbers = #tpu.dot_dimension_numbers<[1], [0], [0], [1], [0, 0, 1, 1], [], []>} : vector<16x128xf32>, vector<128x128xf32>, vector<16x128xf32> -> vector<16x128xf32>
    %cst_43 = arith.constant 1.000000e-30 : f32
    %94 = vector.broadcast %cst_43 : f32 to vector<16x128xf32>
    %95 = arith.maximumf %93, %94 : vector<16x128xf32>
    %96 = arith.divf %92, %95 : vector<16x128xf32>
    %cst_44 = arith.constant dense<0.000000e+00> : vector<16x128xf32>
    %97 = tpu.matmul %96, %15, %cst_44 {dimension_numbers = #tpu.dot_dimension_numbers<[1], [0], [0], [1], [0, 0, 1, 1], [], []>} : vector<16x128xf32>, vector<128x128xf32>, vector<16x128xf32> -> vector<16x128xf32>
    %98 = tpu.concatenate %81, %81, %81, %81, %81, %81, %81, %81 in 0 : vector<16x64xf32>, vector<16x64xf32>, vector<16x64xf32>, vector<16x64xf32>, vector<16x64xf32>, vector<16x64xf32>, vector<16x64xf32>, vector<16x64xf32> -> vector<128x64xf32>
    %99 = arith.mulf %98, %18 : vector<128x64xf32>
    %100 = arith.truncf %99 : vector<128x64xf32> to vector<128x64xbf16>
    %101 = arith.truncf %97 : vector<16x128xf32> to vector<16x128xbf16>
    %cst_45 = arith.constant dense<0.000000e+00> : vector<16x64xf32>
    %102 = tpu.matmul %101, %100, %cst_45 {dimension_numbers = #tpu.dot_dimension_numbers<[1], [0], [0], [1], [0, 0, 1, 1], [], []>} : vector<16x128xbf16>, vector<128x64xbf16>, vector<16x64xf32> -> vector<16x64xf32>
    %103 = vector.extract_strided_slice %30 {offsets = [48, 0], sizes = [16, 64], strides = [1, 1]} : vector<128x192xbf16> to vector<16x64xbf16>
    %104 = vector.extract_strided_slice %29 {offsets = [48, 128], sizes = [16, 64], strides = [1, 1]} : vector<128x192xf32> to vector<16x64xf32>
    %105 = vector.extract_strided_slice %33 {offsets = [0, 48], sizes = [64, 16], strides = [1, 1]} : vector<64x128xbf16> to vector<64x16xbf16>
    %cst_46 = arith.constant dense<0.000000e+00> : vector<64x128xf32>
    %106 = tpu.matmul %105, %16, %cst_46 {dimension_numbers = #tpu.dot_dimension_numbers<[1], [0], [0], [1], [0, 0, 1, 1], [], []>} : vector<64x16xbf16>, vector<16x128xbf16>, vector<64x128xf32> -> vector<64x128xf32>
    %107 = arith.mulf %106, %17 : vector<64x128xf32>
    %108 = arith.truncf %107 : vector<64x128xf32> to vector<64x128xbf16>
    %cst_47 = arith.constant dense<0.000000e+00> : vector<16x128xf32>
    %109 = tpu.matmul %103, %108, %cst_47 {dimension_numbers = #tpu.dot_dimension_numbers<[1], [0], [0], [1], [0, 0, 1, 1], [], []>} : vector<16x64xbf16>, vector<64x128xbf16>, vector<16x128xf32> -> vector<16x128xf32>
    %cst_48 = arith.constant dense<0.000000e+00> : vector<16x128xf32>
    %110 = tpu.matmul %109, %12, %cst_48 {dimension_numbers = #tpu.dot_dimension_numbers<[1], [0], [0], [1], [0, 0, 1, 1], [], []>} : vector<16x128xf32>, vector<128x128xf32>, vector<16x128xf32> -> vector<16x128xf32>
    %cst_49 = arith.constant dense<0xFF800000> : vector<16xf32>
    %111 = vector.multi_reduction <maximumf>, %110, %cst_49 [1] : vector<16x128xf32> to vector<16xf32>
    %112 = vector.shape_cast %111 : vector<16xf32> to vector<16x1xf32>
    %113 = vector.broadcast %112 : vector<16x1xf32> to vector<16x128xf32>
    %114 = arith.subf %110, %113 : vector<16x128xf32>
    %115 = math.exp %114 : vector<16x128xf32>
    %cst_50 = arith.constant dense<0.000000e+00> : vector<16x128xf32>
    %116 = tpu.matmul %115, %19, %cst_50 {dimension_numbers = #tpu.dot_dimension_numbers<[1], [0], [0], [1], [0, 0, 1, 1], [], []>} : vector<16x128xf32>, vector<128x128xf32>, vector<16x128xf32> -> vector<16x128xf32>
    %cst_51 = arith.constant 1.000000e-30 : f32
    %117 = vector.broadcast %cst_51 : f32 to vector<16x128xf32>
    %118 = arith.maximumf %116, %117 : vector<16x128xf32>
    %119 = arith.divf %115, %118 : vector<16x128xf32>
    %cst_52 = arith.constant dense<0.000000e+00> : vector<16x128xf32>
    %120 = tpu.matmul %119, %15, %cst_52 {dimension_numbers = #tpu.dot_dimension_numbers<[1], [0], [0], [1], [0, 0, 1, 1], [], []>} : vector<16x128xf32>, vector<128x128xf32>, vector<16x128xf32> -> vector<16x128xf32>
    %121 = tpu.concatenate %104, %104, %104, %104, %104, %104, %104, %104 in 0 : vector<16x64xf32>, vector<16x64xf32>, vector<16x64xf32>, vector<16x64xf32>, vector<16x64xf32>, vector<16x64xf32>, vector<16x64xf32>, vector<16x64xf32> -> vector<128x64xf32>
    %122 = arith.mulf %121, %18 : vector<128x64xf32>
    %123 = arith.truncf %122 : vector<128x64xf32> to vector<128x64xbf16>
    %124 = arith.truncf %120 : vector<16x128xf32> to vector<16x128xbf16>
    %cst_53 = arith.constant dense<0.000000e+00> : vector<16x64xf32>
    %125 = tpu.matmul %124, %123, %cst_53 {dimension_numbers = #tpu.dot_dimension_numbers<[1], [0], [0], [1], [0, 0, 1, 1], [], []>} : vector<16x128xbf16>, vector<128x64xbf16>, vector<16x64xf32> -> vector<16x64xf32>
    %126 = vector.extract_strided_slice %30 {offsets = [64, 0], sizes = [16, 64], strides = [1, 1]} : vector<128x192xbf16> to vector<16x64xbf16>
    %127 = vector.extract_strided_slice %29 {offsets = [64, 128], sizes = [16, 64], strides = [1, 1]} : vector<128x192xf32> to vector<16x64xf32>
    %128 = vector.extract_strided_slice %33 {offsets = [0, 64], sizes = [64, 16], strides = [1, 1]} : vector<64x128xbf16> to vector<64x16xbf16>
    %cst_54 = arith.constant dense<0.000000e+00> : vector<64x128xf32>
    %129 = tpu.matmul %128, %16, %cst_54 {dimension_numbers = #tpu.dot_dimension_numbers<[1], [0], [0], [1], [0, 0, 1, 1], [], []>} : vector<64x16xbf16>, vector<16x128xbf16>, vector<64x128xf32> -> vector<64x128xf32>
    %130 = arith.mulf %129, %17 : vector<64x128xf32>
    %131 = arith.truncf %130 : vector<64x128xf32> to vector<64x128xbf16>
    %cst_55 = arith.constant dense<0.000000e+00> : vector<16x128xf32>
    %132 = tpu.matmul %126, %131, %cst_55 {dimension_numbers = #tpu.dot_dimension_numbers<[1], [0], [0], [1], [0, 0, 1, 1], [], []>} : vector<16x64xbf16>, vector<64x128xbf16>, vector<16x128xf32> -> vector<16x128xf32>
    %cst_56 = arith.constant dense<0.000000e+00> : vector<16x128xf32>
    %133 = tpu.matmul %132, %12, %cst_56 {dimension_numbers = #tpu.dot_dimension_numbers<[1], [0], [0], [1], [0, 0, 1, 1], [], []>} : vector<16x128xf32>, vector<128x128xf32>, vector<16x128xf32> -> vector<16x128xf32>
    %cst_57 = arith.constant dense<0xFF800000> : vector<16xf32>
    %134 = vector.multi_reduction <maximumf>, %133, %cst_57 [1] : vector<16x128xf32> to vector<16xf32>
    %135 = vector.shape_cast %134 : vector<16xf32> to vector<16x1xf32>
    %136 = vector.broadcast %135 : vector<16x1xf32> to vector<16x128xf32>
    %137 = arith.subf %133, %136 : vector<16x128xf32>
    %138 = math.exp %137 : vector<16x128xf32>
    %cst_58 = arith.constant dense<0.000000e+00> : vector<16x128xf32>
    %139 = tpu.matmul %138, %19, %cst_58 {dimension_numbers = #tpu.dot_dimension_numbers<[1], [0], [0], [1], [0, 0, 1, 1], [], []>} : vector<16x128xf32>, vector<128x128xf32>, vector<16x128xf32> -> vector<16x128xf32>
    %cst_59 = arith.constant 1.000000e-30 : f32
    %140 = vector.broadcast %cst_59 : f32 to vector<16x128xf32>
    %141 = arith.maximumf %139, %140 : vector<16x128xf32>
    %142 = arith.divf %138, %141 : vector<16x128xf32>
    %cst_60 = arith.constant dense<0.000000e+00> : vector<16x128xf32>
    %143 = tpu.matmul %142, %15, %cst_60 {dimension_numbers = #tpu.dot_dimension_numbers<[1], [0], [0], [1], [0, 0, 1, 1], [], []>} : vector<16x128xf32>, vector<128x128xf32>, vector<16x128xf32> -> vector<16x128xf32>
    %144 = tpu.concatenate %127, %127, %127, %127, %127, %127, %127, %127 in 0 : vector<16x64xf32>, vector<16x64xf32>, vector<16x64xf32>, vector<16x64xf32>, vector<16x64xf32>, vector<16x64xf32>, vector<16x64xf32>, vector<16x64xf32> -> vector<128x64xf32>
    %145 = arith.mulf %144, %18 : vector<128x64xf32>
    %146 = arith.truncf %145 : vector<128x64xf32> to vector<128x64xbf16>
    %147 = arith.truncf %143 : vector<16x128xf32> to vector<16x128xbf16>
    %cst_61 = arith.constant dense<0.000000e+00> : vector<16x64xf32>
    %148 = tpu.matmul %147, %146, %cst_61 {dimension_numbers = #tpu.dot_dimension_numbers<[1], [0], [0], [1], [0, 0, 1, 1], [], []>} : vector<16x128xbf16>, vector<128x64xbf16>, vector<16x64xf32> -> vector<16x64xf32>
    %149 = vector.extract_strided_slice %30 {offsets = [80, 0], sizes = [16, 64], strides = [1, 1]} : vector<128x192xbf16> to vector<16x64xbf16>
    %150 = vector.extract_strided_slice %29 {offsets = [80, 128], sizes = [16, 64], strides = [1, 1]} : vector<128x192xf32> to vector<16x64xf32>
    %151 = vector.extract_strided_slice %33 {offsets = [0, 80], sizes = [64, 16], strides = [1, 1]} : vector<64x128xbf16> to vector<64x16xbf16>
    %cst_62 = arith.constant dense<0.000000e+00> : vector<64x128xf32>
    %152 = tpu.matmul %151, %16, %cst_62 {dimension_numbers = #tpu.dot_dimension_numbers<[1], [0], [0], [1], [0, 0, 1, 1], [], []>} : vector<64x16xbf16>, vector<16x128xbf16>, vector<64x128xf32> -> vector<64x128xf32>
    %153 = arith.mulf %152, %17 : vector<64x128xf32>
    %154 = arith.truncf %153 : vector<64x128xf32> to vector<64x128xbf16>
    %cst_63 = arith.constant dense<0.000000e+00> : vector<16x128xf32>
    %155 = tpu.matmul %149, %154, %cst_63 {dimension_numbers = #tpu.dot_dimension_numbers<[1], [0], [0], [1], [0, 0, 1, 1], [], []>} : vector<16x64xbf16>, vector<64x128xbf16>, vector<16x128xf32> -> vector<16x128xf32>
    %cst_64 = arith.constant dense<0.000000e+00> : vector<16x128xf32>
    %156 = tpu.matmul %155, %12, %cst_64 {dimension_numbers = #tpu.dot_dimension_numbers<[1], [0], [0], [1], [0, 0, 1, 1], [], []>} : vector<16x128xf32>, vector<128x128xf32>, vector<16x128xf32> -> vector<16x128xf32>
    %cst_65 = arith.constant dense<0xFF800000> : vector<16xf32>
    %157 = vector.multi_reduction <maximumf>, %156, %cst_65 [1] : vector<16x128xf32> to vector<16xf32>
    %158 = vector.shape_cast %157 : vector<16xf32> to vector<16x1xf32>
    %159 = vector.broadcast %158 : vector<16x1xf32> to vector<16x128xf32>
    %160 = arith.subf %156, %159 : vector<16x128xf32>
    %161 = math.exp %160 : vector<16x128xf32>
    %cst_66 = arith.constant dense<0.000000e+00> : vector<16x128xf32>
    %162 = tpu.matmul %161, %19, %cst_66 {dimension_numbers = #tpu.dot_dimension_numbers<[1], [0], [0], [1], [0, 0, 1, 1], [], []>} : vector<16x128xf32>, vector<128x128xf32>, vector<16x128xf32> -> vector<16x128xf32>
    %cst_67 = arith.constant 1.000000e-30 : f32
    %163 = vector.broadcast %cst_67 : f32 to vector<16x128xf32>
    %164 = arith.maximumf %162, %163 : vector<16x128xf32>
    %165 = arith.divf %161, %164 : vector<16x128xf32>
    %cst_68 = arith.constant dense<0.000000e+00> : vector<16x128xf32>
    %166 = tpu.matmul %165, %15, %cst_68 {dimension_numbers = #tpu.dot_dimension_numbers<[1], [0], [0], [1], [0, 0, 1, 1], [], []>} : vector<16x128xf32>, vector<128x128xf32>, vector<16x128xf32> -> vector<16x128xf32>
    %167 = tpu.concatenate %150, %150, %150, %150, %150, %150, %150, %150 in 0 : vector<16x64xf32>, vector<16x64xf32>, vector<16x64xf32>, vector<16x64xf32>, vector<16x64xf32>, vector<16x64xf32>, vector<16x64xf32>, vector<16x64xf32> -> vector<128x64xf32>
    %168 = arith.mulf %167, %18 : vector<128x64xf32>
    %169 = arith.truncf %168 : vector<128x64xf32> to vector<128x64xbf16>
    %170 = arith.truncf %166 : vector<16x128xf32> to vector<16x128xbf16>
    %cst_69 = arith.constant dense<0.000000e+00> : vector<16x64xf32>
    %171 = tpu.matmul %170, %169, %cst_69 {dimension_numbers = #tpu.dot_dimension_numbers<[1], [0], [0], [1], [0, 0, 1, 1], [], []>} : vector<16x128xbf16>, vector<128x64xbf16>, vector<16x64xf32> -> vector<16x64xf32>
    %172 = vector.extract_strided_slice %30 {offsets = [96, 0], sizes = [16, 64], strides = [1, 1]} : vector<128x192xbf16> to vector<16x64xbf16>
    %173 = vector.extract_strided_slice %29 {offsets = [96, 128], sizes = [16, 64], strides = [1, 1]} : vector<128x192xf32> to vector<16x64xf32>
    %174 = vector.extract_strided_slice %33 {offsets = [0, 96], sizes = [64, 16], strides = [1, 1]} : vector<64x128xbf16> to vector<64x16xbf16>
    %cst_70 = arith.constant dense<0.000000e+00> : vector<64x128xf32>
    %175 = tpu.matmul %174, %16, %cst_70 {dimension_numbers = #tpu.dot_dimension_numbers<[1], [0], [0], [1], [0, 0, 1, 1], [], []>} : vector<64x16xbf16>, vector<16x128xbf16>, vector<64x128xf32> -> vector<64x128xf32>
    %176 = arith.mulf %175, %17 : vector<64x128xf32>
    %177 = arith.truncf %176 : vector<64x128xf32> to vector<64x128xbf16>
    %cst_71 = arith.constant dense<0.000000e+00> : vector<16x128xf32>
    %178 = tpu.matmul %172, %177, %cst_71 {dimension_numbers = #tpu.dot_dimension_numbers<[1], [0], [0], [1], [0, 0, 1, 1], [], []>} : vector<16x64xbf16>, vector<64x128xbf16>, vector<16x128xf32> -> vector<16x128xf32>
    %cst_72 = arith.constant dense<0.000000e+00> : vector<16x128xf32>
    %179 = tpu.matmul %178, %12, %cst_72 {dimension_numbers = #tpu.dot_dimension_numbers<[1], [0], [0], [1], [0, 0, 1, 1], [], []>} : vector<16x128xf32>, vector<128x128xf32>, vector<16x128xf32> -> vector<16x128xf32>
    %cst_73 = arith.constant dense<0xFF800000> : vector<16xf32>
    %180 = vector.multi_reduction <maximumf>, %179, %cst_73 [1] : vector<16x128xf32> to vector<16xf32>
    %181 = vector.shape_cast %180 : vector<16xf32> to vector<16x1xf32>
    %182 = vector.broadcast %181 : vector<16x1xf32> to vector<16x128xf32>
    %183 = arith.subf %179, %182 : vector<16x128xf32>
    %184 = math.exp %183 : vector<16x128xf32>
    %cst_74 = arith.constant dense<0.000000e+00> : vector<16x128xf32>
    %185 = tpu.matmul %184, %19, %cst_74 {dimension_numbers = #tpu.dot_dimension_numbers<[1], [0], [0], [1], [0, 0, 1, 1], [], []>} : vector<16x128xf32>, vector<128x128xf32>, vector<16x128xf32> -> vector<16x128xf32>
    %cst_75 = arith.constant 1.000000e-30 : f32
    %186 = vector.broadcast %cst_75 : f32 to vector<16x128xf32>
    %187 = arith.maximumf %185, %186 : vector<16x128xf32>
    %188 = arith.divf %184, %187 : vector<16x128xf32>
    %cst_76 = arith.constant dense<0.000000e+00> : vector<16x128xf32>
    %189 = tpu.matmul %188, %15, %cst_76 {dimension_numbers = #tpu.dot_dimension_numbers<[1], [0], [0], [1], [0, 0, 1, 1], [], []>} : vector<16x128xf32>, vector<128x128xf32>, vector<16x128xf32> -> vector<16x128xf32>
    %190 = tpu.concatenate %173, %173, %173, %173, %173, %173, %173, %173 in 0 : vector<16x64xf32>, vector<16x64xf32>, vector<16x64xf32>, vector<16x64xf32>, vector<16x64xf32>, vector<16x64xf32>, vector<16x64xf32>, vector<16x64xf32> -> vector<128x64xf32>
    %191 = arith.mulf %190, %18 : vector<128x64xf32>
    %192 = arith.truncf %191 : vector<128x64xf32> to vector<128x64xbf16>
    %193 = arith.truncf %189 : vector<16x128xf32> to vector<16x128xbf16>
    %cst_77 = arith.constant dense<0.000000e+00> : vector<16x64xf32>
    %194 = tpu.matmul %193, %192, %cst_77 {dimension_numbers = #tpu.dot_dimension_numbers<[1], [0], [0], [1], [0, 0, 1, 1], [], []>} : vector<16x128xbf16>, vector<128x64xbf16>, vector<16x64xf32> -> vector<16x64xf32>
    %195 = vector.extract_strided_slice %30 {offsets = [112, 0], sizes = [16, 64], strides = [1, 1]} : vector<128x192xbf16> to vector<16x64xbf16>
    %196 = vector.extract_strided_slice %29 {offsets = [112, 128], sizes = [16, 64], strides = [1, 1]} : vector<128x192xf32> to vector<16x64xf32>
    %197 = vector.extract_strided_slice %33 {offsets = [0, 112], sizes = [64, 16], strides = [1, 1]} : vector<64x128xbf16> to vector<64x16xbf16>
    %cst_78 = arith.constant dense<0.000000e+00> : vector<64x128xf32>
    %198 = tpu.matmul %197, %16, %cst_78 {dimension_numbers = #tpu.dot_dimension_numbers<[1], [0], [0], [1], [0, 0, 1, 1], [], []>} : vector<64x16xbf16>, vector<16x128xbf16>, vector<64x128xf32> -> vector<64x128xf32>
    %199 = arith.mulf %198, %17 : vector<64x128xf32>
    %200 = arith.truncf %199 : vector<64x128xf32> to vector<64x128xbf16>
    %cst_79 = arith.constant dense<0.000000e+00> : vector<16x128xf32>
    %201 = tpu.matmul %195, %200, %cst_79 {dimension_numbers = #tpu.dot_dimension_numbers<[1], [0], [0], [1], [0, 0, 1, 1], [], []>} : vector<16x64xbf16>, vector<64x128xbf16>, vector<16x128xf32> -> vector<16x128xf32>
    %cst_80 = arith.constant dense<0.000000e+00> : vector<16x128xf32>
    %202 = tpu.matmul %201, %12, %cst_80 {dimension_numbers = #tpu.dot_dimension_numbers<[1], [0], [0], [1], [0, 0, 1, 1], [], []>} : vector<16x128xf32>, vector<128x128xf32>, vector<16x128xf32> -> vector<16x128xf32>
    %cst_81 = arith.constant dense<0xFF800000> : vector<16xf32>
    %203 = vector.multi_reduction <maximumf>, %202, %cst_81 [1] : vector<16x128xf32> to vector<16xf32>
    %204 = vector.shape_cast %203 : vector<16xf32> to vector<16x1xf32>
    %205 = vector.broadcast %204 : vector<16x1xf32> to vector<16x128xf32>
    %206 = arith.subf %202, %205 : vector<16x128xf32>
    %207 = math.exp %206 : vector<16x128xf32>
    %cst_82 = arith.constant dense<0.000000e+00> : vector<16x128xf32>
    %208 = tpu.matmul %207, %19, %cst_82 {dimension_numbers = #tpu.dot_dimension_numbers<[1], [0], [0], [1], [0, 0, 1, 1], [], []>} : vector<16x128xf32>, vector<128x128xf32>, vector<16x128xf32> -> vector<16x128xf32>
    %cst_83 = arith.constant 1.000000e-30 : f32
    %209 = vector.broadcast %cst_83 : f32 to vector<16x128xf32>
    %210 = arith.maximumf %208, %209 : vector<16x128xf32>
    %211 = arith.divf %207, %210 : vector<16x128xf32>
    %cst_84 = arith.constant dense<0.000000e+00> : vector<16x128xf32>
    %212 = tpu.matmul %211, %15, %cst_84 {dimension_numbers = #tpu.dot_dimension_numbers<[1], [0], [0], [1], [0, 0, 1, 1], [], []>} : vector<16x128xf32>, vector<128x128xf32>, vector<16x128xf32> -> vector<16x128xf32>
    %213 = tpu.concatenate %196, %196, %196, %196, %196, %196, %196, %196 in 0 : vector<16x64xf32>, vector<16x64xf32>, vector<16x64xf32>, vector<16x64xf32>, vector<16x64xf32>, vector<16x64xf32>, vector<16x64xf32>, vector<16x64xf32> -> vector<128x64xf32>
    %214 = arith.mulf %213, %18 : vector<128x64xf32>
    %215 = arith.truncf %214 : vector<128x64xf32> to vector<128x64xbf16>
    %216 = arith.truncf %212 : vector<16x128xf32> to vector<16x128xbf16>
    %cst_85 = arith.constant dense<0.000000e+00> : vector<16x64xf32>
    %217 = tpu.matmul %216, %215, %cst_85 {dimension_numbers = #tpu.dot_dimension_numbers<[1], [0], [0], [1], [0, 0, 1, 1], [], []>} : vector<16x128xbf16>, vector<128x64xbf16>, vector<16x64xf32> -> vector<16x64xf32>
    %218 = tpu.concatenate %56, %79, %102, %125, %148, %171, %194, %217 in 0 : vector<16x64xf32>, vector<16x64xf32>, vector<16x64xf32>, vector<16x64xf32>, vector<16x64xf32>, vector<16x64xf32>, vector<16x64xf32>, vector<16x64xf32> -> vector<128x64xf32>
    %219 = arith.truncf %218 : vector<128x64xf32> to vector<128x64xbf16>
    %220 = arith.index_cast %arg1 : i32 to index
    %c0_86 = arith.constant 0 : index
    %c0_87 = arith.constant 0 : index
    %221 = vector.load %arg5[%220, %c0_86, %c0_87] : memref<2x64x64xbf16, #tpu.memory_space<vmem>>, vector<1x64x64xbf16>
    %222 = vector.shape_cast %221 : vector<1x64x64xbf16> to vector<64x64xbf16>
    %cst_88 = arith.constant dense<0.000000e+00> : vector<128x64xf32>
    %223 = tpu.matmul %219, %222, %cst_88 {dimension_numbers = #tpu.dot_dimension_numbers<[1], [0], [0], [1], [0, 0, 1, 1], [], []>} : vector<128x64xbf16>, vector<64x64xbf16>, vector<128x64xf32> -> vector<128x64xf32>
    %224 = vector.extract_strided_slice %6 {offsets = [0, 0], sizes = [1, 64], strides = [1, 1]} : vector<6x64xf32> to vector<1x64xf32>
    %225 = vector.broadcast %224 : vector<1x64xf32> to vector<128x64xf32>
    %226 = arith.addf %223, %225 : vector<128x64xf32>
    %227 = arith.addf %226, %3 : vector<128x64xf32>
    %228 = vector.extract_strided_slice %6 {offsets = [1, 0], sizes = [1, 64], strides = [1, 1]} : vector<6x64xf32> to vector<1x64xf32>
    %229 = vector.extract_strided_slice %6 {offsets = [2, 0], sizes = [1, 64], strides = [1, 1]} : vector<6x64xf32> to vector<1x64xf32>
    %cst_89 = arith.constant dense<0.000000e+00> : vector<128xf32>
    %230 = vector.multi_reduction <add>, %227, %cst_89 [1] : vector<128x64xf32> to vector<128xf32>
    %231 = vector.shape_cast %230 : vector<128xf32> to vector<128x1xf32>
    %cst_90 = arith.constant 6.400000e+01 : f32
    %232 = vector.broadcast %cst_90 : f32 to vector<128x1xf32>
    %233 = arith.divf %231, %232 : vector<128x1xf32>
    %234 = vector.broadcast %233 : vector<128x1xf32> to vector<128x64xf32>
    %235 = arith.subf %227, %234 : vector<128x64xf32>
    %236 = arith.mulf %235, %235 : vector<128x64xf32>
    %cst_91 = arith.constant dense<0.000000e+00> : vector<128xf32>
    %237 = vector.multi_reduction <add>, %236, %cst_91 [1] : vector<128x64xf32> to vector<128xf32>
    %238 = vector.shape_cast %237 : vector<128xf32> to vector<128x1xf32>
    %cst_92 = arith.constant 6.400000e+01 : f32
    %239 = vector.broadcast %cst_92 : f32 to vector<128x1xf32>
    %240 = arith.divf %238, %239 : vector<128x1xf32>
    %241 = vector.broadcast %233 : vector<128x1xf32> to vector<128x64xf32>
    %242 = arith.subf %227, %241 : vector<128x64xf32>
    %cst_93 = arith.constant 9.99999974E-6 : f32
    %243 = vector.broadcast %cst_93 : f32 to vector<128x1xf32>
    %244 = arith.addf %240, %243 : vector<128x1xf32>
    %245 = math.rsqrt %244 : vector<128x1xf32>
    %246 = vector.broadcast %245 : vector<128x1xf32> to vector<128x64xf32>
    %247 = arith.mulf %242, %246 : vector<128x64xf32>
    %248 = vector.broadcast %228 : vector<1x64xf32> to vector<128x64xf32>
    %249 = arith.mulf %247, %248 : vector<128x64xf32>
    %250 = vector.broadcast %229 : vector<1x64xf32> to vector<128x64xf32>
    %251 = arith.addf %249, %250 : vector<128x64xf32>
    %252 = arith.truncf %251 : vector<128x64xf32> to vector<128x64xbf16>
    %253 = arith.index_cast %arg1 : i32 to index
    %c0_94 = arith.constant 0 : index
    %c0_95 = arith.constant 0 : index
    %254 = vector.load %arg7[%253, %c0_94, %c0_95] : memref<2x64x128xbf16, #tpu.memory_space<vmem>>, vector<1x64x128xbf16>
    %255 = vector.shape_cast %254 : vector<1x64x128xbf16> to vector<64x128xbf16>
    %cst_96 = arith.constant dense<0.000000e+00> : vector<128x128xf32>
    %256 = tpu.matmul %252, %255, %cst_96 {dimension_numbers = #tpu.dot_dimension_numbers<[1], [0], [0], [1], [0, 0, 1, 1], [], []>} : vector<128x64xbf16>, vector<64x128xbf16>, vector<128x128xf32> -> vector<128x128xf32>
    %257 = vector.extract_strided_slice %9 {offsets = [0, 0], sizes = [1, 128], strides = [1, 1]} : vector<4x128xf32> to vector<1x128xf32>
    %258 = vector.broadcast %257 : vector<1x128xf32> to vector<128x128xf32>
    %259 = arith.addf %256, %258 : vector<128x128xf32>
    %260 = arith.index_cast %arg1 : i32 to index
    %c0_97 = arith.constant 0 : index
    %c0_98 = arith.constant 0 : index
    %261 = vector.load %arg8[%260, %c0_97, %c0_98] : memref<2x64x128xbf16, #tpu.memory_space<vmem>>, vector<1x64x128xbf16>
    %262 = vector.shape_cast %261 : vector<1x64x128xbf16> to vector<64x128xbf16>
    %cst_99 = arith.constant dense<0.000000e+00> : vector<128x128xf32>
    %263 = tpu.matmul %252, %262, %cst_99 {dimension_numbers = #tpu.dot_dimension_numbers<[1], [0], [0], [1], [0, 0, 1, 1], [], []>} : vector<128x64xbf16>, vector<64x128xbf16>, vector<128x128xf32> -> vector<128x128xf32>
    %264 = vector.extract_strided_slice %9 {offsets = [1, 0], sizes = [1, 128], strides = [1, 1]} : vector<4x128xf32> to vector<1x128xf32>
    %265 = vector.broadcast %264 : vector<1x128xf32> to vector<128x128xf32>
    %266 = arith.addf %263, %265 : vector<128x128xf32>
    %cst_100 = arith.constant 0.000000e+00 : f32
    %267 = vector.broadcast %cst_100 : f32 to vector<128x128xf32>
    %268 = arith.maximumf %259, %267 : vector<128x128xf32>
    %269 = arith.mulf %268, %266 : vector<128x128xf32>
    %270 = vector.extract_strided_slice %9 {offsets = [2, 0], sizes = [1, 128], strides = [1, 1]} : vector<4x128xf32> to vector<1x128xf32>
    %271 = vector.extract_strided_slice %9 {offsets = [3, 0], sizes = [1, 128], strides = [1, 1]} : vector<4x128xf32> to vector<1x128xf32>
    %cst_101 = arith.constant dense<0.000000e+00> : vector<128xf32>
    %272 = vector.multi_reduction <add>, %269, %cst_101 [1] : vector<128x128xf32> to vector<128xf32>
    %273 = vector.shape_cast %272 : vector<128xf32> to vector<128x1xf32>
    %cst_102 = arith.constant 1.280000e+02 : f32
    %274 = vector.broadcast %cst_102 : f32 to vector<128x1xf32>
    %275 = arith.divf %273, %274 : vector<128x1xf32>
    %276 = vector.broadcast %275 : vector<128x1xf32> to vector<128x128xf32>
    %277 = arith.subf %269, %276 : vector<128x128xf32>
    %278 = arith.mulf %277, %277 : vector<128x128xf32>
    %cst_103 = arith.constant dense<0.000000e+00> : vector<128xf32>
    %279 = vector.multi_reduction <add>, %278, %cst_103 [1] : vector<128x128xf32> to vector<128xf32>
    %280 = vector.shape_cast %279 : vector<128xf32> to vector<128x1xf32>
    %cst_104 = arith.constant 1.280000e+02 : f32
    %281 = vector.broadcast %cst_104 : f32 to vector<128x1xf32>
    %282 = arith.divf %280, %281 : vector<128x1xf32>
    %283 = vector.broadcast %275 : vector<128x1xf32> to vector<128x128xf32>
    %284 = arith.subf %269, %283 : vector<128x128xf32>
    %cst_105 = arith.constant 9.99999974E-6 : f32
    %285 = vector.broadcast %cst_105 : f32 to vector<128x1xf32>
    %286 = arith.addf %282, %285 : vector<128x1xf32>
    %287 = math.rsqrt %286 : vector<128x1xf32>
    %288 = vector.broadcast %287 : vector<128x1xf32> to vector<128x128xf32>
    %289 = arith.mulf %284, %288 : vector<128x128xf32>
    %290 = vector.broadcast %270 : vector<1x128xf32> to vector<128x128xf32>
    %291 = arith.mulf %289, %290 : vector<128x128xf32>
    %292 = vector.broadcast %271 : vector<1x128xf32> to vector<128x128xf32>
    %293 = arith.addf %291, %292 : vector<128x128xf32>
    %294 = arith.truncf %293 : vector<128x128xf32> to vector<128x128xbf16>
    %295 = arith.index_cast %arg1 : i32 to index
    %c0_106 = arith.constant 0 : index
    %c0_107 = arith.constant 0 : index
    %296 = vector.load %arg9[%295, %c0_106, %c0_107] : memref<2x128x64xbf16, #tpu.memory_space<vmem>>, vector<1x128x64xbf16>
    %297 = vector.shape_cast %296 : vector<1x128x64xbf16> to vector<128x64xbf16>
    %cst_108 = arith.constant dense<0.000000e+00> : vector<128x64xf32>
    %298 = tpu.matmul %294, %297, %cst_108 {dimension_numbers = #tpu.dot_dimension_numbers<[1], [0], [0], [1], [0, 0, 1, 1], [], []>} : vector<128x128xbf16>, vector<128x64xbf16>, vector<128x64xf32> -> vector<128x64xf32>
    %299 = vector.extract_strided_slice %6 {offsets = [3, 0], sizes = [1, 64], strides = [1, 1]} : vector<6x64xf32> to vector<1x64xf32>
    %300 = vector.broadcast %299 : vector<1x64xf32> to vector<128x64xf32>
    %301 = arith.addf %298, %300 : vector<128x64xf32>
    %302 = arith.addf %301, %251 : vector<128x64xf32>
    %303 = vector.extract_strided_slice %6 {offsets = [4, 0], sizes = [1, 64], strides = [1, 1]} : vector<6x64xf32> to vector<1x64xf32>
    %304 = vector.extract_strided_slice %6 {offsets = [5, 0], sizes = [1, 64], strides = [1, 1]} : vector<6x64xf32> to vector<1x64xf32>
    %cst_109 = arith.constant dense<0.000000e+00> : vector<128xf32>
    %305 = vector.multi_reduction <add>, %302, %cst_109 [1] : vector<128x64xf32> to vector<128xf32>
    %306 = vector.shape_cast %305 : vector<128xf32> to vector<128x1xf32>
    %cst_110 = arith.constant 6.400000e+01 : f32
    %307 = vector.broadcast %cst_110 : f32 to vector<128x1xf32>
    %308 = arith.divf %306, %307 : vector<128x1xf32>
    %309 = vector.broadcast %308 : vector<128x1xf32> to vector<128x64xf32>
    %310 = arith.subf %302, %309 : vector<128x64xf32>
    %311 = arith.mulf %310, %310 : vector<128x64xf32>
    %cst_111 = arith.constant dense<0.000000e+00> : vector<128xf32>
    %312 = vector.multi_reduction <add>, %311, %cst_111 [1] : vector<128x64xf32> to vector<128xf32>
    %313 = vector.shape_cast %312 : vector<128xf32> to vector<128x1xf32>
    %cst_112 = arith.constant 6.400000e+01 : f32
    %314 = vector.broadcast %cst_112 : f32 to vector<128x1xf32>
    %315 = arith.divf %313, %314 : vector<128x1xf32>
    %316 = vector.broadcast %308 : vector<128x1xf32> to vector<128x64xf32>
    %317 = arith.subf %302, %316 : vector<128x64xf32>
    %cst_113 = arith.constant 9.99999974E-6 : f32
    %318 = vector.broadcast %cst_113 : f32 to vector<128x1xf32>
    %319 = arith.addf %315, %318 : vector<128x1xf32>
    %320 = math.rsqrt %319 : vector<128x1xf32>
    %321 = vector.broadcast %320 : vector<128x1xf32> to vector<128x64xf32>
    %322 = arith.mulf %317, %321 : vector<128x64xf32>
    %323 = vector.broadcast %303 : vector<1x64xf32> to vector<128x64xf32>
    %324 = arith.mulf %322, %323 : vector<128x64xf32>
    %325 = vector.broadcast %304 : vector<1x64xf32> to vector<128x64xf32>
    %326 = arith.addf %324, %325 : vector<128x64xf32>
    %c0_114 = arith.constant 0 : index
    %c0_115 = arith.constant 0 : index
    %327 = vector.load %arg17[%c0_114, %c0_115] : memref<128x64xf32, #tpu.memory_space<vmem>>, vector<128x64xf32>
    tpu.vector_store %arg17[%c0_114, %c0_115], %326 {strides = array<i32>} : memref<128x64xf32, #tpu.memory_space<vmem>>, vector<128x64xf32>,
    return
  }
  func.func @transform_0(%arg0: i32, %arg1: i32) -> (i32, i32) {
    %c0_i32 = arith.constant 0 : i32
    %c0_i32_0 = arith.constant 0 : i32
    return %arg0, %c0_i32 : i32, i32
  }
  func.func @transform_1(%arg0: i32, %arg1: i32) -> (i32, i32, i32) {
    %c0_i32 = arith.constant 0 : i32
    %c0_i32_0 = arith.constant 0 : i32
    %c0_i32_1 = arith.constant 0 : i32
    %c0_i32_2 = arith.constant 0 : i32
    return %c0_i32, %c0_i32_0, %c0_i32_1 : i32, i32, i32
  }
  func.func @transform_2(%arg0: i32, %arg1: i32) -> (i32, i32, i32) {
    %c0_i32 = arith.constant 0 : i32
    %c0_i32_0 = arith.constant 0 : i32
    %c0_i32_1 = arith.constant 0 : i32
    %c0_i32_2 = arith.constant 0 : i32
    return %c0_i32, %c0_i32_0, %c0_i32_1 : i32, i32, i32
  }
  func.func @transform_3(%arg0: i32, %arg1: i32) -> (i32, i32, i32) {
    %c0_i32 = arith.constant 0 : i32
    %c0_i32_0 = arith.constant 0 : i32
    %c0_i32_1 = arith.constant 0 : i32
    %c0_i32_2 = arith.constant 0 : i32
    return %c0_i32, %c0_i32_0, %c0_i32_1 : i32, i32, i32
  }
  func.func @transform_4(%arg0: i32, %arg1: i32) -> (i32, i32, i32) {
    %c0_i32 = arith.constant 0 : i32
    %c0_i32_0 = arith.constant 0 : i32
    %c0_i32_1 = arith.constant 0 : i32
    %c0_i32_2 = arith.constant 0 : i32
    return %c0_i32, %c0_i32_0, %c0_i32_1 : i32, i32, i32
  }
  func.func @transform_5(%arg0: i32, %arg1: i32) -> (i32, i32, i32) {
    %c0_i32 = arith.constant 0 : i32
    %c0_i32_0 = arith.constant 0 : i32
    %c0_i32_1 = arith.constant 0 : i32
    %c0_i32_2 = arith.constant 0 : i32
    return %c0_i32, %c0_i32_0, %c0_i32_1 : i32, i32, i32
  }
  func.func @transform_6(%arg0: i32, %arg1: i32) -> (i32, i32, i32) {
    %c0_i32 = arith.constant 0 : i32
    %c0_i32_0 = arith.constant 0 : i32
    %c0_i32_1 = arith.constant 0 : i32
    %c0_i32_2 = arith.constant 0 : i32
    return %c0_i32, %c0_i32_0, %c0_i32_1 : i32, i32, i32
  }
  func.func @transform_7(%arg0: i32, %arg1: i32) -> (i32, i32, i32) {
    %c0_i32 = arith.constant 0 : i32
    %c0_i32_0 = arith.constant 0 : i32
    %c0_i32_1 = arith.constant 0 : i32
    %c0_i32_2 = arith.constant 0 : i32
    return %c0_i32, %c0_i32_0, %c0_i32_1 : i32, i32, i32
  }
  func.func @transform_8(%arg0: i32, %arg1: i32) -> (i32, i32, i32) {
    %c0_i32 = arith.constant 0 : i32
    %c0_i32_0 = arith.constant 0 : i32
    %c0_i32_1 = arith.constant 0 : i32
    %c0_i32_2 = arith.constant 0 : i32
    return %c0_i32, %c0_i32_0, %c0_i32_1 : i32, i32, i32
  }
  func.func @transform_9(%arg0: i32, %arg1: i32) -> (i32, i32, i32) {
    %c0_i32 = arith.constant 0 : i32
    %c0_i32_0 = arith.constant 0 : i32
    %c0_i32_1 = arith.constant 0 : i32
    %c0_i32_2 = arith.constant 0 : i32
    return %c0_i32, %c0_i32_0, %c0_i32_1 : i32, i32, i32
  }
  func.func @transform_10(%arg0: i32, %arg1: i32) -> (i32, i32, i32) {
    %c0_i32 = arith.constant 0 : i32
    %c0_i32_0 = arith.constant 0 : i32
    %c0_i32_1 = arith.constant 0 : i32
    %c0_i32_2 = arith.constant 0 : i32
    return %c0_i32, %c0_i32_0, %c0_i32_1 : i32, i32, i32
  }
  func.func @transform_11(%arg0: i32, %arg1: i32) -> (i32, i32) {
    %c0_i32 = arith.constant 0 : i32
    %c0_i32_0 = arith.constant 0 : i32
    %c0_i32_1 = arith.constant 0 : i32
    return %c0_i32, %c0_i32_0 : i32, i32
  }
  func.func @transform_12(%arg0: i32, %arg1: i32) -> (i32, i32) {
    %c0_i32 = arith.constant 0 : i32
    %c0_i32_0 = arith.constant 0 : i32
    %c0_i32_1 = arith.constant 0 : i32
    return %c0_i32, %c0_i32_0 : i32, i32
  }
  func.func @transform_13(%arg0: i32, %arg1: i32) -> (i32, i32) {
    %c0_i32 = arith.constant 0 : i32
    %c0_i32_0 = arith.constant 0 : i32
    %c0_i32_1 = arith.constant 0 : i32
    return %c0_i32, %c0_i32_0 : i32, i32
  }
  func.func @transform_14(%arg0: i32, %arg1: i32) -> (i32, i32) {
    %c0_i32 = arith.constant 0 : i32
    %c0_i32_0 = arith.constant 0 : i32
    %c0_i32_1 = arith.constant 0 : i32
    return %c0_i32, %c0_i32_0 : i32, i32
  }
  func.func @transform_15(%arg0: i32, %arg1: i32) -> (i32, i32) {
    %c0_i32 = arith.constant 0 : i32
    %c0_i32_0 = arith.constant 0 : i32
    return %arg0, %c0_i32 : i32, i32
  }
}

</mosaic_0001>

<llo_original>
// kernel: transformer_forward.1
$region0: #{transformer_forward.1}
  #allocation0 [shape = 'u32[]', space=smem, size = 0x4, offset = 0x4, fixed_abs, tag = 'smem constant byte address 0x4 - core index']
  #allocation1 [shape = 'u32[144,128]{1,0:T(1,128)}', space=vmem, size = 0x12000, scoped, tag = 'internal scratch']
  %s0 = inlined_call_operand.vmem [shape: f32[256,64], index: 0, kind: input, shape index: {}]
  %s1 = inlined_call_operand.vmem [shape: bf16[2,64,192], index: 1, kind: input, shape index: {}]
  %s2 = inlined_call_operand.vmem [shape: f32[2,1,192], index: 2, kind: input, shape index: {}]
  %s3 = inlined_call_operand.vmem [shape: bf16[2,64,64], index: 3, kind: input, shape index: {}]
  %s4 = inlined_call_operand.vmem [shape: f32[2,6,64], index: 4, kind: input, shape index: {}]
  %s5 = inlined_call_operand.vmem [shape: bf16[2,64,128], index: 5, kind: input, shape index: {}]
  %s6 = inlined_call_operand.vmem [shape: bf16[2,64,128], index: 6, kind: input, shape index: {}]
  %s7 = inlined_call_operand.vmem [shape: bf16[2,128,64], index: 7, kind: input, shape index: {}]
  %s8 = inlined_call_operand.vmem [shape: f32[2,4,128], index: 8, kind: input, shape index: {}]
  %s9 = inlined_call_operand.vmem [shape: f32[2,128,128], index: 9, kind: input, shape index: {}]
  %s10 = inlined_call_operand.vmem [shape: f32[2,128,128], index: 10, kind: input, shape index: {}]
  %s11 = inlined_call_operand.vmem [shape: bf16[16,128], index: 11, kind: input, shape index: {}]
  %s12 = inlined_call_operand.vmem [shape: f32[64,128], index: 12, kind: input, shape index: {}]
  %s13 = inlined_call_operand.vmem [shape: f32[128,64], index: 13, kind: input, shape index: {}]
  %s14 = inlined_call_operand.vmem [shape: f32[128,128], index: 14, kind: input, shape index: {}]
  %s15 = inlined_call_operand.hbm [shape: f32[256,64], index: 15, kind: output, shape index: {}]
  %s16 = sld [smem:[#allocation0]]
  $region97: #{transformer_forward.1} parent=0
    _
  %s18 = ssub.s32 1, %s16
  %s19 = scalar_select 0, %s18, %s16
  $region1: #{transformer_forward.1} parent=0
    #allocation2 [shape = 'u8[131072]{0}', space=vmem, size = 0x20000, scoped, tag = 'output window, operand 0']
    #allocation3 [shape = 's32[2]{0}', space=sflag, size = 0x8, scoped, tag = 'scoped memory for transformer_forward.1']
    %20 = vsyncpa [#allocation3], 0
    %s21 = scalar_lea.sflag [#allocation3], 1
    %22 = vsyncpa %s21, 0
    loop: start=0, step=1, limit=6
    $region2: #{transformer_forward.1} parent=1 // loop_pre_header
      _
    $region3: #{transformer_forward.1} parent=1 // loop_header
      %s24 = sphi 0, %s28
      %p25 = scmp.ge.s32.totalorder %s24, 6
      %s31 = sphi 0, %s43
      %s32 = sphi 0, %s39
      %s33 = sphi 0, %s31
      %s34 = sphi 0, %s32
      %s35 = sphi 0, %s33
      %s36 = sphi 0, %s34
      %s46 = sphi 0, %s48
      %s49 = sphi 0, %s46
      %s50 = sphi 0, %s49
      %s66 = sphi 0, %s50
      %s70 = sphi 0, %s70
      %s72 = sphi 0, %s70
      %s73 = sphi 0, %s72
      %s87 = sphi 0, %s73
      %s91 = sphi 0, %s91
      %s93 = sphi 0, %s91
      %s94 = sphi 0, %s93
      %s108 = sphi 0, %s94
      %s112 = sphi 0, %s112
      %s114 = sphi 0, %s112
      %s115 = sphi 0, %s114
      %s129 = sphi 0, %s115
      %s133 = sphi 0, %s133
      %s135 = sphi 0, %s133
      %s136 = sphi 0, %s135
      %s150 = sphi 0, %s136
      %s154 = sphi 0, %s154
      %s156 = sphi 0, %s154
      %s157 = sphi 0, %s156
      %s171 = sphi 0, %s157
      %s175 = sphi 0, %s175
      %s177 = sphi 0, %s175
      %s178 = sphi 0, %s177
      %s192 = sphi 0, %s178
      %s196 = sphi 0, %s196
      %s198 = sphi 0, %s196
      %s199 = sphi 0, %s198
      %s213 = sphi 0, %s199
      %s217 = sphi 0, %s217
      %s219 = sphi 0, %s217
      %s220 = sphi 0, %s219
      %s234 = sphi 0, %s220
      %s238 = sphi 0, %s238
      %s240 = sphi 0, %s238
      %s241 = sphi 0, %s240
      %s255 = sphi 0, %s241
      %s259 = sphi 0, %s259
      %s261 = sphi 0, %s259
      %s262 = sphi 0, %s261
      %s276 = sphi 0, %s262
      %s280 = sphi 0, %s280
      %s282 = sphi 0, %s280
      %s283 = sphi 0, %s282
      %s297 = sphi 0, %s283
      %s301 = sphi 0, %s301
      %s303 = sphi 0, %s301
      %s304 = sphi 0, %s303
      %s318 = sphi 0, %s304
      %s322 = sphi 0, %s322
      %s324 = sphi 0, %s322
      %s325 = sphi 0, %s324
      %s339 = sphi 0, %s325
      %s343 = sphi 0, %s343
      %s345 = sphi 0, %s343
      %s346 = sphi 0, %s345
      %s360 = sphi 0, %s346
      %s366 = sphi 0, %s368
      %s369 = sphi 0, %s366
      %s370 = sphi 0, %s369
      %s386 = sphi 0, %s370
    $region4: #{transformer_forward.1} parent=1 // loop_header_branch
      %27 = sbr.rel (%p25) target = $region8
    $region5: #{transformer_forward.1} parent=1 // loop_body
      %s29 = ssub.s32 %s24, 1
      %s30 = ssub.s32 %s24, 2
      %s37 = sadd.s32 1, %s32
      %p38 = scmp.ge.s32.totalorder %s37, 2
      %s39 = scalar_select %p38, 0, %s37
      %s40 = sadd.s32 1, %s31
      %s41 = scalar_select %p38, %s40, %s31
      %p42 = scmp.ge.s32.totalorder %s41, 2
      %s43 = scalar_select %p42, 0, %s41
      %s44 = ssub.s32 %s31, %s43
      %p45 = scmp.eq.s32.totalorder %s44, 0
      %s47 = sadd.s32 %s46, 1
      %s48 = scalar_select %p45, %s46, %s47
      %p51 = pneg %p45
      %p52 = scmp.eq.s32.totalorder %s24, 3
      %p53 = por %p51, %p52
      %p54 = scmp.ne.s32.totalorder %s46, %s49
      %p55 = scmp.eq.s32.totalorder %s24, 0
      %p56 = por %p54, %p55
      %p57 = scmp.ne.s32.totalorder %s46, %s49
      %p58 = scmp.eq.s32.totalorder %s29, 3
      %p59 = por %p57, %p58
      %p60 = scmp.ne.s32.totalorder %s49, %s50
      %p61 = scmp.eq.s32.totalorder %s29, 0
      %p62 = por %p60, %p61
      %p63 = scmp.ne.s32.totalorder %s49, %s50
      %p64 = scmp.eq.s32.totalorder %s30, 3
      %p65 = por %p63, %p64
      %p67 = scmp.ne.s32.totalorder %s50, %s66
      %p68 = scmp.eq.s32.totalorder %s30, 0
      %p69 = por %p67, %p68
      %s71 = sadd.s32 %s70, 1
      %p74 = scmp.eq.s32.totalorder %s24, 3
      %p75 = scmp.ne.s32.totalorder %s70, %s72
      %p76 = scmp.eq.s32.totalorder %s24, 0
      %p77 = por %p75, %p76
      %p78 = scmp.ne.s32.totalorder %s70, %s72
      %p79 = scmp.eq.s32.totalorder %s29, 3
      %p80 = por %p78, %p79
      %p81 = scmp.ne.s32.totalorder %s72, %s73
      %p82 = scmp.eq.s32.totalorder %s29, 0
      %p83 = por %p81, %p82
      %p84 = scmp.ne.s32.totalorder %s72, %s73
      %p85 = scmp.eq.s32.totalorder %s30, 3
      %p86 = por %p84, %p85
      %p88 = scmp.ne.s32.totalorder %s73, %s87
      %p89 = scmp.eq.s32.totalorder %s30, 0
      %p90 = por %p88, %p89
      %s92 = sadd.s32 %s91, 1
      %p95 = scmp.eq.s32.totalorder %s24, 3
      %p96 = scmp.ne.s32.totalorder %s91, %s93
      %p97 = scmp.eq.s32.totalorder %s24, 0
      %p98 = por %p96, %p97
      %p99 = scmp.ne.s32.totalorder %s91, %s93
      %p100 = scmp.eq.s32.totalorder %s29, 3
      %p101 = por %p99, %p100
      %p102 = scmp.ne.s32.totalorder %s93, %s94
      %p103 = scmp.eq.s32.totalorder %s29, 0
      %p104 = por %p102, %p103
      %p105 = scmp.ne.s32.totalorder %s93, %s94
      %p106 = scmp.eq.s32.totalorder %s30, 3
      %p107 = por %p105, %p106
      %p109 = scmp.ne.s32.totalorder %s94, %s108
      %p110 = scmp.eq.s32.totalorder %s30, 0
      %p111 = por %p109, %p110
      %s113 = sadd.s32 %s112, 1
      %p116 = scmp.eq.s32.totalorder %s24, 3
      %p117 = scmp.ne.s32.totalorder %s112, %s114
      %p118 = scmp.eq.s32.totalorder %s24, 0
      %p119 = por %p117, %p118
      %p120 = scmp.ne.s32.totalorder %s112, %s114
      %p121 = scmp.eq.s32.totalorder %s29, 3
      %p122 = por %p120, %p121
      %p123 = scmp.ne.s32.totalorder %s114, %s115
      %p124 = scmp.eq.s32.totalorder %s29, 0
      %p125 = por %p123, %p124
      %p126 = scmp.ne.s32.totalorder %s114, %s115
      %p127 = scmp.eq.s32.totalorder %s30, 3
      %p128 = por %p126, %p127
      %p130 = scmp.ne.s32.totalorder %s115, %s129
      %p131 = scmp.eq.s32.totalorder %s30, 0
      %p132 = por %p130, %p131
      %s134 = sadd.s32 %s133, 1
      %p137 = scmp.eq.s32.totalorder %s24, 3
      %p138 = scmp.ne.s32.totalorder %s133, %s135
      %p139 = scmp.eq.s32.totalorder %s24, 0
      %p140 = por %p138, %p139
      %p141 = scmp.ne.s32.totalorder %s133, %s135
      %p142 = scmp.eq.s32.totalorder %s29, 3
      %p143 = por %p141, %p142
      %p144 = scmp.ne.s32.totalorder %s135, %s136
      %p145 = scmp.eq.s32.totalorder %s29, 0
      %p146 = por %p144, %p145
      %p147 = scmp.ne.s32.totalorder %s135, %s136
      %p148 = scmp.eq.s32.totalorder %s30, 3
      %p149 = por %p147, %p148
      %p151 = scmp.ne.s32.totalorder %s136, %s150
      %p152 = scmp.eq.s32.totalorder %s30, 0
      %p153 = por %p151, %p152
      %s155 = sadd.s32 %s154, 1
      %p158 = scmp.eq.s32.totalorder %s24, 3
      %p159 = scmp.ne.s32.totalorder %s154, %s156
      %p160 = scmp.eq.s32.totalorder %s24, 0
      %p161 = por %p159, %p160
      %p162 = scmp.ne.s32.totalorder %s154, %s156
      %p163 = scmp.eq.s32.totalorder %s29, 3
      %p164 = por %p162, %p163
      %p165 = scmp.ne.s32.totalorder %s156, %s157
      %p166 = scmp.eq.s32.totalorder %s29, 0
      %p167 = por %p165, %p166
      %p168 = scmp.ne.s32.totalorder %s156, %s157
      %p169 = scmp.eq.s32.totalorder %s30, 3
      %p170 = por %p168, %p169
      %p172 = scmp.ne.s32.totalorder %s157, %s171
      %p173 = scmp.eq.s32.totalorder %s30, 0
      %p174 = por %p172, %p173
      %s176 = sadd.s32 %s175, 1
      %p179 = scmp.eq.s32.totalorder %s24, 3
      %p180 = scmp.ne.s32.totalorder %s175, %s177
      %p181 = scmp.eq.s32.totalorder %s24, 0
      %p182 = por %p180, %p181
      %p183 = scmp.ne.s32.totalorder %s175, %s177
      %p184 = scmp.eq.s32.totalorder %s29, 3
      %p185 = por %p183, %p184
      %p186 = scmp.ne.s32.totalorder %s177, %s178
      %p187 = scmp.eq.s32.totalorder %s29, 0
      %p188 = por %p186, %p187
      %p189 = scmp.ne.s32.totalorder %s177, %s178
      %p190 = scmp.eq.s32.totalorder %s30, 3
      %p191 = por %p189, %p190
      %p193 = scmp.ne.s32.totalorder %s178, %s192
      %p194 = scmp.eq.s32.totalorder %s30, 0
      %p195 = por %p193, %p194
      %s197 = sadd.s32 %s196, 1
      %p200 = scmp.eq.s32.totalorder %s24, 3
      %p201 = scmp.ne.s32.totalorder %s196, %s198
      %p202 = scmp.eq.s32.totalorder %s24, 0
      %p203 = por %p201, %p202
      %p204 = scmp.ne.s32.totalorder %s196, %s198
      %p205 = scmp.eq.s32.totalorder %s29, 3
      %p206 = por %p204, %p205
      %p207 = scmp.ne.s32.totalorder %s198, %s199
      %p208 = scmp.eq.s32.totalorder %s29, 0
      %p209 = por %p207, %p208
      %p210 = scmp.ne.s32.totalorder %s198, %s199
      %p211 = scmp.eq.s32.totalorder %s30, 3
      %p212 = por %p210, %p211
      %p214 = scmp.ne.s32.totalorder %s199, %s213
      %p215 = scmp.eq.s32.totalorder %s30, 0
      %p216 = por %p214, %p215
      %s218 = sadd.s32 %s217, 1
      %p221 = scmp.eq.s32.totalorder %s24, 3
      %p222 = scmp.ne.s32.totalorder %s217, %s219
      %p223 = scmp.eq.s32.totalorder %s24, 0
      %p224 = por %p222, %p223
      %p225 = scmp.ne.s32.totalorder %s217, %s219
      %p226 = scmp.eq.s32.totalorder %s29, 3
      %p227 = por %p225, %p226
      %p228 = scmp.ne.s32.totalorder %s219, %s220
      %p229 = scmp.eq.s32.totalorder %s29, 0
      %p230 = por %p228, %p229
      %p231 = scmp.ne.s32.totalorder %s219, %s220
      %p232 = scmp.eq.s32.totalorder %s30, 3
      %p233 = por %p231, %p232
      %p235 = scmp.ne.s32.totalorder %s220, %s234
      %p236 = scmp.eq.s32.totalorder %s30, 0
      %p237 = por %p235, %p236
      %s239 = sadd.s32 %s238, 1
      %p242 = scmp.eq.s32.totalorder %s24, 3
      %p243 = scmp.ne.s32.totalorder %s238, %s240
      %p244 = scmp.eq.s32.totalorder %s24, 0
      %p245 = por %p243, %p244
      %p246 = scmp.ne.s32.totalorder %s238, %s240
      %p247 = scmp.eq.s32.totalorder %s29, 3
      %p248 = por %p246, %p247
      %p249 = scmp.ne.s32.totalorder %s240, %s241
      %p250 = scmp.eq.s32.totalorder %s29, 0
      %p251 = por %p249, %p250
      %p252 = scmp.ne.s32.totalorder %s240, %s241
      %p253 = scmp.eq.s32.totalorder %s30, 3
      %p254 = por %p252, %p253
      %p256 = scmp.ne.s32.totalorder %s241, %s255
      %p257 = scmp.eq.s32.totalorder %s30, 0
      %p258 = por %p256, %p257
      %s260 = sadd.s32 %s259, 1
      %p263 = scmp.eq.s32.totalorder %s24, 3
      %p264 = scmp.ne.s32.totalorder %s259, %s261
      %p265 = scmp.eq.s32.totalorder %s24, 0
      %p266 = por %p264, %p265
      %p267 = scmp.ne.s32.totalorder %s259, %s261
      %p268 = scmp.eq.s32.totalorder %s29, 3
      %p269 = por %p267, %p268
      %p270 = scmp.ne.s32.totalorder %s261, %s262
      %p271 = scmp.eq.s32.totalorder %s29, 0
      %p272 = por %p270, %p271
      %p273 = scmp.ne.s32.totalorder %s261, %s262
      %p274 = scmp.eq.s32.totalorder %s30, 3
      %p275 = por %p273, %p274
      %p277 = scmp.ne.s32.totalorder %s262, %s276
      %p278 = scmp.eq.s32.totalorder %s30, 0
      %p279 = por %p277, %p278
      %s281 = sadd.s32 %s280, 1
      %p284 = scmp.eq.s32.totalorder %s24, 3
      %p285 = scmp.ne.s32.totalorder %s280, %s282
      %p286 = scmp.eq.s32.totalorder %s24, 0
      %p287 = por %p285, %p286
      %p288 = scmp.ne.s32.totalorder %s280, %s282
      %p289 = scmp.eq.s32.totalorder %s29, 3
      %p290 = por %p288, %p289
      %p291 = scmp.ne.s32.totalorder %s282, %s283
      %p292 = scmp.eq.s32.totalorder %s29, 0
      %p293 = por %p291, %p292
      %p294 = scmp.ne.s32.totalorder %s282, %s283
      %p295 = scmp.eq.s32.totalorder %s30, 3
      %p296 = por %p294, %p295
      %p298 = scmp.ne.s32.totalorder %s283, %s297
      %p299 = scmp.eq.s32.totalorder %s30, 0
      %p300 = por %p298, %p299
      %s302 = sadd.s32 %s301, 1
      %p305 = scmp.eq.s32.totalorder %s24, 3
      %p306 = scmp.ne.s32.totalorder %s301, %s303
      %p307 = scmp.eq.s32.totalorder %s24, 0
      %p308 = por %p306, %p307
      %p309 = scmp.ne.s32.totalorder %s301, %s303
      %p310 = scmp.eq.s32.totalorder %s29, 3
      %p311 = por %p309, %p310
      %p312 = scmp.ne.s32.totalorder %s303, %s304
      %p313 = scmp.eq.s32.totalorder %s29, 0
      %p314 = por %p312, %p313
      %p315 = scmp.ne.s32.totalorder %s303, %s304
      %p316 = scmp.eq.s32.totalorder %s30, 3
      %p317 = por %p315, %p316
      %p319 = scmp.ne.s32.totalorder %s304, %s318
      %p320 = scmp.eq.s32.totalorder %s30, 0
      %p321 = por %p319, %p320
      %s323 = sadd.s32 %s322, 1
      %p326 = scmp.eq.s32.totalorder %s24, 3
      %p327 = scmp.ne.s32.totalorder %s322, %s324
      %p328 = scmp.eq.s32.totalorder %s24, 0
      %p329 = por %p327, %p328
      %p330 = scmp.ne.s32.totalorder %s322, %s324
      %p331 = scmp.eq.s32.totalorder %s29, 3
      %p332 = por %p330, %p331
      %p333 = scmp.ne.s32.totalorder %s324, %s325
      %p334 = scmp.eq.s32.totalorder %s29, 0
      %p335 = por %p333, %p334
      %p336 = scmp.ne.s32.totalorder %s324, %s325
      %p337 = scmp.eq.s32.totalorder %s30, 3
      %p338 = por %p336, %p337
      %p340 = scmp.ne.s32.totalorder %s325, %s339
      %p341 = scmp.eq.s32.totalorder %s30, 0
      %p342 = por %p340, %p341
      %s344 = sadd.s32 %s343, 1
      %p347 = scmp.eq.s32.totalorder %s24, 3
      %p348 = scmp.ne.s32.totalorder %s343, %s345
      %p349 = scmp.eq.s32.totalorder %s24, 0
      %p350 = por %p348, %p349
      %p351 = scmp.ne.s32.totalorder %s343, %s345
      %p352 = scmp.eq.s32.totalorder %s29, 3
      %p353 = por %p351, %p352
      %p354 = scmp.ne.s32.totalorder %s345, %s346
      %p355 = scmp.eq.s32.totalorder %s29, 0
      %p356 = por %p354, %p355
      %p357 = scmp.ne.s32.totalorder %s345, %s346
      %p358 = scmp.eq.s32.totalorder %s30, 3
      %p359 = por %p357, %p358
      %p361 = scmp.ne.s32.totalorder %s346, %s360
      %p362 = scmp.eq.s32.totalorder %s30, 0
      %p363 = por %p361, %p362
      %s364 = ssub.s32 %s31, %s43
      %p365 = scmp.eq.s32.totalorder %s364, 0
      %s367 = sadd.s32 %s366, 1
      %s368 = scalar_select %p365, %s366, %s367
      %p371 = pneg %p365
      %p372 = scmp.eq.s32.totalorder %s24, 3
      %p373 = por %p371, %p372
      %p374 = scmp.ne.s32.totalorder %s366, %s369
      %p375 = scmp.eq.s32.totalorder %s24, 0
      %p376 = por %p374, %p375
      %p377 = scmp.ne.s32.totalorder %s366, %s369
      %p378 = scmp.eq.s32.totalorder %s29, 3
      %p379 = por %p377, %p378
      %p380 = scmp.ne.s32.totalorder %s369, %s370
      %p381 = scmp.eq.s32.totalorder %s29, 0
      %p382 = por %p380, %p381
      %p383 = scmp.ne.s32.totalorder %s369, %s370
      %p384 = scmp.eq.s32.totalorder %s30, 3
      %p385 = por %p383, %p384
      %p387 = scmp.ne.s32.totalorder %s370, %s386
      %p388 = scmp.eq.s32.totalorder %s30, 0
      %p389 = por %p387, %p388
      %p390 = scmp.le.s32.totalorder 1, %s24
      %p391 = scmp.lt.s32.totalorder %s24, 5
      %p392 = pnand %p390, %p391
      %p393 = pneg %p392
      // Predicated region
      $region9: #{transformer_forward.1} parent=5 // pred_check
        _
      $region10: #{transformer_forward.1} parent=5 // pred_check_branch
        %395 = sbr.rel (%p392) target = $region12
      $region11: #{transformer_forward.1} parent=5 // pred_region
        %s396 = ssub.s32 %s24, 1
        // Predicated region
        $region13: #{transformer_forward.1} parent=11 // pred_check
          %p397 = pneg %p83
        $region14: #{transformer_forward.1} parent=11 // pred_check_branch
          %399 = sbr.rel (%p397) target = $region16
        $region15: #{transformer_forward.1} parent=11 // pred_region
          _
        $region16: #{transformer_forward.1} parent=11 // pred_fallthru
          _
        // Predicated region
        $region17: #{transformer_forward.1} parent=11 // pred_check
          %p400 = pneg %p104
        $region18: #{transformer_forward.1} parent=11 // pred_check_branch
          %402 = sbr.rel (%p400) target = $region20
        $region19: #{transformer_forward.1} parent=11 // pred_region
          _
        $region20: #{transformer_forward.1} parent=11 // pred_fallthru
          _
        // Predicated region
        $region21: #{transformer_forward.1} parent=11 // pred_check
          %p403 = pneg %p125
        $region22: #{transformer_forward.1} parent=11 // pred_check_branch
          %405 = sbr.rel (%p403) target = $region24
        $region23: #{transformer_forward.1} parent=11 // pred_region
          _
        $region24: #{transformer_forward.1} parent=11 // pred_fallthru
          _
        // Predicated region
        $region25: #{transformer_forward.1} parent=11 // pred_check
          %p406 = pneg %p146
        $region26: #{transformer_forward.1} parent=11 // pred_check_branch
          %408 = sbr.rel (%p406) target = $region28
        $region27: #{transformer_forward.1} parent=11 // pred_region
          _
        $region28: #{transformer_forward.1} parent=11 // pred_fallthru
          _
        // Predicated region
        $region29: #{transformer_forward.1} parent=11 // pred_check
          %p409 = pneg %p167
        $region30: #{transformer_forward.1} parent=11 // pred_check_branch
          %411 = sbr.rel (%p409) target = $region32
        $region31: #{transformer_forward.1} parent=11 // pred_region
          _
        $region32: #{transformer_forward.1} parent=11 // pred_fallthru
          _
        // Predicated region
        $region33: #{transformer_forward.1} parent=11 // pred_check
          %p412 = pneg %p188
        $region34: #{transformer_forward.1} parent=11 // pred_check_branch
          %414 = sbr.rel (%p412) target = $region36
        $region35: #{transformer_forward.1} parent=11 // pred_region
          _
        $region36: #{transformer_forward.1} parent=11 // pred_fallthru
          _
        // Predicated region
        $region37: #{transformer_forward.1} parent=11 // pred_check
          %p415 = pneg %p209
        $region38: #{transformer_forward.1} parent=11 // pred_check_branch
          %417 = sbr.rel (%p415) target = $region40
        $region39: #{transformer_forward.1} parent=11 // pred_region
          _
        $region40: #{transformer_forward.1} parent=11 // pred_fallthru
          _
        // Predicated region
        $region41: #{transformer_forward.1} parent=11 // pred_check
          %p418 = pneg %p230
        $region42: #{transformer_forward.1} parent=11 // pred_check_branch
          %420 = sbr.rel (%p418) target = $region44
        $region43: #{transformer_forward.1} parent=11 // pred_region
          _
        $region44: #{transformer_forward.1} parent=11 // pred_fallthru
          _
        // Predicated region
        $region45: #{transformer_forward.1} parent=11 // pred_check
          %p421 = pneg %p251
        $region46: #{transformer_forward.1} parent=11 // pred_check_branch
          %423 = sbr.rel (%p421) target = $region48
        $region47: #{transformer_forward.1} parent=11 // pred_region
          _
        $region48: #{transformer_forward.1} parent=11 // pred_fallthru
          _
        // Predicated region
        $region49: #{transformer_forward.1} parent=11 // pred_check
          %p424 = pneg %p272
        $region50: #{transformer_forward.1} parent=11 // pred_check_branch
          %426 = sbr.rel (%p424) target = $region52
        $region51: #{transformer_forward.1} parent=11 // pred_region
          _
        $region52: #{transformer_forward.1} parent=11 // pred_fallthru
          _
        // Predicated region
        $region53: #{transformer_forward.1} parent=11 // pred_check
          %p427 = pneg %p293
        $region54: #{transformer_forward.1} parent=11 // pred_check_branch
          %429 = sbr.rel (%p427) target = $region56
        $region55: #{transformer_forward.1} parent=11 // pred_region
          _
        $region56: #{transformer_forward.1} parent=11 // pred_fallthru
          _
        // Predicated region
        $region57: #{transformer_forward.1} parent=11 // pred_check
          %p430 = pneg %p314
        $region58: #{transformer_forward.1} parent=11 // pred_check_branch
          %432 = sbr.rel (%p430) target = $region60
        $region59: #{transformer_forward.1} parent=11 // pred_region
          _
        $region60: #{transformer_forward.1} parent=11 // pred_fallthru
          _
        // Predicated region
        $region61: #{transformer_forward.1} parent=11 // pred_check
          %p433 = pneg %p335
        $region62: #{transformer_forward.1} parent=11 // pred_check_branch
          %435 = sbr.rel (%p433) target = $region64
        $region63: #{transformer_forward.1} parent=11 // pred_region
          _
        $region64: #{transformer_forward.1} parent=11 // pred_fallthru
          _
        // Predicated region
        $region65: #{transformer_forward.1} parent=11 // pred_check
          %p436 = pneg %p356
        $region66: #{transformer_forward.1} parent=11 // pred_check_branch
          %438 = sbr.rel (%p436) target = $region68
        $region67: #{transformer_forward.1} parent=11 // pred_region
          _
        $region68: #{transformer_forward.1} parent=11 // pred_fallthru
          _
      $region12: #{transformer_forward.1} parent=5 // pred_fallthru
        _
      %p439 = scmp.lt.s32.totalorder %s24, 4
      // Predicated region
      $region69: #{transformer_forward.1} parent=5 // pred_check
        %p440 = pneg %p439
      $region70: #{transformer_forward.1} parent=5 // pred_check_branch
        %442 = sbr.rel (%p440) target = $region72
      $region71: #{transformer_forward.1} parent=5 // pred_region
        // Predicated region
        $region73: #{transformer_forward.1} parent=71 // pred_check
          %p443 = pneg %p56
        $region74: #{transformer_forward.1} parent=71 // pred_check_branch
          %445 = sbr.rel (%p443) target = $region76
        $region75: #{transformer_forward.1} parent=71 // pred_region
          %s446 = smul.u32 16, %s31
          %p447 = scmp.lt.s32.totalorder %s446, 31
          %s448 = scalar_select %p447, %s446, 31
          %s449 = smul.addr %s448, 8
          %s450 = scalar_lea.vmem %s0, %s449
          %s451 = smul.u32 16, %s31
        $region76: #{transformer_forward.1} parent=71 // pred_fallthru
          _
      $region72: #{transformer_forward.1} parent=5 // pred_fallthru
        _
      %p452 = scmp.le.s32.totalorder 1, %s24
      %p453 = scmp.lt.s32.totalorder %s24, 5
      %p454 = pnand %p452, %p453
      %p455 = pneg %p454
      // Predicated region
      $region77: #{transformer_forward.1} parent=5 // pred_check
        _
      $region78: #{transformer_forward.1} parent=5 // pred_check_branch
        %457 = sbr.rel (%p454) target = $region80
      $region79: #{transformer_forward.1} parent=5 // pred_region
        %s458 = ssub.s32 %s24, 1
        %s459 = smul.u32 16, %s33
        %p460 = scmp.lt.s32.totalorder %s459, 31
        %s461 = scalar_select %p460, %s459, 31
        %s462 = smul.addr %s461, 8
        %s463 = scalar_lea.vmem %s0, %s462
        %p464 = pneg %p62
        %p465 = pneg %p59
        %p466 = pneg %p83
        %p467 = pneg %p80
        %p468 = pneg %p104
        %p469 = pneg %p101
        %p470 = pneg %p125
        %p471 = pneg %p122
        %p472 = pneg %p146
        %p473 = pneg %p143
        %p474 = pneg %p167
        %p475 = pneg %p164
        %p476 = pneg %p188
        %p477 = pneg %p185
        %p478 = pneg %p209
        %p479 = pneg %p206
        %p480 = pneg %p230
        %p481 = pneg %p227
        %p482 = pneg %p251
        %p483 = pneg %p248
        %p484 = pneg %p272
        %p485 = pneg %p269
        %p486 = pneg %p293
        %p487 = pneg %p290
        %p488 = pneg %p314
        %p489 = pneg %p311
        %p490 = pneg %p335
        %p491 = pneg %p332
        %p492 = pneg %p356
        %p493 = pneg %p353
        %p494 = pneg %p382
        %p495 = pneg %p379
        %s496 = sand.u32 %s369, 1
        %s497 = scalar_lea.sflag [#allocation3], %s496
        %s498 = sand.u32 %s369, 1
        %s499 = smul.addr %s498, 128
        %s500 = scalar_lea.vmem [#allocation2], %s499
        %s501 = smul.u32 16, %s33
        %p502 = scmp.lt.s32.totalorder %s501, 31
        %s503 = scalar_select %p502, %s501, 31
        %s504 = smul.addr %s503, 8
        %s505 = scalar_lea.vmem %s0, %s504
        %s506 = smul.u32 16, %s33
        %s507 = smul.u32 16, %s33
        %p509 = scmp.eq.s32.totalorder %s34, 0
        // Predicated region
        $region81: #{transformer_forward.1} parent=79 // pred_check
          %p510 = pneg %p509
        $region82: #{transformer_forward.1} parent=79 // pred_check_branch
          %512 = sbr.rel (%p510) target = $region84
        $region83: #{transformer_forward.1} parent=79 // pred_region
          %v513 = vld [vmem:[%s505] sm:$0xff]
          %v514 = vld [vmem:[%s505 + $0x8] sm:$0xff]
          %v515 = vld [vmem:[%s505 + $0x10] sm:$0xff]
          %v516 = vld [vmem:[%s505 + $0x18] sm:$0xff]
          %v517 = vld [vmem:[%s505 + $0x20] sm:$0xff]
          %v518 = vld [vmem:[%s505 + $0x28] sm:$0xff]
          %v519 = vld [vmem:[%s505 + $0x30] sm:$0xff]
          %v520 = vld [vmem:[%s505 + $0x38] sm:$0xff]
          %v521 = vld [vmem:[%s505 + $0x40] sm:$0xff]
          %v522 = vld [vmem:[%s505 + $0x48] sm:$0xff]
          %v523 = vld [vmem:[%s505 + $0x50] sm:$0xff]
          %v524 = vld [vmem:[%s505 + $0x58] sm:$0xff]
          %v525 = vld [vmem:[%s505 + $0x60] sm:$0xff]
          %v526 = vld [vmem:[%s505 + $0x68] sm:$0xff]
          %v527 = vld [vmem:[%s505 + $0x70] sm:$0xff]
          %v528 = vld [vmem:[%s505 + $0x78] sm:$0xff]
          %vm529 = vcmask 523264
          %530 = vst.msk [vmem:[%s500] sm:$0xff] %vm529, %v513
          %531 = vst.msk [vmem:[%s500 + $0x8] sm:$0xff] %vm529, %v514
          %532 = vst.msk [vmem:[%s500 + $0x10] sm:$0xff] %vm529, %v515
          %533 = vst.msk [vmem:[%s500 + $0x18] sm:$0xff] %vm529, %v516
          %534 = vst.msk [vmem:[%s500 + $0x20] sm:$0xff] %vm529, %v517
          %535 = vst.msk [vmem:[%s500 + $0x28] sm:$0xff] %vm529, %v518
          %536 = vst.msk [vmem:[%s500 + $0x30] sm:$0xff] %vm529, %v519
          %537 = vst.msk [vmem:[%s500 + $0x38] sm:$0xff] %vm529, %v520
          %538 = vst.msk [vmem:[%s500 + $0x40] sm:$0xff] %vm529, %v521
          %539 = vst.msk [vmem:[%s500 + $0x48] sm:$0xff] %vm529, %v522
          %540 = vst.msk [vmem:[%s500 + $0x50] sm:$0xff] %vm529, %v523
          %541 = vst.msk [vmem:[%s500 + $0x58] sm:$0xff] %vm529, %v524
          %542 = vst.msk [vmem:[%s500 + $0x60] sm:$0xff] %vm529, %v525
          %543 = vst.msk [vmem:[%s500 + $0x68] sm:$0xff] %vm529, %v526
          %544 = vst.msk [vmem:[%s500 + $0x70] sm:$0xff] %vm529, %v527
          %545 = vst.msk [vmem:[%s500 + $0x78] sm:$0xff] %vm529, %v528
        $region84: #{transformer_forward.1} parent=79 // pred_fallthru
          _
        %v546 = vld [vmem:[%s500] sm:$0xff]
        %v547 = vld [vmem:[%s500 + $0x8] sm:$0xff]
        %v548 = vld [vmem:[%s500 + $0x10] sm:$0xff]
        %v549 = vld [vmem:[%s500 + $0x18] sm:$0xff]
        %v550 = vld [vmem:[%s500 + $0x20] sm:$0xff]
        %v551 = vld [vmem:[%s500 + $0x28] sm:$0xff]
        %v552 = vld [vmem:[%s500 + $0x30] sm:$0xff]
        %v553 = vld [vmem:[%s500 + $0x38] sm:$0xff]
        %v554 = vld [vmem:[%s500 + $0x40] sm:$0xff]
        %v555 = vld [vmem:[%s500 + $0x48] sm:$0xff]
        %v556 = vld [vmem:[%s500 + $0x50] sm:$0xff]
        %v557 = vld [vmem:[%s500 + $0x58] sm:$0xff]
        %v558 = vld [vmem:[%s500 + $0x60] sm:$0xff]
        %v559 = vld [vmem:[%s500 + $0x68] sm:$0xff]
        %v560 = vld [vmem:[%s500 + $0x70] sm:$0xff]
        %v561 = vld [vmem:[%s500 + $0x78] sm:$0xff]
        %s562 = smul.u32 %s34, 8
        %s563 = scalar_lea.vmem %s4, %s562
        %v564 = vld [vmem:[%s563] sm:$0x3f]
        %s565 = smul.u32 %s34, 4
        %s566 = scalar_lea.vmem %s8, %s565
        %v567 = vld [vmem:[%s566] sm:$0xf]
        %s568 = smul.u32 %s34, 128
        %s569 = scalar_lea.vmem %s9, %s568
        %v570 = vld [vmem:[%s569] sm:$0xff]
        %v571 = vld [vmem:[%s569 + $0x8] sm:$0xff]
        %v572 = vld [vmem:[%s569 + $0x10] sm:$0xff]
        %v573 = vld [vmem:[%s569 + $0x18] sm:$0xff]
        %v574 = vld [vmem:[%s569 + $0x20] sm:$0xff]
        %v575 = vld [vmem:[%s569 + $0x28] sm:$0xff]
        %v576 = vld [vmem:[%s569 + $0x30] sm:$0xff]
        %v577 = vld [vmem:[%s569 + $0x38] sm:$0xff]
        %v578 = vld [vmem:[%s569 + $0x40] sm:$0xff]
        %v579 = vld [vmem:[%s569 + $0x48] sm:$0xff]
        %v580 = vld [vmem:[%s569 + $0x50] sm:$0xff]
        %v581 = vld [vmem:[%s569 + $0x58] sm:$0xff]
        %v582 = vld [vmem:[%s569 + $0x60] sm:$0xff]
        %v583 = vld [vmem:[%s569 + $0x68] sm:$0xff]
        %v584 = vld [vmem:[%s569 + $0x70] sm:$0xff]
        %v585 = vld [vmem:[%s569 + $0x78] sm:$0xff]
        %s586 = scalar_lea.vmem %s10, %s568
        %v587 = vld [vmem:[%s586] sm:$0xff]
        %v588 = vld [vmem:[%s586 + $0x8] sm:$0xff]
        %v589 = vld [vmem:[%s586 + $0x10] sm:$0xff]
        %v590 = vld [vmem:[%s586 + $0x18] sm:$0xff]
        %v591 = vld [vmem:[%s586 + $0x20] sm:$0xff]
        %v592 = vld [vmem:[%s586 + $0x28] sm:$0xff]
        %v593 = vld [vmem:[%s586 + $0x30] sm:$0xff]
        %v594 = vld [vmem:[%s586 + $0x38] sm:$0xff]
        %v595 = vld [vmem:[%s586 + $0x40] sm:$0xff]
        %v596 = vld [vmem:[%s586 + $0x48] sm:$0xff]
        %v597 = vld [vmem:[%s586 + $0x50] sm:$0xff]
        %v598 = vld [vmem:[%s586 + $0x58] sm:$0xff]
        %v599 = vld [vmem:[%s586 + $0x60] sm:$0xff]
        %v600 = vld [vmem:[%s586 + $0x68] sm:$0xff]
        %v601 = vld [vmem:[%s586 + $0x70] sm:$0xff]
        %v602 = vld [vmem:[%s586 + $0x78] sm:$0xff]
        %v603 = vld [vmem:[%s11] sm:$0xf]
        %v604 = vld [vmem:[%s11 + $0x4] sm:$0xf]
        %v605 = vld [vmem:[%s12] sm:$0xff]
        %v606 = vld [vmem:[%s12 + $0x8] sm:$0xff]
        %v607 = vld [vmem:[%s12 + $0x10] sm:$0xff]
        %v608 = vld [vmem:[%s12 + $0x18] sm:$0xff]
        %v609 = vld [vmem:[%s12 + $0x20] sm:$0xff]
        %v610 = vld [vmem:[%s12 + $0x28] sm:$0xff]
        %v611 = vld [vmem:[%s12 + $0x30] sm:$0xff]
        %v612 = vld [vmem:[%s12 + $0x38] sm:$0xff]
        %v613 = vld [vmem:[%s13] sm:$0xff]
        %v614 = vld [vmem:[%s13 + $0x8] sm:$0xff]
        %v615 = vld [vmem:[%s13 + $0x10] sm:$0xff]
        %v616 = vld [vmem:[%s13 + $0x18] sm:$0xff]
        %v617 = vld [vmem:[%s13 + $0x20] sm:$0xff]
        %v618 = vld [vmem:[%s13 + $0x28] sm:$0xff]
        %v619 = vld [vmem:[%s13 + $0x30] sm:$0xff]
        %v620 = vld [vmem:[%s13 + $0x38] sm:$0xff]
        %v621 = vld [vmem:[%s13 + $0x40] sm:$0xff]
        %v622 = vld [vmem:[%s13 + $0x48] sm:$0xff]
        %v623 = vld [vmem:[%s13 + $0x50] sm:$0xff]
        %v624 = vld [vmem:[%s13 + $0x58] sm:$0xff]
        %v625 = vld [vmem:[%s13 + $0x60] sm:$0xff]
        %v626 = vld [vmem:[%s13 + $0x68] sm:$0xff]
        %v627 = vld [vmem:[%s13 + $0x70] sm:$0xff]
        %v628 = vld [vmem:[%s13 + $0x78] sm:$0xff]
        %v629 = vld [vmem:[%s14] sm:$0xff]
        %v630 = vld [vmem:[%s14 + $0x8] sm:$0xff]
        %v631 = vld [vmem:[%s14 + $0x10] sm:$0xff]
        %v632 = vld [vmem:[%s14 + $0x18] sm:$0xff]
        %v633 = vld [vmem:[%s14 + $0x20] sm:$0xff]
        %v634 = vld [vmem:[%s14 + $0x28] sm:$0xff]
        %v635 = vld [vmem:[%s14 + $0x30] sm:$0xff]
        %v636 = vld [vmem:[%s14 + $0x38] sm:$0xff]
        %v637 = vld [vmem:[%s14 + $0x40] sm:$0xff]
        %v638 = vld [vmem:[%s14 + $0x48] sm:$0xff]
        %v639 = vld [vmem:[%s14 + $0x50] sm:$0xff]
        %v640 = vld [vmem:[%s14 + $0x58] sm:$0xff]
        %v641 = vld [vmem:[%s14 + $0x60] sm:$0xff]
        %v642 = vld [vmem:[%s14 + $0x68] sm:$0xff]
        %v643 = vld [vmem:[%s14 + $0x70] sm:$0xff]
        %v644 = vld [vmem:[%s14 + $0x78] sm:$0xff]
        %v645 = vpack.c.bf16 %v547, %v546
        %v646 = vpack.c.bf16 %v549, %v548
        %v647 = vpack.c.bf16 %v551, %v550
        %v648 = vpack.c.bf16 %v553, %v552
        %v649 = vpack.c.bf16 %v555, %v554
        %v650 = vpack.c.bf16 %v557, %v556
        %v651 = vpack.c.bf16 %v559, %v558
        %v652 = vpack.c.bf16 %v561, %v560
        %s653 = smul.u32 %s34, 16
        %s654 = smul.addr %s653, 4
        %s655 = scalar_lea.vmem %s1, %s654
        %v656 = vld [vmem:[%s655] sm:$0xff]
        %v657 = vld [vmem:[%s655 + $0x8] sm:$0xff]
        %v658 = vld [vmem:[%s655 + $0x10] sm:$0xff]
        %v659 = vld [vmem:[%s655 + $0x18] sm:$0xff]
        %v660 = vld [vmem:[%s655 + $0x20] sm:$0xff]
        %v661 = vld [vmem:[%s655 + $0x28] sm:$0xff]
        %v662 = vld [vmem:[%s655 + $0x30] sm:$0xff]
        %v663 = vld [vmem:[%s655 + $0x38] sm:$0xff]
        %s664 = smul.u32 %s34, 2
        %s665 = scalar_lea.vmem %s2, %s664
        %v666 = vld [vmem:[%s665] sm:$0x3]
        %v668 = vlaneseq
        %v669 = vshrl.u32 %v668, 7
        %v670 = vsub.s32 0, %v669
        %v671 = vrot.slane %v666, %v670
        %v672 = vlaneseq
        %v673 = vshrl.u32 %v672, 7
        %v674 = vsub.s32 1, %v673
        %v675 = vrot.slane %v666, %v674
        %v686 = vunpack.c.l.b16 %v656
        %v687 = vunpack.c.h.b16 %v656
        %v688 = vunpack.c.l.b16 %v657
        %v689 = vunpack.c.h.b16 %v657
        %v690 = vunpack.c.l.b16 %v658
        %v691 = vunpack.c.h.b16 %v658
        %v692 = vunpack.c.l.b16 %v659
        %v693 = vunpack.c.h.b16 %v659
        %v694 = vunpack.c.l.b16 %v660
        %v695 = vunpack.c.h.b16 %v660
        %v696 = vunpack.c.l.b16 %v661
        %v697 = vunpack.c.h.b16 %v661
        %v698 = vunpack.c.l.b16 %v662
        %v699 = vunpack.c.h.b16 %v662
        %v700 = vunpack.c.l.b16 %v663
        %v701 = vunpack.c.h.b16 %v663
        %v702 = vpack.c.b16 %v688, %v686
        %v703 = vpack.c.b16 %v689, %v687
        %v704 = vpack.c.b16 %v692, %v690
        %v705 = vpack.c.b16 %v693, %v691
        %v706 = vpack.c.b16 %v696, %v694
        %v707 = vpack.c.b16 %v697, %v695
        %v708 = vpack.c.b16 %v700, %v698
        %v709 = vpack.c.b16 %v701, %v699
        %vm718 = vcmask 523264
        %v720 = vsel %vm718, %v645, 0
        %v723 = vsel %vm718, %v646, 0
        %v726 = vsel %vm718, %v647, 0
        %v729 = vsel %vm718, %v648, 0
        %v732 = vsel %vm718, %v649, 0
        %v735 = vsel %vm718, %v650, 0
        %v738 = vsel %vm718, %v651, 0
        %v741 = vsel %vm718, %v652, 0
        %743 = vmatprep.subr.bf16.mxu0 %v703
        %744 = vmatpush1.bf16.msra.mxu0 %v702
        %745 = vmatprep.subr.bf16.mxu0 %v705
        %746 = vmatpush1.bf16.msra.mxu0 %v704
        %747 = vmatprep.subr.bf16.mxu0 %v707
        %748 = vmatpush1.bf16.msra.mxu0 %v706
        %749 = vmatprep.subr.bf16.mxu0 %v709
        %750 = vmatpush1.bf16.msra.mxu0 %v708
        %751 = vmatprep.subr.bf16.mxu0 0
        %752 = vmatpush1.bf16.msra.mxu0 0
        %753 = vmatprep.subr.bf16.mxu0 0
        %754 = vmatpush1.bf16.msra.mxu0 0
        %755 = vmatprep.subr.bf16.mxu0 0
        %756 = vmatpush1.bf16.msra.mxu0 0
        %757 = vmatprep.subr.bf16.mxu0 0
        %758 = vmatpush1.bf16.msra.mxu0 0
        %759 = vmatprep.subr.bf16.mxu0 0
        %760 = vmatpush1.bf16.msra.mxu0 0
        %761 = vmatprep.subr.bf16.mxu0 0
        %762 = vmatpush1.bf16.msra.mxu0 0
        %763 = vmatprep.subr.bf16.mxu0 0
        %764 = vmatpush1.bf16.msra.mxu0 0
        %765 = vmatprep.subr.bf16.mxu0 0
        %766 = vmatpush1.bf16.msra.mxu0 0
        %767 = vmatprep.subr.bf16.mxu0 0
        %768 = vmatpush1.bf16.msra.mxu0 0
        %769 = vmatprep.subr.bf16.mxu0 0
        %770 = vmatpush1.bf16.msra.mxu0 0
        %771 = vmatprep.subr.bf16.mxu0 0
        %772 = vmatpush1.bf16.msra.mxu0 0
        %773 = vmatprep.subr.bf16.mxu0 0
        %774 = vmatpush1.bf16.msra.mxu0 0
        %775 = vmatprep.mubr.bf16.mxu0 0
        %776 = vmatmul.mubr.bf16.gmra.mrb[0].mxu0 %v720
        %v777 = vpop.f32.mrb[0].mxu0
        %v778 = vadd.f32 %v671, %v777
        %v779 = vpop.f32.mrb[0].mxu0
        %v780 = vadd.f32 %v675, %v779
        %v781 = vpop.f32.mrb[0].mxu0
        %v782 = vadd.f32 %v671, %v781
        %v783 = vpop.f32.mrb[0].mxu0
        %v784 = vadd.f32 %v675, %v783
        %785 = vmatprep.mubr.bf16.mxu0 0
        %786 = vmatmul.mubr.bf16.gmra.mrb[0].mxu0 %v723
        %v787 = vpop.f32.mrb[0].mxu0
        %v788 = vadd.f32 %v671, %v787
        %v789 = vpop.f32.mrb[0].mxu0
        %v790 = vadd.f32 %v675, %v789
        %v791 = vpop.f32.mrb[0].mxu0
        %v792 = vadd.f32 %v671, %v791
        %v793 = vpop.f32.mrb[0].mxu0
        %v794 = vadd.f32 %v675, %v793
        %795 = vmatprep.mubr.bf16.mxu0 0
        %796 = vmatmul.mubr.bf16.gmra.mrb[0].mxu0 %v726
        %v797 = vpop.f32.mrb[0].mxu0
        %v798 = vadd.f32 %v671, %v797
        %v799 = vpop.f32.mrb[0].mxu0
        %v800 = vadd.f32 %v675, %v799
        %v801 = vpop.f32.mrb[0].mxu0
        %v802 = vadd.f32 %v671, %v801
        %v803 = vpop.f32.mrb[0].mxu0
        %v804 = vadd.f32 %v675, %v803
        %805 = vmatprep.mubr.bf16.mxu0 0
        %806 = vmatmul.mubr.bf16.gmra.mrb[0].mxu0 %v729
        %v807 = vpop.f32.mrb[0].mxu0
        %v808 = vadd.f32 %v671, %v807
        %v809 = vpop.f32.mrb[0].mxu0
        %v810 = vadd.f32 %v675, %v809
        %v811 = vpop.f32.mrb[0].mxu0
        %v812 = vadd.f32 %v671, %v811
        %v813 = vpop.f32.mrb[0].mxu0
        %v814 = vadd.f32 %v675, %v813
        %815 = vmatprep.mubr.bf16.mxu0 0
        %816 = vmatmul.mubr.bf16.gmra.mrb[0].mxu0 %v732
        %v817 = vpop.f32.mrb[0].mxu0
        %v818 = vadd.f32 %v671, %v817
        %v819 = vpop.f32.mrb[0].mxu0
        %v820 = vadd.f32 %v675, %v819
        %v821 = vpop.f32.mrb[0].mxu0
        %v822 = vadd.f32 %v671, %v821
        %v823 = vpop.f32.mrb[0].mxu0
        %v824 = vadd.f32 %v675, %v823
        %825 = vmatprep.mubr.bf16.mxu0 0
        %826 = vmatmul.mubr.bf16.gmra.mrb[0].mxu0 %v735
        %v827 = vpop.f32.mrb[0].mxu0
        %v828 = vadd.f32 %v671, %v827
        %v829 = vpop.f32.mrb[0].mxu0
        %v830 = vadd.f32 %v675, %v829
        %v831 = vpop.f32.mrb[0].mxu0
        %v832 = vadd.f32 %v671, %v831
        %v833 = vpop.f32.mrb[0].mxu0
        %v834 = vadd.f32 %v675, %v833
        %835 = vmatprep.mubr.bf16.mxu0 0
        %836 = vmatmul.mubr.bf16.gmra.mrb[0].mxu0 %v738
        %v837 = vpop.f32.mrb[0].mxu0
        %v838 = vadd.f32 %v671, %v837
        %v839 = vpop.f32.mrb[0].mxu0
        %v840 = vadd.f32 %v675, %v839
        %v841 = vpop.f32.mrb[0].mxu0
        %v842 = vadd.f32 %v671, %v841
        %v843 = vpop.f32.mrb[0].mxu0
        %v844 = vadd.f32 %v675, %v843
        %845 = vmatprep.mubr.bf16.mxu0 0
        %846 = vmatmul.mubr.bf16.gmra.mrb[0].mxu0 %v741
        %v847 = vpop.f32.mrb[0].mxu0
        %v848 = vadd.f32 %v671, %v847
        %v849 = vpop.f32.mrb[0].mxu0
        %v850 = vadd.f32 %v675, %v849
        %v851 = vpop.f32.mrb[0].mxu0
        %v852 = vadd.f32 %v671, %v851
        %v853 = vpop.f32.mrb[0].mxu0
        %v854 = vadd.f32 %v675, %v853
        %855 = vdwg.mxu0
        %v856 = vpack.c.bf16 %v782, %v778
        %v857 = vpack.c.bf16 %v792, %v788
        %v858 = vpack.c.bf16 %v802, %v798
        %v859 = vpack.c.bf16 %v812, %v808
        %v860 = vpack.c.bf16 %v822, %v818
        %v861 = vpack.c.bf16 %v832, %v828
        %v862 = vpack.c.bf16 %v842, %v838
        %v863 = vpack.c.bf16 %v852, %v848
        %880 = vrot.lane.b32.xlu0 %v778, 64
        %v881 = vpop.permute.xlu0 %880
        %882 = vrot.lane.b32.xlu0 %v782, 64
        %v883 = vpop.permute.xlu0 %882
        %884 = vrot.lane.b32.xlu0 %v788, 64
        %v885 = vpop.permute.xlu0 %884
        %886 = vrot.lane.b32.xlu0 %v792, 64
        %v887 = vpop.permute.xlu0 %886
        %888 = vrot.lane.b32.xlu0 %v798, 64
        %v889 = vpop.permute.xlu0 %888
        %890 = vrot.lane.b32.xlu0 %v802, 64
        %v891 = vpop.permute.xlu0 %890
        %892 = vrot.lane.b32.xlu0 %v808, 64
        %v893 = vpop.permute.xlu0 %892
        %894 = vrot.lane.b32.xlu0 %v812, 64
        %v895 = vpop.permute.xlu0 %894
        %896 = vrot.lane.b32.xlu0 %v818, 64
        %v897 = vpop.permute.xlu0 %896
        %898 = vrot.lane.b32.xlu0 %v822, 64
        %v899 = vpop.permute.xlu0 %898
        %900 = vrot.lane.b32.xlu0 %v828, 64
        %v901 = vpop.permute.xlu0 %900
        %902 = vrot.lane.b32.xlu0 %v832, 64
        %v903 = vpop.permute.xlu0 %902
        %904 = vrot.lane.b32.xlu0 %v838, 64
        %v905 = vpop.permute.xlu0 %904
        %906 = vrot.lane.b32.xlu0 %v842, 64
        %v907 = vpop.permute.xlu0 %906
        %908 = vrot.lane.b32.xlu0 %v848, 64
        %v909 = vpop.permute.xlu0 %908
        %910 = vrot.lane.b32.xlu0 %v852, 64
        %v911 = vpop.permute.xlu0 %910
        %928 = vxpose.xlu0.b32.start [1/16] %v881, 128
        %929 = vxpose.xlu0.b32.cont [2/16] %v883, 128
        %930 = vxpose.xlu0.b32.cont [3/16] %v885, 128
        %931 = vxpose.xlu0.b32.cont [4/16] %v887, 128
        %932 = vxpose.xlu0.b32.cont [5/16] %v889, 128
        %933 = vxpose.xlu0.b32.cont [6/16] %v891, 128
        %934 = vxpose.xlu0.b32.cont [7/16] %v893, 128
        %935 = vxpose.xlu0.b32.cont [8/16] %v895, 128
        %936 = vxpose.xlu0.b32.cont [9/16] %v897, 128
        %937 = vxpose.xlu0.b32.cont [10/16] %v899, 128
        %938 = vxpose.xlu0.b32.cont [11/16] %v901, 128
        %939 = vxpose.xlu0.b32.cont [12/16] %v903, 128
        %940 = vxpose.xlu0.b32.cont [13/16] %v905, 128
        %941 = vxpose.xlu0.b32.cont [14/16] %v907, 128
        %942 = vxpose.xlu0.b32.cont [15/16] %v909, 128
        %943 = vxpose.xlu0.b32.end [16/16] %v911, 128
        %v944 = vpop.trf.xlu0
        %v945 = vpop.trf.xlu0
        %v946 = vpop.trf.xlu0
        %v947 = vpop.trf.xlu0
        %v948 = vpop.trf.xlu0
        %v949 = vpop.trf.xlu0
        %v950 = vpop.trf.xlu0
        %v951 = vpop.trf.xlu0
        %v952 = vpop.trf.xlu0
        %v953 = vpop.trf.xlu0
        %v954 = vpop.trf.xlu0
        %v955 = vpop.trf.xlu0
        %v956 = vpop.trf.xlu0
        %v957 = vpop.trf.xlu0
        %v958 = vpop.trf.xlu0
        %v959 = vpop.trf.xlu0
        %v960 = vpack.c.bf16 %v945, %v944
        %v961 = vpack.c.bf16 %v947, %v946
        %v962 = vpack.c.bf16 %v949, %v948
        %v963 = vpack.c.bf16 %v951, %v950
        %v966 = vunpack.c.l.b16 %v603
        %v967 = vunpack.c.l.b16 %v604
        %v968 = vpack.c.b16 %v967, %v966
        %vm970 = vcmask 130048
        %v972 = vsel %vm970, %v960, 0
        %v975 = vsel %vm970, %v961, 0
        %v978 = vsel %vm970, %v962, 0
        %v981 = vsel %vm970, %v963, 0
        %983 = vmatprep.subr.bf16.mxu0 0
        %984 = vmatpush1.bf16.msra.mxu0 %v968
        %985 = vmatprep.subr.bf16.mxu0 0
        %986 = vmatpush1.bf16.msra.mxu0 0
        %987 = vmatprep.subr.bf16.mxu0 0
        %988 = vmatpush1.bf16.msra.mxu0 0
        %989 = vmatprep.subr.bf16.mxu0 0
        %990 = vmatpush1.bf16.msra.mxu0 0
        %991 = vmatprep.subr.bf16.mxu0 0
        %992 = vmatpush1.bf16.msra.mxu0 0
        %993 = vmatprep.subr.bf16.mxu0 0
        %994 = vmatpush1.bf16.msra.mxu0 0
        %995 = vmatprep.subr.bf16.mxu0 0
        %996 = vmatpush1.bf16.msra.mxu0 0
        %997 = vmatprep.subr.bf16.mxu0 0
        %998 = vmatpush1.bf16.msra.mxu0 0
        %999 = vmatprep.subr.bf16.mxu0 0
        %1000 = vmatpush1.bf16.msra.mxu0 0
        %1001 = vmatprep.subr.bf16.mxu0 0
        %1002 = vmatpush1.bf16.msra.mxu0 0
        %1003 = vmatprep.subr.bf16.mxu0 0
        %1004 = vmatpush1.bf16.msra.mxu0 0
        %1005 = vmatprep.subr.bf16.mxu0 0
        %1006 = vmatpush1.bf16.msra.mxu0 0
        %1007 = vmatprep.subr.bf16.mxu0 0
        %1008 = vmatpush1.bf16.msra.mxu0 0
        %1009 = vmatprep.subr.bf16.mxu0 0
        %1010 = vmatpush1.bf16.msra.mxu0 0
        %1011 = vmatprep.subr.bf16.mxu0 0
        %1012 = vmatpush1.bf16.msra.mxu0 0
        %1013 = vmatprep.subr.bf16.mxu0 0
        %1014 = vmatpush1.bf16.msra.mxu0 0
        %1015 = vmatprep.mubr.bf16.mxu0 0
        %1016 = vmatmul.mubr.bf16.gmra.mrb[0].mxu0 %v972
        %v1017 = vpop.f32.mrb[0].mxu0
        %v1018 = vadd.f32 0.0, %v1017
        %v1019 = vpop.f32.mrb[0].mxu0
        %v1020 = vpop.f32.mrb[0].mxu0
        %v1021 = vadd.f32 0.0, %v1020
        %v1022 = vpop.f32.mrb[0].mxu0
        %1023 = vmatprep.mubr.bf16.mxu0 0
        %1024 = vmatmul.mubr.bf16.gmra.mrb[0].mxu0 %v975
        %v1025 = vpop.f32.mrb[0].mxu0
        %v1026 = vadd.f32 0.0, %v1025
        %v1027 = vpop.f32.mrb[0].mxu0
        %v1028 = vpop.f32.mrb[0].mxu0
        %v1029 = vadd.f32 0.0, %v1028
        %v1030 = vpop.f32.mrb[0].mxu0
        %1031 = vmatprep.mubr.bf16.mxu0 0
        %1032 = vmatmul.mubr.bf16.gmra.mrb[0].mxu0 %v978
        %v1033 = vpop.f32.mrb[0].mxu0
        %v1034 = vadd.f32 0.0, %v1033
        %v1035 = vpop.f32.mrb[0].mxu0
        %v1036 = vpop.f32.mrb[0].mxu0
        %v1037 = vadd.f32 0.0, %v1036
        %v1038 = vpop.f32.mrb[0].mxu0
        %1039 = vmatprep.mubr.bf16.mxu0 0
        %1040 = vmatmul.mubr.bf16.gmra.mrb[0].mxu0 %v981
        %v1041 = vpop.f32.mrb[0].mxu0
        %v1042 = vadd.f32 0.0, %v1041
        %v1043 = vpop.f32.mrb[0].mxu0
        %v1044 = vpop.f32.mrb[0].mxu0
        %v1045 = vadd.f32 0.0, %v1044
        %v1046 = vpop.f32.mrb[0].mxu0
        %1047 = vdwg.mxu0
        %v1048 = vmul.f32 %v1018, %v605
        %v1049 = vmul.f32 %v1021, %v606
        %v1050 = vmul.f32 %v1026, %v607
        %v1051 = vmul.f32 %v1029, %v608
        %v1052 = vmul.f32 %v1034, %v609
        %v1053 = vmul.f32 %v1037, %v610
        %v1054 = vmul.f32 %v1042, %v611
        %v1055 = vmul.f32 %v1045, %v612
        %v1056 = vpack.c.bf16 %v1049, %v1048
        %v1057 = vpack.c.bf16 %v1051, %v1050
        %v1058 = vpack.c.bf16 %v1053, %v1052
        %v1059 = vpack.c.bf16 %v1055, %v1054
        %v1061 = vsel %vm718, %v856, 0
        %1063 = vmatprep.subr.bf16.mxu0 0
        %1064 = vmatpush1.bf16.msra.mxu0 %v1056
        %1065 = vmatprep.subr.bf16.mxu0 0
        %1066 = vmatpush1.bf16.msra.mxu0 %v1057
        %1067 = vmatprep.subr.bf16.mxu0 0
        %1068 = vmatpush1.bf16.msra.mxu0 %v1058
        %1069 = vmatprep.subr.bf16.mxu0 0
        %1070 = vmatpush1.bf16.msra.mxu0 %v1059
        %1071 = vmatprep.subr.bf16.mxu0 0
        %1072 = vmatpush1.bf16.msra.mxu0 0
        %1073 = vmatprep.subr.bf16.mxu0 0
        %1074 = vmatpush1.bf16.msra.mxu0 0
        %1075 = vmatprep.subr.bf16.mxu0 0
        %1076 = vmatpush1.bf16.msra.mxu0 0
        %1077 = vmatprep.subr.bf16.mxu0 0
        %1078 = vmatpush1.bf16.msra.mxu0 0
        %1079 = vmatprep.subr.bf16.mxu0 0
        %1080 = vmatpush1.bf16.msra.mxu0 0
        %1081 = vmatprep.subr.bf16.mxu0 0
        %1082 = vmatpush1.bf16.msra.mxu0 0
        %1083 = vmatprep.subr.bf16.mxu0 0
        %1084 = vmatpush1.bf16.msra.mxu0 0
        %1085 = vmatprep.subr.bf16.mxu0 0
        %1086 = vmatpush1.bf16.msra.mxu0 0
        %1087 = vmatprep.subr.bf16.mxu0 0
        %1088 = vmatpush1.bf16.msra.mxu0 0
        %1089 = vmatprep.subr.bf16.mxu0 0
        %1090 = vmatpush1.bf16.msra.mxu0 0
        %1091 = vmatprep.subr.bf16.mxu0 0
        %1092 = vmatpush1.bf16.msra.mxu0 0
        %1093 = vmatprep.subr.bf16.mxu0 0
        %1094 = vmatpush1.bf16.msra.mxu0 0
        %1095 = vmatprep.mubr.bf16.mxu0 0
        %1096 = vmatmul.mubr.bf16.gmra.mrb[0].mxu0 %v1061
        %v1097 = vpop.f32.mrb[0].mxu0
        %v1098 = vadd.f32 0.0, %v1097
        %v1099 = vpop.f32.mrb[0].mxu0
        %v1100 = vpop.f32.mrb[0].mxu0
        %v1101 = vadd.f32 0.0, %v1100
        %v1102 = vpop.f32.mrb[0].mxu0
        %1103 = vdwg.mxu0
        %1104 = vmatprep.subr.mxu0 0.0
        %1105 = vmatpush1.msra.mxu0 %v570
        %1106 = vmatprep.subr.mxu0 0.0
        %1107 = vmatpush1.msra.mxu0 %v571
        %1108 = vmatprep.subr.mxu0 0.0
        %1109 = vmatpush1.msra.mxu0 %v572
        %1110 = vmatprep.subr.mxu0 0.0
        %1111 = vmatpush1.msra.mxu0 %v573
        %1112 = vmatprep.subr.mxu0 0.0
        %1113 = vmatpush1.msra.mxu0 %v574
        %1114 = vmatprep.subr.mxu0 0.0
        %1115 = vmatpush1.msra.mxu0 %v575
        %1116 = vmatprep.subr.mxu0 0.0
        %1117 = vmatpush1.msra.mxu0 %v576
        %1118 = vmatprep.subr.mxu0 0.0
        %1119 = vmatpush1.msra.mxu0 %v577
        %1120 = vmatprep.subr.mxu0 0.0
        %1121 = vmatpush1.msra.mxu0 %v578
        %1122 = vmatprep.subr.mxu0 0.0
        %1123 = vmatpush1.msra.mxu0 %v579
        %1124 = vmatprep.subr.mxu0 0.0
        %1125 = vmatpush1.msra.mxu0 %v580
        %1126 = vmatprep.subr.mxu0 0.0
        %1127 = vmatpush1.msra.mxu0 %v581
        %1128 = vmatprep.subr.mxu0 0.0
        %1129 = vmatpush1.msra.mxu0 %v582
        %1130 = vmatprep.subr.mxu0 0.0
        %1131 = vmatpush1.msra.mxu0 %v583
        %1132 = vmatprep.subr.mxu0 0.0
        %1133 = vmatpush1.msra.mxu0 %v584
        %1134 = vmatprep.subr.mxu0 0.0
        %1135 = vmatpush1.msra.mxu0 %v585
        %1136 = vmatprep.subr.mxu0 0.0
        %1137 = vmatpush1.msra.mxu0 0.0
        %1138 = vmatprep.subr.mxu0 0.0
        %1139 = vmatpush1.msra.mxu0 0.0
        %1140 = vmatprep.subr.mxu0 0.0
        %1141 = vmatpush1.msra.mxu0 0.0
        %1142 = vmatprep.subr.mxu0 0.0
        %1143 = vmatpush1.msra.mxu0 0.0
        %1144 = vmatprep.subr.mxu0 0.0
        %1145 = vmatpush1.msra.mxu0 0.0
        %1146 = vmatprep.subr.mxu0 0.0
        %1147 = vmatpush1.msra.mxu0 0.0
        %1148 = vmatprep.subr.mxu0 0.0
        %1149 = vmatpush1.msra.mxu0 0.0
        %1150 = vmatprep.subr.mxu0 0.0
        %1151 = vmatpush1.msra.mxu0 0.0
        %1152 = vmatprep.subr.mxu0 0.0
        %1153 = vmatpush1.msra.mxu0 0.0
        %1154 = vmatprep.subr.mxu0 0.0
        %1155 = vmatpush1.msra.mxu0 0.0
        %1156 = vmatprep.subr.mxu0 0.0
        %1157 = vmatpush1.msra.mxu0 0.0
        %1158 = vmatprep.subr.mxu0 0.0
        %1159 = vmatpush1.msra.mxu0 0.0
        %1160 = vmatprep.subr.mxu0 0.0
        %1161 = vmatpush1.msra.mxu0 0.0
        %1162 = vmatprep.subr.mxu0 0.0
        %1163 = vmatpush1.msra.mxu0 0.0
        %1164 = vmatprep.subr.mxu0 0.0
        %1165 = vmatpush1.msra.mxu0 0.0
        %1166 = vmatprep.subr.mxu0 0.0
        %1167 = vmatpush1.msra.mxu0 0.0
        %1168 = vmatprep.mubr.f32.mxu0 0.0
        %1169 = vmatmul.mubr.f32.gmra.mrb[0].mxu0 %v1098
        %v1170 = vpop.f32.mrb[0].mxu0
        %v1171 = vadd.f32 0.0, %v1170
        %v1172 = vpop.f32.mrb[0].mxu0
        %1173 = vmatprep.mubr.f32.mxu0 0.0
        %1174 = vmatmul.mubr.f32.gmra.mrb[0].mxu0 %v1101
        %v1175 = vpop.f32.mrb[0].mxu0
        %v1176 = vadd.f32 0.0, %v1175
        %v1177 = vpop.f32.mrb[0].mxu0
        %1178 = vdwg.mxu0
        %1179 = vmax.xlane.f32.xlu0 %v1171
        %v1180 = vpop.xlane.xlu0 %1179
        %1181 = vmax.xlane.f32.xlu0 %v1176
        %v1182 = vpop.xlane.xlu0 %1181
        %v1183 = vsub.f32 %v1171, %v1180
        %v1184 = vsub.f32 %v1176, %v1182
        %v1185 = vmul.f32 %v1183, 1.442695
        %v1186 = vpow.pop %v1185
        %v1187 = vmul.f32 %v1184, 1.442695
        %v1188 = vpow.pop %v1187
        %1189 = vmatprep.subr.mxu0 0.0
        %1190 = vmatpush1.msra.mxu0 %v629
        %1191 = vmatprep.subr.mxu0 0.0
        %1192 = vmatpush1.msra.mxu0 %v630
        %1193 = vmatprep.subr.mxu0 0.0
        %1194 = vmatpush1.msra.mxu0 %v631
        %1195 = vmatprep.subr.mxu0 0.0
        %1196 = vmatpush1.msra.mxu0 %v632
        %1197 = vmatprep.subr.mxu0 0.0
        %1198 = vmatpush1.msra.mxu0 %v633
        %1199 = vmatprep.subr.mxu0 0.0
        %1200 = vmatpush1.msra.mxu0 %v634
        %1201 = vmatprep.subr.mxu0 0.0
        %1202 = vmatpush1.msra.mxu0 %v635
        %1203 = vmatprep.subr.mxu0 0.0
        %1204 = vmatpush1.msra.mxu0 %v636
        %1205 = vmatprep.subr.mxu0 0.0
        %1206 = vmatpush1.msra.mxu0 %v637
        %1207 = vmatprep.subr.mxu0 0.0
        %1208 = vmatpush1.msra.mxu0 %v638
        %1209 = vmatprep.subr.mxu0 0.0
        %1210 = vmatpush1.msra.mxu0 %v639
        %1211 = vmatprep.subr.mxu0 0.0
        %1212 = vmatpush1.msra.mxu0 %v640
        %1213 = vmatprep.subr.mxu0 0.0
        %1214 = vmatpush1.msra.mxu0 %v641
        %1215 = vmatprep.subr.mxu0 0.0
        %1216 = vmatpush1.msra.mxu0 %v642
        %1217 = vmatprep.subr.mxu0 0.0
        %1218 = vmatpush1.msra.mxu0 %v643
        %1219 = vmatprep.subr.mxu0 0.0
        %1220 = vmatpush1.msra.mxu0 %v644
        %1221 = vmatprep.subr.mxu0 0.0
        %1222 = vmatpush1.msra.mxu0 0.0
        %1223 = vmatprep.subr.mxu0 0.0
        %1224 = vmatpush1.msra.mxu0 0.0
        %1225 = vmatprep.subr.mxu0 0.0
        %1226 = vmatpush1.msra.mxu0 0.0
        %1227 = vmatprep.subr.mxu0 0.0
        %1228 = vmatpush1.msra.mxu0 0.0
        %1229 = vmatprep.subr.mxu0 0.0
        %1230 = vmatpush1.msra.mxu0 0.0
        %1231 = vmatprep.subr.mxu0 0.0
        %1232 = vmatpush1.msra.mxu0 0.0
        %1233 = vmatprep.subr.mxu0 0.0
        %1234 = vmatpush1.msra.mxu0 0.0
        %1235 = vmatprep.subr.mxu0 0.0
        %1236 = vmatpush1.msra.mxu0 0.0
        %1237 = vmatprep.subr.mxu0 0.0
        %1238 = vmatpush1.msra.mxu0 0.0
        %1239 = vmatprep.subr.mxu0 0.0
        %1240 = vmatpush1.msra.mxu0 0.0
        %1241 = vmatprep.subr.mxu0 0.0
        %1242 = vmatpush1.msra.mxu0 0.0
        %1243 = vmatprep.subr.mxu0 0.0
        %1244 = vmatpush1.msra.mxu0 0.0
        %1245 = vmatprep.subr.mxu0 0.0
        %1246 = vmatpush1.msra.mxu0 0.0
        %1247 = vmatprep.subr.mxu0 0.0
        %1248 = vmatpush1.msra.mxu0 0.0
        %1249 = vmatprep.subr.mxu0 0.0
        %1250 = vmatpush1.msra.mxu0 0.0
        %1251 = vmatprep.subr.mxu0 0.0
        %1252 = vmatpush1.msra.mxu0 0.0
        %1253 = vmatprep.mubr.f32.mxu0 0.0
        %1254 = vmatmul.mubr.f32.gmra.mrb[0].mxu0 %v1186
        %v1255 = vpop.f32.mrb[0].mxu0
        %v1256 = vadd.f32 0.0, %v1255
        %v1257 = vpop.f32.mrb[0].mxu0
        %1258 = vmatprep.mubr.f32.mxu0 0.0
        %1259 = vmatmul.mubr.f32.gmra.mrb[0].mxu0 %v1188
        %v1260 = vpop.f32.mrb[0].mxu0
        %v1261 = vadd.f32 0.0, %v1260
        %v1262 = vpop.f32.mrb[0].mxu0
        %1263 = vdwg.mxu0
        %v1264 = vmax.f32 %v1256, 1e-30
        %v1265 = vmax.f32 %v1261, 1e-30
        %v1266 = vrcp.pop %v1264
        %v1267 = vmul.f32 %v1186, %v1266
        %v1268 = vrcp.pop %v1265
        %v1269 = vmul.f32 %v1188, %v1268
        %1270 = vmatprep.subr.mxu0 0.0
        %1271 = vmatpush1.msra.mxu0 %v587
        %1272 = vmatprep.subr.mxu0 0.0
        %1273 = vmatpush1.msra.mxu0 %v588
        %1274 = vmatprep.subr.mxu0 0.0
        %1275 = vmatpush1.msra.mxu0 %v589
        %1276 = vmatprep.subr.mxu0 0.0
        %1277 = vmatpush1.msra.mxu0 %v590
        %1278 = vmatprep.subr.mxu0 0.0
        %1279 = vmatpush1.msra.mxu0 %v591
        %1280 = vmatprep.subr.mxu0 0.0
        %1281 = vmatpush1.msra.mxu0 %v592
        %1282 = vmatprep.subr.mxu0 0.0
        %1283 = vmatpush1.msra.mxu0 %v593
        %1284 = vmatprep.subr.mxu0 0.0
        %1285 = vmatpush1.msra.mxu0 %v594
        %1286 = vmatprep.subr.mxu0 0.0
        %1287 = vmatpush1.msra.mxu0 %v595
        %1288 = vmatprep.subr.mxu0 0.0
        %1289 = vmatpush1.msra.mxu0 %v596
        %1290 = vmatprep.subr.mxu0 0.0
        %1291 = vmatpush1.msra.mxu0 %v597
        %1292 = vmatprep.subr.mxu0 0.0
        %1293 = vmatpush1.msra.mxu0 %v598
        %1294 = vmatprep.subr.mxu0 0.0
        %1295 = vmatpush1.msra.mxu0 %v599
        %1296 = vmatprep.subr.mxu0 0.0
        %1297 = vmatpush1.msra.mxu0 %v600
        %1298 = vmatprep.subr.mxu0 0.0
        %1299 = vmatpush1.msra.mxu0 %v601
        %1300 = vmatprep.subr.mxu0 0.0
        %1301 = vmatpush1.msra.mxu0 %v602
        %1302 = vmatprep.subr.mxu0 0.0
        %1303 = vmatpush1.msra.mxu0 0.0
        %1304 = vmatprep.subr.mxu0 0.0
        %1305 = vmatpush1.msra.mxu0 0.0
        %1306 = vmatprep.subr.mxu0 0.0
        %1307 = vmatpush1.msra.mxu0 0.0
        %1308 = vmatprep.subr.mxu0 0.0
        %1309 = vmatpush1.msra.mxu0 0.0
        %1310 = vmatprep.subr.mxu0 0.0
        %1311 = vmatpush1.msra.mxu0 0.0
        %1312 = vmatprep.subr.mxu0 0.0
        %1313 = vmatpush1.msra.mxu0 0.0
        %1314 = vmatprep.subr.mxu0 0.0
        %1315 = vmatpush1.msra.mxu0 0.0
        %1316 = vmatprep.subr.mxu0 0.0
        %1317 = vmatpush1.msra.mxu0 0.0
        %1318 = vmatprep.subr.mxu0 0.0
        %1319 = vmatpush1.msra.mxu0 0.0
        %1320 = vmatprep.subr.mxu0 0.0
        %1321 = vmatpush1.msra.mxu0 0.0
        %1322 = vmatprep.subr.mxu0 0.0
        %1323 = vmatpush1.msra.mxu0 0.0
        %1324 = vmatprep.subr.mxu0 0.0
        %1325 = vmatpush1.msra.mxu0 0.0
        %1326 = vmatprep.subr.mxu0 0.0
        %1327 = vmatpush1.msra.mxu0 0.0
        %1328 = vmatprep.subr.mxu0 0.0
        %1329 = vmatpush1.msra.mxu0 0.0
        %1330 = vmatprep.subr.mxu0 0.0
        %1331 = vmatpush1.msra.mxu0 0.0
        %1332 = vmatprep.subr.mxu0 0.0
        %1333 = vmatpush1.msra.mxu0 0.0
        %1334 = vmatprep.mubr.f32.mxu0 0.0
        %1335 = vmatmul.mubr.f32.gmra.mrb[0].mxu0 %v1267
        %v1336 = vpop.f32.mrb[0].mxu0
        %v1337 = vadd.f32 0.0, %v1336
        %v1338 = vpop.f32.mrb[0].mxu0
        %1339 = vmatprep.mubr.f32.mxu0 0.0
        %1340 = vmatmul.mubr.f32.gmra.mrb[0].mxu0 %v1269
        %v1341 = vpop.f32.mrb[0].mxu0
        %v1342 = vadd.f32 0.0, %v1341
        %v1343 = vpop.f32.mrb[0].mxu0
        %1344 = vdwg.mxu0
        %v1345 = vmul.f32 %v780, %v613
        %v1346 = vmul.f32 %v784, %v614
        %v1347 = vmul.f32 %v780, %v615
        %v1348 = vmul.f32 %v784, %v616
        %v1349 = vmul.f32 %v780, %v617
        %v1350 = vmul.f32 %v784, %v618
        %v1351 = vmul.f32 %v780, %v619
        %v1352 = vmul.f32 %v784, %v620
        %v1353 = vmul.f32 %v780, %v621
        %v1354 = vmul.f32 %v784, %v622
        %v1355 = vmul.f32 %v780, %v623
        %v1356 = vmul.f32 %v784, %v624
        %v1357 = vmul.f32 %v780, %v625
        %v1358 = vmul.f32 %v784, %v626
        %v1359 = vmul.f32 %v780, %v627
        %v1360 = vmul.f32 %v784, %v628
        %v1361 = vpack.c.bf16 %v1346, %v1345
        %v1362 = vpack.c.bf16 %v1348, %v1347
        %v1363 = vpack.c.bf16 %v1350, %v1349
        %v1364 = vpack.c.bf16 %v1352, %v1351
        %v1365 = vpack.c.bf16 %v1354, %v1353
        %v1366 = vpack.c.bf16 %v1356, %v1355
        %v1367 = vpack.c.bf16 %v1358, %v1357
        %v1368 = vpack.c.bf16 %v1360, %v1359
        %v1369 = vpack.c.bf16 %v1342, %v1337
        %1370 = vmatprep.subr.bf16.mxu0 0
        %1371 = vmatpush1.bf16.msra.mxu0 %v1361
        %1372 = vmatprep.subr.bf16.mxu0 0
        %1373 = vmatpush1.bf16.msra.mxu0 %v1362
        %1374 = vmatprep.subr.bf16.mxu0 0
        %1375 = vmatpush1.bf16.msra.mxu0 %v1363
        %1376 = vmatprep.subr.bf16.mxu0 0
        %1377 = vmatpush1.bf16.msra.mxu0 %v1364
        %1378 = vmatprep.subr.bf16.mxu0 0
        %1379 = vmatpush1.bf16.msra.mxu0 %v1365
        %1380 = vmatprep.subr.bf16.mxu0 0
        %1381 = vmatpush1.bf16.msra.mxu0 %v1366
        %1382 = vmatprep.subr.bf16.mxu0 0
        %1383 = vmatpush1.bf16.msra.mxu0 %v1367
        %1384 = vmatprep.subr.bf16.mxu0 0
        %1385 = vmatpush1.bf16.msra.mxu0 %v1368
        %1386 = vmatprep.subr.bf16.mxu0 0
        %1387 = vmatpush1.bf16.msra.mxu0 0
        %1388 = vmatprep.subr.bf16.mxu0 0
        %1389 = vmatpush1.bf16.msra.mxu0 0
        %1390 = vmatprep.subr.bf16.mxu0 0
        %1391 = vmatpush1.bf16.msra.mxu0 0
        %1392 = vmatprep.subr.bf16.mxu0 0
        %1393 = vmatpush1.bf16.msra.mxu0 0
        %1394 = vmatprep.subr.bf16.mxu0 0
        %1395 = vmatpush1.bf16.msra.mxu0 0
        %1396 = vmatprep.subr.bf16.mxu0 0
        %1397 = vmatpush1.bf16.msra.mxu0 0
        %1398 = vmatprep.subr.bf16.mxu0 0
        %1399 = vmatpush1.bf16.msra.mxu0 0
        %1400 = vmatprep.subr.bf16.mxu0 0
        %1401 = vmatpush1.bf16.msra.mxu0 0
        %1402 = vmatprep.mubr.bf16.mxu0 0
        %1403 = vmatmul.mubr.bf16.gmra.mrb[0].mxu0 %v1369
        %v1404 = vpop.f32.mrb[0].mxu0
        %v1405 = vadd.f32 0.0, %v1404
        %v1406 = vpop.f32.mrb[0].mxu0
        %v1407 = vpop.f32.mrb[0].mxu0
        %v1408 = vadd.f32 0.0, %v1407
        %v1409 = vpop.f32.mrb[0].mxu0
        %1410 = vdwg.mxu0
        %1415 = vrot.lane.b32.xlu0 %v960, 112
        %v1416 = vpop.permute.xlu0 %1415
        %1417 = vrot.lane.b32.xlu0 %v961, 112
        %v1418 = vpop.permute.xlu0 %1417
        %1419 = vrot.lane.b32.xlu0 %v962, 112
        %v1420 = vpop.permute.xlu0 %1419
        %1421 = vrot.lane.b32.xlu0 %v963, 112
        %v1422 = vpop.permute.xlu0 %1421
        %v1424 = vsel %vm970, %v1416, 0
        %v1427 = vsel %vm970, %v1418, 0
        %v1430 = vsel %vm970, %v1420, 0
        %v1433 = vsel %vm970, %v1422, 0
        %1435 = vmatprep.subr.bf16.mxu0 0
        %1436 = vmatpush1.bf16.msra.mxu0 %v968
        %1437 = vmatprep.subr.bf16.mxu0 0
        %1438 = vmatpush1.bf16.msra.mxu0 0
        %1439 = vmatprep.subr.bf16.mxu0 0
        %1440 = vmatpush1.bf16.msra.mxu0 0
        %1441 = vmatprep.subr.bf16.mxu0 0
        %1442 = vmatpush1.bf16.msra.mxu0 0
        %1443 = vmatprep.subr.bf16.mxu0 0
        %1444 = vmatpush1.bf16.msra.mxu0 0
        %1445 = vmatprep.subr.bf16.mxu0 0
        %1446 = vmatpush1.bf16.msra.mxu0 0
        %1447 = vmatprep.subr.bf16.mxu0 0
        %1448 = vmatpush1.bf16.msra.mxu0 0
        %1449 = vmatprep.subr.bf16.mxu0 0
        %1450 = vmatpush1.bf16.msra.mxu0 0
        %1451 = vmatprep.subr.bf16.mxu0 0
        %1452 = vmatpush1.bf16.msra.mxu0 0
        %1453 = vmatprep.subr.bf16.mxu0 0
        %1454 = vmatpush1.bf16.msra.mxu0 0
        %1455 = vmatprep.subr.bf16.mxu0 0
        %1456 = vmatpush1.bf16.msra.mxu0 0
        %1457 = vmatprep.subr.bf16.mxu0 0
        %1458 = vmatpush1.bf16.msra.mxu0 0
        %1459 = vmatprep.subr.bf16.mxu0 0
        %1460 = vmatpush1.bf16.msra.mxu0 0
        %1461 = vmatprep.subr.bf16.mxu0 0
        %1462 = vmatpush1.bf16.msra.mxu0 0
        %1463 = vmatprep.subr.bf16.mxu0 0
        %1464 = vmatpush1.bf16.msra.mxu0 0
        %1465 = vmatprep.subr.bf16.mxu0 0
        %1466 = vmatpush1.bf16.msra.mxu0 0
        %1467 = vmatprep.mubr.bf16.mxu0 0
        %1468 = vmatmul.mubr.bf16.gmra.mrb[0].mxu0 %v1424
        %v1469 = vpop.f32.mrb[0].mxu0
        %v1470 = vadd.f32 0.0, %v1469
        %v1471 = vpop.f32.mrb[0].mxu0
        %v1472 = vpop.f32.mrb[0].mxu0
        %v1473 = vadd.f32 0.0, %v1472
        %v1474 = vpop.f32.mrb[0].mxu0
        %1475 = vmatprep.mubr.bf16.mxu0 0
        %1476 = vmatmul.mubr.bf16.gmra.mrb[0].mxu0 %v1427
        %v1477 = vpop.f32.mrb[0].mxu0
        %v1478 = vadd.f32 0.0, %v1477
        %v1479 = vpop.f32.mrb[0].mxu0
        %v1480 = vpop.f32.mrb[0].mxu0
        %v1481 = vadd.f32 0.0, %v1480
        %v1482 = vpop.f32.mrb[0].mxu0
        %1483 = vmatprep.mubr.bf16.mxu0 0
        %1484 = vmatmul.mubr.bf16.gmra.mrb[0].mxu0 %v1430
        %v1485 = vpop.f32.mrb[0].mxu0
        %v1486 = vadd.f32 0.0, %v1485
        %v1487 = vpop.f32.mrb[0].mxu0
        %v1488 = vpop.f32.mrb[0].mxu0
        %v1489 = vadd.f32 0.0, %v1488
        %v1490 = vpop.f32.mrb[0].mxu0
        %1491 = vmatprep.mubr.bf16.mxu0 0
        %1492 = vmatmul.mubr.bf16.gmra.mrb[0].mxu0 %v1433
        %v1493 = vpop.f32.mrb[0].mxu0
        %v1494 = vadd.f32 0.0, %v1493
        %v1495 = vpop.f32.mrb[0].mxu0
        %v1496 = vpop.f32.mrb[0].mxu0
        %v1497 = vadd.f32 0.0, %v1496
        %v1498 = vpop.f32.mrb[0].mxu0
        %1499 = vdwg.mxu0
        %v1500 = vmul.f32 %v1470, %v605
        %v1501 = vmul.f32 %v1473, %v606
        %v1502 = vmul.f32 %v1478, %v607
        %v1503 = vmul.f32 %v1481, %v608
        %v1504 = vmul.f32 %v1486, %v609
        %v1505 = vmul.f32 %v1489, %v610
        %v1506 = vmul.f32 %v1494, %v611
        %v1507 = vmul.f32 %v1497, %v612
        %v1508 = vpack.c.bf16 %v1501, %v1500
        %v1509 = vpack.c.bf16 %v1503, %v1502
        %v1510 = vpack.c.bf16 %v1505, %v1504
        %v1511 = vpack.c.bf16 %v1507, %v1506
        %v1513 = vsel %vm718, %v857, 0
        %1515 = vmatprep.subr.bf16.mxu0 0
        %1516 = vmatpush1.bf16.msra.mxu0 %v1508
        %1517 = vmatprep.subr.bf16.mxu0 0
        %1518 = vmatpush1.bf16.msra.mxu0 %v1509
        %1519 = vmatprep.subr.bf16.mxu0 0
        %1520 = vmatpush1.bf16.msra.mxu0 %v1510
        %1521 = vmatprep.subr.bf16.mxu0 0
        %1522 = vmatpush1.bf16.msra.mxu0 %v1511
        %1523 = vmatprep.subr.bf16.mxu0 0
        %1524 = vmatpush1.bf16.msra.mxu0 0
        %1525 = vmatprep.subr.bf16.mxu0 0
        %1526 = vmatpush1.bf16.msra.mxu0 0
        %1527 = vmatprep.subr.bf16.mxu0 0
        %1528 = vmatpush1.bf16.msra.mxu0 0
        %1529 = vmatprep.subr.bf16.mxu0 0
        %1530 = vmatpush1.bf16.msra.mxu0 0
        %1531 = vmatprep.subr.bf16.mxu0 0
        %1532 = vmatpush1.bf16.msra.mxu0 0
        %1533 = vmatprep.subr.bf16.mxu0 0
        %1534 = vmatpush1.bf16.msra.mxu0 0
        %1535 = vmatprep.subr.bf16.mxu0 0
        %1536 = vmatpush1.bf16.msra.mxu0 0
        %1537 = vmatprep.subr.bf16.mxu0 0
        %1538 = vmatpush1.bf16.msra.mxu0 0
        %1539 = vmatprep.subr.bf16.mxu0 0
        %1540 = vmatpush1.bf16.msra.mxu0 0
        %1541 = vmatprep.subr.bf16.mxu0 0
        %1542 = vmatpush1.bf16.msra.mxu0 0
        %1543 = vmatprep.subr.bf16.mxu0 0
        %1544 = vmatpush1.bf16.msra.mxu0 0
        %1545 = vmatprep.subr.bf16.mxu0 0
        %1546 = vmatpush1.bf16.msra.mxu0 0
        %1547 = vmatprep.mubr.bf16.mxu0 0
        %1548 = vmatmul.mubr.bf16.gmra.mrb[0].mxu0 %v1513
        %v1549 = vpop.f32.mrb[0].mxu0
        %v1550 = vadd.f32 0.0, %v1549
        %v1551 = vpop.f32.mrb[0].mxu0
        %v1552 = vpop.f32.mrb[0].mxu0
        %v1553 = vadd.f32 0.0, %v1552
        %v1554 = vpop.f32.mrb[0].mxu0
        %1555 = vdwg.mxu0
        %1556 = vmatprep.subr.mxu0 0.0
        %1557 = vmatpush1.msra.mxu0 %v570
        %1558 = vmatprep.subr.mxu0 0.0
        %1559 = vmatpush1.msra.mxu0 %v571
        %1560 = vmatprep.subr.mxu0 0.0
        %1561 = vmatpush1.msra.mxu0 %v572
        %1562 = vmatprep.subr.mxu0 0.0
        %1563 = vmatpush1.msra.mxu0 %v573
        %1564 = vmatprep.subr.mxu0 0.0
        %1565 = vmatpush1.msra.mxu0 %v574
        %1566 = vmatprep.subr.mxu0 0.0
        %1567 = vmatpush1.msra.mxu0 %v575
        %1568 = vmatprep.subr.mxu0 0.0
        %1569 = vmatpush1.msra.mxu0 %v576
        %1570 = vmatprep.subr.mxu0 0.0
        %1571 = vmatpush1.msra.mxu0 %v577
        %1572 = vmatprep.subr.mxu0 0.0
        %1573 = vmatpush1.msra.mxu0 %v578
        %1574 = vmatprep.subr.mxu0 0.0
        %1575 = vmatpush1.msra.mxu0 %v579
        %1576 = vmatprep.subr.mxu0 0.0
        %1577 = vmatpush1.msra.mxu0 %v580
        %1578 = vmatprep.subr.mxu0 0.0
        %1579 = vmatpush1.msra.mxu0 %v581
        %1580 = vmatprep.subr.mxu0 0.0
        %1581 = vmatpush1.msra.mxu0 %v582
        %1582 = vmatprep.subr.mxu0 0.0
        %1583 = vmatpush1.msra.mxu0 %v583
        %1584 = vmatprep.subr.mxu0 0.0
        %1585 = vmatpush1.msra.mxu0 %v584
        %1586 = vmatprep.subr.mxu0 0.0
        %1587 = vmatpush1.msra.mxu0 %v585
        %1588 = vmatprep.subr.mxu0 0.0
        %1589 = vmatpush1.msra.mxu0 0.0
        %1590 = vmatprep.subr.mxu0 0.0
        %1591 = vmatpush1.msra.mxu0 0.0
        %1592 = vmatprep.subr.mxu0 0.0
        %1593 = vmatpush1.msra.mxu0 0.0
        %1594 = vmatprep.subr.mxu0 0.0
        %1595 = vmatpush1.msra.mxu0 0.0
        %1596 = vmatprep.subr.mxu0 0.0
        %1597 = vmatpush1.msra.mxu0 0.0
        %1598 = vmatprep.subr.mxu0 0.0
        %1599 = vmatpush1.msra.mxu0 0.0
        %1600 = vmatprep.subr.mxu0 0.0
        %1601 = vmatpush1.msra.mxu0 0.0
        %1602 = vmatprep.subr.mxu0 0.0
        %1603 = vmatpush1.msra.mxu0 0.0
        %1604 = vmatprep.subr.mxu0 0.0
        %1605 = vmatpush1.msra.mxu0 0.0
        %1606 = vmatprep.subr.mxu0 0.0
        %1607 = vmatpush1.msra.mxu0 0.0
        %1608 = vmatprep.subr.mxu0 0.0
        %1609 = vmatpush1.msra.mxu0 0.0
        %1610 = vmatprep.subr.mxu0 0.0
        %1611 = vmatpush1.msra.mxu0 0.0
        %1612 = vmatprep.subr.mxu0 0.0
        %1613 = vmatpush1.msra.mxu0 0.0
        %1614 = vmatprep.subr.mxu0 0.0
        %1615 = vmatpush1.msra.mxu0 0.0
        %1616 = vmatprep.subr.mxu0 0.0
        %1617 = vmatpush1.msra.mxu0 0.0
        %1618 = vmatprep.subr.mxu0 0.0
        %1619 = vmatpush1.msra.mxu0 0.0
        %1620 = vmatprep.mubr.f32.mxu0 0.0
        %1621 = vmatmul.mubr.f32.gmra.mrb[0].mxu0 %v1550
        %v1622 = vpop.f32.mrb[0].mxu0
        %v1623 = vadd.f32 0.0, %v1622
        %v1624 = vpop.f32.mrb[0].mxu0
        %1625 = vmatprep.mubr.f32.mxu0 0.0
        %1626 = vmatmul.mubr.f32.gmra.mrb[0].mxu0 %v1553
        %v1627 = vpop.f32.mrb[0].mxu0
        %v1628 = vadd.f32 0.0, %v1627
        %v1629 = vpop.f32.mrb[0].mxu0
        %1630 = vdwg.mxu0
        %1631 = vmax.xlane.f32.xlu0 %v1623
        %v1632 = vpop.xlane.xlu0 %1631
        %1633 = vmax.xlane.f32.xlu0 %v1628
        %v1634 = vpop.xlane.xlu0 %1633
        %v1635 = vsub.f32 %v1623, %v1632
        %v1636 = vsub.f32 %v1628, %v1634
        %v1637 = vmul.f32 %v1635, 1.442695
        %v1638 = vpow.pop %v1637
        %v1639 = vmul.f32 %v1636, 1.442695
        %v1640 = vpow.pop %v1639
        %1641 = vmatprep.subr.mxu0 0.0
        %1642 = vmatpush1.msra.mxu0 %v629
        %1643 = vmatprep.subr.mxu0 0.0
        %1644 = vmatpush1.msra.mxu0 %v630
        %1645 = vmatprep.subr.mxu0 0.0
        %1646 = vmatpush1.msra.mxu0 %v631
        %1647 = vmatprep.subr.mxu0 0.0
        %1648 = vmatpush1.msra.mxu0 %v632
        %1649 = vmatprep.subr.mxu0 0.0
        %1650 = vmatpush1.msra.mxu0 %v633
        %1651 = vmatprep.subr.mxu0 0.0
        %1652 = vmatpush1.msra.mxu0 %v634
        %1653 = vmatprep.subr.mxu0 0.0
        %1654 = vmatpush1.msra.mxu0 %v635
        %1655 = vmatprep.subr.mxu0 0.0
        %1656 = vmatpush1.msra.mxu0 %v636
        %1657 = vmatprep.subr.mxu0 0.0
        %1658 = vmatpush1.msra.mxu0 %v637
        %1659 = vmatprep.subr.mxu0 0.0
        %1660 = vmatpush1.msra.mxu0 %v638
        %1661 = vmatprep.subr.mxu0 0.0
        %1662 = vmatpush1.msra.mxu0 %v639
        %1663 = vmatprep.subr.mxu0 0.0
        %1664 = vmatpush1.msra.mxu0 %v640
        %1665 = vmatprep.subr.mxu0 0.0
        %1666 = vmatpush1.msra.mxu0 %v641
        %1667 = vmatprep.subr.mxu0 0.0
        %1668 = vmatpush1.msra.mxu0 %v642
        %1669 = vmatprep.subr.mxu0 0.0
        %1670 = vmatpush1.msra.mxu0 %v643
        %1671 = vmatprep.subr.mxu0 0.0
        %1672 = vmatpush1.msra.mxu0 %v644
        %1673 = vmatprep.subr.mxu0 0.0
        %1674 = vmatpush1.msra.mxu0 0.0
        %1675 = vmatprep.subr.mxu0 0.0
        %1676 = vmatpush1.msra.mxu0 0.0
        %1677 = vmatprep.subr.mxu0 0.0
        %1678 = vmatpush1.msra.mxu0 0.0
        %1679 = vmatprep.subr.mxu0 0.0
        %1680 = vmatpush1.msra.mxu0 0.0
        %1681 = vmatprep.subr.mxu0 0.0
        %1682 = vmatpush1.msra.mxu0 0.0
        %1683 = vmatprep.subr.mxu0 0.0
        %1684 = vmatpush1.msra.mxu0 0.0
        %1685 = vmatprep.subr.mxu0 0.0
        %1686 = vmatpush1.msra.mxu0 0.0
        %1687 = vmatprep.subr.mxu0 0.0
        %1688 = vmatpush1.msra.mxu0 0.0
        %1689 = vmatprep.subr.mxu0 0.0
        %1690 = vmatpush1.msra.mxu0 0.0
        %1691 = vmatprep.subr.mxu0 0.0
        %1692 = vmatpush1.msra.mxu0 0.0
        %1693 = vmatprep.subr.mxu0 0.0
        %1694 = vmatpush1.msra.mxu0 0.0
        %1695 = vmatprep.subr.mxu0 0.0
        %1696 = vmatpush1.msra.mxu0 0.0
        %1697 = vmatprep.subr.mxu0 0.0
        %1698 = vmatpush1.msra.mxu0 0.0
        %1699 = vmatprep.subr.mxu0 0.0
        %1700 = vmatpush1.msra.mxu0 0.0
        %1701 = vmatprep.subr.mxu0 0.0
        %1702 = vmatpush1.msra.mxu0 0.0
        %1703 = vmatprep.subr.mxu0 0.0
        %1704 = vmatpush1.msra.mxu0 0.0
        %1705 = vmatprep.mubr.f32.mxu0 0.0
        %1706 = vmatmul.mubr.f32.gmra.mrb[0].mxu0 %v1638
        %v1707 = vpop.f32.mrb[0].mxu0
        %v1708 = vadd.f32 0.0, %v1707
        %v1709 = vpop.f32.mrb[0].mxu0
        %1710 = vmatprep.mubr.f32.mxu0 0.0
        %1711 = vmatmul.mubr.f32.gmra.mrb[0].mxu0 %v1640
        %v1712 = vpop.f32.mrb[0].mxu0
        %v1713 = vadd.f32 0.0, %v1712
        %v1714 = vpop.f32.mrb[0].mxu0
        %1715 = vdwg.mxu0
        %v1716 = vmax.f32 %v1708, 1e-30
        %v1717 = vmax.f32 %v1713, 1e-30
        %v1718 = vrcp.pop %v1716
        %v1719 = vmul.f32 %v1638, %v1718
        %v1720 = vrcp.pop %v1717
        %v1721 = vmul.f32 %v1640, %v1720
        %1722 = vmatprep.subr.mxu0 0.0
        %1723 = vmatpush1.msra.mxu0 %v587
        %1724 = vmatprep.subr.mxu0 0.0
        %1725 = vmatpush1.msra.mxu0 %v588
        %1726 = vmatprep.subr.mxu0 0.0
        %1727 = vmatpush1.msra.mxu0 %v589
        %1728 = vmatprep.subr.mxu0 0.0
        %1729 = vmatpush1.msra.mxu0 %v590
        %1730 = vmatprep.subr.mxu0 0.0
        %1731 = vmatpush1.msra.mxu0 %v591
        %1732 = vmatprep.subr.mxu0 0.0
        %1733 = vmatpush1.msra.mxu0 %v592
        %1734 = vmatprep.subr.mxu0 0.0
        %1735 = vmatpush1.msra.mxu0 %v593
        %1736 = vmatprep.subr.mxu0 0.0
        %1737 = vmatpush1.msra.mxu0 %v594
        %1738 = vmatprep.subr.mxu0 0.0
        %1739 = vmatpush1.msra.mxu0 %v595
        %1740 = vmatprep.subr.mxu0 0.0
        %1741 = vmatpush1.msra.mxu0 %v596
        %1742 = vmatprep.subr.mxu0 0.0
        %1743 = vmatpush1.msra.mxu0 %v597
        %1744 = vmatprep.subr.mxu0 0.0
        %1745 = vmatpush1.msra.mxu0 %v598
        %1746 = vmatprep.subr.mxu0 0.0
        %1747 = vmatpush1.msra.mxu0 %v599
        %1748 = vmatprep.subr.mxu0 0.0
        %1749 = vmatpush1.msra.mxu0 %v600
        %1750 = vmatprep.subr.mxu0 0.0
        %1751 = vmatpush1.msra.mxu0 %v601
        %1752 = vmatprep.subr.mxu0 0.0
        %1753 = vmatpush1.msra.mxu0 %v602
        %1754 = vmatprep.subr.mxu0 0.0
        %1755 = vmatpush1.msra.mxu0 0.0
        %1756 = vmatprep.subr.mxu0 0.0
        %1757 = vmatpush1.msra.mxu0 0.0
        %1758 = vmatprep.subr.mxu0 0.0
        %1759 = vmatpush1.msra.mxu0 0.0
        %1760 = vmatprep.subr.mxu0 0.0
        %1761 = vmatpush1.msra.mxu0 0.0
        %1762 = vmatprep.subr.mxu0 0.0
        %1763 = vmatpush1.msra.mxu0 0.0
        %1764 = vmatprep.subr.mxu0 0.0
        %1765 = vmatpush1.msra.mxu0 0.0
        %1766 = vmatprep.subr.mxu0 0.0
        %1767 = vmatpush1.msra.mxu0 0.0
        %1768 = vmatprep.subr.mxu0 0.0
        %1769 = vmatpush1.msra.mxu0 0.0
        %1770 = vmatprep.subr.mxu0 0.0
        %1771 = vmatpush1.msra.mxu0 0.0
        %1772 = vmatprep.subr.mxu0 0.0
        %1773 = vmatpush1.msra.mxu0 0.0
        %1774 = vmatprep.subr.mxu0 0.0
        %1775 = vmatpush1.msra.mxu0 0.0
        %1776 = vmatprep.subr.mxu0 0.0
        %1777 = vmatpush1.msra.mxu0 0.0
        %1778 = vmatprep.subr.mxu0 0.0
        %1779 = vmatpush1.msra.mxu0 0.0
        %1780 = vmatprep.subr.mxu0 0.0
        %1781 = vmatpush1.msra.mxu0 0.0
        %1782 = vmatprep.subr.mxu0 0.0
        %1783 = vmatpush1.msra.mxu0 0.0
        %1784 = vmatprep.subr.mxu0 0.0
        %1785 = vmatpush1.msra.mxu0 0.0
        %1786 = vmatprep.mubr.f32.mxu0 0.0
        %1787 = vmatmul.mubr.f32.gmra.mrb[0].mxu0 %v1719
        %v1788 = vpop.f32.mrb[0].mxu0
        %v1789 = vadd.f32 0.0, %v1788
        %v1790 = vpop.f32.mrb[0].mxu0
        %1791 = vmatprep.mubr.f32.mxu0 0.0
        %1792 = vmatmul.mubr.f32.gmra.mrb[0].mxu0 %v1721
        %v1793 = vpop.f32.mrb[0].mxu0
        %v1794 = vadd.f32 0.0, %v1793
        %v1795 = vpop.f32.mrb[0].mxu0
        %1796 = vdwg.mxu0
        %v1797 = vmul.f32 %v790, %v613
        %v1798 = vmul.f32 %v794, %v614
        %v1799 = vmul.f32 %v790, %v615
        %v1800 = vmul.f32 %v794, %v616
        %v1801 = vmul.f32 %v790, %v617
        %v1802 = vmul.f32 %v794, %v618
        %v1803 = vmul.f32 %v790, %v619
        %v1804 = vmul.f32 %v794, %v620
        %v1805 = vmul.f32 %v790, %v621
        %v1806 = vmul.f32 %v794, %v622
        %v1807 = vmul.f32 %v790, %v623
        %v1808 = vmul.f32 %v794, %v624
        %v1809 = vmul.f32 %v790, %v625
        %v1810 = vmul.f32 %v794, %v626
        %v1811 = vmul.f32 %v790, %v627
        %v1812 = vmul.f32 %v794, %v628
        %v1813 = vpack.c.bf16 %v1798, %v1797
        %v1814 = vpack.c.bf16 %v1800, %v1799
        %v1815 = vpack.c.bf16 %v1802, %v1801
        %v1816 = vpack.c.bf16 %v1804, %v1803
        %v1817 = vpack.c.bf16 %v1806, %v1805
        %v1818 = vpack.c.bf16 %v1808, %v1807
        %v1819 = vpack.c.bf16 %v1810, %v1809
        %v1820 = vpack.c.bf16 %v1812, %v1811
        %v1821 = vpack.c.bf16 %v1794, %v1789
        %1822 = vmatprep.subr.bf16.mxu0 0
        %1823 = vmatpush1.bf16.msra.mxu0 %v1813
        %1824 = vmatprep.subr.bf16.mxu0 0
        %1825 = vmatpush1.bf16.msra.mxu0 %v1814
        %1826 = vmatprep.subr.bf16.mxu0 0
        %1827 = vmatpush1.bf16.msra.mxu0 %v1815
        %1828 = vmatprep.subr.bf16.mxu0 0
        %1829 = vmatpush1.bf16.msra.mxu0 %v1816
        %1830 = vmatprep.subr.bf16.mxu0 0
        %1831 = vmatpush1.bf16.msra.mxu0 %v1817
        %1832 = vmatprep.subr.bf16.mxu0 0
        %1833 = vmatpush1.bf16.msra.mxu0 %v1818
        %1834 = vmatprep.subr.bf16.mxu0 0
        %1835 = vmatpush1.bf16.msra.mxu0 %v1819
        %1836 = vmatprep.subr.bf16.mxu0 0
        %1837 = vmatpush1.bf16.msra.mxu0 %v1820
        %1838 = vmatprep.subr.bf16.mxu0 0
        %1839 = vmatpush1.bf16.msra.mxu0 0
        %1840 = vmatprep.subr.bf16.mxu0 0
        %1841 = vmatpush1.bf16.msra.mxu0 0
        %1842 = vmatprep.subr.bf16.mxu0 0
        %1843 = vmatpush1.bf16.msra.mxu0 0
        %1844 = vmatprep.subr.bf16.mxu0 0
        %1845 = vmatpush1.bf16.msra.mxu0 0
        %1846 = vmatprep.subr.bf16.mxu0 0
        %1847 = vmatpush1.bf16.msra.mxu0 0
        %1848 = vmatprep.subr.bf16.mxu0 0
        %1849 = vmatpush1.bf16.msra.mxu0 0
        %1850 = vmatprep.subr.bf16.mxu0 0
        %1851 = vmatpush1.bf16.msra.mxu0 0
        %1852 = vmatprep.subr.bf16.mxu0 0
        %1853 = vmatpush1.bf16.msra.mxu0 0
        %1854 = vmatprep.mubr.bf16.mxu0 0
        %1855 = vmatmul.mubr.bf16.gmra.mrb[0].mxu0 %v1821
        %v1856 = vpop.f32.mrb[0].mxu0
        %v1857 = vadd.f32 0.0, %v1856
        %v1858 = vpop.f32.mrb[0].mxu0
        %v1859 = vpop.f32.mrb[0].mxu0
        %v1860 = vadd.f32 0.0, %v1859
        %v1861 = vpop.f32.mrb[0].mxu0
        %1862 = vdwg.mxu0
        %1863 = vrot.lane.b32.xlu0 %v960, 96
        %v1864 = vpop.permute.xlu0 %1863
        %1865 = vrot.lane.b32.xlu0 %v961, 96
        %v1866 = vpop.permute.xlu0 %1865
        %1867 = vrot.lane.b32.xlu0 %v962, 96
        %v1868 = vpop.permute.xlu0 %1867
        %1869 = vrot.lane.b32.xlu0 %v963, 96
        %v1870 = vpop.permute.xlu0 %1869
        %v1872 = vsel %vm970, %v1864, 0
        %v1875 = vsel %vm970, %v1866, 0
        %v1878 = vsel %vm970, %v1868, 0
        %v1881 = vsel %vm970, %v1870, 0
        %1883 = vmatprep.subr.bf16.mxu0 0
        %1884 = vmatpush1.bf16.msra.mxu0 %v968
        %1885 = vmatprep.subr.bf16.mxu0 0
        %1886 = vmatpush1.bf16.msra.mxu0 0
        %1887 = vmatprep.subr.bf16.mxu0 0
        %1888 = vmatpush1.bf16.msra.mxu0 0
        %1889 = vmatprep.subr.bf16.mxu0 0
        %1890 = vmatpush1.bf16.msra.mxu0 0
        %1891 = vmatprep.subr.bf16.mxu0 0
        %1892 = vmatpush1.bf16.msra.mxu0 0
        %1893 = vmatprep.subr.bf16.mxu0 0
        %1894 = vmatpush1.bf16.msra.mxu0 0
        %1895 = vmatprep.subr.bf16.mxu0 0
        %1896 = vmatpush1.bf16.msra.mxu0 0
        %1897 = vmatprep.subr.bf16.mxu0 0
        %1898 = vmatpush1.bf16.msra.mxu0 0
        %1899 = vmatprep.subr.bf16.mxu0 0
        %1900 = vmatpush1.bf16.msra.mxu0 0
        %1901 = vmatprep.subr.bf16.mxu0 0
        %1902 = vmatpush1.bf16.msra.mxu0 0
        %1903 = vmatprep.subr.bf16.mxu0 0
        %1904 = vmatpush1.bf16.msra.mxu0 0
        %1905 = vmatprep.subr.bf16.mxu0 0
        %1906 = vmatpush1.bf16.msra.mxu0 0
        %1907 = vmatprep.subr.bf16.mxu0 0
        %1908 = vmatpush1.bf16.msra.mxu0 0
        %1909 = vmatprep.subr.bf16.mxu0 0
        %1910 = vmatpush1.bf16.msra.mxu0 0
        %1911 = vmatprep.subr.bf16.mxu0 0
        %1912 = vmatpush1.bf16.msra.mxu0 0
        %1913 = vmatprep.subr.bf16.mxu0 0
        %1914 = vmatpush1.bf16.msra.mxu0 0
        %1915 = vmatprep.mubr.bf16.mxu0 0
        %1916 = vmatmul.mubr.bf16.gmra.mrb[0].mxu0 %v1872
        %v1917 = vpop.f32.mrb[0].mxu0
        %v1918 = vadd.f32 0.0, %v1917
        %v1919 = vpop.f32.mrb[0].mxu0
        %v1920 = vpop.f32.mrb[0].mxu0
        %v1921 = vadd.f32 0.0, %v1920
        %v1922 = vpop.f32.mrb[0].mxu0
        %1923 = vmatprep.mubr.bf16.mxu0 0
        %1924 = vmatmul.mubr.bf16.gmra.mrb[0].mxu0 %v1875
        %v1925 = vpop.f32.mrb[0].mxu0
        %v1926 = vadd.f32 0.0, %v1925
        %v1927 = vpop.f32.mrb[0].mxu0
        %v1928 = vpop.f32.mrb[0].mxu0
        %v1929 = vadd.f32 0.0, %v1928
        %v1930 = vpop.f32.mrb[0].mxu0
        %1931 = vmatprep.mubr.bf16.mxu0 0
        %1932 = vmatmul.mubr.bf16.gmra.mrb[0].mxu0 %v1878
        %v1933 = vpop.f32.mrb[0].mxu0
        %v1934 = vadd.f32 0.0, %v1933
        %v1935 = vpop.f32.mrb[0].mxu0
        %v1936 = vpop.f32.mrb[0].mxu0
        %v1937 = vadd.f32 0.0, %v1936
        %v1938 = vpop.f32.mrb[0].mxu0
        %1939 = vmatprep.mubr.bf16.mxu0 0
        %1940 = vmatmul.mubr.bf16.gmra.mrb[0].mxu0 %v1881
        %v1941 = vpop.f32.mrb[0].mxu0
        %v1942 = vadd.f32 0.0, %v1941
        %v1943 = vpop.f32.mrb[0].mxu0
        %v1944 = vpop.f32.mrb[0].mxu0
        %v1945 = vadd.f32 0.0, %v1944
        %v1946 = vpop.f32.mrb[0].mxu0
        %1947 = vdwg.mxu0
        %v1948 = vmul.f32 %v1918, %v605
        %v1949 = vmul.f32 %v1921, %v606
        %v1950 = vmul.f32 %v1926, %v607
        %v1951 = vmul.f32 %v1929, %v608
        %v1952 = vmul.f32 %v1934, %v609
        %v1953 = vmul.f32 %v1937, %v610
        %v1954 = vmul.f32 %v1942, %v611
        %v1955 = vmul.f32 %v1945, %v612
        %v1956 = vpack.c.bf16 %v1949, %v1948
        %v1957 = vpack.c.bf16 %v1951, %v1950
        %v1958 = vpack.c.bf16 %v1953, %v1952
        %v1959 = vpack.c.bf16 %v1955, %v1954
        %v1961 = vsel %vm718, %v858, 0
        %1963 = vmatprep.subr.bf16.mxu0 0
        %1964 = vmatpush1.bf16.msra.mxu0 %v1956
        %1965 = vmatprep.subr.bf16.mxu0 0
        %1966 = vmatpush1.bf16.msra.mxu0 %v1957
        %1967 = vmatprep.subr.bf16.mxu0 0
        %1968 = vmatpush1.bf16.msra.mxu0 %v1958
        %1969 = vmatprep.subr.bf16.mxu0 0
        %1970 = vmatpush1.bf16.msra.mxu0 %v1959
        %1971 = vmatprep.subr.bf16.mxu0 0
        %1972 = vmatpush1.bf16.msra.mxu0 0
        %1973 = vmatprep.subr.bf16.mxu0 0
        %1974 = vmatpush1.bf16.msra.mxu0 0
        %1975 = vmatprep.subr.bf16.mxu0 0
        %1976 = vmatpush1.bf16.msra.mxu0 0
        %1977 = vmatprep.subr.bf16.mxu0 0
        %1978 = vmatpush1.bf16.msra.mxu0 0
        %1979 = vmatprep.subr.bf16.mxu0 0
        %1980 = vmatpush1.bf16.msra.mxu0 0
        %1981 = vmatprep.subr.bf16.mxu0 0
        %1982 = vmatpush1.bf16.msra.mxu0 0
        %1983 = vmatprep.subr.bf16.mxu0 0
        %1984 = vmatpush1.bf16.msra.mxu0 0
        %1985 = vmatprep.subr.bf16.mxu0 0
        %1986 = vmatpush1.bf16.msra.mxu0 0
        %1987 = vmatprep.subr.bf16.mxu0 0
        %1988 = vmatpush1.bf16.msra.mxu0 0
        %1989 = vmatprep.subr.bf16.mxu0 0
        %1990 = vmatpush1.bf16.msra.mxu0 0
        %1991 = vmatprep.subr.bf16.mxu0 0
        %1992 = vmatpush1.bf16.msra.mxu0 0
        %1993 = vmatprep.subr.bf16.mxu0 0
        %1994 = vmatpush1.bf16.msra.mxu0 0
        %1995 = vmatprep.mubr.bf16.mxu0 0
        %1996 = vmatmul.mubr.bf16.gmra.mrb[0].mxu0 %v1961
        %v1997 = vpop.f32.mrb[0].mxu0
        %v1998 = vadd.f32 0.0, %v1997
        %v1999 = vpop.f32.mrb[0].mxu0
        %v2000 = vpop.f32.mrb[0].mxu0
        %v2001 = vadd.f32 0.0, %v2000
        %v2002 = vpop.f32.mrb[0].mxu0
        %2003 = vdwg.mxu0
        %2004 = vmatprep.subr.mxu0 0.0
        %2005 = vmatpush1.msra.mxu0 %v570
        %2006 = vmatprep.subr.mxu0 0.0
        %2007 = vmatpush1.msra.mxu0 %v571
        %2008 = vmatprep.subr.mxu0 0.0
        %2009 = vmatpush1.msra.mxu0 %v572
        %2010 = vmatprep.subr.mxu0 0.0
        %2011 = vmatpush1.msra.mxu0 %v573
        %2012 = vmatprep.subr.mxu0 0.0
        %2013 = vmatpush1.msra.mxu0 %v574
        %2014 = vmatprep.subr.mxu0 0.0
        %2015 = vmatpush1.msra.mxu0 %v575
        %2016 = vmatprep.subr.mxu0 0.0
        %2017 = vmatpush1.msra.mxu0 %v576
        %2018 = vmatprep.subr.mxu0 0.0
        %2019 = vmatpush1.msra.mxu0 %v577
        %2020 = vmatprep.subr.mxu0 0.0
        %2021 = vmatpush1.msra.mxu0 %v578
        %2022 = vmatprep.subr.mxu0 0.0
        %2023 = vmatpush1.msra.mxu0 %v579
        %2024 = vmatprep.subr.mxu0 0.0
        %2025 = vmatpush1.msra.mxu0 %v580
        %2026 = vmatprep.subr.mxu0 0.0
        %2027 = vmatpush1.msra.mxu0 %v581
        %2028 = vmatprep.subr.mxu0 0.0
        %2029 = vmatpush1.msra.mxu0 %v582
        %2030 = vmatprep.subr.mxu0 0.0
        %2031 = vmatpush1.msra.mxu0 %v583
        %2032 = vmatprep.subr.mxu0 0.0
        %2033 = vmatpush1.msra.mxu0 %v584
        %2034 = vmatprep.subr.mxu0 0.0
        %2035 = vmatpush1.msra.mxu0 %v585
        %2036 = vmatprep.subr.mxu0 0.0
        %2037 = vmatpush1.msra.mxu0 0.0
        %2038 = vmatprep.subr.mxu0 0.0
        %2039 = vmatpush1.msra.mxu0 0.0
        %2040 = vmatprep.subr.mxu0 0.0
        %2041 = vmatpush1.msra.mxu0 0.0
        %2042 = vmatprep.subr.mxu0 0.0
        %2043 = vmatpush1.msra.mxu0 0.0
        %2044 = vmatprep.subr.mxu0 0.0
        %2045 = vmatpush1.msra.mxu0 0.0
        %2046 = vmatprep.subr.mxu0 0.0
        %2047 = vmatpush1.msra.mxu0 0.0
        %2048 = vmatprep.subr.mxu0 0.0
        %2049 = vmatpush1.msra.mxu0 0.0
        %2050 = vmatprep.subr.mxu0 0.0
        %2051 = vmatpush1.msra.mxu0 0.0
        %2052 = vmatprep.subr.mxu0 0.0
        %2053 = vmatpush1.msra.mxu0 0.0
        %2054 = vmatprep.subr.mxu0 0.0
        %2055 = vmatpush1.msra.mxu0 0.0
        %2056 = vmatprep.subr.mxu0 0.0
        %2057 = vmatpush1.msra.mxu0 0.0
        %2058 = vmatprep.subr.mxu0 0.0
        %2059 = vmatpush1.msra.mxu0 0.0
        %2060 = vmatprep.subr.mxu0 0.0
        %2061 = vmatpush1.msra.mxu0 0.0
        %2062 = vmatprep.subr.mxu0 0.0
        %2063 = vmatpush1.msra.mxu0 0.0
        %2064 = vmatprep.subr.mxu0 0.0
        %2065 = vmatpush1.msra.mxu0 0.0
        %2066 = vmatprep.subr.mxu0 0.0
        %2067 = vmatpush1.msra.mxu0 0.0
        %2068 = vmatprep.mubr.f32.mxu0 0.0
        %2069 = vmatmul.mubr.f32.gmra.mrb[0].mxu0 %v1998
        %v2070 = vpop.f32.mrb[0].mxu0
        %v2071 = vadd.f32 0.0, %v2070
        %v2072 = vpop.f32.mrb[0].mxu0
        %2073 = vmatprep.mubr.f32.mxu0 0.0
        %2074 = vmatmul.mubr.f32.gmra.mrb[0].mxu0 %v2001
        %v2075 = vpop.f32.mrb[0].mxu0
        %v2076 = vadd.f32 0.0, %v2075
        %v2077 = vpop.f32.mrb[0].mxu0
        %2078 = vdwg.mxu0
        %2079 = vmax.xlane.f32.xlu0 %v2071
        %v2080 = vpop.xlane.xlu0 %2079
        %2081 = vmax.xlane.f32.xlu0 %v2076
        %v2082 = vpop.xlane.xlu0 %2081
        %v2083 = vsub.f32 %v2071, %v2080
        %v2084 = vsub.f32 %v2076, %v2082
        %v2085 = vmul.f32 %v2083, 1.442695
        %v2086 = vpow.pop %v2085
        %v2087 = vmul.f32 %v2084, 1.442695
        %v2088 = vpow.pop %v2087
        %2089 = vmatprep.subr.mxu0 0.0
        %2090 = vmatpush1.msra.mxu0 %v629
        %2091 = vmatprep.subr.mxu0 0.0
        %2092 = vmatpush1.msra.mxu0 %v630
        %2093 = vmatprep.subr.mxu0 0.0
        %2094 = vmatpush1.msra.mxu0 %v631
        %2095 = vmatprep.subr.mxu0 0.0
        %2096 = vmatpush1.msra.mxu0 %v632
        %2097 = vmatprep.subr.mxu0 0.0
        %2098 = vmatpush1.msra.mxu0 %v633
        %2099 = vmatprep.subr.mxu0 0.0
        %2100 = vmatpush1.msra.mxu0 %v634
        %2101 = vmatprep.subr.mxu0 0.0
        %2102 = vmatpush1.msra.mxu0 %v635
        %2103 = vmatprep.subr.mxu0 0.0
        %2104 = vmatpush1.msra.mxu0 %v636
        %2105 = vmatprep.subr.mxu0 0.0
        %2106 = vmatpush1.msra.mxu0 %v637
        %2107 = vmatprep.subr.mxu0 0.0
        %2108 = vmatpush1.msra.mxu0 %v638
        %2109 = vmatprep.subr.mxu0 0.0
        %2110 = vmatpush1.msra.mxu0 %v639
        %2111 = vmatprep.subr.mxu0 0.0
        %2112 = vmatpush1.msra.mxu0 %v640
        %2113 = vmatprep.subr.mxu0 0.0
        %2114 = vmatpush1.msra.mxu0 %v641
        %2115 = vmatprep.subr.mxu0 0.0
        %2116 = vmatpush1.msra.mxu0 %v642
        %2117 = vmatprep.subr.mxu0 0.0
        %2118 = vmatpush1.msra.mxu0 %v643
        %2119 = vmatprep.subr.mxu0 0.0
        %2120 = vmatpush1.msra.mxu0 %v644
        %2121 = vmatprep.subr.mxu0 0.0
        %2122 = vmatpush1.msra.mxu0 0.0
        %2123 = vmatprep.subr.mxu0 0.0
        %2124 = vmatpush1.msra.mxu0 0.0
        %2125 = vmatprep.subr.mxu0 0.0
        %2126 = vmatpush1.msra.mxu0 0.0
        %2127 = vmatprep.subr.mxu0 0.0
        %2128 = vmatpush1.msra.mxu0 0.0
        %2129 = vmatprep.subr.mxu0 0.0
        %2130 = vmatpush1.msra.mxu0 0.0
        %2131 = vmatprep.subr.mxu0 0.0
        %2132 = vmatpush1.msra.mxu0 0.0
        %2133 = vmatprep.subr.mxu0 0.0
        %2134 = vmatpush1.msra.mxu0 0.0
        %2135 = vmatprep.subr.mxu0 0.0
        %2136 = vmatpush1.msra.mxu0 0.0
        %2137 = vmatprep.subr.mxu0 0.0
        %2138 = vmatpush1.msra.mxu0 0.0
        %2139 = vmatprep.subr.mxu0 0.0
        %2140 = vmatpush1.msra.mxu0 0.0
        %2141 = vmatprep.subr.mxu0 0.0
        %2142 = vmatpush1.msra.mxu0 0.0
        %2143 = vmatprep.subr.mxu0 0.0
        %2144 = vmatpush1.msra.mxu0 0.0
        %2145 = vmatprep.subr.mxu0 0.0
        %2146 = vmatpush1.msra.mxu0 0.0
        %2147 = vmatprep.subr.mxu0 0.0
        %2148 = vmatpush1.msra.mxu0 0.0
        %2149 = vmatprep.subr.mxu0 0.0
        %2150 = vmatpush1.msra.mxu0 0.0
        %2151 = vmatprep.subr.mxu0 0.0
        %2152 = vmatpush1.msra.mxu0 0.0
        %2153 = vmatprep.mubr.f32.mxu0 0.0
        %2154 = vmatmul.mubr.f32.gmra.mrb[0].mxu0 %v2086
        %v2155 = vpop.f32.mrb[0].mxu0
        %v2156 = vadd.f32 0.0, %v2155
        %v2157 = vpop.f32.mrb[0].mxu0
        %2158 = vmatprep.mubr.f32.mxu0 0.0
        %2159 = vmatmul.mubr.f32.gmra.mrb[0].mxu0 %v2088
        %v2160 = vpop.f32.mrb[0].mxu0
        %v2161 = vadd.f32 0.0, %v2160
        %v2162 = vpop.f32.mrb[0].mxu0
        %2163 = vdwg.mxu0
        %v2164 = vmax.f32 %v2156, 1e-30
        %v2165 = vmax.f32 %v2161, 1e-30
        %v2166 = vrcp.pop %v2164
        %v2167 = vmul.f32 %v2086, %v2166
        %v2168 = vrcp.pop %v2165
        %v2169 = vmul.f32 %v2088, %v2168
        %2170 = vmatprep.subr.mxu0 0.0
        %2171 = vmatpush1.msra.mxu0 %v587
        %2172 = vmatprep.subr.mxu0 0.0
        %2173 = vmatpush1.msra.mxu0 %v588
        %2174 = vmatprep.subr.mxu0 0.0
        %2175 = vmatpush1.msra.mxu0 %v589
        %2176 = vmatprep.subr.mxu0 0.0
        %2177 = vmatpush1.msra.mxu0 %v590
        %2178 = vmatprep.subr.mxu0 0.0
        %2179 = vmatpush1.msra.mxu0 %v591
        %2180 = vmatprep.subr.mxu0 0.0
        %2181 = vmatpush1.msra.mxu0 %v592
        %2182 = vmatprep.subr.mxu0 0.0
        %2183 = vmatpush1.msra.mxu0 %v593
        %2184 = vmatprep.subr.mxu0 0.0
        %2185 = vmatpush1.msra.mxu0 %v594
        %2186 = vmatprep.subr.mxu0 0.0
        %2187 = vmatpush1.msra.mxu0 %v595
        %2188 = vmatprep.subr.mxu0 0.0
        %2189 = vmatpush1.msra.mxu0 %v596
        %2190 = vmatprep.subr.mxu0 0.0
        %2191 = vmatpush1.msra.mxu0 %v597
        %2192 = vmatprep.subr.mxu0 0.0
        %2193 = vmatpush1.msra.mxu0 %v598
        %2194 = vmatprep.subr.mxu0 0.0
        %2195 = vmatpush1.msra.mxu0 %v599
        %2196 = vmatprep.subr.mxu0 0.0
        %2197 = vmatpush1.msra.mxu0 %v600
        %2198 = vmatprep.subr.mxu0 0.0
        %2199 = vmatpush1.msra.mxu0 %v601
        %2200 = vmatprep.subr.mxu0 0.0
        %2201 = vmatpush1.msra.mxu0 %v602
        %2202 = vmatprep.subr.mxu0 0.0
        %2203 = vmatpush1.msra.mxu0 0.0
        %2204 = vmatprep.subr.mxu0 0.0
        %2205 = vmatpush1.msra.mxu0 0.0
        %2206 = vmatprep.subr.mxu0 0.0
        %2207 = vmatpush1.msra.mxu0 0.0
        %2208 = vmatprep.subr.mxu0 0.0
        %2209 = vmatpush1.msra.mxu0 0.0
        %2210 = vmatprep.subr.mxu0 0.0
        %2211 = vmatpush1.msra.mxu0 0.0
        %2212 = vmatprep.subr.mxu0 0.0
        %2213 = vmatpush1.msra.mxu0 0.0
        %2214 = vmatprep.subr.mxu0 0.0
        %2215 = vmatpush1.msra.mxu0 0.0
        %2216 = vmatprep.subr.mxu0 0.0
        %2217 = vmatpush1.msra.mxu0 0.0
        %2218 = vmatprep.subr.mxu0 0.0
        %2219 = vmatpush1.msra.mxu0 0.0
        %2220 = vmatprep.subr.mxu0 0.0
        %2221 = vmatpush1.msra.mxu0 0.0
        %2222 = vmatprep.subr.mxu0 0.0
        %2223 = vmatpush1.msra.mxu0 0.0
        %2224 = vmatprep.subr.mxu0 0.0
        %2225 = vmatpush1.msra.mxu0 0.0
        %2226 = vmatprep.subr.mxu0 0.0
        %2227 = vmatpush1.msra.mxu0 0.0
        %2228 = vmatprep.subr.mxu0 0.0
        %2229 = vmatpush1.msra.mxu0 0.0
        %2230 = vmatprep.subr.mxu0 0.0
        %2231 = vmatpush1.msra.mxu0 0.0
        %2232 = vmatprep.subr.mxu0 0.0
        %2233 = vmatpush1.msra.mxu0 0.0
        %2234 = vmatprep.mubr.f32.mxu0 0.0
        %2235 = vmatmul.mubr.f32.gmra.mrb[0].mxu0 %v2167
        %v2236 = vpop.f32.mrb[0].mxu0
        %v2237 = vadd.f32 0.0, %v2236
        %v2238 = vpop.f32.mrb[0].mxu0
        %2239 = vmatprep.mubr.f32.mxu0 0.0
        %2240 = vmatmul.mubr.f32.gmra.mrb[0].mxu0 %v2169
        %v2241 = vpop.f32.mrb[0].mxu0
        %v2242 = vadd.f32 0.0, %v2241
        %v2243 = vpop.f32.mrb[0].mxu0
        %2244 = vdwg.mxu0
        %v2245 = vmul.f32 %v800, %v613
        %v2246 = vmul.f32 %v804, %v614
        %v2247 = vmul.f32 %v800, %v615
        %v2248 = vmul.f32 %v804, %v616
        %v2249 = vmul.f32 %v800, %v617
        %v2250 = vmul.f32 %v804, %v618
        %v2251 = vmul.f32 %v800, %v619
        %v2252 = vmul.f32 %v804, %v620
        %v2253 = vmul.f32 %v800, %v621
        %v2254 = vmul.f32 %v804, %v622
        %v2255 = vmul.f32 %v800, %v623
        %v2256 = vmul.f32 %v804, %v624
        %v2257 = vmul.f32 %v800, %v625
        %v2258 = vmul.f32 %v804, %v626
        %v2259 = vmul.f32 %v800, %v627
        %v2260 = vmul.f32 %v804, %v628
        %v2261 = vpack.c.bf16 %v2246, %v2245
        %v2262 = vpack.c.bf16 %v2248, %v2247
        %v2263 = vpack.c.bf16 %v2250, %v2249
        %v2264 = vpack.c.bf16 %v2252, %v2251
        %v2265 = vpack.c.bf16 %v2254, %v2253
        %v2266 = vpack.c.bf16 %v2256, %v2255
        %v2267 = vpack.c.bf16 %v2258, %v2257
        %v2268 = vpack.c.bf16 %v2260, %v2259
        %v2269 = vpack.c.bf16 %v2242, %v2237
        %2270 = vmatprep.subr.bf16.mxu0 0
        %2271 = vmatpush1.bf16.msra.mxu0 %v2261
        %2272 = vmatprep.subr.bf16.mxu0 0
        %2273 = vmatpush1.bf16.msra.mxu0 %v2262
        %2274 = vmatprep.subr.bf16.mxu0 0
        %2275 = vmatpush1.bf16.msra.mxu0 %v2263
        %2276 = vmatprep.subr.bf16.mxu0 0
        %2277 = vmatpush1.bf16.msra.mxu0 %v2264
        %2278 = vmatprep.subr.bf16.mxu0 0
        %2279 = vmatpush1.bf16.msra.mxu0 %v2265
        %2280 = vmatprep.subr.bf16.mxu0 0
        %2281 = vmatpush1.bf16.msra.mxu0 %v2266
        %2282 = vmatprep.subr.bf16.mxu0 0
        %2283 = vmatpush1.bf16.msra.mxu0 %v2267
        %2284 = vmatprep.subr.bf16.mxu0 0
        %2285 = vmatpush1.bf16.msra.mxu0 %v2268
        %2286 = vmatprep.subr.bf16.mxu0 0
        %2287 = vmatpush1.bf16.msra.mxu0 0
        %2288 = vmatprep.subr.bf16.mxu0 0
        %2289 = vmatpush1.bf16.msra.mxu0 0
        %2290 = vmatprep.subr.bf16.mxu0 0
        %2291 = vmatpush1.bf16.msra.mxu0 0
        %2292 = vmatprep.subr.bf16.mxu0 0
        %2293 = vmatpush1.bf16.msra.mxu0 0
        %2294 = vmatprep.subr.bf16.mxu0 0
        %2295 = vmatpush1.bf16.msra.mxu0 0
        %2296 = vmatprep.subr.bf16.mxu0 0
        %2297 = vmatpush1.bf16.msra.mxu0 0
        %2298 = vmatprep.subr.bf16.mxu0 0
        %2299 = vmatpush1.bf16.msra.mxu0 0
        %2300 = vmatprep.subr.bf16.mxu0 0
        %2301 = vmatpush1.bf16.msra.mxu0 0
        %2302 = vmatprep.mubr.bf16.mxu0 0
        %2303 = vmatmul.mubr.bf16.gmra.mrb[0].mxu0 %v2269
        %v2304 = vpop.f32.mrb[0].mxu0
        %v2305 = vadd.f32 0.0, %v2304
        %v2306 = vpop.f32.mrb[0].mxu0
        %v2307 = vpop.f32.mrb[0].mxu0
        %v2308 = vadd.f32 0.0, %v2307
        %v2309 = vpop.f32.mrb[0].mxu0
        %2310 = vdwg.mxu0
        %2311 = vrot.lane.b32.xlu0 %v960, 80
        %v2312 = vpop.permute.xlu0 %2311
        %2313 = vrot.lane.b32.xlu0 %v961, 80
        %v2314 = vpop.permute.xlu0 %2313
        %2315 = vrot.lane.b32.xlu0 %v962, 80
        %v2316 = vpop.permute.xlu0 %2315
        %2317 = vrot.lane.b32.xlu0 %v963, 80
        %v2318 = vpop.permute.xlu0 %2317
        %v2320 = vsel %vm970, %v2312, 0
        %v2323 = vsel %vm970, %v2314, 0
        %v2326 = vsel %vm970, %v2316, 0
        %v2329 = vsel %vm970, %v2318, 0
        %2331 = vmatprep.subr.bf16.mxu0 0
        %2332 = vmatpush1.bf16.msra.mxu0 %v968
        %2333 = vmatprep.subr.bf16.mxu0 0
        %2334 = vmatpush1.bf16.msra.mxu0 0
        %2335 = vmatprep.subr.bf16.mxu0 0
        %2336 = vmatpush1.bf16.msra.mxu0 0
        %2337 = vmatprep.subr.bf16.mxu0 0
        %2338 = vmatpush1.bf16.msra.mxu0 0
        %2339 = vmatprep.subr.bf16.mxu0 0
        %2340 = vmatpush1.bf16.msra.mxu0 0
        %2341 = vmatprep.subr.bf16.mxu0 0
        %2342 = vmatpush1.bf16.msra.mxu0 0
        %2343 = vmatprep.subr.bf16.mxu0 0
        %2344 = vmatpush1.bf16.msra.mxu0 0
        %2345 = vmatprep.subr.bf16.mxu0 0
        %2346 = vmatpush1.bf16.msra.mxu0 0
        %2347 = vmatprep.subr.bf16.mxu0 0
        %2348 = vmatpush1.bf16.msra.mxu0 0
        %2349 = vmatprep.subr.bf16.mxu0 0
        %2350 = vmatpush1.bf16.msra.mxu0 0
        %2351 = vmatprep.subr.bf16.mxu0 0
        %2352 = vmatpush1.bf16.msra.mxu0 0
        %2353 = vmatprep.subr.bf16.mxu0 0
        %2354 = vmatpush1.bf16.msra.mxu0 0
        %2355 = vmatprep.subr.bf16.mxu0 0
        %2356 = vmatpush1.bf16.msra.mxu0 0
        %2357 = vmatprep.subr.bf16.mxu0 0
        %2358 = vmatpush1.bf16.msra.mxu0 0
        %2359 = vmatprep.subr.bf16.mxu0 0
        %2360 = vmatpush1.bf16.msra.mxu0 0
        %2361 = vmatprep.subr.bf16.mxu0 0
        %2362 = vmatpush1.bf16.msra.mxu0 0
        %2363 = vmatprep.mubr.bf16.mxu0 0
        %2364 = vmatmul.mubr.bf16.gmra.mrb[0].mxu0 %v2320
        %v2365 = vpop.f32.mrb[0].mxu0
        %v2366 = vadd.f32 0.0, %v2365
        %v2367 = vpop.f32.mrb[0].mxu0
        %v2368 = vpop.f32.mrb[0].mxu0
        %v2369 = vadd.f32 0.0, %v2368
        %v2370 = vpop.f32.mrb[0].mxu0
        %2371 = vmatprep.mubr.bf16.mxu0 0
        %2372 = vmatmul.mubr.bf16.gmra.mrb[0].mxu0 %v2323
        %v2373 = vpop.f32.mrb[0].mxu0
        %v2374 = vadd.f32 0.0, %v2373
        %v2375 = vpop.f32.mrb[0].mxu0
        %v2376 = vpop.f32.mrb[0].mxu0
        %v2377 = vadd.f32 0.0, %v2376
        %v2378 = vpop.f32.mrb[0].mxu0
        %2379 = vmatprep.mubr.bf16.mxu0 0
        %2380 = vmatmul.mubr.bf16.gmra.mrb[0].mxu0 %v2326
        %v2381 = vpop.f32.mrb[0].mxu0
        %v2382 = vadd.f32 0.0, %v2381
        %v2383 = vpop.f32.mrb[0].mxu0
        %v2384 = vpop.f32.mrb[0].mxu0
        %v2385 = vadd.f32 0.0, %v2384
        %v2386 = vpop.f32.mrb[0].mxu0
        %2387 = vmatprep.mubr.bf16.mxu0 0
        %2388 = vmatmul.mubr.bf16.gmra.mrb[0].mxu0 %v2329
        %v2389 = vpop.f32.mrb[0].mxu0
        %v2390 = vadd.f32 0.0, %v2389
        %v2391 = vpop.f32.mrb[0].mxu0
        %v2392 = vpop.f32.mrb[0].mxu0
        %v2393 = vadd.f32 0.0, %v2392
        %v2394 = vpop.f32.mrb[0].mxu0
        %2395 = vdwg.mxu0
        %v2396 = vmul.f32 %v2366, %v605
        %v2397 = vmul.f32 %v2369, %v606
        %v2398 = vmul.f32 %v2374, %v607
        %v2399 = vmul.f32 %v2377, %v608
        %v2400 = vmul.f32 %v2382, %v609
        %v2401 = vmul.f32 %v2385, %v610
        %v2402 = vmul.f32 %v2390, %v611
        %v2403 = vmul.f32 %v2393, %v612
        %v2404 = vpack.c.bf16 %v2397, %v2396
        %v2405 = vpack.c.bf16 %v2399, %v2398
        %v2406 = vpack.c.bf16 %v2401, %v2400
        %v2407 = vpack.c.bf16 %v2403, %v2402
        %v2409 = vsel %vm718, %v859, 0
        %2411 = vmatprep.subr.bf16.mxu0 0
        %2412 = vmatpush1.bf16.msra.mxu0 %v2404
        %2413 = vmatprep.subr.bf16.mxu0 0
        %2414 = vmatpush1.bf16.msra.mxu0 %v2405
        %2415 = vmatprep.subr.bf16.mxu0 0
        %2416 = vmatpush1.bf16.msra.mxu0 %v2406
        %2417 = vmatprep.subr.bf16.mxu0 0
        %2418 = vmatpush1.bf16.msra.mxu0 %v2407
        %2419 = vmatprep.subr.bf16.mxu0 0
        %2420 = vmatpush1.bf16.msra.mxu0 0
        %2421 = vmatprep.subr.bf16.mxu0 0
        %2422 = vmatpush1.bf16.msra.mxu0 0
        %2423 = vmatprep.subr.bf16.mxu0 0
        %2424 = vmatpush1.bf16.msra.mxu0 0
        %2425 = vmatprep.subr.bf16.mxu0 0
        %2426 = vmatpush1.bf16.msra.mxu0 0
        %2427 = vmatprep.subr.bf16.mxu0 0
        %2428 = vmatpush1.bf16.msra.mxu0 0
        %2429 = vmatprep.subr.bf16.mxu0 0
        %2430 = vmatpush1.bf16.msra.mxu0 0
        %2431 = vmatprep.subr.bf16.mxu0 0
        %2432 = vmatpush1.bf16.msra.mxu0 0
        %2433 = vmatprep.subr.bf16.mxu0 0
        %2434 = vmatpush1.bf16.msra.mxu0 0
        %2435 = vmatprep.subr.bf16.mxu0 0
        %2436 = vmatpush1.bf16.msra.mxu0 0
        %2437 = vmatprep.subr.bf16.mxu0 0
        %2438 = vmatpush1.bf16.msra.mxu0 0
        %2439 = vmatprep.subr.bf16.mxu0 0
        %2440 = vmatpush1.bf16.msra.mxu0 0
        %2441 = vmatprep.subr.bf16.mxu0 0
        %2442 = vmatpush1.bf16.msra.mxu0 0
        %2443 = vmatprep.mubr.bf16.mxu0 0
        %2444 = vmatmul.mubr.bf16.gmra.mrb[0].mxu0 %v2409
        %v2445 = vpop.f32.mrb[0].mxu0
        %v2446 = vadd.f32 0.0, %v2445
        %v2447 = vpop.f32.mrb[0].mxu0
        %v2448 = vpop.f32.mrb[0].mxu0
        %v2449 = vadd.f32 0.0, %v2448
        %v2450 = vpop.f32.mrb[0].mxu0
        %2451 = vdwg.mxu0
        %2452 = vmatprep.subr.mxu0 0.0
        %2453 = vmatpush1.msra.mxu0 %v570
        %2454 = vmatprep.subr.mxu0 0.0
        %2455 = vmatpush1.msra.mxu0 %v571
        %2456 = vmatprep.subr.mxu0 0.0
        %2457 = vmatpush1.msra.mxu0 %v572
        %2458 = vmatprep.subr.mxu0 0.0
        %2459 = vmatpush1.msra.mxu0 %v573
        %2460 = vmatprep.subr.mxu0 0.0
        %2461 = vmatpush1.msra.mxu0 %v574
        %2462 = vmatprep.subr.mxu0 0.0
        %2463 = vmatpush1.msra.mxu0 %v575
        %2464 = vmatprep.subr.mxu0 0.0
        %2465 = vmatpush1.msra.mxu0 %v576
        %2466 = vmatprep.subr.mxu0 0.0
        %2467 = vmatpush1.msra.mxu0 %v577
        %2468 = vmatprep.subr.mxu0 0.0
        %2469 = vmatpush1.msra.mxu0 %v578
        %2470 = vmatprep.subr.mxu0 0.0
        %2471 = vmatpush1.msra.mxu0 %v579
        %2472 = vmatprep.subr.mxu0 0.0
        %2473 = vmatpush1.msra.mxu0 %v580
        %2474 = vmatprep.subr.mxu0 0.0
        %2475 = vmatpush1.msra.mxu0 %v581
        %2476 = vmatprep.subr.mxu0 0.0
        %2477 = vmatpush1.msra.mxu0 %v582
        %2478 = vmatprep.subr.mxu0 0.0
        %2479 = vmatpush1.msra.mxu0 %v583
        %2480 = vmatprep.subr.mxu0 0.0
        %2481 = vmatpush1.msra.mxu0 %v584
        %2482 = vmatprep.subr.mxu0 0.0
        %2483 = vmatpush1.msra.mxu0 %v585
        %2484 = vmatprep.subr.mxu0 0.0
        %2485 = vmatpush1.msra.mxu0 0.0
        %2486 = vmatprep.subr.mxu0 0.0
        %2487 = vmatpush1.msra.mxu0 0.0
        %2488 = vmatprep.subr.mxu0 0.0
        %2489 = vmatpush1.msra.mxu0 0.0
        %2490 = vmatprep.subr.mxu0 0.0
        %2491 = vmatpush1.msra.mxu0 0.0
        %2492 = vmatprep.subr.mxu0 0.0
        %2493 = vmatpush1.msra.mxu0 0.0
        %2494 = vmatprep.subr.mxu0 0.0
        %2495 = vmatpush1.msra.mxu0 0.0
        %2496 = vmatprep.subr.mxu0 0.0
        %2497 = vmatpush1.msra.mxu0 0.0
        %2498 = vmatprep.subr.mxu0 0.0
        %2499 = vmatpush1.msra.mxu0 0.0
        %2500 = vmatprep.subr.mxu0 0.0
        %2501 = vmatpush1.msra.mxu0 0.0
        %2502 = vmatprep.subr.mxu0 0.0
        %2503 = vmatpush1.msra.mxu0 0.0
        %2504 = vmatprep.subr.mxu0 0.0
        %2505 = vmatpush1.msra.mxu0 0.0
        %2506 = vmatprep.subr.mxu0 0.0
        %2507 = vmatpush1.msra.mxu0 0.0
        %2508 = vmatprep.subr.mxu0 0.0
        %2509 = vmatpush1.msra.mxu0 0.0
        %2510 = vmatprep.subr.mxu0 0.0
        %2511 = vmatpush1.msra.mxu0 0.0
        %2512 = vmatprep.subr.mxu0 0.0
        %2513 = vmatpush1.msra.mxu0 0.0
        %2514 = vmatprep.subr.mxu0 0.0
        %2515 = vmatpush1.msra.mxu0 0.0
        %2516 = vmatprep.mubr.f32.mxu0 0.0
        %2517 = vmatmul.mubr.f32.gmra.mrb[0].mxu0 %v2446
        %v2518 = vpop.f32.mrb[0].mxu0
        %v2519 = vadd.f32 0.0, %v2518
        %v2520 = vpop.f32.mrb[0].mxu0
        %2521 = vmatprep.mubr.f32.mxu0 0.0
        %2522 = vmatmul.mubr.f32.gmra.mrb[0].mxu0 %v2449
        %v2523 = vpop.f32.mrb[0].mxu0
        %v2524 = vadd.f32 0.0, %v2523
        %v2525 = vpop.f32.mrb[0].mxu0
        %2526 = vdwg.mxu0
        %2527 = vmax.xlane.f32.xlu0 %v2519
        %v2528 = vpop.xlane.xlu0 %2527
        %2529 = vmax.xlane.f32.xlu0 %v2524
        %v2530 = vpop.xlane.xlu0 %2529
        %v2531 = vsub.f32 %v2519, %v2528
        %v2532 = vsub.f32 %v2524, %v2530
        %v2533 = vmul.f32 %v2531, 1.442695
        %v2534 = vpow.pop %v2533
        %v2535 = vmul.f32 %v2532, 1.442695
        %v2536 = vpow.pop %v2535
        %2537 = vmatprep.subr.mxu0 0.0
        %2538 = vmatpush1.msra.mxu0 %v629
        %2539 = vmatprep.subr.mxu0 0.0
        %2540 = vmatpush1.msra.mxu0 %v630
        %2541 = vmatprep.subr.mxu0 0.0
        %2542 = vmatpush1.msra.mxu0 %v631
        %2543 = vmatprep.subr.mxu0 0.0
        %2544 = vmatpush1.msra.mxu0 %v632
        %2545 = vmatprep.subr.mxu0 0.0
        %2546 = vmatpush1.msra.mxu0 %v633
        %2547 = vmatprep.subr.mxu0 0.0
        %2548 = vmatpush1.msra.mxu0 %v634
        %2549 = vmatprep.subr.mxu0 0.0
        %2550 = vmatpush1.msra.mxu0 %v635
        %2551 = vmatprep.subr.mxu0 0.0
        %2552 = vmatpush1.msra.mxu0 %v636
        %2553 = vmatprep.subr.mxu0 0.0
        %2554 = vmatpush1.msra.mxu0 %v637
        %2555 = vmatprep.subr.mxu0 0.0
        %2556 = vmatpush1.msra.mxu0 %v638
        %2557 = vmatprep.subr.mxu0 0.0
        %2558 = vmatpush1.msra.mxu0 %v639
        %2559 = vmatprep.subr.mxu0 0.0
        %2560 = vmatpush1.msra.mxu0 %v640
        %2561 = vmatprep.subr.mxu0 0.0
        %2562 = vmatpush1.msra.mxu0 %v641
        %2563 = vmatprep.subr.mxu0 0.0
        %2564 = vmatpush1.msra.mxu0 %v642
        %2565 = vmatprep.subr.mxu0 0.0
        %2566 = vmatpush1.msra.mxu0 %v643
        %2567 = vmatprep.subr.mxu0 0.0
        %2568 = vmatpush1.msra.mxu0 %v644
        %2569 = vmatprep.subr.mxu0 0.0
        %2570 = vmatpush1.msra.mxu0 0.0
        %2571 = vmatprep.subr.mxu0 0.0
        %2572 = vmatpush1.msra.mxu0 0.0
        %2573 = vmatprep.subr.mxu0 0.0
        %2574 = vmatpush1.msra.mxu0 0.0
        %2575 = vmatprep.subr.mxu0 0.0
        %2576 = vmatpush1.msra.mxu0 0.0
        %2577 = vmatprep.subr.mxu0 0.0
        %2578 = vmatpush1.msra.mxu0 0.0
        %2579 = vmatprep.subr.mxu0 0.0
        %2580 = vmatpush1.msra.mxu0 0.0
        %2581 = vmatprep.subr.mxu0 0.0
        %2582 = vmatpush1.msra.mxu0 0.0
        %2583 = vmatprep.subr.mxu0 0.0
        %2584 = vmatpush1.msra.mxu0 0.0
        %2585 = vmatprep.subr.mxu0 0.0
        %2586 = vmatpush1.msra.mxu0 0.0
        %2587 = vmatprep.subr.mxu0 0.0
        %2588 = vmatpush1.msra.mxu0 0.0
        %2589 = vmatprep.subr.mxu0 0.0
        %2590 = vmatpush1.msra.mxu0 0.0
        %2591 = vmatprep.subr.mxu0 0.0
        %2592 = vmatpush1.msra.mxu0 0.0
        %2593 = vmatprep.subr.mxu0 0.0
        %2594 = vmatpush1.msra.mxu0 0.0
        %2595 = vmatprep.subr.mxu0 0.0
        %2596 = vmatpush1.msra.mxu0 0.0
        %2597 = vmatprep.subr.mxu0 0.0
        %2598 = vmatpush1.msra.mxu0 0.0
        %2599 = vmatprep.subr.mxu0 0.0
        %2600 = vmatpush1.msra.mxu0 0.0
        %2601 = vmatprep.mubr.f32.mxu0 0.0
        %2602 = vmatmul.mubr.f32.gmra.mrb[0].mxu0 %v2534
        %v2603 = vpop.f32.mrb[0].mxu0
        %v2604 = vadd.f32 0.0, %v2603
        %v2605 = vpop.f32.mrb[0].mxu0
        %2606 = vmatprep.mubr.f32.mxu0 0.0
        %2607 = vmatmul.mubr.f32.gmra.mrb[0].mxu0 %v2536
        %v2608 = vpop.f32.mrb[0].mxu0
        %v2609 = vadd.f32 0.0, %v2608
        %v2610 = vpop.f32.mrb[0].mxu0
        %2611 = vdwg.mxu0
        %v2612 = vmax.f32 %v2604, 1e-30
        %v2613 = vmax.f32 %v2609, 1e-30
        %v2614 = vrcp.pop %v2612
        %v2615 = vmul.f32 %v2534, %v2614
        %v2616 = vrcp.pop %v2613
        %v2617 = vmul.f32 %v2536, %v2616
        %2618 = vmatprep.subr.mxu0 0.0
        %2619 = vmatpush1.msra.mxu0 %v587
        %2620 = vmatprep.subr.mxu0 0.0
        %2621 = vmatpush1.msra.mxu0 %v588
        %2622 = vmatprep.subr.mxu0 0.0
        %2623 = vmatpush1.msra.mxu0 %v589
        %2624 = vmatprep.subr.mxu0 0.0
        %2625 = vmatpush1.msra.mxu0 %v590
        %2626 = vmatprep.subr.mxu0 0.0
        %2627 = vmatpush1.msra.mxu0 %v591
        %2628 = vmatprep.subr.mxu0 0.0
        %2629 = vmatpush1.msra.mxu0 %v592
        %2630 = vmatprep.subr.mxu0 0.0
        %2631 = vmatpush1.msra.mxu0 %v593
        %2632 = vmatprep.subr.mxu0 0.0
        %2633 = vmatpush1.msra.mxu0 %v594
        %2634 = vmatprep.subr.mxu0 0.0
        %2635 = vmatpush1.msra.mxu0 %v595
        %2636 = vmatprep.subr.mxu0 0.0
        %2637 = vmatpush1.msra.mxu0 %v596
        %2638 = vmatprep.subr.mxu0 0.0
        %2639 = vmatpush1.msra.mxu0 %v597
        %2640 = vmatprep.subr.mxu0 0.0
        %2641 = vmatpush1.msra.mxu0 %v598
        %2642 = vmatprep.subr.mxu0 0.0
        %2643 = vmatpush1.msra.mxu0 %v599
        %2644 = vmatprep.subr.mxu0 0.0
        %2645 = vmatpush1.msra.mxu0 %v600
        %2646 = vmatprep.subr.mxu0 0.0
        %2647 = vmatpush1.msra.mxu0 %v601
        %2648 = vmatprep.subr.mxu0 0.0
        %2649 = vmatpush1.msra.mxu0 %v602
        %2650 = vmatprep.subr.mxu0 0.0
        %2651 = vmatpush1.msra.mxu0 0.0
        %2652 = vmatprep.subr.mxu0 0.0
        %2653 = vmatpush1.msra.mxu0 0.0
        %2654 = vmatprep.subr.mxu0 0.0
        %2655 = vmatpush1.msra.mxu0 0.0
        %2656 = vmatprep.subr.mxu0 0.0
        %2657 = vmatpush1.msra.mxu0 0.0
        %2658 = vmatprep.subr.mxu0 0.0
        %2659 = vmatpush1.msra.mxu0 0.0
        %2660 = vmatprep.subr.mxu0 0.0
        %2661 = vmatpush1.msra.mxu0 0.0
        %2662 = vmatprep.subr.mxu0 0.0
        %2663 = vmatpush1.msra.mxu0 0.0
        %2664 = vmatprep.subr.mxu0 0.0
        %2665 = vmatpush1.msra.mxu0 0.0
        %2666 = vmatprep.subr.mxu0 0.0
        %2667 = vmatpush1.msra.mxu0 0.0
        %2668 = vmatprep.subr.mxu0 0.0
        %2669 = vmatpush1.msra.mxu0 0.0
        %2670 = vmatprep.subr.mxu0 0.0
        %2671 = vmatpush1.msra.mxu0 0.0
        %2672 = vmatprep.subr.mxu0 0.0
        %2673 = vmatpush1.msra.mxu0 0.0
        %2674 = vmatprep.subr.mxu0 0.0
        %2675 = vmatpush1.msra.mxu0 0.0
        %2676 = vmatprep.subr.mxu0 0.0
        %2677 = vmatpush1.msra.mxu0 0.0
        %2678 = vmatprep.subr.mxu0 0.0
        %2679 = vmatpush1.msra.mxu0 0.0
        %2680 = vmatprep.subr.mxu0 0.0
        %2681 = vmatpush1.msra.mxu0 0.0
        %2682 = vmatprep.mubr.f32.mxu0 0.0
        %2683 = vmatmul.mubr.f32.gmra.mrb[0].mxu0 %v2615
        %v2684 = vpop.f32.mrb[0].mxu0
        %v2685 = vadd.f32 0.0, %v2684
        %v2686 = vpop.f32.mrb[0].mxu0
        %2687 = vmatprep.mubr.f32.mxu0 0.0
        %2688 = vmatmul.mubr.f32.gmra.mrb[0].mxu0 %v2617
        %v2689 = vpop.f32.mrb[0].mxu0
        %v2690 = vadd.f32 0.0, %v2689
        %v2691 = vpop.f32.mrb[0].mxu0
        %2692 = vdwg.mxu0
        %v2693 = vmul.f32 %v810, %v613
        %v2694 = vmul.f32 %v814, %v614
        %v2695 = vmul.f32 %v810, %v615
        %v2696 = vmul.f32 %v814, %v616
        %v2697 = vmul.f32 %v810, %v617
        %v2698 = vmul.f32 %v814, %v618
        %v2699 = vmul.f32 %v810, %v619
        %v2700 = vmul.f32 %v814, %v620
        %v2701 = vmul.f32 %v810, %v621
        %v2702 = vmul.f32 %v814, %v622
        %v2703 = vmul.f32 %v810, %v623
        %v2704 = vmul.f32 %v814, %v624
        %v2705 = vmul.f32 %v810, %v625
        %v2706 = vmul.f32 %v814, %v626
        %v2707 = vmul.f32 %v810, %v627
        %v2708 = vmul.f32 %v814, %v628
        %v2709 = vpack.c.bf16 %v2694, %v2693
        %v2710 = vpack.c.bf16 %v2696, %v2695
        %v2711 = vpack.c.bf16 %v2698, %v2697
        %v2712 = vpack.c.bf16 %v2700, %v2699
        %v2713 = vpack.c.bf16 %v2702, %v2701
        %v2714 = vpack.c.bf16 %v2704, %v2703
        %v2715 = vpack.c.bf16 %v2706, %v2705
        %v2716 = vpack.c.bf16 %v2708, %v2707
        %v2717 = vpack.c.bf16 %v2690, %v2685
        %2718 = vmatprep.subr.bf16.mxu0 0
        %2719 = vmatpush1.bf16.msra.mxu0 %v2709
        %2720 = vmatprep.subr.bf16.mxu0 0
        %2721 = vmatpush1.bf16.msra.mxu0 %v2710
        %2722 = vmatprep.subr.bf16.mxu0 0
        %2723 = vmatpush1.bf16.msra.mxu0 %v2711
        %2724 = vmatprep.subr.bf16.mxu0 0
        %2725 = vmatpush1.bf16.msra.mxu0 %v2712
        %2726 = vmatprep.subr.bf16.mxu0 0
        %2727 = vmatpush1.bf16.msra.mxu0 %v2713
        %2728 = vmatprep.subr.bf16.mxu0 0
        %2729 = vmatpush1.bf16.msra.mxu0 %v2714
        %2730 = vmatprep.subr.bf16.mxu0 0
        %2731 = vmatpush1.bf16.msra.mxu0 %v2715
        %2732 = vmatprep.subr.bf16.mxu0 0
        %2733 = vmatpush1.bf16.msra.mxu0 %v2716
        %2734 = vmatprep.subr.bf16.mxu0 0
        %2735 = vmatpush1.bf16.msra.mxu0 0
        %2736 = vmatprep.subr.bf16.mxu0 0
        %2737 = vmatpush1.bf16.msra.mxu0 0
        %2738 = vmatprep.subr.bf16.mxu0 0
        %2739 = vmatpush1.bf16.msra.mxu0 0
        %2740 = vmatprep.subr.bf16.mxu0 0
        %2741 = vmatpush1.bf16.msra.mxu0 0
        %2742 = vmatprep.subr.bf16.mxu0 0
        %2743 = vmatpush1.bf16.msra.mxu0 0
        %2744 = vmatprep.subr.bf16.mxu0 0
        %2745 = vmatpush1.bf16.msra.mxu0 0
        %2746 = vmatprep.subr.bf16.mxu0 0
        %2747 = vmatpush1.bf16.msra.mxu0 0
        %2748 = vmatprep.subr.bf16.mxu0 0
        %2749 = vmatpush1.bf16.msra.mxu0 0
        %2750 = vmatprep.mubr.bf16.mxu0 0
        %2751 = vmatmul.mubr.bf16.gmra.mrb[0].mxu0 %v2717
        %v2752 = vpop.f32.mrb[0].mxu0
        %v2753 = vadd.f32 0.0, %v2752
        %v2754 = vpop.f32.mrb[0].mxu0
        %v2755 = vpop.f32.mrb[0].mxu0
        %v2756 = vadd.f32 0.0, %v2755
        %v2757 = vpop.f32.mrb[0].mxu0
        %2758 = vdwg.mxu0
        %2759 = vrot.lane.b32.xlu0 %v960, 64
        %v2760 = vpop.permute.xlu0 %2759
        %2761 = vrot.lane.b32.xlu0 %v961, 64
        %v2762 = vpop.permute.xlu0 %2761
        %2763 = vrot.lane.b32.xlu0 %v962, 64
        %v2764 = vpop.permute.xlu0 %2763
        %2765 = vrot.lane.b32.xlu0 %v963, 64
        %v2766 = vpop.permute.xlu0 %2765
        %v2768 = vsel %vm970, %v2760, 0
        %v2771 = vsel %vm970, %v2762, 0
        %v2774 = vsel %vm970, %v2764, 0
        %v2777 = vsel %vm970, %v2766, 0
        %2779 = vmatprep.subr.bf16.mxu0 0
        %2780 = vmatpush1.bf16.msra.mxu0 %v968
        %2781 = vmatprep.subr.bf16.mxu0 0
        %2782 = vmatpush1.bf16.msra.mxu0 0
        %2783 = vmatprep.subr.bf16.mxu0 0
        %2784 = vmatpush1.bf16.msra.mxu0 0
        %2785 = vmatprep.subr.bf16.mxu0 0
        %2786 = vmatpush1.bf16.msra.mxu0 0
        %2787 = vmatprep.subr.bf16.mxu0 0
        %2788 = vmatpush1.bf16.msra.mxu0 0
        %2789 = vmatprep.subr.bf16.mxu0 0
        %2790 = vmatpush1.bf16.msra.mxu0 0
        %2791 = vmatprep.subr.bf16.mxu0 0
        %2792 = vmatpush1.bf16.msra.mxu0 0
        %2793 = vmatprep.subr.bf16.mxu0 0
        %2794 = vmatpush1.bf16.msra.mxu0 0
        %2795 = vmatprep.subr.bf16.mxu0 0
        %2796 = vmatpush1.bf16.msra.mxu0 0
        %2797 = vmatprep.subr.bf16.mxu0 0
        %2798 = vmatpush1.bf16.msra.mxu0 0
        %2799 = vmatprep.subr.bf16.mxu0 0
        %2800 = vmatpush1.bf16.msra.mxu0 0
        %2801 = vmatprep.subr.bf16.mxu0 0
        %2802 = vmatpush1.bf16.msra.mxu0 0
        %2803 = vmatprep.subr.bf16.mxu0 0
        %2804 = vmatpush1.bf16.msra.mxu0 0
        %2805 = vmatprep.subr.bf16.mxu0 0
        %2806 = vmatpush1.bf16.msra.mxu0 0
        %2807 = vmatprep.subr.bf16.mxu0 0
        %2808 = vmatpush1.bf16.msra.mxu0 0
        %2809 = vmatprep.subr.bf16.mxu0 0
        %2810 = vmatpush1.bf16.msra.mxu0 0
        %2811 = vmatprep.mubr.bf16.mxu0 0
        %2812 = vmatmul.mubr.bf16.gmra.mrb[0].mxu0 %v2768
        %v2813 = vpop.f32.mrb[0].mxu0
        %v2814 = vadd.f32 0.0, %v2813
        %v2815 = vpop.f32.mrb[0].mxu0
        %v2816 = vpop.f32.mrb[0].mxu0
        %v2817 = vadd.f32 0.0, %v2816
        %v2818 = vpop.f32.mrb[0].mxu0
        %2819 = vmatprep.mubr.bf16.mxu0 0
        %2820 = vmatmul.mubr.bf16.gmra.mrb[0].mxu0 %v2771
        %v2821 = vpop.f32.mrb[0].mxu0
        %v2822 = vadd.f32 0.0, %v2821
        %v2823 = vpop.f32.mrb[0].mxu0
        %v2824 = vpop.f32.mrb[0].mxu0
        %v2825 = vadd.f32 0.0, %v2824
        %v2826 = vpop.f32.mrb[0].mxu0
        %2827 = vmatprep.mubr.bf16.mxu0 0
        %2828 = vmatmul.mubr.bf16.gmra.mrb[0].mxu0 %v2774
        %v2829 = vpop.f32.mrb[0].mxu0
        %v2830 = vadd.f32 0.0, %v2829
        %v2831 = vpop.f32.mrb[0].mxu0
        %v2832 = vpop.f32.mrb[0].mxu0
        %v2833 = vadd.f32 0.0, %v2832
        %v2834 = vpop.f32.mrb[0].mxu0
        %2835 = vmatprep.mubr.bf16.mxu0 0
        %2836 = vmatmul.mubr.bf16.gmra.mrb[0].mxu0 %v2777
        %v2837 = vpop.f32.mrb[0].mxu0
        %v2838 = vadd.f32 0.0, %v2837
        %v2839 = vpop.f32.mrb[0].mxu0
        %v2840 = vpop.f32.mrb[0].mxu0
        %v2841 = vadd.f32 0.0, %v2840
        %v2842 = vpop.f32.mrb[0].mxu0
        %2843 = vdwg.mxu0
        %v2844 = vmul.f32 %v2814, %v605
        %v2845 = vmul.f32 %v2817, %v606
        %v2846 = vmul.f32 %v2822, %v607
        %v2847 = vmul.f32 %v2825, %v608
        %v2848 = vmul.f32 %v2830, %v609
        %v2849 = vmul.f32 %v2833, %v610
        %v2850 = vmul.f32 %v2838, %v611
        %v2851 = vmul.f32 %v2841, %v612
        %v2852 = vpack.c.bf16 %v2845, %v2844
        %v2853 = vpack.c.bf16 %v2847, %v2846
        %v2854 = vpack.c.bf16 %v2849, %v2848
        %v2855 = vpack.c.bf16 %v2851, %v2850
        %v2857 = vsel %vm718, %v860, 0
        %2859 = vmatprep.subr.bf16.mxu0 0
        %2860 = vmatpush1.bf16.msra.mxu0 %v2852
        %2861 = vmatprep.subr.bf16.mxu0 0
        %2862 = vmatpush1.bf16.msra.mxu0 %v2853
        %2863 = vmatprep.subr.bf16.mxu0 0
        %2864 = vmatpush1.bf16.msra.mxu0 %v2854
        %2865 = vmatprep.subr.bf16.mxu0 0
        %2866 = vmatpush1.bf16.msra.mxu0 %v2855
        %2867 = vmatprep.subr.bf16.mxu0 0
        %2868 = vmatpush1.bf16.msra.mxu0 0
        %2869 = vmatprep.subr.bf16.mxu0 0
        %2870 = vmatpush1.bf16.msra.mxu0 0
        %2871 = vmatprep.subr.bf16.mxu0 0
        %2872 = vmatpush1.bf16.msra.mxu0 0
        %2873 = vmatprep.subr.bf16.mxu0 0
        %2874 = vmatpush1.bf16.msra.mxu0 0
        %2875 = vmatprep.subr.bf16.mxu0 0
        %2876 = vmatpush1.bf16.msra.mxu0 0
        %2877 = vmatprep.subr.bf16.mxu0 0
        %2878 = vmatpush1.bf16.msra.mxu0 0
        %2879 = vmatprep.subr.bf16.mxu0 0
        %2880 = vmatpush1.bf16.msra.mxu0 0
        %2881 = vmatprep.subr.bf16.mxu0 0
        %2882 = vmatpush1.bf16.msra.mxu0 0
        %2883 = vmatprep.subr.bf16.mxu0 0
        %2884 = vmatpush1.bf16.msra.mxu0 0
        %2885 = vmatprep.subr.bf16.mxu0 0
        %2886 = vmatpush1.bf16.msra.mxu0 0
        %2887 = vmatprep.subr.bf16.mxu0 0
        %2888 = vmatpush1.bf16.msra.mxu0 0
        %2889 = vmatprep.subr.bf16.mxu0 0
        %2890 = vmatpush1.bf16.msra.mxu0 0
        %2891 = vmatprep.mubr.bf16.mxu0 0
        %2892 = vmatmul.mubr.bf16.gmra.mrb[0].mxu0 %v2857
        %v2893 = vpop.f32.mrb[0].mxu0
        %v2894 = vadd.f32 0.0, %v2893
        %v2895 = vpop.f32.mrb[0].mxu0
        %v2896 = vpop.f32.mrb[0].mxu0
        %v2897 = vadd.f32 0.0, %v2896
        %v2898 = vpop.f32.mrb[0].mxu0
        %2899 = vdwg.mxu0
        %2900 = vmatprep.subr.mxu0 0.0
        %2901 = vmatpush1.msra.mxu0 %v570
        %2902 = vmatprep.subr.mxu0 0.0
        %2903 = vmatpush1.msra.mxu0 %v571
        %2904 = vmatprep.subr.mxu0 0.0
        %2905 = vmatpush1.msra.mxu0 %v572
        %2906 = vmatprep.subr.mxu0 0.0
        %2907 = vmatpush1.msra.mxu0 %v573
        %2908 = vmatprep.subr.mxu0 0.0
        %2909 = vmatpush1.msra.mxu0 %v574
        %2910 = vmatprep.subr.mxu0 0.0
        %2911 = vmatpush1.msra.mxu0 %v575
        %2912 = vmatprep.subr.mxu0 0.0
        %2913 = vmatpush1.msra.mxu0 %v576
        %2914 = vmatprep.subr.mxu0 0.0
        %2915 = vmatpush1.msra.mxu0 %v577
        %2916 = vmatprep.subr.mxu0 0.0
        %2917 = vmatpush1.msra.mxu0 %v578
        %2918 = vmatprep.subr.mxu0 0.0
        %2919 = vmatpush1.msra.mxu0 %v579
        %2920 = vmatprep.subr.mxu0 0.0
        %2921 = vmatpush1.msra.mxu0 %v580
        %2922 = vmatprep.subr.mxu0 0.0
        %2923 = vmatpush1.msra.mxu0 %v581
        %2924 = vmatprep.subr.mxu0 0.0
        %2925 = vmatpush1.msra.mxu0 %v582
        %2926 = vmatprep.subr.mxu0 0.0
        %2927 = vmatpush1.msra.mxu0 %v583
        %2928 = vmatprep.subr.mxu0 0.0
        %2929 = vmatpush1.msra.mxu0 %v584
        %2930 = vmatprep.subr.mxu0 0.0
        %2931 = vmatpush1.msra.mxu0 %v585
        %2932 = vmatprep.subr.mxu0 0.0
        %2933 = vmatpush1.msra.mxu0 0.0
        %2934 = vmatprep.subr.mxu0 0.0
        %2935 = vmatpush1.msra.mxu0 0.0
        %2936 = vmatprep.subr.mxu0 0.0
        %2937 = vmatpush1.msra.mxu0 0.0
        %2938 = vmatprep.subr.mxu0 0.0
        %2939 = vmatpush1.msra.mxu0 0.0
        %2940 = vmatprep.subr.mxu0 0.0
        %2941 = vmatpush1.msra.mxu0 0.0
        %2942 = vmatprep.subr.mxu0 0.0
        %2943 = vmatpush1.msra.mxu0 0.0
        %2944 = vmatprep.subr.mxu0 0.0
        %2945 = vmatpush1.msra.mxu0 0.0
        %2946 = vmatprep.subr.mxu0 0.0
        %2947 = vmatpush1.msra.mxu0 0.0
        %2948 = vmatprep.subr.mxu0 0.0
        %2949 = vmatpush1.msra.mxu0 0.0
        %2950 = vmatprep.subr.mxu0 0.0
        %2951 = vmatpush1.msra.mxu0 0.0
        %2952 = vmatprep.subr.mxu0 0.0
        %2953 = vmatpush1.msra.mxu0 0.0
        %2954 = vmatprep.subr.mxu0 0.0
        %2955 = vmatpush1.msra.mxu0 0.0
        %2956 = vmatprep.subr.mxu0 0.0
        %2957 = vmatpush1.msra.mxu0 0.0
        %2958 = vmatprep.subr.mxu0 0.0
        %2959 = vmatpush1.msra.mxu0 0.0
        %2960 = vmatprep.subr.mxu0 0.0
        %2961 = vmatpush1.msra.mxu0 0.0
        %2962 = vmatprep.subr.mxu0 0.0
        %2963 = vmatpush1.msra.mxu0 0.0
        %2964 = vmatprep.mubr.f32.mxu0 0.0
        %2965 = vmatmul.mubr.f32.gmra.mrb[0].mxu0 %v2894
        %v2966 = vpop.f32.mrb[0].mxu0
        %v2967 = vadd.f32 0.0, %v2966
        %v2968 = vpop.f32.mrb[0].mxu0
        %2969 = vmatprep.mubr.f32.mxu0 0.0
        %2970 = vmatmul.mubr.f32.gmra.mrb[0].mxu0 %v2897
        %v2971 = vpop.f32.mrb[0].mxu0
        %v2972 = vadd.f32 0.0, %v2971
        %v2973 = vpop.f32.mrb[0].mxu0
        %2974 = vdwg.mxu0
        %2975 = vmax.xlane.f32.xlu0 %v2967
        %v2976 = vpop.xlane.xlu0 %2975
        %2977 = vmax.xlane.f32.xlu0 %v2972
        %v2978 = vpop.xlane.xlu0 %2977
        %v2979 = vsub.f32 %v2967, %v2976
        %v2980 = vsub.f32 %v2972, %v2978
        %v2981 = vmul.f32 %v2979, 1.442695
        %v2982 = vpow.pop %v2981
        %v2983 = vmul.f32 %v2980, 1.442695
        %v2984 = vpow.pop %v2983
        %2985 = vmatprep.subr.mxu0 0.0
        %2986 = vmatpush1.msra.mxu0 %v629
        %2987 = vmatprep.subr.mxu0 0.0
        %2988 = vmatpush1.msra.mxu0 %v630
        %2989 = vmatprep.subr.mxu0 0.0
        %2990 = vmatpush1.msra.mxu0 %v631
        %2991 = vmatprep.subr.mxu0 0.0
        %2992 = vmatpush1.msra.mxu0 %v632
        %2993 = vmatprep.subr.mxu0 0.0
        %2994 = vmatpush1.msra.mxu0 %v633
        %2995 = vmatprep.subr.mxu0 0.0
        %2996 = vmatpush1.msra.mxu0 %v634
        %2997 = vmatprep.subr.mxu0 0.0
        %2998 = vmatpush1.msra.mxu0 %v635
        %2999 = vmatprep.subr.mxu0 0.0
        %3000 = vmatpush1.msra.mxu0 %v636
        %3001 = vmatprep.subr.mxu0 0.0
        %3002 = vmatpush1.msra.mxu0 %v637
        %3003 = vmatprep.subr.mxu0 0.0
        %3004 = vmatpush1.msra.mxu0 %v638
        %3005 = vmatprep.subr.mxu0 0.0
        %3006 = vmatpush1.msra.mxu0 %v639
        %3007 = vmatprep.subr.mxu0 0.0
        %3008 = vmatpush1.msra.mxu0 %v640
        %3009 = vmatprep.subr.mxu0 0.0
        %3010 = vmatpush1.msra.mxu0 %v641
        %3011 = vmatprep.subr.mxu0 0.0
        %3012 = vmatpush1.msra.mxu0 %v642
        %3013 = vmatprep.subr.mxu0 0.0
        %3014 = vmatpush1.msra.mxu0 %v643
        %3015 = vmatprep.subr.mxu0 0.0
        %3016 = vmatpush1.msra.mxu0 %v644
        %3017 = vmatprep.subr.mxu0 0.0
        %3018 = vmatpush1.msra.mxu0 0.0
        %3019 = vmatprep.subr.mxu0 0.0
        %3020 = vmatpush1.msra.mxu0 0.0
        %3021 = vmatprep.subr.mxu0 0.0
        %3022 = vmatpush1.msra.mxu0 0.0
        %3023 = vmatprep.subr.mxu0 0.0
        %3024 = vmatpush1.msra.mxu0 0.0
        %3025 = vmatprep.subr.mxu0 0.0
        %3026 = vmatpush1.msra.mxu0 0.0
        %3027 = vmatprep.subr.mxu0 0.0
        %3028 = vmatpush1.msra.mxu0 0.0
        %3029 = vmatprep.subr.mxu0 0.0
        %3030 = vmatpush1.msra.mxu0 0.0
        %3031 = vmatprep.subr.mxu0 0.0
        %3032 = vmatpush1.msra.mxu0 0.0
        %3033 = vmatprep.subr.mxu0 0.0
        %3034 = vmatpush1.msra.mxu0 0.0
        %3035 = vmatprep.subr.mxu0 0.0
        %3036 = vmatpush1.msra.mxu0 0.0
        %3037 = vmatprep.subr.mxu0 0.0
        %3038 = vmatpush1.msra.mxu0 0.0
        %3039 = vmatprep.subr.mxu0 0.0
        %3040 = vmatpush1.msra.mxu0 0.0
        %3041 = vmatprep.subr.mxu0 0.0
        %3042 = vmatpush1.msra.mxu0 0.0
        %3043 = vmatprep.subr.mxu0 0.0
        %3044 = vmatpush1.msra.mxu0 0.0
        %3045 = vmatprep.subr.mxu0 0.0
        %3046 = vmatpush1.msra.mxu0 0.0
        %3047 = vmatprep.subr.mxu0 0.0
        %3048 = vmatpush1.msra.mxu0 0.0
        %3049 = vmatprep.mubr.f32.mxu0 0.0
        %3050 = vmatmul.mubr.f32.gmra.mrb[0].mxu0 %v2982
        %v3051 = vpop.f32.mrb[0].mxu0
        %v3052 = vadd.f32 0.0, %v3051
        %v3053 = vpop.f32.mrb[0].mxu0
        %3054 = vmatprep.mubr.f32.mxu0 0.0
        %3055 = vmatmul.mubr.f32.gmra.mrb[0].mxu0 %v2984
        %v3056 = vpop.f32.mrb[0].mxu0
        %v3057 = vadd.f32 0.0, %v3056
        %v3058 = vpop.f32.mrb[0].mxu0
        %3059 = vdwg.mxu0
        %v3060 = vmax.f32 %v3052, 1e-30
        %v3061 = vmax.f32 %v3057, 1e-30
        %v3062 = vrcp.pop %v3060
        %v3063 = vmul.f32 %v2982, %v3062
        %v3064 = vrcp.pop %v3061
        %v3065 = vmul.f32 %v2984, %v3064
        %3066 = vmatprep.subr.mxu0 0.0
        %3067 = vmatpush1.msra.mxu0 %v587
        %3068 = vmatprep.subr.mxu0 0.0
        %3069 = vmatpush1.msra.mxu0 %v588
        %3070 = vmatprep.subr.mxu0 0.0
        %3071 = vmatpush1.msra.mxu0 %v589
        %3072 = vmatprep.subr.mxu0 0.0
        %3073 = vmatpush1.msra.mxu0 %v590
        %3074 = vmatprep.subr.mxu0 0.0
        %3075 = vmatpush1.msra.mxu0 %v591
        %3076 = vmatprep.subr.mxu0 0.0
        %3077 = vmatpush1.msra.mxu0 %v592
        %3078 = vmatprep.subr.mxu0 0.0
        %3079 = vmatpush1.msra.mxu0 %v593
        %3080 = vmatprep.subr.mxu0 0.0
        %3081 = vmatpush1.msra.mxu0 %v594
        %3082 = vmatprep.subr.mxu0 0.0
        %3083 = vmatpush1.msra.mxu0 %v595
        %3084 = vmatprep.subr.mxu0 0.0
        %3085 = vmatpush1.msra.mxu0 %v596
        %3086 = vmatprep.subr.mxu0 0.0
        %3087 = vmatpush1.msra.mxu0 %v597
        %3088 = vmatprep.subr.mxu0 0.0
        %3089 = vmatpush1.msra.mxu0 %v598
        %3090 = vmatprep.subr.mxu0 0.0
        %3091 = vmatpush1.msra.mxu0 %v599
        %3092 = vmatprep.subr.mxu0 0.0
        %3093 = vmatpush1.msra.mxu0 %v600
        %3094 = vmatprep.subr.mxu0 0.0
        %3095 = vmatpush1.msra.mxu0 %v601
        %3096 = vmatprep.subr.mxu0 0.0
        %3097 = vmatpush1.msra.mxu0 %v602
        %3098 = vmatprep.subr.mxu0 0.0
        %3099 = vmatpush1.msra.mxu0 0.0
        %3100 = vmatprep.subr.mxu0 0.0
        %3101 = vmatpush1.msra.mxu0 0.0
        %3102 = vmatprep.subr.mxu0 0.0
        %3103 = vmatpush1.msra.mxu0 0.0
        %3104 = vmatprep.subr.mxu0 0.0
        %3105 = vmatpush1.msra.mxu0 0.0
        %3106 = vmatprep.subr.mxu0 0.0
        %3107 = vmatpush1.msra.mxu0 0.0
        %3108 = vmatprep.subr.mxu0 0.0
        %3109 = vmatpush1.msra.mxu0 0.0
        %3110 = vmatprep.subr.mxu0 0.0
        %3111 = vmatpush1.msra.mxu0 0.0
        %3112 = vmatprep.subr.mxu0 0.0
        %3113 = vmatpush1.msra.mxu0 0.0
        %3114 = vmatprep.subr.mxu0 0.0
        %3115 = vmatpush1.msra.mxu0 0.0
        %3116 = vmatprep.subr.mxu0 0.0
        %3117 = vmatpush1.msra.mxu0 0.0
        %3118 = vmatprep.subr.mxu0 0.0
        %3119 = vmatpush1.msra.mxu0 0.0
        %3120 = vmatprep.subr.mxu0 0.0
        %3121 = vmatpush1.msra.mxu0 0.0
        %3122 = vmatprep.subr.mxu0 0.0
        %3123 = vmatpush1.msra.mxu0 0.0
        %3124 = vmatprep.subr.mxu0 0.0
        %3125 = vmatpush1.msra.mxu0 0.0
        %3126 = vmatprep.subr.mxu0 0.0
        %3127 = vmatpush1.msra.mxu0 0.0
        %3128 = vmatprep.subr.mxu0 0.0
        %3129 = vmatpush1.msra.mxu0 0.0
        %3130 = vmatprep.mubr.f32.mxu0 0.0
        %3131 = vmatmul.mubr.f32.gmra.mrb[0].mxu0 %v3063
        %v3132 = vpop.f32.mrb[0].mxu0
        %v3133 = vadd.f32 0.0, %v3132
        %v3134 = vpop.f32.mrb[0].mxu0
        %3135 = vmatprep.mubr.f32.mxu0 0.0
        %3136 = vmatmul.mubr.f32.gmra.mrb[0].mxu0 %v3065
        %v3137 = vpop.f32.mrb[0].mxu0
        %v3138 = vadd.f32 0.0, %v3137
        %v3139 = vpop.f32.mrb[0].mxu0
        %3140 = vdwg.mxu0
        %v3141 = vmul.f32 %v820, %v613
        %v3142 = vmul.f32 %v824, %v614
        %v3143 = vmul.f32 %v820, %v615
        %v3144 = vmul.f32 %v824, %v616
        %v3145 = vmul.f32 %v820, %v617
        %v3146 = vmul.f32 %v824, %v618
        %v3147 = vmul.f32 %v820, %v619
        %v3148 = vmul.f32 %v824, %v620
        %v3149 = vmul.f32 %v820, %v621
        %v3150 = vmul.f32 %v824, %v622
        %v3151 = vmul.f32 %v820, %v623
        %v3152 = vmul.f32 %v824, %v624
        %v3153 = vmul.f32 %v820, %v625
        %v3154 = vmul.f32 %v824, %v626
        %v3155 = vmul.f32 %v820, %v627
        %v3156 = vmul.f32 %v824, %v628
        %v3157 = vpack.c.bf16 %v3142, %v3141
        %v3158 = vpack.c.bf16 %v3144, %v3143
        %v3159 = vpack.c.bf16 %v3146, %v3145
        %v3160 = vpack.c.bf16 %v3148, %v3147
        %v3161 = vpack.c.bf16 %v3150, %v3149
        %v3162 = vpack.c.bf16 %v3152, %v3151
        %v3163 = vpack.c.bf16 %v3154, %v3153
        %v3164 = vpack.c.bf16 %v3156, %v3155
        %v3165 = vpack.c.bf16 %v3138, %v3133
        %3166 = vmatprep.subr.bf16.mxu0 0
        %3167 = vmatpush1.bf16.msra.mxu0 %v3157
        %3168 = vmatprep.subr.bf16.mxu0 0
        %3169 = vmatpush1.bf16.msra.mxu0 %v3158
        %3170 = vmatprep.subr.bf16.mxu0 0
        %3171 = vmatpush1.bf16.msra.mxu0 %v3159
        %3172 = vmatprep.subr.bf16.mxu0 0
        %3173 = vmatpush1.bf16.msra.mxu0 %v3160
        %3174 = vmatprep.subr.bf16.mxu0 0
        %3175 = vmatpush1.bf16.msra.mxu0 %v3161
        %3176 = vmatprep.subr.bf16.mxu0 0
        %3177 = vmatpush1.bf16.msra.mxu0 %v3162
        %3178 = vmatprep.subr.bf16.mxu0 0
        %3179 = vmatpush1.bf16.msra.mxu0 %v3163
        %3180 = vmatprep.subr.bf16.mxu0 0
        %3181 = vmatpush1.bf16.msra.mxu0 %v3164
        %3182 = vmatprep.subr.bf16.mxu0 0
        %3183 = vmatpush1.bf16.msra.mxu0 0
        %3184 = vmatprep.subr.bf16.mxu0 0
        %3185 = vmatpush1.bf16.msra.mxu0 0
        %3186 = vmatprep.subr.bf16.mxu0 0
        %3187 = vmatpush1.bf16.msra.mxu0 0
        %3188 = vmatprep.subr.bf16.mxu0 0
        %3189 = vmatpush1.bf16.msra.mxu0 0
        %3190 = vmatprep.subr.bf16.mxu0 0
        %3191 = vmatpush1.bf16.msra.mxu0 0
        %3192 = vmatprep.subr.bf16.mxu0 0
        %3193 = vmatpush1.bf16.msra.mxu0 0
        %3194 = vmatprep.subr.bf16.mxu0 0
        %3195 = vmatpush1.bf16.msra.mxu0 0
        %3196 = vmatprep.subr.bf16.mxu0 0
        %3197 = vmatpush1.bf16.msra.mxu0 0
        %3198 = vmatprep.mubr.bf16.mxu0 0
        %3199 = vmatmul.mubr.bf16.gmra.mrb[0].mxu0 %v3165
        %v3200 = vpop.f32.mrb[0].mxu0
        %v3201 = vadd.f32 0.0, %v3200
        %v3202 = vpop.f32.mrb[0].mxu0
        %v3203 = vpop.f32.mrb[0].mxu0
        %v3204 = vadd.f32 0.0, %v3203
        %v3205 = vpop.f32.mrb[0].mxu0
        %3206 = vdwg.mxu0
        %3207 = vrot.lane.b32.xlu0 %v960, 48
        %v3208 = vpop.permute.xlu0 %3207
        %3209 = vrot.lane.b32.xlu0 %v961, 48
        %v3210 = vpop.permute.xlu0 %3209
        %3211 = vrot.lane.b32.xlu0 %v962, 48
        %v3212 = vpop.permute.xlu0 %3211
        %3213 = vrot.lane.b32.xlu0 %v963, 48
        %v3214 = vpop.permute.xlu0 %3213
        %v3216 = vsel %vm970, %v3208, 0
        %v3219 = vsel %vm970, %v3210, 0
        %v3222 = vsel %vm970, %v3212, 0
        %v3225 = vsel %vm970, %v3214, 0
        %3227 = vmatprep.subr.bf16.mxu0 0
        %3228 = vmatpush1.bf16.msra.mxu0 %v968
        %3229 = vmatprep.subr.bf16.mxu0 0
        %3230 = vmatpush1.bf16.msra.mxu0 0
        %3231 = vmatprep.subr.bf16.mxu0 0
        %3232 = vmatpush1.bf16.msra.mxu0 0
        %3233 = vmatprep.subr.bf16.mxu0 0
        %3234 = vmatpush1.bf16.msra.mxu0 0
        %3235 = vmatprep.subr.bf16.mxu0 0
        %3236 = vmatpush1.bf16.msra.mxu0 0
        %3237 = vmatprep.subr.bf16.mxu0 0
        %3238 = vmatpush1.bf16.msra.mxu0 0
        %3239 = vmatprep.subr.bf16.mxu0 0
        %3240 = vmatpush1.bf16.msra.mxu0 0
        %3241 = vmatprep.subr.bf16.mxu0 0
        %3242 = vmatpush1.bf16.msra.mxu0 0
        %3243 = vmatprep.subr.bf16.mxu0 0
        %3244 = vmatpush1.bf16.msra.mxu0 0
        %3245 = vmatprep.subr.bf16.mxu0 0
        %3246 = vmatpush1.bf16.msra.mxu0 0
        %3247 = vmatprep.subr.bf16.mxu0 0
        %3248 = vmatpush1.bf16.msra.mxu0 0
        %3249 = vmatprep.subr.bf16.mxu0 0
        %3250 = vmatpush1.bf16.msra.mxu0 0
        %3251 = vmatprep.subr.bf16.mxu0 0
        %3252 = vmatpush1.bf16.msra.mxu0 0
        %3253 = vmatprep.subr.bf16.mxu0 0
        %3254 = vmatpush1.bf16.msra.mxu0 0
        %3255 = vmatprep.subr.bf16.mxu0 0
        %3256 = vmatpush1.bf16.msra.mxu0 0
        %3257 = vmatprep.subr.bf16.mxu0 0
        %3258 = vmatpush1.bf16.msra.mxu0 0
        %3259 = vmatprep.mubr.bf16.mxu0 0
        %3260 = vmatmul.mubr.bf16.gmra.mrb[0].mxu0 %v3216
        %v3261 = vpop.f32.mrb[0].mxu0
        %v3262 = vadd.f32 0.0, %v3261
        %v3263 = vpop.f32.mrb[0].mxu0
        %v3264 = vpop.f32.mrb[0].mxu0
        %v3265 = vadd.f32 0.0, %v3264
        %v3266 = vpop.f32.mrb[0].mxu0
        %3267 = vmatprep.mubr.bf16.mxu0 0
        %3268 = vmatmul.mubr.bf16.gmra.mrb[0].mxu0 %v3219
        %v3269 = vpop.f32.mrb[0].mxu0
        %v3270 = vadd.f32 0.0, %v3269
        %v3271 = vpop.f32.mrb[0].mxu0
        %v3272 = vpop.f32.mrb[0].mxu0
        %v3273 = vadd.f32 0.0, %v3272
        %v3274 = vpop.f32.mrb[0].mxu0
        %3275 = vmatprep.mubr.bf16.mxu0 0
        %3276 = vmatmul.mubr.bf16.gmra.mrb[0].mxu0 %v3222
        %v3277 = vpop.f32.mrb[0].mxu0
        %v3278 = vadd.f32 0.0, %v3277
        %v3279 = vpop.f32.mrb[0].mxu0
        %v3280 = vpop.f32.mrb[0].mxu0
        %v3281 = vadd.f32 0.0, %v3280
        %v3282 = vpop.f32.mrb[0].mxu0
        %3283 = vmatprep.mubr.bf16.mxu0 0
        %3284 = vmatmul.mubr.bf16.gmra.mrb[0].mxu0 %v3225
        %v3285 = vpop.f32.mrb[0].mxu0
        %v3286 = vadd.f32 0.0, %v3285
        %v3287 = vpop.f32.mrb[0].mxu0
        %v3288 = vpop.f32.mrb[0].mxu0
        %v3289 = vadd.f32 0.0, %v3288
        %v3290 = vpop.f32.mrb[0].mxu0
        %3291 = vdwg.mxu0
        %v3292 = vmul.f32 %v3262, %v605
        %v3293 = vmul.f32 %v3265, %v606
        %v3294 = vmul.f32 %v3270, %v607
        %v3295 = vmul.f32 %v3273, %v608
        %v3296 = vmul.f32 %v3278, %v609
        %v3297 = vmul.f32 %v3281, %v610
        %v3298 = vmul.f32 %v3286, %v611
        %v3299 = vmul.f32 %v3289, %v612
        %v3300 = vpack.c.bf16 %v3293, %v3292
        %v3301 = vpack.c.bf16 %v3295, %v3294
        %v3302 = vpack.c.bf16 %v3297, %v3296
        %v3303 = vpack.c.bf16 %v3299, %v3298
        %v3305 = vsel %vm718, %v861, 0
        %3307 = vmatprep.subr.bf16.mxu0 0
        %3308 = vmatpush1.bf16.msra.mxu0 %v3300
        %3309 = vmatprep.subr.bf16.mxu0 0
        %3310 = vmatpush1.bf16.msra.mxu0 %v3301
        %3311 = vmatprep.subr.bf16.mxu0 0
        %3312 = vmatpush1.bf16.msra.mxu0 %v3302
        %3313 = vmatprep.subr.bf16.mxu0 0
        %3314 = vmatpush1.bf16.msra.mxu0 %v3303
        %3315 = vmatprep.subr.bf16.mxu0 0
        %3316 = vmatpush1.bf16.msra.mxu0 0
        %3317 = vmatprep.subr.bf16.mxu0 0
        %3318 = vmatpush1.bf16.msra.mxu0 0
        %3319 = vmatprep.subr.bf16.mxu0 0
        %3320 = vmatpush1.bf16.msra.mxu0 0
        %3321 = vmatprep.subr.bf16.mxu0 0
        %3322 = vmatpush1.bf16.msra.mxu0 0
        %3323 = vmatprep.subr.bf16.mxu0 0
        %3324 = vmatpush1.bf16.msra.mxu0 0
        %3325 = vmatprep.subr.bf16.mxu0 0
        %3326 = vmatpush1.bf16.msra.mxu0 0
        %3327 = vmatprep.subr.bf16.mxu0 0
        %3328 = vmatpush1.bf16.msra.mxu0 0
        %3329 = vmatprep.subr.bf16.mxu0 0
        %3330 = vmatpush1.bf16.msra.mxu0 0
        %3331 = vmatprep.subr.bf16.mxu0 0
        %3332 = vmatpush1.bf16.msra.mxu0 0
        %3333 = vmatprep.subr.bf16.mxu0 0
        %3334 = vmatpush1.bf16.msra.mxu0 0
        %3335 = vmatprep.subr.bf16.mxu0 0
        %3336 = vmatpush1.bf16.msra.mxu0 0
        %3337 = vmatprep.subr.bf16.mxu0 0
        %3338 = vmatpush1.bf16.msra.mxu0 0
        %3339 = vmatprep.mubr.bf16.mxu0 0
        %3340 = vmatmul.mubr.bf16.gmra.mrb[0].mxu0 %v3305
        %v3341 = vpop.f32.mrb[0].mxu0
        %v3342 = vadd.f32 0.0, %v3341
        %v3343 = vpop.f32.mrb[0].mxu0
        %v3344 = vpop.f32.mrb[0].mxu0
        %v3345 = vadd.f32 0.0, %v3344
        %v3346 = vpop.f32.mrb[0].mxu0
        %3347 = vdwg.mxu0
        %3348 = vmatprep.subr.mxu0 0.0
        %3349 = vmatpush1.msra.mxu0 %v570
        %3350 = vmatprep.subr.mxu0 0.0
        %3351 = vmatpush1.msra.mxu0 %v571
        %3352 = vmatprep.subr.mxu0 0.0
        %3353 = vmatpush1.msra.mxu0 %v572
        %3354 = vmatprep.subr.mxu0 0.0
        %3355 = vmatpush1.msra.mxu0 %v573
        %3356 = vmatprep.subr.mxu0 0.0
        %3357 = vmatpush1.msra.mxu0 %v574
        %3358 = vmatprep.subr.mxu0 0.0
        %3359 = vmatpush1.msra.mxu0 %v575
        %3360 = vmatprep.subr.mxu0 0.0
        %3361 = vmatpush1.msra.mxu0 %v576
        %3362 = vmatprep.subr.mxu0 0.0
        %3363 = vmatpush1.msra.mxu0 %v577
        %3364 = vmatprep.subr.mxu0 0.0
        %3365 = vmatpush1.msra.mxu0 %v578
        %3366 = vmatprep.subr.mxu0 0.0
        %3367 = vmatpush1.msra.mxu0 %v579
        %3368 = vmatprep.subr.mxu0 0.0
        %3369 = vmatpush1.msra.mxu0 %v580
        %3370 = vmatprep.subr.mxu0 0.0
        %3371 = vmatpush1.msra.mxu0 %v581
        %3372 = vmatprep.subr.mxu0 0.0
        %3373 = vmatpush1.msra.mxu0 %v582
        %3374 = vmatprep.subr.mxu0 0.0
        %3375 = vmatpush1.msra.mxu0 %v583
        %3376 = vmatprep.subr.mxu0 0.0
        %3377 = vmatpush1.msra.mxu0 %v584
        %3378 = vmatprep.subr.mxu0 0.0
        %3379 = vmatpush1.msra.mxu0 %v585
        %3380 = vmatprep.subr.mxu0 0.0
        %3381 = vmatpush1.msra.mxu0 0.0
        %3382 = vmatprep.subr.mxu0 0.0
        %3383 = vmatpush1.msra.mxu0 0.0
        %3384 = vmatprep.subr.mxu0 0.0
        %3385 = vmatpush1.msra.mxu0 0.0
        %3386 = vmatprep.subr.mxu0 0.0
        %3387 = vmatpush1.msra.mxu0 0.0
        %3388 = vmatprep.subr.mxu0 0.0
        %3389 = vmatpush1.msra.mxu0 0.0
        %3390 = vmatprep.subr.mxu0 0.0
        %3391 = vmatpush1.msra.mxu0 0.0
        %3392 = vmatprep.subr.mxu0 0.0
        %3393 = vmatpush1.msra.mxu0 0.0
        %3394 = vmatprep.subr.mxu0 0.0
        %3395 = vmatpush1.msra.mxu0 0.0
        %3396 = vmatprep.subr.mxu0 0.0
        %3397 = vmatpush1.msra.mxu0 0.0
        %3398 = vmatprep.subr.mxu0 0.0
        %3399 = vmatpush1.msra.mxu0 0.0
        %3400 = vmatprep.subr.mxu0 0.0
        %3401 = vmatpush1.msra.mxu0 0.0
        %3402 = vmatprep.subr.mxu0 0.0
        %3403 = vmatpush1.msra.mxu0 0.0
        %3404 = vmatprep.subr.mxu0 0.0
        %3405 = vmatpush1.msra.mxu0 0.0
        %3406 = vmatprep.subr.mxu0 0.0
        %3407 = vmatpush1.msra.mxu0 0.0
        %3408 = vmatprep.subr.mxu0 0.0
        %3409 = vmatpush1.msra.mxu0 0.0
        %3410 = vmatprep.subr.mxu0 0.0
        %3411 = vmatpush1.msra.mxu0 0.0
        %3412 = vmatprep.mubr.f32.mxu0 0.0
        %3413 = vmatmul.mubr.f32.gmra.mrb[0].mxu0 %v3342
        %v3414 = vpop.f32.mrb[0].mxu0
        %v3415 = vadd.f32 0.0, %v3414
        %v3416 = vpop.f32.mrb[0].mxu0
        %3417 = vmatprep.mubr.f32.mxu0 0.0
        %3418 = vmatmul.mubr.f32.gmra.mrb[0].mxu0 %v3345
        %v3419 = vpop.f32.mrb[0].mxu0
        %v3420 = vadd.f32 0.0, %v3419
        %v3421 = vpop.f32.mrb[0].mxu0
        %3422 = vdwg.mxu0
        %3423 = vmax.xlane.f32.xlu0 %v3415
        %v3424 = vpop.xlane.xlu0 %3423
        %3425 = vmax.xlane.f32.xlu0 %v3420
        %v3426 = vpop.xlane.xlu0 %3425
        %v3427 = vsub.f32 %v3415, %v3424
        %v3428 = vsub.f32 %v3420, %v3426
        %v3429 = vmul.f32 %v3427, 1.442695
        %v3430 = vpow.pop %v3429
        %v3431 = vmul.f32 %v3428, 1.442695
        %v3432 = vpow.pop %v3431
        %3433 = vmatprep.subr.mxu0 0.0
        %3434 = vmatpush1.msra.mxu0 %v629
        %3435 = vmatprep.subr.mxu0 0.0
        %3436 = vmatpush1.msra.mxu0 %v630
        %3437 = vmatprep.subr.mxu0 0.0
        %3438 = vmatpush1.msra.mxu0 %v631
        %3439 = vmatprep.subr.mxu0 0.0
        %3440 = vmatpush1.msra.mxu0 %v632
        %3441 = vmatprep.subr.mxu0 0.0
        %3442 = vmatpush1.msra.mxu0 %v633
        %3443 = vmatprep.subr.mxu0 0.0
        %3444 = vmatpush1.msra.mxu0 %v634
        %3445 = vmatprep.subr.mxu0 0.0
        %3446 = vmatpush1.msra.mxu0 %v635
        %3447 = vmatprep.subr.mxu0 0.0
        %3448 = vmatpush1.msra.mxu0 %v636
        %3449 = vmatprep.subr.mxu0 0.0
        %3450 = vmatpush1.msra.mxu0 %v637
        %3451 = vmatprep.subr.mxu0 0.0
        %3452 = vmatpush1.msra.mxu0 %v638
        %3453 = vmatprep.subr.mxu0 0.0
        %3454 = vmatpush1.msra.mxu0 %v639
        %3455 = vmatprep.subr.mxu0 0.0
        %3456 = vmatpush1.msra.mxu0 %v640
        %3457 = vmatprep.subr.mxu0 0.0
        %3458 = vmatpush1.msra.mxu0 %v641
        %3459 = vmatprep.subr.mxu0 0.0
        %3460 = vmatpush1.msra.mxu0 %v642
        %3461 = vmatprep.subr.mxu0 0.0
        %3462 = vmatpush1.msra.mxu0 %v643
        %3463 = vmatprep.subr.mxu0 0.0
        %3464 = vmatpush1.msra.mxu0 %v644
        %3465 = vmatprep.subr.mxu0 0.0
        %3466 = vmatpush1.msra.mxu0 0.0
        %3467 = vmatprep.subr.mxu0 0.0
        %3468 = vmatpush1.msra.mxu0 0.0
        %3469 = vmatprep.subr.mxu0 0.0
        %3470 = vmatpush1.msra.mxu0 0.0
        %3471 = vmatprep.subr.mxu0 0.0
        %3472 = vmatpush1.msra.mxu0 0.0
        %3473 = vmatprep.subr.mxu0 0.0
        %3474 = vmatpush1.msra.mxu0 0.0
        %3475 = vmatprep.subr.mxu0 0.0
        %3476 = vmatpush1.msra.mxu0 0.0
        %3477 = vmatprep.subr.mxu0 0.0
        %3478 = vmatpush1.msra.mxu0 0.0
        %3479 = vmatprep.subr.mxu0 0.0
        %3480 = vmatpush1.msra.mxu0 0.0
        %3481 = vmatprep.subr.mxu0 0.0
        %3482 = vmatpush1.msra.mxu0 0.0
        %3483 = vmatprep.subr.mxu0 0.0
        %3484 = vmatpush1.msra.mxu0 0.0
        %3485 = vmatprep.subr.mxu0 0.0
        %3486 = vmatpush1.msra.mxu0 0.0
        %3487 = vmatprep.subr.mxu0 0.0
        %3488 = vmatpush1.msra.mxu0 0.0
        %3489 = vmatprep.subr.mxu0 0.0
        %3490 = vmatpush1.msra.mxu0 0.0
        %3491 = vmatprep.subr.mxu0 0.0
        %3492 = vmatpush1.msra.mxu0 0.0
        %3493 = vmatprep.subr.mxu0 0.0
        %3494 = vmatpush1.msra.mxu0 0.0
        %3495 = vmatprep.subr.mxu0 0.0
        %3496 = vmatpush1.msra.mxu0 0.0
        %3497 = vmatprep.mubr.f32.mxu0 0.0
        %3498 = vmatmul.mubr.f32.gmra.mrb[0].mxu0 %v3430
        %v3499 = vpop.f32.mrb[0].mxu0
        %v3500 = vadd.f32 0.0, %v3499
        %v3501 = vpop.f32.mrb[0].mxu0
        %3502 = vmatprep.mubr.f32.mxu0 0.0
        %3503 = vmatmul.mubr.f32.gmra.mrb[0].mxu0 %v3432
        %v3504 = vpop.f32.mrb[0].mxu0
        %v3505 = vadd.f32 0.0, %v3504
        %v3506 = vpop.f32.mrb[0].mxu0
        %3507 = vdwg.mxu0
        %v3508 = vmax.f32 %v3500, 1e-30
        %v3509 = vmax.f32 %v3505, 1e-30
        %v3510 = vrcp.pop %v3508
        %v3511 = vmul.f32 %v3430, %v3510
        %v3512 = vrcp.pop %v3509
        %v3513 = vmul.f32 %v3432, %v3512
        %3514 = vmatprep.subr.mxu0 0.0
        %3515 = vmatpush1.msra.mxu0 %v587
        %3516 = vmatprep.subr.mxu0 0.0
        %3517 = vmatpush1.msra.mxu0 %v588
        %3518 = vmatprep.subr.mxu0 0.0
        %3519 = vmatpush1.msra.mxu0 %v589
        %3520 = vmatprep.subr.mxu0 0.0
        %3521 = vmatpush1.msra.mxu0 %v590
        %3522 = vmatprep.subr.mxu0 0.0
        %3523 = vmatpush1.msra.mxu0 %v591
        %3524 = vmatprep.subr.mxu0 0.0
        %3525 = vmatpush1.msra.mxu0 %v592
        %3526 = vmatprep.subr.mxu0 0.0
        %3527 = vmatpush1.msra.mxu0 %v593
        %3528 = vmatprep.subr.mxu0 0.0
        %3529 = vmatpush1.msra.mxu0 %v594
        %3530 = vmatprep.subr.mxu0 0.0
        %3531 = vmatpush1.msra.mxu0 %v595
        %3532 = vmatprep.subr.mxu0 0.0
        %3533 = vmatpush1.msra.mxu0 %v596
        %3534 = vmatprep.subr.mxu0 0.0
        %3535 = vmatpush1.msra.mxu0 %v597
        %3536 = vmatprep.subr.mxu0 0.0
        %3537 = vmatpush1.msra.mxu0 %v598
        %3538 = vmatprep.subr.mxu0 0.0
        %3539 = vmatpush1.msra.mxu0 %v599
        %3540 = vmatprep.subr.mxu0 0.0
        %3541 = vmatpush1.msra.mxu0 %v600
        %3542 = vmatprep.subr.mxu0 0.0
        %3543 = vmatpush1.msra.mxu0 %v601
        %3544 = vmatprep.subr.mxu0 0.0
        %3545 = vmatpush1.msra.mxu0 %v602
        %3546 = vmatprep.subr.mxu0 0.0
        %3547 = vmatpush1.msra.mxu0 0.0
        %3548 = vmatprep.subr.mxu0 0.0
        %3549 = vmatpush1.msra.mxu0 0.0
        %3550 = vmatprep.subr.mxu0 0.0
        %3551 = vmatpush1.msra.mxu0 0.0
        %3552 = vmatprep.subr.mxu0 0.0
        %3553 = vmatpush1.msra.mxu0 0.0
        %3554 = vmatprep.subr.mxu0 0.0
        %3555 = vmatpush1.msra.mxu0 0.0
        %3556 = vmatprep.subr.mxu0 0.0
        %3557 = vmatpush1.msra.mxu0 0.0
        %3558 = vmatprep.subr.mxu0 0.0
        %3559 = vmatpush1.msra.mxu0 0.0
        %3560 = vmatprep.subr.mxu0 0.0
        %3561 = vmatpush1.msra.mxu0 0.0
        %3562 = vmatprep.subr.mxu0 0.0
        %3563 = vmatpush1.msra.mxu0 0.0
        %3564 = vmatprep.subr.mxu0 0.0
        %3565 = vmatpush1.msra.mxu0 0.0
        %3566 = vmatprep.subr.mxu0 0.0
        %3567 = vmatpush1.msra.mxu0 0.0
        %3568 = vmatprep.subr.mxu0 0.0
        %3569 = vmatpush1.msra.mxu0 0.0
        %3570 = vmatprep.subr.mxu0 0.0
        %3571 = vmatpush1.msra.mxu0 0.0
        %3572 = vmatprep.subr.mxu0 0.0
        %3573 = vmatpush1.msra.mxu0 0.0
        %3574 = vmatprep.subr.mxu0 0.0
        %3575 = vmatpush1.msra.mxu0 0.0
        %3576 = vmatprep.subr.mxu0 0.0
        %3577 = vmatpush1.msra.mxu0 0.0
        %3578 = vmatprep.mubr.f32.mxu0 0.0
        %3579 = vmatmul.mubr.f32.gmra.mrb[0].mxu0 %v3511
        %v3580 = vpop.f32.mrb[0].mxu0
        %v3581 = vadd.f32 0.0, %v3580
        %v3582 = vpop.f32.mrb[0].mxu0
        %3583 = vmatprep.mubr.f32.mxu0 0.0
        %3584 = vmatmul.mubr.f32.gmra.mrb[0].mxu0 %v3513
        %v3585 = vpop.f32.mrb[0].mxu0
        %v3586 = vadd.f32 0.0, %v3585
        %v3587 = vpop.f32.mrb[0].mxu0
        %3588 = vdwg.mxu0
        %v3589 = vmul.f32 %v830, %v613
        %v3590 = vmul.f32 %v834, %v614
        %v3591 = vmul.f32 %v830, %v615
        %v3592 = vmul.f32 %v834, %v616
        %v3593 = vmul.f32 %v830, %v617
        %v3594 = vmul.f32 %v834, %v618
        %v3595 = vmul.f32 %v830, %v619
        %v3596 = vmul.f32 %v834, %v620
        %v3597 = vmul.f32 %v830, %v621
        %v3598 = vmul.f32 %v834, %v622
        %v3599 = vmul.f32 %v830, %v623
        %v3600 = vmul.f32 %v834, %v624
        %v3601 = vmul.f32 %v830, %v625
        %v3602 = vmul.f32 %v834, %v626
        %v3603 = vmul.f32 %v830, %v627
        %v3604 = vmul.f32 %v834, %v628
        %v3605 = vpack.c.bf16 %v3590, %v3589
        %v3606 = vpack.c.bf16 %v3592, %v3591
        %v3607 = vpack.c.bf16 %v3594, %v3593
        %v3608 = vpack.c.bf16 %v3596, %v3595
        %v3609 = vpack.c.bf16 %v3598, %v3597
        %v3610 = vpack.c.bf16 %v3600, %v3599
        %v3611 = vpack.c.bf16 %v3602, %v3601
        %v3612 = vpack.c.bf16 %v3604, %v3603
        %v3613 = vpack.c.bf16 %v3586, %v3581
        %3614 = vmatprep.subr.bf16.mxu0 0
        %3615 = vmatpush1.bf16.msra.mxu0 %v3605
        %3616 = vmatprep.subr.bf16.mxu0 0
        %3617 = vmatpush1.bf16.msra.mxu0 %v3606
        %3618 = vmatprep.subr.bf16.mxu0 0
        %3619 = vmatpush1.bf16.msra.mxu0 %v3607
        %3620 = vmatprep.subr.bf16.mxu0 0
        %3621 = vmatpush1.bf16.msra.mxu0 %v3608
        %3622 = vmatprep.subr.bf16.mxu0 0
        %3623 = vmatpush1.bf16.msra.mxu0 %v3609
        %3624 = vmatprep.subr.bf16.mxu0 0
        %3625 = vmatpush1.bf16.msra.mxu0 %v3610
        %3626 = vmatprep.subr.bf16.mxu0 0
        %3627 = vmatpush1.bf16.msra.mxu0 %v3611
        %3628 = vmatprep.subr.bf16.mxu0 0
        %3629 = vmatpush1.bf16.msra.mxu0 %v3612
        %3630 = vmatprep.subr.bf16.mxu0 0
        %3631 = vmatpush1.bf16.msra.mxu0 0
        %3632 = vmatprep.subr.bf16.mxu0 0
        %3633 = vmatpush1.bf16.msra.mxu0 0
        %3634 = vmatprep.subr.bf16.mxu0 0
        %3635 = vmatpush1.bf16.msra.mxu0 0
        %3636 = vmatprep.subr.bf16.mxu0 0
        %3637 = vmatpush1.bf16.msra.mxu0 0
        %3638 = vmatprep.subr.bf16.mxu0 0
        %3639 = vmatpush1.bf16.msra.mxu0 0
        %3640 = vmatprep.subr.bf16.mxu0 0
        %3641 = vmatpush1.bf16.msra.mxu0 0
        %3642 = vmatprep.subr.bf16.mxu0 0
        %3643 = vmatpush1.bf16.msra.mxu0 0
        %3644 = vmatprep.subr.bf16.mxu0 0
        %3645 = vmatpush1.bf16.msra.mxu0 0
        %3646 = vmatprep.mubr.bf16.mxu0 0
        %3647 = vmatmul.mubr.bf16.gmra.mrb[0].mxu0 %v3613
        %v3648 = vpop.f32.mrb[0].mxu0
        %v3649 = vadd.f32 0.0, %v3648
        %v3650 = vpop.f32.mrb[0].mxu0
        %v3651 = vpop.f32.mrb[0].mxu0
        %v3652 = vadd.f32 0.0, %v3651
        %v3653 = vpop.f32.mrb[0].mxu0
        %3654 = vdwg.mxu0
        %3655 = vrot.lane.b32.xlu0 %v960, 32
        %v3656 = vpop.permute.xlu0 %3655
        %3657 = vrot.lane.b32.xlu0 %v961, 32
        %v3658 = vpop.permute.xlu0 %3657
        %3659 = vrot.lane.b32.xlu0 %v962, 32
        %v3660 = vpop.permute.xlu0 %3659
        %3661 = vrot.lane.b32.xlu0 %v963, 32
        %v3662 = vpop.permute.xlu0 %3661
        %v3664 = vsel %vm970, %v3656, 0
        %v3667 = vsel %vm970, %v3658, 0
        %v3670 = vsel %vm970, %v3660, 0
        %v3673 = vsel %vm970, %v3662, 0
        %3675 = vmatprep.subr.bf16.mxu0 0
        %3676 = vmatpush1.bf16.msra.mxu0 %v968
        %3677 = vmatprep.subr.bf16.mxu0 0
        %3678 = vmatpush1.bf16.msra.mxu0 0
        %3679 = vmatprep.subr.bf16.mxu0 0
        %3680 = vmatpush1.bf16.msra.mxu0 0
        %3681 = vmatprep.subr.bf16.mxu0 0
        %3682 = vmatpush1.bf16.msra.mxu0 0
        %3683 = vmatprep.subr.bf16.mxu0 0
        %3684 = vmatpush1.bf16.msra.mxu0 0
        %3685 = vmatprep.subr.bf16.mxu0 0
        %3686 = vmatpush1.bf16.msra.mxu0 0
        %3687 = vmatprep.subr.bf16.mxu0 0
        %3688 = vmatpush1.bf16.msra.mxu0 0
        %3689 = vmatprep.subr.bf16.mxu0 0
        %3690 = vmatpush1.bf16.msra.mxu0 0
        %3691 = vmatprep.subr.bf16.mxu0 0
        %3692 = vmatpush1.bf16.msra.mxu0 0
        %3693 = vmatprep.subr.bf16.mxu0 0
        %3694 = vmatpush1.bf16.msra.mxu0 0
        %3695 = vmatprep.subr.bf16.mxu0 0
        %3696 = vmatpush1.bf16.msra.mxu0 0
        %3697 = vmatprep.subr.bf16.mxu0 0
        %3698 = vmatpush1.bf16.msra.mxu0 0
        %3699 = vmatprep.subr.bf16.mxu0 0
        %3700 = vmatpush1.bf16.msra.mxu0 0
        %3701 = vmatprep.subr.bf16.mxu0 0
        %3702 = vmatpush1.bf16.msra.mxu0 0
        %3703 = vmatprep.subr.bf16.mxu0 0
        %3704 = vmatpush1.bf16.msra.mxu0 0
        %3705 = vmatprep.subr.bf16.mxu0 0
        %3706 = vmatpush1.bf16.msra.mxu0 0
        %3707 = vmatprep.mubr.bf16.mxu0 0
        %3708 = vmatmul.mubr.bf16.gmra.mrb[0].mxu0 %v3664
        %v3709 = vpop.f32.mrb[0].mxu0
        %v3710 = vadd.f32 0.0, %v3709
        %v3711 = vpop.f32.mrb[0].mxu0
        %v3712 = vpop.f32.mrb[0].mxu0
        %v3713 = vadd.f32 0.0, %v3712
        %v3714 = vpop.f32.mrb[0].mxu0
        %3715 = vmatprep.mubr.bf16.mxu0 0
        %3716 = vmatmul.mubr.bf16.gmra.mrb[0].mxu0 %v3667
        %v3717 = vpop.f32.mrb[0].mxu0
        %v3718 = vadd.f32 0.0, %v3717
        %v3719 = vpop.f32.mrb[0].mxu0
        %v3720 = vpop.f32.mrb[0].mxu0
        %v3721 = vadd.f32 0.0, %v3720
        %v3722 = vpop.f32.mrb[0].mxu0
        %3723 = vmatprep.mubr.bf16.mxu0 0
        %3724 = vmatmul.mubr.bf16.gmra.mrb[0].mxu0 %v3670
        %v3725 = vpop.f32.mrb[0].mxu0
        %v3726 = vadd.f32 0.0, %v3725
        %v3727 = vpop.f32.mrb[0].mxu0
        %v3728 = vpop.f32.mrb[0].mxu0
        %v3729 = vadd.f32 0.0, %v3728
        %v3730 = vpop.f32.mrb[0].mxu0
        %3731 = vmatprep.mubr.bf16.mxu0 0
        %3732 = vmatmul.mubr.bf16.gmra.mrb[0].mxu0 %v3673
        %v3733 = vpop.f32.mrb[0].mxu0
        %v3734 = vadd.f32 0.0, %v3733
        %v3735 = vpop.f32.mrb[0].mxu0
        %v3736 = vpop.f32.mrb[0].mxu0
        %v3737 = vadd.f32 0.0, %v3736
        %v3738 = vpop.f32.mrb[0].mxu0
        %3739 = vdwg.mxu0
        %v3740 = vmul.f32 %v3710, %v605
        %v3741 = vmul.f32 %v3713, %v606
        %v3742 = vmul.f32 %v3718, %v607
        %v3743 = vmul.f32 %v3721, %v608
        %v3744 = vmul.f32 %v3726, %v609
        %v3745 = vmul.f32 %v3729, %v610
        %v3746 = vmul.f32 %v3734, %v611
        %v3747 = vmul.f32 %v3737, %v612
        %v3748 = vpack.c.bf16 %v3741, %v3740
        %v3749 = vpack.c.bf16 %v3743, %v3742
        %v3750 = vpack.c.bf16 %v3745, %v3744
        %v3751 = vpack.c.bf16 %v3747, %v3746
        %v3753 = vsel %vm718, %v862, 0
        %3755 = vmatprep.subr.bf16.mxu0 0
        %3756 = vmatpush1.bf16.msra.mxu0 %v3748
        %3757 = vmatprep.subr.bf16.mxu0 0
        %3758 = vmatpush1.bf16.msra.mxu0 %v3749
        %3759 = vmatprep.subr.bf16.mxu0 0
        %3760 = vmatpush1.bf16.msra.mxu0 %v3750
        %3761 = vmatprep.subr.bf16.mxu0 0
        %3762 = vmatpush1.bf16.msra.mxu0 %v3751
        %3763 = vmatprep.subr.bf16.mxu0 0
        %3764 = vmatpush1.bf16.msra.mxu0 0
        %3765 = vmatprep.subr.bf16.mxu0 0
        %3766 = vmatpush1.bf16.msra.mxu0 0
        %3767 = vmatprep.subr.bf16.mxu0 0
        %3768 = vmatpush1.bf16.msra.mxu0 0
        %3769 = vmatprep.subr.bf16.mxu0 0
        %3770 = vmatpush1.bf16.msra.mxu0 0
        %3771 = vmatprep.subr.bf16.mxu0 0
        %3772 = vmatpush1.bf16.msra.mxu0 0
        %3773 = vmatprep.subr.bf16.mxu0 0
        %3774 = vmatpush1.bf16.msra.mxu0 0
        %3775 = vmatprep.subr.bf16.mxu0 0
        %3776 = vmatpush1.bf16.msra.mxu0 0
        %3777 = vmatprep.subr.bf16.mxu0 0
        %3778 = vmatpush1.bf16.msra.mxu0 0
        %3779 = vmatprep.subr.bf16.mxu0 0
        %3780 = vmatpush1.bf16.msra.mxu0 0
        %3781 = vmatprep.subr.bf16.mxu0 0
        %3782 = vmatpush1.bf16.msra.mxu0 0
        %3783 = vmatprep.subr.bf16.mxu0 0
        %3784 = vmatpush1.bf16.msra.mxu0 0
        %3785 = vmatprep.subr.bf16.mxu0 0
        %3786 = vmatpush1.bf16.msra.mxu0 0
        %3787 = vmatprep.mubr.bf16.mxu0 0
        %3788 = vmatmul.mubr.bf16.gmra.mrb[0].mxu0 %v3753
        %v3789 = vpop.f32.mrb[0].mxu0
        %v3790 = vadd.f32 0.0, %v3789
        %v3791 = vpop.f32.mrb[0].mxu0
        %v3792 = vpop.f32.mrb[0].mxu0
        %v3793 = vadd.f32 0.0, %v3792
        %v3794 = vpop.f32.mrb[0].mxu0
        %3795 = vdwg.mxu0
        %3796 = vmatprep.subr.mxu0 0.0
        %3797 = vmatpush1.msra.mxu0 %v570
        %3798 = vmatprep.subr.mxu0 0.0
        %3799 = vmatpush1.msra.mxu0 %v571
        %3800 = vmatprep.subr.mxu0 0.0
        %3801 = vmatpush1.msra.mxu0 %v572
        %3802 = vmatprep.subr.mxu0 0.0
        %3803 = vmatpush1.msra.mxu0 %v573
        %3804 = vmatprep.subr.mxu0 0.0
        %3805 = vmatpush1.msra.mxu0 %v574
        %3806 = vmatprep.subr.mxu0 0.0
        %3807 = vmatpush1.msra.mxu0 %v575
        %3808 = vmatprep.subr.mxu0 0.0
        %3809 = vmatpush1.msra.mxu0 %v576
        %3810 = vmatprep.subr.mxu0 0.0
        %3811 = vmatpush1.msra.mxu0 %v577
        %3812 = vmatprep.subr.mxu0 0.0
        %3813 = vmatpush1.msra.mxu0 %v578
        %3814 = vmatprep.subr.mxu0 0.0
        %3815 = vmatpush1.msra.mxu0 %v579
        %3816 = vmatprep.subr.mxu0 0.0
        %3817 = vmatpush1.msra.mxu0 %v580
        %3818 = vmatprep.subr.mxu0 0.0
        %3819 = vmatpush1.msra.mxu0 %v581
        %3820 = vmatprep.subr.mxu0 0.0
        %3821 = vmatpush1.msra.mxu0 %v582
        %3822 = vmatprep.subr.mxu0 0.0
        %3823 = vmatpush1.msra.mxu0 %v583
        %3824 = vmatprep.subr.mxu0 0.0
        %3825 = vmatpush1.msra.mxu0 %v584
        %3826 = vmatprep.subr.mxu0 0.0
        %3827 = vmatpush1.msra.mxu0 %v585
        %3828 = vmatprep.subr.mxu0 0.0
        %3829 = vmatpush1.msra.mxu0 0.0
        %3830 = vmatprep.subr.mxu0 0.0
        %3831 = vmatpush1.msra.mxu0 0.0
        %3832 = vmatprep.subr.mxu0 0.0
        %3833 = vmatpush1.msra.mxu0 0.0
        %3834 = vmatprep.subr.mxu0 0.0
        %3835 = vmatpush1.msra.mxu0 0.0
        %3836 = vmatprep.subr.mxu0 0.0
        %3837 = vmatpush1.msra.mxu0 0.0
        %3838 = vmatprep.subr.mxu0 0.0
        %3839 = vmatpush1.msra.mxu0 0.0
        %3840 = vmatprep.subr.mxu0 0.0
        %3841 = vmatpush1.msra.mxu0 0.0
        %3842 = vmatprep.subr.mxu0 0.0
        %3843 = vmatpush1.msra.mxu0 0.0
        %3844 = vmatprep.subr.mxu0 0.0
        %3845 = vmatpush1.msra.mxu0 0.0
        %3846 = vmatprep.subr.mxu0 0.0
        %3847 = vmatpush1.msra.mxu0 0.0
        %3848 = vmatprep.subr.mxu0 0.0
        %3849 = vmatpush1.msra.mxu0 0.0
        %3850 = vmatprep.subr.mxu0 0.0
        %3851 = vmatpush1.msra.mxu0 0.0
        %3852 = vmatprep.subr.mxu0 0.0
        %3853 = vmatpush1.msra.mxu0 0.0
        %3854 = vmatprep.subr.mxu0 0.0
        %3855 = vmatpush1.msra.mxu0 0.0
        %3856 = vmatprep.subr.mxu0 0.0
        %3857 = vmatpush1.msra.mxu0 0.0
        %3858 = vmatprep.subr.mxu0 0.0
        %3859 = vmatpush1.msra.mxu0 0.0
        %3860 = vmatprep.mubr.f32.mxu0 0.0
        %3861 = vmatmul.mubr.f32.gmra.mrb[0].mxu0 %v3790
        %v3862 = vpop.f32.mrb[0].mxu0
        %v3863 = vadd.f32 0.0, %v3862
        %v3864 = vpop.f32.mrb[0].mxu0
        %3865 = vmatprep.mubr.f32.mxu0 0.0
        %3866 = vmatmul.mubr.f32.gmra.mrb[0].mxu0 %v3793
        %v3867 = vpop.f32.mrb[0].mxu0
        %v3868 = vadd.f32 0.0, %v3867
        %v3869 = vpop.f32.mrb[0].mxu0
        %3870 = vdwg.mxu0
        %3871 = vmax.xlane.f32.xlu0 %v3863
        %v3872 = vpop.xlane.xlu0 %3871
        %3873 = vmax.xlane.f32.xlu0 %v3868
        %v3874 = vpop.xlane.xlu0 %3873
        %v3875 = vsub.f32 %v3863, %v3872
        %v3876 = vsub.f32 %v3868, %v3874
        %v3877 = vmul.f32 %v3875, 1.442695
        %v3878 = vpow.pop %v3877
        %v3879 = vmul.f32 %v3876, 1.442695
        %v3880 = vpow.pop %v3879
        %3881 = vmatprep.subr.mxu0 0.0
        %3882 = vmatpush1.msra.mxu0 %v629
        %3883 = vmatprep.subr.mxu0 0.0
        %3884 = vmatpush1.msra.mxu0 %v630
        %3885 = vmatprep.subr.mxu0 0.0
        %3886 = vmatpush1.msra.mxu0 %v631
        %3887 = vmatprep.subr.mxu0 0.0
        %3888 = vmatpush1.msra.mxu0 %v632
        %3889 = vmatprep.subr.mxu0 0.0
        %3890 = vmatpush1.msra.mxu0 %v633
        %3891 = vmatprep.subr.mxu0 0.0
        %3892 = vmatpush1.msra.mxu0 %v634
        %3893 = vmatprep.subr.mxu0 0.0
        %3894 = vmatpush1.msra.mxu0 %v635
        %3895 = vmatprep.subr.mxu0 0.0
        %3896 = vmatpush1.msra.mxu0 %v636
        %3897 = vmatprep.subr.mxu0 0.0
        %3898 = vmatpush1.msra.mxu0 %v637
        %3899 = vmatprep.subr.mxu0 0.0
        %3900 = vmatpush1.msra.mxu0 %v638
        %3901 = vmatprep.subr.mxu0 0.0
        %3902 = vmatpush1.msra.mxu0 %v639
        %3903 = vmatprep.subr.mxu0 0.0
        %3904 = vmatpush1.msra.mxu0 %v640
        %3905 = vmatprep.subr.mxu0 0.0
        %3906 = vmatpush1.msra.mxu0 %v641
        %3907 = vmatprep.subr.mxu0 0.0
        %3908 = vmatpush1.msra.mxu0 %v642
        %3909 = vmatprep.subr.mxu0 0.0
        %3910 = vmatpush1.msra.mxu0 %v643
        %3911 = vmatprep.subr.mxu0 0.0
        %3912 = vmatpush1.msra.mxu0 %v644
        %3913 = vmatprep.subr.mxu0 0.0
        %3914 = vmatpush1.msra.mxu0 0.0
        %3915 = vmatprep.subr.mxu0 0.0
        %3916 = vmatpush1.msra.mxu0 0.0
        %3917 = vmatprep.subr.mxu0 0.0
        %3918 = vmatpush1.msra.mxu0 0.0
        %3919 = vmatprep.subr.mxu0 0.0
        %3920 = vmatpush1.msra.mxu0 0.0
        %3921 = vmatprep.subr.mxu0 0.0
        %3922 = vmatpush1.msra.mxu0 0.0
        %3923 = vmatprep.subr.mxu0 0.0
        %3924 = vmatpush1.msra.mxu0 0.0
        %3925 = vmatprep.subr.mxu0 0.0
        %3926 = vmatpush1.msra.mxu0 0.0
        %3927 = vmatprep.subr.mxu0 0.0
        %3928 = vmatpush1.msra.mxu0 0.0
        %3929 = vmatprep.subr.mxu0 0.0
        %3930 = vmatpush1.msra.mxu0 0.0
        %3931 = vmatprep.subr.mxu0 0.0
        %3932 = vmatpush1.msra.mxu0 0.0
        %3933 = vmatprep.subr.mxu0 0.0
        %3934 = vmatpush1.msra.mxu0 0.0
        %3935 = vmatprep.subr.mxu0 0.0
        %3936 = vmatpush1.msra.mxu0 0.0
        %3937 = vmatprep.subr.mxu0 0.0
        %3938 = vmatpush1.msra.mxu0 0.0
        %3939 = vmatprep.subr.mxu0 0.0
        %3940 = vmatpush1.msra.mxu0 0.0
        %3941 = vmatprep.subr.mxu0 0.0
        %3942 = vmatpush1.msra.mxu0 0.0
        %3943 = vmatprep.subr.mxu0 0.0
        %3944 = vmatpush1.msra.mxu0 0.0
        %3945 = vmatprep.mubr.f32.mxu0 0.0
        %3946 = vmatmul.mubr.f32.gmra.mrb[0].mxu0 %v3878
        %v3947 = vpop.f32.mrb[0].mxu0
        %v3948 = vadd.f32 0.0, %v3947
        %v3949 = vpop.f32.mrb[0].mxu0
        %3950 = vmatprep.mubr.f32.mxu0 0.0
        %3951 = vmatmul.mubr.f32.gmra.mrb[0].mxu0 %v3880
        %v3952 = vpop.f32.mrb[0].mxu0
        %v3953 = vadd.f32 0.0, %v3952
        %v3954 = vpop.f32.mrb[0].mxu0
        %3955 = vdwg.mxu0
        %v3956 = vmax.f32 %v3948, 1e-30
        %v3957 = vmax.f32 %v3953, 1e-30
        %v3958 = vrcp.pop %v3956
        %v3959 = vmul.f32 %v3878, %v3958
        %v3960 = vrcp.pop %v3957
        %v3961 = vmul.f32 %v3880, %v3960
        %3962 = vmatprep.subr.mxu0 0.0
        %3963 = vmatpush1.msra.mxu0 %v587
        %3964 = vmatprep.subr.mxu0 0.0
        %3965 = vmatpush1.msra.mxu0 %v588
        %3966 = vmatprep.subr.mxu0 0.0
        %3967 = vmatpush1.msra.mxu0 %v589
        %3968 = vmatprep.subr.mxu0 0.0
        %3969 = vmatpush1.msra.mxu0 %v590
        %3970 = vmatprep.subr.mxu0 0.0
        %3971 = vmatpush1.msra.mxu0 %v591
        %3972 = vmatprep.subr.mxu0 0.0
        %3973 = vmatpush1.msra.mxu0 %v592
        %3974 = vmatprep.subr.mxu0 0.0
        %3975 = vmatpush1.msra.mxu0 %v593
        %3976 = vmatprep.subr.mxu0 0.0
        %3977 = vmatpush1.msra.mxu0 %v594
        %3978 = vmatprep.subr.mxu0 0.0
        %3979 = vmatpush1.msra.mxu0 %v595
        %3980 = vmatprep.subr.mxu0 0.0
        %3981 = vmatpush1.msra.mxu0 %v596
        %3982 = vmatprep.subr.mxu0 0.0
        %3983 = vmatpush1.msra.mxu0 %v597
        %3984 = vmatprep.subr.mxu0 0.0
        %3985 = vmatpush1.msra.mxu0 %v598
        %3986 = vmatprep.subr.mxu0 0.0
        %3987 = vmatpush1.msra.mxu0 %v599
        %3988 = vmatprep.subr.mxu0 0.0
        %3989 = vmatpush1.msra.mxu0 %v600
        %3990 = vmatprep.subr.mxu0 0.0
        %3991 = vmatpush1.msra.mxu0 %v601
        %3992 = vmatprep.subr.mxu0 0.0
        %3993 = vmatpush1.msra.mxu0 %v602
        %3994 = vmatprep.subr.mxu0 0.0
        %3995 = vmatpush1.msra.mxu0 0.0
        %3996 = vmatprep.subr.mxu0 0.0
        %3997 = vmatpush1.msra.mxu0 0.0
        %3998 = vmatprep.subr.mxu0 0.0
        %3999 = vmatpush1.msra.mxu0 0.0
        %4000 = vmatprep.subr.mxu0 0.0
        %4001 = vmatpush1.msra.mxu0 0.0
        %4002 = vmatprep.subr.mxu0 0.0
        %4003 = vmatpush1.msra.mxu0 0.0
        %4004 = vmatprep.subr.mxu0 0.0
        %4005 = vmatpush1.msra.mxu0 0.0
        %4006 = vmatprep.subr.mxu0 0.0
        %4007 = vmatpush1.msra.mxu0 0.0
        %4008 = vmatprep.subr.mxu0 0.0
        %4009 = vmatpush1.msra.mxu0 0.0
        %4010 = vmatprep.subr.mxu0 0.0
        %4011 = vmatpush1.msra.mxu0 0.0
        %4012 = vmatprep.subr.mxu0 0.0
        %4013 = vmatpush1.msra.mxu0 0.0
        %4014 = vmatprep.subr.mxu0 0.0
        %4015 = vmatpush1.msra.mxu0 0.0
        %4016 = vmatprep.subr.mxu0 0.0
        %4017 = vmatpush1.msra.mxu0 0.0
        %4018 = vmatprep.subr.mxu0 0.0
        %4019 = vmatpush1.msra.mxu0 0.0
        %4020 = vmatprep.subr.mxu0 0.0
        %4021 = vmatpush1.msra.mxu0 0.0
        %4022 = vmatprep.subr.mxu0 0.0
        %4023 = vmatpush1.msra.mxu0 0.0
        %4024 = vmatprep.subr.mxu0 0.0
        %4025 = vmatpush1.msra.mxu0 0.0
        %4026 = vmatprep.mubr.f32.mxu0 0.0
        %4027 = vmatmul.mubr.f32.gmra.mrb[0].mxu0 %v3959
        %v4028 = vpop.f32.mrb[0].mxu0
        %v4029 = vadd.f32 0.0, %v4028
        %v4030 = vpop.f32.mrb[0].mxu0
        %4031 = vmatprep.mubr.f32.mxu0 0.0
        %4032 = vmatmul.mubr.f32.gmra.mrb[0].mxu0 %v3961
        %v4033 = vpop.f32.mrb[0].mxu0
        %v4034 = vadd.f32 0.0, %v4033
        %v4035 = vpop.f32.mrb[0].mxu0
        %4036 = vdwg.mxu0
        %v4037 = vmul.f32 %v840, %v613
        %v4038 = vmul.f32 %v844, %v614
        %v4039 = vmul.f32 %v840, %v615
        %v4040 = vmul.f32 %v844, %v616
        %v4041 = vmul.f32 %v840, %v617
        %v4042 = vmul.f32 %v844, %v618
        %v4043 = vmul.f32 %v840, %v619
        %v4044 = vmul.f32 %v844, %v620
        %v4045 = vmul.f32 %v840, %v621
        %v4046 = vmul.f32 %v844, %v622
        %v4047 = vmul.f32 %v840, %v623
        %v4048 = vmul.f32 %v844, %v624
        %v4049 = vmul.f32 %v840, %v625
        %v4050 = vmul.f32 %v844, %v626
        %v4051 = vmul.f32 %v840, %v627
        %v4052 = vmul.f32 %v844, %v628
        %v4053 = vpack.c.bf16 %v4038, %v4037
        %v4054 = vpack.c.bf16 %v4040, %v4039
        %v4055 = vpack.c.bf16 %v4042, %v4041
        %v4056 = vpack.c.bf16 %v4044, %v4043
        %v4057 = vpack.c.bf16 %v4046, %v4045
        %v4058 = vpack.c.bf16 %v4048, %v4047
        %v4059 = vpack.c.bf16 %v4050, %v4049
        %v4060 = vpack.c.bf16 %v4052, %v4051
        %v4061 = vpack.c.bf16 %v4034, %v4029
        %4062 = vmatprep.subr.bf16.mxu0 0
        %4063 = vmatpush1.bf16.msra.mxu0 %v4053
        %4064 = vmatprep.subr.bf16.mxu0 0
        %4065 = vmatpush1.bf16.msra.mxu0 %v4054
        %4066 = vmatprep.subr.bf16.mxu0 0
        %4067 = vmatpush1.bf16.msra.mxu0 %v4055
        %4068 = vmatprep.subr.bf16.mxu0 0
        %4069 = vmatpush1.bf16.msra.mxu0 %v4056
        %4070 = vmatprep.subr.bf16.mxu0 0
        %4071 = vmatpush1.bf16.msra.mxu0 %v4057
        %4072 = vmatprep.subr.bf16.mxu0 0
        %4073 = vmatpush1.bf16.msra.mxu0 %v4058
        %4074 = vmatprep.subr.bf16.mxu0 0
        %4075 = vmatpush1.bf16.msra.mxu0 %v4059
        %4076 = vmatprep.subr.bf16.mxu0 0
        %4077 = vmatpush1.bf16.msra.mxu0 %v4060
        %4078 = vmatprep.subr.bf16.mxu0 0
        %4079 = vmatpush1.bf16.msra.mxu0 0
        %4080 = vmatprep.subr.bf16.mxu0 0
        %4081 = vmatpush1.bf16.msra.mxu0 0
        %4082 = vmatprep.subr.bf16.mxu0 0
        %4083 = vmatpush1.bf16.msra.mxu0 0
        %4084 = vmatprep.subr.bf16.mxu0 0
        %4085 = vmatpush1.bf16.msra.mxu0 0
        %4086 = vmatprep.subr.bf16.mxu0 0
        %4087 = vmatpush1.bf16.msra.mxu0 0
        %4088 = vmatprep.subr.bf16.mxu0 0
        %4089 = vmatpush1.bf16.msra.mxu0 0
        %4090 = vmatprep.subr.bf16.mxu0 0
        %4091 = vmatpush1.bf16.msra.mxu0 0
        %4092 = vmatprep.subr.bf16.mxu0 0
        %4093 = vmatpush1.bf16.msra.mxu0 0
        %4094 = vmatprep.mubr.bf16.mxu0 0
        %4095 = vmatmul.mubr.bf16.gmra.mrb[0].mxu0 %v4061
        %v4096 = vpop.f32.mrb[0].mxu0
        %v4097 = vadd.f32 0.0, %v4096
        %v4098 = vpop.f32.mrb[0].mxu0
        %v4099 = vpop.f32.mrb[0].mxu0
        %v4100 = vadd.f32 0.0, %v4099
        %v4101 = vpop.f32.mrb[0].mxu0
        %4102 = vdwg.mxu0
        %4103 = vrot.lane.b32.xlu0 %v960, 16
        %v4104 = vpop.permute.xlu0 %4103
        %4105 = vrot.lane.b32.xlu0 %v961, 16
        %v4106 = vpop.permute.xlu0 %4105
        %4107 = vrot.lane.b32.xlu0 %v962, 16
        %v4108 = vpop.permute.xlu0 %4107
        %4109 = vrot.lane.b32.xlu0 %v963, 16
        %v4110 = vpop.permute.xlu0 %4109
        %v4112 = vsel %vm970, %v4104, 0
        %v4115 = vsel %vm970, %v4106, 0
        %v4118 = vsel %vm970, %v4108, 0
        %v4121 = vsel %vm970, %v4110, 0
        %4123 = vmatprep.subr.bf16.mxu0 0
        %4124 = vmatpush1.bf16.msra.mxu0 %v968
        %4125 = vmatprep.subr.bf16.mxu0 0
        %4126 = vmatpush1.bf16.msra.mxu0 0
        %4127 = vmatprep.subr.bf16.mxu0 0
        %4128 = vmatpush1.bf16.msra.mxu0 0
        %4129 = vmatprep.subr.bf16.mxu0 0
        %4130 = vmatpush1.bf16.msra.mxu0 0
        %4131 = vmatprep.subr.bf16.mxu0 0
        %4132 = vmatpush1.bf16.msra.mxu0 0
        %4133 = vmatprep.subr.bf16.mxu0 0
        %4134 = vmatpush1.bf16.msra.mxu0 0
        %4135 = vmatprep.subr.bf16.mxu0 0
        %4136 = vmatpush1.bf16.msra.mxu0 0
        %4137 = vmatprep.subr.bf16.mxu0 0
        %4138 = vmatpush1.bf16.msra.mxu0 0
        %4139 = vmatprep.subr.bf16.mxu0 0
        %4140 = vmatpush1.bf16.msra.mxu0 0
        %4141 = vmatprep.subr.bf16.mxu0 0
        %4142 = vmatpush1.bf16.msra.mxu0 0
        %4143 = vmatprep.subr.bf16.mxu0 0
        %4144 = vmatpush1.bf16.msra.mxu0 0
        %4145 = vmatprep.subr.bf16.mxu0 0
        %4146 = vmatpush1.bf16.msra.mxu0 0
        %4147 = vmatprep.subr.bf16.mxu0 0
        %4148 = vmatpush1.bf16.msra.mxu0 0
        %4149 = vmatprep.subr.bf16.mxu0 0
        %4150 = vmatpush1.bf16.msra.mxu0 0
        %4151 = vmatprep.subr.bf16.mxu0 0
        %4152 = vmatpush1.bf16.msra.mxu0 0
        %4153 = vmatprep.subr.bf16.mxu0 0
        %4154 = vmatpush1.bf16.msra.mxu0 0
        %4155 = vmatprep.mubr.bf16.mxu0 0
        %4156 = vmatmul.mubr.bf16.gmra.mrb[0].mxu0 %v4112
        %v4157 = vpop.f32.mrb[0].mxu0
        %v4158 = vadd.f32 0.0, %v4157
        %v4159 = vpop.f32.mrb[0].mxu0
        %v4160 = vpop.f32.mrb[0].mxu0
        %v4161 = vadd.f32 0.0, %v4160
        %v4162 = vpop.f32.mrb[0].mxu0
        %4163 = vmatprep.mubr.bf16.mxu0 0
        %4164 = vmatmul.mubr.bf16.gmra.mrb[0].mxu0 %v4115
        %v4165 = vpop.f32.mrb[0].mxu0
        %v4166 = vadd.f32 0.0, %v4165
        %v4167 = vpop.f32.mrb[0].mxu0
        %v4168 = vpop.f32.mrb[0].mxu0
        %v4169 = vadd.f32 0.0, %v4168
        %v4170 = vpop.f32.mrb[0].mxu0
        %4171 = vmatprep.mubr.bf16.mxu0 0
        %4172 = vmatmul.mubr.bf16.gmra.mrb[0].mxu0 %v4118
        %v4173 = vpop.f32.mrb[0].mxu0
        %v4174 = vadd.f32 0.0, %v4173
        %v4175 = vpop.f32.mrb[0].mxu0
        %v4176 = vpop.f32.mrb[0].mxu0
        %v4177 = vadd.f32 0.0, %v4176
        %v4178 = vpop.f32.mrb[0].mxu0
        %4179 = vmatprep.mubr.bf16.mxu0 0
        %4180 = vmatmul.mubr.bf16.gmra.mrb[0].mxu0 %v4121
        %v4181 = vpop.f32.mrb[0].mxu0
        %v4182 = vadd.f32 0.0, %v4181
        %v4183 = vpop.f32.mrb[0].mxu0
        %v4184 = vpop.f32.mrb[0].mxu0
        %v4185 = vadd.f32 0.0, %v4184
        %v4186 = vpop.f32.mrb[0].mxu0
        %4187 = vdwg.mxu0
        %v4188 = vmul.f32 %v4158, %v605
        %v4189 = vmul.f32 %v4161, %v606
        %v4190 = vmul.f32 %v4166, %v607
        %v4191 = vmul.f32 %v4169, %v608
        %v4192 = vmul.f32 %v4174, %v609
        %v4193 = vmul.f32 %v4177, %v610
        %v4194 = vmul.f32 %v4182, %v611
        %v4195 = vmul.f32 %v4185, %v612
        %v4196 = vpack.c.bf16 %v4189, %v4188
        %v4197 = vpack.c.bf16 %v4191, %v4190
        %v4198 = vpack.c.bf16 %v4193, %v4192
        %v4199 = vpack.c.bf16 %v4195, %v4194
        %v4201 = vsel %vm718, %v863, 0
        %4203 = vmatprep.subr.bf16.mxu0 0
        %4204 = vmatpush1.bf16.msra.mxu0 %v4196
        %4205 = vmatprep.subr.bf16.mxu0 0
        %4206 = vmatpush1.bf16.msra.mxu0 %v4197
        %4207 = vmatprep.subr.bf16.mxu0 0
        %4208 = vmatpush1.bf16.msra.mxu0 %v4198
        %4209 = vmatprep.subr.bf16.mxu0 0
        %4210 = vmatpush1.bf16.msra.mxu0 %v4199
        %4211 = vmatprep.subr.bf16.mxu0 0
        %4212 = vmatpush1.bf16.msra.mxu0 0
        %4213 = vmatprep.subr.bf16.mxu0 0
        %4214 = vmatpush1.bf16.msra.mxu0 0
        %4215 = vmatprep.subr.bf16.mxu0 0
        %4216 = vmatpush1.bf16.msra.mxu0 0
        %4217 = vmatprep.subr.bf16.mxu0 0
        %4218 = vmatpush1.bf16.msra.mxu0 0
        %4219 = vmatprep.subr.bf16.mxu0 0
        %4220 = vmatpush1.bf16.msra.mxu0 0
        %4221 = vmatprep.subr.bf16.mxu0 0
        %4222 = vmatpush1.bf16.msra.mxu0 0
        %4223 = vmatprep.subr.bf16.mxu0 0
        %4224 = vmatpush1.bf16.msra.mxu0 0
        %4225 = vmatprep.subr.bf16.mxu0 0
        %4226 = vmatpush1.bf16.msra.mxu0 0
        %4227 = vmatprep.subr.bf16.mxu0 0
        %4228 = vmatpush1.bf16.msra.mxu0 0
        %4229 = vmatprep.subr.bf16.mxu0 0
        %4230 = vmatpush1.bf16.msra.mxu0 0
        %4231 = vmatprep.subr.bf16.mxu0 0
        %4232 = vmatpush1.bf16.msra.mxu0 0
        %4233 = vmatprep.subr.bf16.mxu0 0
        %4234 = vmatpush1.bf16.msra.mxu0 0
        %4235 = vmatprep.mubr.bf16.mxu0 0
        %4236 = vmatmul.mubr.bf16.gmra.mrb[0].mxu0 %v4201
        %v4237 = vpop.f32.mrb[0].mxu0
        %v4238 = vadd.f32 0.0, %v4237
        %v4239 = vpop.f32.mrb[0].mxu0
        %v4240 = vpop.f32.mrb[0].mxu0
        %v4241 = vadd.f32 0.0, %v4240
        %v4242 = vpop.f32.mrb[0].mxu0
        %4243 = vdwg.mxu0
        %4244 = vmatprep.subr.mxu0 0.0
        %4245 = vmatpush1.msra.mxu0 %v570
        %4246 = vmatprep.subr.mxu0 0.0
        %4247 = vmatpush1.msra.mxu0 %v571
        %4248 = vmatprep.subr.mxu0 0.0
        %4249 = vmatpush1.msra.mxu0 %v572
        %4250 = vmatprep.subr.mxu0 0.0
        %4251 = vmatpush1.msra.mxu0 %v573
        %4252 = vmatprep.subr.mxu0 0.0
        %4253 = vmatpush1.msra.mxu0 %v574
        %4254 = vmatprep.subr.mxu0 0.0
        %4255 = vmatpush1.msra.mxu0 %v575
        %4256 = vmatprep.subr.mxu0 0.0
        %4257 = vmatpush1.msra.mxu0 %v576
        %4258 = vmatprep.subr.mxu0 0.0
        %4259 = vmatpush1.msra.mxu0 %v577
        %4260 = vmatprep.subr.mxu0 0.0
        %4261 = vmatpush1.msra.mxu0 %v578
        %4262 = vmatprep.subr.mxu0 0.0
        %4263 = vmatpush1.msra.mxu0 %v579
        %4264 = vmatprep.subr.mxu0 0.0
        %4265 = vmatpush1.msra.mxu0 %v580
        %4266 = vmatprep.subr.mxu0 0.0
        %4267 = vmatpush1.msra.mxu0 %v581
        %4268 = vmatprep.subr.mxu0 0.0
        %4269 = vmatpush1.msra.mxu0 %v582
        %4270 = vmatprep.subr.mxu0 0.0
        %4271 = vmatpush1.msra.mxu0 %v583
        %4272 = vmatprep.subr.mxu0 0.0
        %4273 = vmatpush1.msra.mxu0 %v584
        %4274 = vmatprep.subr.mxu0 0.0
        %4275 = vmatpush1.msra.mxu0 %v585
        %4276 = vmatprep.subr.mxu0 0.0
        %4277 = vmatpush1.msra.mxu0 0.0
        %4278 = vmatprep.subr.mxu0 0.0
        %4279 = vmatpush1.msra.mxu0 0.0
        %4280 = vmatprep.subr.mxu0 0.0
        %4281 = vmatpush1.msra.mxu0 0.0
        %4282 = vmatprep.subr.mxu0 0.0
        %4283 = vmatpush1.msra.mxu0 0.0
        %4284 = vmatprep.subr.mxu0 0.0
        %4285 = vmatpush1.msra.mxu0 0.0
        %4286 = vmatprep.subr.mxu0 0.0
        %4287 = vmatpush1.msra.mxu0 0.0
        %4288 = vmatprep.subr.mxu0 0.0
        %4289 = vmatpush1.msra.mxu0 0.0
        %4290 = vmatprep.subr.mxu0 0.0
        %4291 = vmatpush1.msra.mxu0 0.0
        %4292 = vmatprep.subr.mxu0 0.0
        %4293 = vmatpush1.msra.mxu0 0.0
        %4294 = vmatprep.subr.mxu0 0.0
        %4295 = vmatpush1.msra.mxu0 0.0
        %4296 = vmatprep.subr.mxu0 0.0
        %4297 = vmatpush1.msra.mxu0 0.0
        %4298 = vmatprep.subr.mxu0 0.0
        %4299 = vmatpush1.msra.mxu0 0.0
        %4300 = vmatprep.subr.mxu0 0.0
        %4301 = vmatpush1.msra.mxu0 0.0
        %4302 = vmatprep.subr.mxu0 0.0
        %4303 = vmatpush1.msra.mxu0 0.0
        %4304 = vmatprep.subr.mxu0 0.0
        %4305 = vmatpush1.msra.mxu0 0.0
        %4306 = vmatprep.subr.mxu0 0.0
        %4307 = vmatpush1.msra.mxu0 0.0
        %4308 = vmatprep.mubr.f32.mxu0 0.0
        %4309 = vmatmul.mubr.f32.gmra.mrb[0].mxu0 %v4238
        %v4310 = vpop.f32.mrb[0].mxu0
        %v4311 = vadd.f32 0.0, %v4310
        %v4312 = vpop.f32.mrb[0].mxu0
        %4313 = vmatprep.mubr.f32.mxu0 0.0
        %4314 = vmatmul.mubr.f32.gmra.mrb[0].mxu0 %v4241
        %v4315 = vpop.f32.mrb[0].mxu0
        %v4316 = vadd.f32 0.0, %v4315
        %v4317 = vpop.f32.mrb[0].mxu0
        %4318 = vdwg.mxu0
        %4319 = vmax.xlane.f32.xlu0 %v4311
        %v4320 = vpop.xlane.xlu0 %4319
        %4321 = vmax.xlane.f32.xlu0 %v4316
        %v4322 = vpop.xlane.xlu0 %4321
        %v4323 = vsub.f32 %v4311, %v4320
        %v4324 = vsub.f32 %v4316, %v4322
        %v4325 = vmul.f32 %v4323, 1.442695
        %v4326 = vpow.pop %v4325
        %v4327 = vmul.f32 %v4324, 1.442695
        %v4328 = vpow.pop %v4327
        %4329 = vmatprep.subr.mxu0 0.0
        %4330 = vmatpush1.msra.mxu0 %v629
        %4331 = vmatprep.subr.mxu0 0.0
        %4332 = vmatpush1.msra.mxu0 %v630
        %4333 = vmatprep.subr.mxu0 0.0
        %4334 = vmatpush1.msra.mxu0 %v631
        %4335 = vmatprep.subr.mxu0 0.0
        %4336 = vmatpush1.msra.mxu0 %v632
        %4337 = vmatprep.subr.mxu0 0.0
        %4338 = vmatpush1.msra.mxu0 %v633
        %4339 = vmatprep.subr.mxu0 0.0
        %4340 = vmatpush1.msra.mxu0 %v634
        %4341 = vmatprep.subr.mxu0 0.0
        %4342 = vmatpush1.msra.mxu0 %v635
        %4343 = vmatprep.subr.mxu0 0.0
        %4344 = vmatpush1.msra.mxu0 %v636
        %4345 = vmatprep.subr.mxu0 0.0
        %4346 = vmatpush1.msra.mxu0 %v637
        %4347 = vmatprep.subr.mxu0 0.0
        %4348 = vmatpush1.msra.mxu0 %v638
        %4349 = vmatprep.subr.mxu0 0.0
        %4350 = vmatpush1.msra.mxu0 %v639
        %4351 = vmatprep.subr.mxu0 0.0
        %4352 = vmatpush1.msra.mxu0 %v640
        %4353 = vmatprep.subr.mxu0 0.0
        %4354 = vmatpush1.msra.mxu0 %v641
        %4355 = vmatprep.subr.mxu0 0.0
        %4356 = vmatpush1.msra.mxu0 %v642
        %4357 = vmatprep.subr.mxu0 0.0
        %4358 = vmatpush1.msra.mxu0 %v643
        %4359 = vmatprep.subr.mxu0 0.0
        %4360 = vmatpush1.msra.mxu0 %v644
        %4361 = vmatprep.subr.mxu0 0.0
        %4362 = vmatpush1.msra.mxu0 0.0
        %4363 = vmatprep.subr.mxu0 0.0
        %4364 = vmatpush1.msra.mxu0 0.0
        %4365 = vmatprep.subr.mxu0 0.0
        %4366 = vmatpush1.msra.mxu0 0.0
        %4367 = vmatprep.subr.mxu0 0.0
        %4368 = vmatpush1.msra.mxu0 0.0
        %4369 = vmatprep.subr.mxu0 0.0
        %4370 = vmatpush1.msra.mxu0 0.0
        %4371 = vmatprep.subr.mxu0 0.0
        %4372 = vmatpush1.msra.mxu0 0.0
        %4373 = vmatprep.subr.mxu0 0.0
        %4374 = vmatpush1.msra.mxu0 0.0
        %4375 = vmatprep.subr.mxu0 0.0
        %4376 = vmatpush1.msra.mxu0 0.0
        %4377 = vmatprep.subr.mxu0 0.0
        %4378 = vmatpush1.msra.mxu0 0.0
        %4379 = vmatprep.subr.mxu0 0.0
        %4380 = vmatpush1.msra.mxu0 0.0
        %4381 = vmatprep.subr.mxu0 0.0
        %4382 = vmatpush1.msra.mxu0 0.0
        %4383 = vmatprep.subr.mxu0 0.0
        %4384 = vmatpush1.msra.mxu0 0.0
        %4385 = vmatprep.subr.mxu0 0.0
        %4386 = vmatpush1.msra.mxu0 0.0
        %4387 = vmatprep.subr.mxu0 0.0
        %4388 = vmatpush1.msra.mxu0 0.0
        %4389 = vmatprep.subr.mxu0 0.0
        %4390 = vmatpush1.msra.mxu0 0.0
        %4391 = vmatprep.subr.mxu0 0.0
        %4392 = vmatpush1.msra.mxu0 0.0
        %4393 = vmatprep.mubr.f32.mxu0 0.0
        %4394 = vmatmul.mubr.f32.gmra.mrb[0].mxu0 %v4326
        %v4395 = vpop.f32.mrb[0].mxu0
        %v4396 = vadd.f32 0.0, %v4395
        %v4397 = vpop.f32.mrb[0].mxu0
        %4398 = vmatprep.mubr.f32.mxu0 0.0
        %4399 = vmatmul.mubr.f32.gmra.mrb[0].mxu0 %v4328
        %v4400 = vpop.f32.mrb[0].mxu0
        %v4401 = vadd.f32 0.0, %v4400
        %v4402 = vpop.f32.mrb[0].mxu0
        %4403 = vdwg.mxu0
        %v4404 = vmax.f32 %v4396, 1e-30
        %v4405 = vmax.f32 %v4401, 1e-30
        %v4406 = vrcp.pop %v4404
        %v4407 = vmul.f32 %v4326, %v4406
        %v4408 = vrcp.pop %v4405
        %v4409 = vmul.f32 %v4328, %v4408
        %4410 = vmatprep.subr.mxu0 0.0
        %4411 = vmatpush1.msra.mxu0 %v587
        %4412 = vmatprep.subr.mxu0 0.0
        %4413 = vmatpush1.msra.mxu0 %v588
        %4414 = vmatprep.subr.mxu0 0.0
        %4415 = vmatpush1.msra.mxu0 %v589
        %4416 = vmatprep.subr.mxu0 0.0
        %4417 = vmatpush1.msra.mxu0 %v590
        %4418 = vmatprep.subr.mxu0 0.0
        %4419 = vmatpush1.msra.mxu0 %v591
        %4420 = vmatprep.subr.mxu0 0.0
        %4421 = vmatpush1.msra.mxu0 %v592
        %4422 = vmatprep.subr.mxu0 0.0
        %4423 = vmatpush1.msra.mxu0 %v593
        %4424 = vmatprep.subr.mxu0 0.0
        %4425 = vmatpush1.msra.mxu0 %v594
        %4426 = vmatprep.subr.mxu0 0.0
        %4427 = vmatpush1.msra.mxu0 %v595
        %4428 = vmatprep.subr.mxu0 0.0
        %4429 = vmatpush1.msra.mxu0 %v596
        %4430 = vmatprep.subr.mxu0 0.0
        %4431 = vmatpush1.msra.mxu0 %v597
        %4432 = vmatprep.subr.mxu0 0.0
        %4433 = vmatpush1.msra.mxu0 %v598
        %4434 = vmatprep.subr.mxu0 0.0
        %4435 = vmatpush1.msra.mxu0 %v599
        %4436 = vmatprep.subr.mxu0 0.0
        %4437 = vmatpush1.msra.mxu0 %v600
        %4438 = vmatprep.subr.mxu0 0.0
        %4439 = vmatpush1.msra.mxu0 %v601
        %4440 = vmatprep.subr.mxu0 0.0
        %4441 = vmatpush1.msra.mxu0 %v602
        %4442 = vmatprep.subr.mxu0 0.0
        %4443 = vmatpush1.msra.mxu0 0.0
        %4444 = vmatprep.subr.mxu0 0.0
        %4445 = vmatpush1.msra.mxu0 0.0
        %4446 = vmatprep.subr.mxu0 0.0
        %4447 = vmatpush1.msra.mxu0 0.0
        %4448 = vmatprep.subr.mxu0 0.0
        %4449 = vmatpush1.msra.mxu0 0.0
        %4450 = vmatprep.subr.mxu0 0.0
        %4451 = vmatpush1.msra.mxu0 0.0
        %4452 = vmatprep.subr.mxu0 0.0
        %4453 = vmatpush1.msra.mxu0 0.0
        %4454 = vmatprep.subr.mxu0 0.0
        %4455 = vmatpush1.msra.mxu0 0.0
        %4456 = vmatprep.subr.mxu0 0.0
        %4457 = vmatpush1.msra.mxu0 0.0
        %4458 = vmatprep.subr.mxu0 0.0
        %4459 = vmatpush1.msra.mxu0 0.0
        %4460 = vmatprep.subr.mxu0 0.0
        %4461 = vmatpush1.msra.mxu0 0.0
        %4462 = vmatprep.subr.mxu0 0.0
        %4463 = vmatpush1.msra.mxu0 0.0
        %4464 = vmatprep.subr.mxu0 0.0
        %4465 = vmatpush1.msra.mxu0 0.0
        %4466 = vmatprep.subr.mxu0 0.0
        %4467 = vmatpush1.msra.mxu0 0.0
        %4468 = vmatprep.subr.mxu0 0.0
        %4469 = vmatpush1.msra.mxu0 0.0
        %4470 = vmatprep.subr.mxu0 0.0
        %4471 = vmatpush1.msra.mxu0 0.0
        %4472 = vmatprep.subr.mxu0 0.0
        %4473 = vmatpush1.msra.mxu0 0.0
        %4474 = vmatprep.mubr.f32.mxu0 0.0
        %4475 = vmatmul.mubr.f32.gmra.mrb[0].mxu0 %v4407
        %v4476 = vpop.f32.mrb[0].mxu0
        %v4477 = vadd.f32 0.0, %v4476
        %v4478 = vpop.f32.mrb[0].mxu0
        %4479 = vmatprep.mubr.f32.mxu0 0.0
        %4480 = vmatmul.mubr.f32.gmra.mrb[0].mxu0 %v4409
        %v4481 = vpop.f32.mrb[0].mxu0
        %v4482 = vadd.f32 0.0, %v4481
        %v4483 = vpop.f32.mrb[0].mxu0
        %4484 = vdwg.mxu0
        %v4485 = vmul.f32 %v850, %v613
        %v4486 = vmul.f32 %v854, %v614
        %v4487 = vmul.f32 %v850, %v615
        %v4488 = vmul.f32 %v854, %v616
        %v4489 = vmul.f32 %v850, %v617
        %v4490 = vmul.f32 %v854, %v618
        %v4491 = vmul.f32 %v850, %v619
        %v4492 = vmul.f32 %v854, %v620
        %v4493 = vmul.f32 %v850, %v621
        %v4494 = vmul.f32 %v854, %v622
        %v4495 = vmul.f32 %v850, %v623
        %v4496 = vmul.f32 %v854, %v624
        %v4497 = vmul.f32 %v850, %v625
        %v4498 = vmul.f32 %v854, %v626
        %v4499 = vmul.f32 %v850, %v627
        %v4500 = vmul.f32 %v854, %v628
        %v4501 = vpack.c.bf16 %v4486, %v4485
        %v4502 = vpack.c.bf16 %v4488, %v4487
        %v4503 = vpack.c.bf16 %v4490, %v4489
        %v4504 = vpack.c.bf16 %v4492, %v4491
        %v4505 = vpack.c.bf16 %v4494, %v4493
        %v4506 = vpack.c.bf16 %v4496, %v4495
        %v4507 = vpack.c.bf16 %v4498, %v4497
        %v4508 = vpack.c.bf16 %v4500, %v4499
        %v4509 = vpack.c.bf16 %v4482, %v4477
        %4510 = vmatprep.subr.bf16.mxu0 0
        %4511 = vmatpush1.bf16.msra.mxu0 %v4501
        %4512 = vmatprep.subr.bf16.mxu0 0
        %4513 = vmatpush1.bf16.msra.mxu0 %v4502
        %4514 = vmatprep.subr.bf16.mxu0 0
        %4515 = vmatpush1.bf16.msra.mxu0 %v4503
        %4516 = vmatprep.subr.bf16.mxu0 0
        %4517 = vmatpush1.bf16.msra.mxu0 %v4504
        %4518 = vmatprep.subr.bf16.mxu0 0
        %4519 = vmatpush1.bf16.msra.mxu0 %v4505
        %4520 = vmatprep.subr.bf16.mxu0 0
        %4521 = vmatpush1.bf16.msra.mxu0 %v4506
        %4522 = vmatprep.subr.bf16.mxu0 0
        %4523 = vmatpush1.bf16.msra.mxu0 %v4507
        %4524 = vmatprep.subr.bf16.mxu0 0
        %4525 = vmatpush1.bf16.msra.mxu0 %v4508
        %4526 = vmatprep.subr.bf16.mxu0 0
        %4527 = vmatpush1.bf16.msra.mxu0 0
        %4528 = vmatprep.subr.bf16.mxu0 0
        %4529 = vmatpush1.bf16.msra.mxu0 0
        %4530 = vmatprep.subr.bf16.mxu0 0
        %4531 = vmatpush1.bf16.msra.mxu0 0
        %4532 = vmatprep.subr.bf16.mxu0 0
        %4533 = vmatpush1.bf16.msra.mxu0 0
        %4534 = vmatprep.subr.bf16.mxu0 0
        %4535 = vmatpush1.bf16.msra.mxu0 0
        %4536 = vmatprep.subr.bf16.mxu0 0
        %4537 = vmatpush1.bf16.msra.mxu0 0
        %4538 = vmatprep.subr.bf16.mxu0 0
        %4539 = vmatpush1.bf16.msra.mxu0 0
        %4540 = vmatprep.subr.bf16.mxu0 0
        %4541 = vmatpush1.bf16.msra.mxu0 0
        %4542 = vmatprep.mubr.bf16.mxu0 0
        %4543 = vmatmul.mubr.bf16.gmra.mrb[0].mxu0 %v4509
        %v4544 = vpop.f32.mrb[0].mxu0
        %v4545 = vadd.f32 0.0, %v4544
        %v4546 = vpop.f32.mrb[0].mxu0
        %v4547 = vpop.f32.mrb[0].mxu0
        %v4548 = vadd.f32 0.0, %v4547
        %v4549 = vpop.f32.mrb[0].mxu0
        %4550 = vdwg.mxu0
        %v4551 = vpack.c.bf16 %v1408, %v1405
        %v4552 = vpack.c.bf16 %v1860, %v1857
        %v4553 = vpack.c.bf16 %v2308, %v2305
        %v4554 = vpack.c.bf16 %v2756, %v2753
        %v4555 = vpack.c.bf16 %v3204, %v3201
        %v4556 = vpack.c.bf16 %v3652, %v3649
        %v4557 = vpack.c.bf16 %v4100, %v4097
        %v4558 = vpack.c.bf16 %v4548, %v4545
        %s4559 = smul.addr %s562, 4
        %s4560 = scalar_lea.vmem %s3, %s4559
        %v4561 = vld [vmem:[%s4560] sm:$0xf]
        %v4562 = vld [vmem:[%s4560 + $0x4] sm:$0xf]
        %v4563 = vld [vmem:[%s4560 + $0x8] sm:$0xf]
        %v4564 = vld [vmem:[%s4560 + $0xc] sm:$0xf]
        %v4565 = vld [vmem:[%s4560 + $0x10] sm:$0xf]
        %v4566 = vld [vmem:[%s4560 + $0x14] sm:$0xf]
        %v4567 = vld [vmem:[%s4560 + $0x18] sm:$0xf]
        %v4568 = vld [vmem:[%s4560 + $0x1c] sm:$0xf]
        %v4569 = vlaneseq
        %v4570 = vshrl.u32 %v4569, 7
        %v4571 = vsub.s32 0, %v4570
        %v4572 = vrot.slane %v564, %v4571
        %v4581 = vunpack.c.l.b16 %v4561
        %v4582 = vunpack.c.l.b16 %v4562
        %v4583 = vunpack.c.l.b16 %v4563
        %v4584 = vunpack.c.l.b16 %v4564
        %v4585 = vunpack.c.l.b16 %v4565
        %v4586 = vunpack.c.l.b16 %v4566
        %v4587 = vunpack.c.l.b16 %v4567
        %v4588 = vunpack.c.l.b16 %v4568
        %v4589 = vpack.c.b16 %v4582, %v4581
        %v4590 = vpack.c.b16 %v4584, %v4583
        %v4591 = vpack.c.b16 %v4586, %v4585
        %v4592 = vpack.c.b16 %v4588, %v4587
        %v4598 = vsel %vm718, %v4551, 0
        %v4601 = vsel %vm718, %v4552, 0
        %v4604 = vsel %vm718, %v4553, 0
        %v4607 = vsel %vm718, %v4554, 0
        %v4610 = vsel %vm718, %v4555, 0
        %v4613 = vsel %vm718, %v4556, 0
        %v4616 = vsel %vm718, %v4557, 0
        %v4619 = vsel %vm718, %v4558, 0
        %4621 = vmatprep.subr.bf16.mxu0 0
        %4622 = vmatpush1.bf16.msra.mxu0 %v4589
        %4623 = vmatprep.subr.bf16.mxu0 0
        %4624 = vmatpush1.bf16.msra.mxu0 %v4590
        %4625 = vmatprep.subr.bf16.mxu0 0
        %4626 = vmatpush1.bf16.msra.mxu0 %v4591
        %4627 = vmatprep.subr.bf16.mxu0 0
        %4628 = vmatpush1.bf16.msra.mxu0 %v4592
        %4629 = vmatprep.subr.bf16.mxu0 0
        %4630 = vmatpush1.bf16.msra.mxu0 0
        %4631 = vmatprep.subr.bf16.mxu0 0
        %4632 = vmatpush1.bf16.msra.mxu0 0
        %4633 = vmatprep.subr.bf16.mxu0 0
        %4634 = vmatpush1.bf16.msra.mxu0 0
        %4635 = vmatprep.subr.bf16.mxu0 0
        %4636 = vmatpush1.bf16.msra.mxu0 0
        %4637 = vmatprep.subr.bf16.mxu0 0
        %4638 = vmatpush1.bf16.msra.mxu0 0
        %4639 = vmatprep.subr.bf16.mxu0 0
        %4640 = vmatpush1.bf16.msra.mxu0 0
        %4641 = vmatprep.subr.bf16.mxu0 0
        %4642 = vmatpush1.bf16.msra.mxu0 0
        %4643 = vmatprep.subr.bf16.mxu0 0
        %4644 = vmatpush1.bf16.msra.mxu0 0
        %4645 = vmatprep.subr.bf16.mxu0 0
        %4646 = vmatpush1.bf16.msra.mxu0 0
        %4647 = vmatprep.subr.bf16.mxu0 0
        %4648 = vmatpush1.bf16.msra.mxu0 0
        %4649 = vmatprep.subr.bf16.mxu0 0
        %4650 = vmatpush1.bf16.msra.mxu0 0
        %4651 = vmatprep.subr.bf16.mxu0 0
        %4652 = vmatpush1.bf16.msra.mxu0 0
        %4653 = vmatprep.mubr.bf16.mxu0 0
        %4654 = vmatmul.mubr.bf16.gmra.mrb[0].mxu0 %v4598
        %v4655 = vpop.f32.mrb[0].mxu0
        %v4656 = vadd.f32 %v4572, %v4655
        %v4657 = vpop.f32.mrb[0].mxu0
        %v4658 = vpop.f32.mrb[0].mxu0
        %v4659 = vadd.f32 %v4572, %v4658
        %v4660 = vpop.f32.mrb[0].mxu0
        %4661 = vmatprep.mubr.bf16.mxu0 0
        %4662 = vmatmul.mubr.bf16.gmra.mrb[0].mxu0 %v4601
        %v4663 = vpop.f32.mrb[0].mxu0
        %v4664 = vadd.f32 %v4572, %v4663
        %v4665 = vpop.f32.mrb[0].mxu0
        %v4666 = vpop.f32.mrb[0].mxu0
        %v4667 = vadd.f32 %v4572, %v4666
        %v4668 = vpop.f32.mrb[0].mxu0
        %4669 = vmatprep.mubr.bf16.mxu0 0
        %4670 = vmatmul.mubr.bf16.gmra.mrb[0].mxu0 %v4604
        %v4671 = vpop.f32.mrb[0].mxu0
        %v4672 = vadd.f32 %v4572, %v4671
        %v4673 = vpop.f32.mrb[0].mxu0
        %v4674 = vpop.f32.mrb[0].mxu0
        %v4675 = vadd.f32 %v4572, %v4674
        %v4676 = vpop.f32.mrb[0].mxu0
        %4677 = vmatprep.mubr.bf16.mxu0 0
        %4678 = vmatmul.mubr.bf16.gmra.mrb[0].mxu0 %v4607
        %v4679 = vpop.f32.mrb[0].mxu0
        %v4680 = vadd.f32 %v4572, %v4679
        %v4681 = vpop.f32.mrb[0].mxu0
        %v4682 = vpop.f32.mrb[0].mxu0
        %v4683 = vadd.f32 %v4572, %v4682
        %v4684 = vpop.f32.mrb[0].mxu0
        %4685 = vmatprep.mubr.bf16.mxu0 0
        %4686 = vmatmul.mubr.bf16.gmra.mrb[0].mxu0 %v4610
        %v4687 = vpop.f32.mrb[0].mxu0
        %v4688 = vadd.f32 %v4572, %v4687
        %v4689 = vpop.f32.mrb[0].mxu0
        %v4690 = vpop.f32.mrb[0].mxu0
        %v4691 = vadd.f32 %v4572, %v4690
        %v4692 = vpop.f32.mrb[0].mxu0
        %4693 = vmatprep.mubr.bf16.mxu0 0
        %4694 = vmatmul.mubr.bf16.gmra.mrb[0].mxu0 %v4613
        %v4695 = vpop.f32.mrb[0].mxu0
        %v4696 = vadd.f32 %v4572, %v4695
        %v4697 = vpop.f32.mrb[0].mxu0
        %v4698 = vpop.f32.mrb[0].mxu0
        %v4699 = vadd.f32 %v4572, %v4698
        %v4700 = vpop.f32.mrb[0].mxu0
        %4701 = vmatprep.mubr.bf16.mxu0 0
        %4702 = vmatmul.mubr.bf16.gmra.mrb[0].mxu0 %v4616
        %v4703 = vpop.f32.mrb[0].mxu0
        %v4704 = vadd.f32 %v4572, %v4703
        %v4705 = vpop.f32.mrb[0].mxu0
        %v4706 = vpop.f32.mrb[0].mxu0
        %v4707 = vadd.f32 %v4572, %v4706
        %v4708 = vpop.f32.mrb[0].mxu0
        %4709 = vmatprep.mubr.bf16.mxu0 0
        %4710 = vmatmul.mubr.bf16.gmra.mrb[0].mxu0 %v4619
        %v4711 = vpop.f32.mrb[0].mxu0
        %v4712 = vadd.f32 %v4572, %v4711
        %v4713 = vpop.f32.mrb[0].mxu0
        %v4714 = vpop.f32.mrb[0].mxu0
        %v4715 = vadd.f32 %v4572, %v4714
        %v4716 = vpop.f32.mrb[0].mxu0
        %4717 = vdwg.mxu0
        %v4718 = vadd.f32 %v4656, %v546
        %v4719 = vadd.f32 %v4659, %v547
        %v4720 = vadd.f32 %v4664, %v548
        %v4721 = vadd.f32 %v4667, %v549
        %v4722 = vadd.f32 %v4672, %v550
        %v4723 = vadd.f32 %v4675, %v551
        %v4724 = vadd.f32 %v4680, %v552
        %v4725 = vadd.f32 %v4683, %v553
        %v4726 = vadd.f32 %v4688, %v554
        %v4727 = vadd.f32 %v4691, %v555
        %v4728 = vadd.f32 %v4696, %v556
        %v4729 = vadd.f32 %v4699, %v557
        %v4730 = vadd.f32 %v4704, %v558
        %v4731 = vadd.f32 %v4707, %v559
        %v4732 = vadd.f32 %v4712, %v560
        %v4733 = vadd.f32 %v4715, %v561
        %v4734 = vsel %vm718, %v4718, 0.0
        %4735 = vadd.xlane.f32.xlu0 %v4734
        %v4736 = vpop.xlane.xlu0 %4735
        %v4737 = vsel %vm718, %v4719, 0.0
        %4738 = vadd.xlane.f32.xlu0 %v4737
        %v4739 = vpop.xlane.xlu0 %4738
        %v4740 = vsel %vm718, %v4720, 0.0
        %4741 = vadd.xlane.f32.xlu0 %v4740
        %v4742 = vpop.xlane.xlu0 %4741
        %v4743 = vsel %vm718, %v4721, 0.0
        %4744 = vadd.xlane.f32.xlu0 %v4743
        %v4745 = vpop.xlane.xlu0 %4744
        %v4746 = vsel %vm718, %v4722, 0.0
        %4747 = vadd.xlane.f32.xlu0 %v4746
        %v4748 = vpop.xlane.xlu0 %4747
        %v4749 = vsel %vm718, %v4723, 0.0
        %4750 = vadd.xlane.f32.xlu0 %v4749
        %v4751 = vpop.xlane.xlu0 %4750
        %v4752 = vsel %vm718, %v4724, 0.0
        %4753 = vadd.xlane.f32.xlu0 %v4752
        %v4754 = vpop.xlane.xlu0 %4753
        %v4755 = vsel %vm718, %v4725, 0.0
        %4756 = vadd.xlane.f32.xlu0 %v4755
        %v4757 = vpop.xlane.xlu0 %4756
        %v4758 = vsel %vm718, %v4726, 0.0
        %4759 = vadd.xlane.f32.xlu0 %v4758
        %v4760 = vpop.xlane.xlu0 %4759
        %v4761 = vsel %vm718, %v4727, 0.0
        %4762 = vadd.xlane.f32.xlu0 %v4761
        %v4763 = vpop.xlane.xlu0 %4762
        %v4764 = vsel %vm718, %v4728, 0.0
        %4765 = vadd.xlane.f32.xlu0 %v4764
        %v4766 = vpop.xlane.xlu0 %4765
        %v4767 = vsel %vm718, %v4729, 0.0
        %4768 = vadd.xlane.f32.xlu0 %v4767
        %v4769 = vpop.xlane.xlu0 %4768
        %v4770 = vsel %vm718, %v4730, 0.0
        %4771 = vadd.xlane.f32.xlu0 %v4770
        %v4772 = vpop.xlane.xlu0 %4771
        %v4773 = vsel %vm718, %v4731, 0.0
        %4774 = vadd.xlane.f32.xlu0 %v4773
        %v4775 = vpop.xlane.xlu0 %4774
        %v4776 = vsel %vm718, %v4732, 0.0
        %4777 = vadd.xlane.f32.xlu0 %v4776
        %v4778 = vpop.xlane.xlu0 %4777
        %v4779 = vsel %vm718, %v4733, 0.0
        %4780 = vadd.xlane.f32.xlu0 %v4779
        %v4781 = vpop.xlane.xlu0 %4780
        %v4782 = vrcp.pop 64.0
        %v4783 = vmul.f32 %v4736, %v4782
        %v4784 = vmul.f32 %v4739, %v4782
        %v4785 = vmul.f32 %v4742, %v4782
        %v4786 = vmul.f32 %v4745, %v4782
        %v4787 = vmul.f32 %v4748, %v4782
        %v4788 = vmul.f32 %v4751, %v4782
        %v4789 = vmul.f32 %v4754, %v4782
        %v4790 = vmul.f32 %v4757, %v4782
        %v4791 = vmul.f32 %v4760, %v4782
        %v4792 = vmul.f32 %v4763, %v4782
        %v4793 = vmul.f32 %v4766, %v4782
        %v4794 = vmul.f32 %v4769, %v4782
        %v4795 = vmul.f32 %v4772, %v4782
        %v4796 = vmul.f32 %v4775, %v4782
        %v4797 = vmul.f32 %v4778, %v4782
        %v4798 = vmul.f32 %v4781, %v4782
        %v4799 = vsub.f32 %v4718, %v4783
        %v4800 = vsub.f32 %v4719, %v4784
        %v4801 = vsub.f32 %v4720, %v4785
        %v4802 = vsub.f32 %v4721, %v4786
        %v4803 = vsub.f32 %v4722, %v4787
        %v4804 = vsub.f32 %v4723, %v4788
        %v4805 = vsub.f32 %v4724, %v4789
        %v4806 = vsub.f32 %v4725, %v4790
        %v4807 = vsub.f32 %v4726, %v4791
        %v4808 = vsub.f32 %v4727, %v4792
        %v4809 = vsub.f32 %v4728, %v4793
        %v4810 = vsub.f32 %v4729, %v4794
        %v4811 = vsub.f32 %v4730, %v4795
        %v4812 = vsub.f32 %v4731, %v4796
        %v4813 = vsub.f32 %v4732, %v4797
        %v4814 = vsub.f32 %v4733, %v4798
        %v4815 = vmul.f32 %v4799, %v4799
        %v4816 = vmul.f32 %v4800, %v4800
        %v4817 = vmul.f32 %v4801, %v4801
        %v4818 = vmul.f32 %v4802, %v4802
        %v4819 = vmul.f32 %v4803, %v4803
        %v4820 = vmul.f32 %v4804, %v4804
        %v4821 = vmul.f32 %v4805, %v4805
        %v4822 = vmul.f32 %v4806, %v4806
        %v4823 = vmul.f32 %v4807, %v4807
        %v4824 = vmul.f32 %v4808, %v4808
        %v4825 = vmul.f32 %v4809, %v4809
        %v4826 = vmul.f32 %v4810, %v4810
        %v4827 = vmul.f32 %v4811, %v4811
        %v4828 = vmul.f32 %v4812, %v4812
        %v4829 = vmul.f32 %v4813, %v4813
        %v4830 = vmul.f32 %v4814, %v4814
        %v4831 = vsel %vm718, %v4815, 0.0
        %4832 = vadd.xlane.f32.xlu0 %v4831
        %v4833 = vpop.xlane.xlu0 %4832
        %v4834 = vsel %vm718, %v4816, 0.0
        %4835 = vadd.xlane.f32.xlu0 %v4834
        %v4836 = vpop.xlane.xlu0 %4835
        %v4837 = vsel %vm718, %v4817, 0.0
        %4838 = vadd.xlane.f32.xlu0 %v4837
        %v4839 = vpop.xlane.xlu0 %4838
        %v4840 = vsel %vm718, %v4818, 0.0
        %4841 = vadd.xlane.f32.xlu0 %v4840
        %v4842 = vpop.xlane.xlu0 %4841
        %v4843 = vsel %vm718, %v4819, 0.0
        %4844 = vadd.xlane.f32.xlu0 %v4843
        %v4845 = vpop.xlane.xlu0 %4844
        %v4846 = vsel %vm718, %v4820, 0.0
        %4847 = vadd.xlane.f32.xlu0 %v4846
        %v4848 = vpop.xlane.xlu0 %4847
        %v4849 = vsel %vm718, %v4821, 0.0
        %4850 = vadd.xlane.f32.xlu0 %v4849
        %v4851 = vpop.xlane.xlu0 %4850
        %v4852 = vsel %vm718, %v4822, 0.0
        %4853 = vadd.xlane.f32.xlu0 %v4852
        %v4854 = vpop.xlane.xlu0 %4853
        %v4855 = vsel %vm718, %v4823, 0.0
        %4856 = vadd.xlane.f32.xlu0 %v4855
        %v4857 = vpop.xlane.xlu0 %4856
        %v4858 = vsel %vm718, %v4824, 0.0
        %4859 = vadd.xlane.f32.xlu0 %v4858
        %v4860 = vpop.xlane.xlu0 %4859
        %v4861 = vsel %vm718, %v4825, 0.0
        %4862 = vadd.xlane.f32.xlu0 %v4861
        %v4863 = vpop.xlane.xlu0 %4862
        %v4864 = vsel %vm718, %v4826, 0.0
        %4865 = vadd.xlane.f32.xlu0 %v4864
        %v4866 = vpop.xlane.xlu0 %4865
        %v4867 = vsel %vm718, %v4827, 0.0
        %4868 = vadd.xlane.f32.xlu0 %v4867
        %v4869 = vpop.xlane.xlu0 %4868
        %v4870 = vsel %vm718, %v4828, 0.0
        %4871 = vadd.xlane.f32.xlu0 %v4870
        %v4872 = vpop.xlane.xlu0 %4871
        %v4873 = vsel %vm718, %v4829, 0.0
        %4874 = vadd.xlane.f32.xlu0 %v4873
        %v4875 = vpop.xlane.xlu0 %4874
        %v4876 = vsel %vm718, %v4830, 0.0
        %4877 = vadd.xlane.f32.xlu0 %v4876
        %v4878 = vpop.xlane.xlu0 %4877
        %v4879 = vmul.f32 %v4833, %v4782
        %v4880 = vmul.f32 %v4836, %v4782
        %v4881 = vmul.f32 %v4839, %v4782
        %v4882 = vmul.f32 %v4842, %v4782
        %v4883 = vmul.f32 %v4845, %v4782
        %v4884 = vmul.f32 %v4848, %v4782
        %v4885 = vmul.f32 %v4851, %v4782
        %v4886 = vmul.f32 %v4854, %v4782
        %v4887 = vmul.f32 %v4857, %v4782
        %v4888 = vmul.f32 %v4860, %v4782
        %v4889 = vmul.f32 %v4863, %v4782
        %v4890 = vmul.f32 %v4866, %v4782
        %v4891 = vmul.f32 %v4869, %v4782
        %v4892 = vmul.f32 %v4872, %v4782
        %v4893 = vmul.f32 %v4875, %v4782
        %v4894 = vmul.f32 %v4878, %v4782
        %v4895 = vadd.f32 %v4879, 1e-05
        %v4896 = vadd.f32 %v4880, 1e-05
        %v4897 = vadd.f32 %v4881, 1e-05
        %v4898 = vadd.f32 %v4882, 1e-05
        %v4899 = vadd.f32 %v4883, 1e-05
        %v4900 = vadd.f32 %v4884, 1e-05
        %v4901 = vadd.f32 %v4885, 1e-05
        %v4902 = vadd.f32 %v4886, 1e-05
        %v4903 = vadd.f32 %v4887, 1e-05
        %v4904 = vadd.f32 %v4888, 1e-05
        %v4905 = vadd.f32 %v4889, 1e-05
        %v4906 = vadd.f32 %v4890, 1e-05
        %v4907 = vadd.f32 %v4891, 1e-05
        %v4908 = vadd.f32 %v4892, 1e-05
        %v4909 = vadd.f32 %v4893, 1e-05
        %v4910 = vadd.f32 %v4894, 1e-05
        %v4911 = vrsqrt.pop %v4895
        %v4912 = vrsqrt.pop %v4896
        %v4913 = vrsqrt.pop %v4897
        %v4914 = vrsqrt.pop %v4898
        %v4915 = vrsqrt.pop %v4899
        %v4916 = vrsqrt.pop %v4900
        %v4917 = vrsqrt.pop %v4901
        %v4918 = vrsqrt.pop %v4902
        %v4919 = vrsqrt.pop %v4903
        %v4920 = vrsqrt.pop %v4904
        %v4921 = vrsqrt.pop %v4905
        %v4922 = vrsqrt.pop %v4906
        %v4923 = vrsqrt.pop %v4907
        %v4924 = vrsqrt.pop %v4908
        %v4925 = vrsqrt.pop %v4909
        %v4926 = vrsqrt.pop %v4910
        %v4927 = vmul.f32 %v4799, %v4911
        %v4928 = vmul.f32 %v4800, %v4912
        %v4929 = vmul.f32 %v4801, %v4913
        %v4930 = vmul.f32 %v4802, %v4914
        %v4931 = vmul.f32 %v4803, %v4915
        %v4932 = vmul.f32 %v4804, %v4916
        %v4933 = vmul.f32 %v4805, %v4917
        %v4934 = vmul.f32 %v4806, %v4918
        %v4935 = vmul.f32 %v4807, %v4919
        %v4936 = vmul.f32 %v4808, %v4920
        %v4937 = vmul.f32 %v4809, %v4921
        %v4938 = vmul.f32 %v4810, %v4922
        %v4939 = vmul.f32 %v4811, %v4923
        %v4940 = vmul.f32 %v4812, %v4924
        %v4941 = vmul.f32 %v4813, %v4925
        %v4942 = vmul.f32 %v4814, %v4926
        %v4943 = vlaneseq
        %v4944 = vshrl.u32 %v4943, 7
        %v4945 = vsub.s32 1, %v4944
        %v4946 = vrot.slane %v564, %v4945
        %v4947 = vmul.f32 %v4927, %v4946
        %v4948 = vmul.f32 %v4928, %v4946
        %v4949 = vmul.f32 %v4929, %v4946
        %v4950 = vmul.f32 %v4930, %v4946
        %v4951 = vmul.f32 %v4931, %v4946
        %v4952 = vmul.f32 %v4932, %v4946
        %v4953 = vmul.f32 %v4933, %v4946
        %v4954 = vmul.f32 %v4934, %v4946
        %v4955 = vmul.f32 %v4935, %v4946
        %v4956 = vmul.f32 %v4936, %v4946
        %v4957 = vmul.f32 %v4937, %v4946
        %v4958 = vmul.f32 %v4938, %v4946
        %v4959 = vmul.f32 %v4939, %v4946
        %v4960 = vmul.f32 %v4940, %v4946
        %v4961 = vmul.f32 %v4941, %v4946
        %v4962 = vmul.f32 %v4942, %v4946
        %v4963 = vlaneseq
        %v4964 = vshrl.u32 %v4963, 7
        %v4965 = vsub.s32 2, %v4964
        %v4966 = vrot.slane %v564, %v4965
        %v4967 = vadd.f32 %v4947, %v4966
        %v4968 = vadd.f32 %v4948, %v4966
        %v4969 = vadd.f32 %v4949, %v4966
        %v4970 = vadd.f32 %v4950, %v4966
        %v4971 = vadd.f32 %v4951, %v4966
        %v4972 = vadd.f32 %v4952, %v4966
        %v4973 = vadd.f32 %v4953, %v4966
        %v4974 = vadd.f32 %v4954, %v4966
        %v4975 = vadd.f32 %v4955, %v4966
        %v4976 = vadd.f32 %v4956, %v4966
        %v4977 = vadd.f32 %v4957, %v4966
        %v4978 = vadd.f32 %v4958, %v4966
        %v4979 = vadd.f32 %v4959, %v4966
        %v4980 = vadd.f32 %v4960, %v4966
        %v4981 = vadd.f32 %v4961, %v4966
        %v4982 = vadd.f32 %v4962, %v4966
        %v4983 = vpack.c.bf16 %v4968, %v4967
        %v4984 = vpack.c.bf16 %v4970, %v4969
        %v4985 = vpack.c.bf16 %v4972, %v4971
        %v4986 = vpack.c.bf16 %v4974, %v4973
        %v4987 = vpack.c.bf16 %v4976, %v4975
        %v4988 = vpack.c.bf16 %v4978, %v4977
        %v4989 = vpack.c.bf16 %v4980, %v4979
        %v4990 = vpack.c.bf16 %v4982, %v4981
        %s4991 = smul.addr %s562, 4
        %s4992 = scalar_lea.vmem %s5, %s4991
        %v4993 = vld [vmem:[%s4992] sm:$0xf]
        %v4994 = vld [vmem:[%s4992 + $0x4] sm:$0xf]
        %v4995 = vld [vmem:[%s4992 + $0x8] sm:$0xf]
        %v4996 = vld [vmem:[%s4992 + $0xc] sm:$0xf]
        %v4997 = vld [vmem:[%s4992 + $0x10] sm:$0xf]
        %v4998 = vld [vmem:[%s4992 + $0x14] sm:$0xf]
        %v4999 = vld [vmem:[%s4992 + $0x18] sm:$0xf]
        %v5000 = vld [vmem:[%s4992 + $0x1c] sm:$0xf]
        %v5001 = vlaneseq
        %v5002 = vshrl.u32 %v5001, 7
        %v5003 = vsub.s32 0, %v5002
        %v5004 = vrot.slane %v567, %v5003
        %v5013 = vunpack.c.l.b16 %v4993
        %v5014 = vunpack.c.l.b16 %v4994
        %v5015 = vunpack.c.l.b16 %v4995
        %v5016 = vunpack.c.l.b16 %v4996
        %v5017 = vunpack.c.l.b16 %v4997
        %v5018 = vunpack.c.l.b16 %v4998
        %v5019 = vunpack.c.l.b16 %v4999
        %v5020 = vunpack.c.l.b16 %v5000
        %v5021 = vpack.c.b16 %v5014, %v5013
        %v5022 = vpack.c.b16 %v5016, %v5015
        %v5023 = vpack.c.b16 %v5018, %v5017
        %v5024 = vpack.c.b16 %v5020, %v5019
        %v5030 = vsel %vm718, %v4983, 0
        %v5033 = vsel %vm718, %v4984, 0
        %v5036 = vsel %vm718, %v4985, 0
        %v5039 = vsel %vm718, %v4986, 0
        %v5042 = vsel %vm718, %v4987, 0
        %v5045 = vsel %vm718, %v4988, 0
        %v5048 = vsel %vm718, %v4989, 0
        %v5051 = vsel %vm718, %v4990, 0
        %5053 = vmatprep.subr.bf16.mxu0 0
        %5054 = vmatpush1.bf16.msra.mxu0 %v5021
        %5055 = vmatprep.subr.bf16.mxu0 0
        %5056 = vmatpush1.bf16.msra.mxu0 %v5022
        %5057 = vmatprep.subr.bf16.mxu0 0
        %5058 = vmatpush1.bf16.msra.mxu0 %v5023
        %5059 = vmatprep.subr.bf16.mxu0 0
        %5060 = vmatpush1.bf16.msra.mxu0 %v5024
        %5061 = vmatprep.subr.bf16.mxu0 0
        %5062 = vmatpush1.bf16.msra.mxu0 0
        %5063 = vmatprep.subr.bf16.mxu0 0
        %5064 = vmatpush1.bf16.msra.mxu0 0
        %5065 = vmatprep.subr.bf16.mxu0 0
        %5066 = vmatpush1.bf16.msra.mxu0 0
        %5067 = vmatprep.subr.bf16.mxu0 0
        %5068 = vmatpush1.bf16.msra.mxu0 0
        %5069 = vmatprep.subr.bf16.mxu0 0
        %5070 = vmatpush1.bf16.msra.mxu0 0
        %5071 = vmatprep.subr.bf16.mxu0 0
        %5072 = vmatpush1.bf16.msra.mxu0 0
        %5073 = vmatprep.subr.bf16.mxu0 0
        %5074 = vmatpush1.bf16.msra.mxu0 0
        %5075 = vmatprep.subr.bf16.mxu0 0
        %5076 = vmatpush1.bf16.msra.mxu0 0
        %5077 = vmatprep.subr.bf16.mxu0 0
        %5078 = vmatpush1.bf16.msra.mxu0 0
        %5079 = vmatprep.subr.bf16.mxu0 0
        %5080 = vmatpush1.bf16.msra.mxu0 0
        %5081 = vmatprep.subr.bf16.mxu0 0
        %5082 = vmatpush1.bf16.msra.mxu0 0
        %5083 = vmatprep.subr.bf16.mxu0 0
        %5084 = vmatpush1.bf16.msra.mxu0 0
        %5085 = vmatprep.mubr.bf16.mxu0 0
        %5086 = vmatmul.mubr.bf16.gmra.mrb[0].mxu0 %v5030
        %v5087 = vpop.f32.mrb[0].mxu0
        %v5088 = vadd.f32 %v5004, %v5087
        %v5089 = vpop.f32.mrb[0].mxu0
        %v5090 = vpop.f32.mrb[0].mxu0
        %v5091 = vadd.f32 %v5004, %v5090
        %v5092 = vpop.f32.mrb[0].mxu0
        %5093 = vmatprep.mubr.bf16.mxu0 0
        %5094 = vmatmul.mubr.bf16.gmra.mrb[0].mxu0 %v5033
        %v5095 = vpop.f32.mrb[0].mxu0
        %v5096 = vadd.f32 %v5004, %v5095
        %v5097 = vpop.f32.mrb[0].mxu0
        %v5098 = vpop.f32.mrb[0].mxu0
        %v5099 = vadd.f32 %v5004, %v5098
        %v5100 = vpop.f32.mrb[0].mxu0
        %5101 = vmatprep.mubr.bf16.mxu0 0
        %5102 = vmatmul.mubr.bf16.gmra.mrb[0].mxu0 %v5036
        %v5103 = vpop.f32.mrb[0].mxu0
        %v5104 = vadd.f32 %v5004, %v5103
        %v5105 = vpop.f32.mrb[0].mxu0
        %v5106 = vpop.f32.mrb[0].mxu0
        %v5107 = vadd.f32 %v5004, %v5106
        %v5108 = vpop.f32.mrb[0].mxu0
        %5109 = vmatprep.mubr.bf16.mxu0 0
        %5110 = vmatmul.mubr.bf16.gmra.mrb[0].mxu0 %v5039
        %v5111 = vpop.f32.mrb[0].mxu0
        %v5112 = vadd.f32 %v5004, %v5111
        %v5113 = vpop.f32.mrb[0].mxu0
        %v5114 = vpop.f32.mrb[0].mxu0
        %v5115 = vadd.f32 %v5004, %v5114
        %v5116 = vpop.f32.mrb[0].mxu0
        %5117 = vmatprep.mubr.bf16.mxu0 0
        %5118 = vmatmul.mubr.bf16.gmra.mrb[0].mxu0 %v5042
        %v5119 = vpop.f32.mrb[0].mxu0
        %v5120 = vadd.f32 %v5004, %v5119
        %v5121 = vpop.f32.mrb[0].mxu0
        %v5122 = vpop.f32.mrb[0].mxu0
        %v5123 = vadd.f32 %v5004, %v5122
        %v5124 = vpop.f32.mrb[0].mxu0
        %5125 = vmatprep.mubr.bf16.mxu0 0
        %5126 = vmatmul.mubr.bf16.gmra.mrb[0].mxu0 %v5045
        %v5127 = vpop.f32.mrb[0].mxu0
        %v5128 = vadd.f32 %v5004, %v5127
        %v5129 = vpop.f32.mrb[0].mxu0
        %v5130 = vpop.f32.mrb[0].mxu0
        %v5131 = vadd.f32 %v5004, %v5130
        %v5132 = vpop.f32.mrb[0].mxu0
        %5133 = vmatprep.mubr.bf16.mxu0 0
        %5134 = vmatmul.mubr.bf16.gmra.mrb[0].mxu0 %v5048
        %v5135 = vpop.f32.mrb[0].mxu0
        %v5136 = vadd.f32 %v5004, %v5135
        %v5137 = vpop.f32.mrb[0].mxu0
        %v5138 = vpop.f32.mrb[0].mxu0
        %v5139 = vadd.f32 %v5004, %v5138
        %v5140 = vpop.f32.mrb[0].mxu0
        %5141 = vmatprep.mubr.bf16.mxu0 0
        %5142 = vmatmul.mubr.bf16.gmra.mrb[0].mxu0 %v5051
        %v5143 = vpop.f32.mrb[0].mxu0
        %v5144 = vadd.f32 %v5004, %v5143
        %v5145 = vpop.f32.mrb[0].mxu0
        %v5146 = vpop.f32.mrb[0].mxu0
        %v5147 = vadd.f32 %v5004, %v5146
        %v5148 = vpop.f32.mrb[0].mxu0
        %5149 = vdwg.mxu0
        %s5150 = smul.addr %s562, 4
        %s5151 = scalar_lea.vmem %s6, %s5150
        %v5152 = vld [vmem:[%s5151] sm:$0xf]
        %v5153 = vld [vmem:[%s5151 + $0x4] sm:$0xf]
        %v5154 = vld [vmem:[%s5151 + $0x8] sm:$0xf]
        %v5155 = vld [vmem:[%s5151 + $0xc] sm:$0xf]
        %v5156 = vld [vmem:[%s5151 + $0x10] sm:$0xf]
        %v5157 = vld [vmem:[%s5151 + $0x14] sm:$0xf]
        %v5158 = vld [vmem:[%s5151 + $0x18] sm:$0xf]
        %v5159 = vld [vmem:[%s5151 + $0x1c] sm:$0xf]
        %v5160 = vlaneseq
        %v5161 = vshrl.u32 %v5160, 7
        %v5162 = vsub.s32 1, %v5161
        %v5163 = vrot.slane %v567, %v5162
        %v5172 = vunpack.c.l.b16 %v5152
        %v5173 = vunpack.c.l.b16 %v5153
        %v5174 = vunpack.c.l.b16 %v5154
        %v5175 = vunpack.c.l.b16 %v5155
        %v5176 = vunpack.c.l.b16 %v5156
        %v5177 = vunpack.c.l.b16 %v5157
        %v5178 = vunpack.c.l.b16 %v5158
        %v5179 = vunpack.c.l.b16 %v5159
        %v5180 = vpack.c.b16 %v5173, %v5172
        %v5181 = vpack.c.b16 %v5175, %v5174
        %v5182 = vpack.c.b16 %v5177, %v5176
        %v5183 = vpack.c.b16 %v5179, %v5178
        %5188 = vmatprep.subr.bf16.mxu0 0
        %5189 = vmatpush1.bf16.msra.mxu0 %v5180
        %5190 = vmatprep.subr.bf16.mxu0 0
        %5191 = vmatpush1.bf16.msra.mxu0 %v5181
        %5192 = vmatprep.subr.bf16.mxu0 0
        %5193 = vmatpush1.bf16.msra.mxu0 %v5182
        %5194 = vmatprep.subr.bf16.mxu0 0
        %5195 = vmatpush1.bf16.msra.mxu0 %v5183
        %5196 = vmatprep.subr.bf16.mxu0 0
        %5197 = vmatpush1.bf16.msra.mxu0 0
        %5198 = vmatprep.subr.bf16.mxu0 0
        %5199 = vmatpush1.bf16.msra.mxu0 0
        %5200 = vmatprep.subr.bf16.mxu0 0
        %5201 = vmatpush1.bf16.msra.mxu0 0
        %5202 = vmatprep.subr.bf16.mxu0 0
        %5203 = vmatpush1.bf16.msra.mxu0 0
        %5204 = vmatprep.subr.bf16.mxu0 0
        %5205 = vmatpush1.bf16.msra.mxu0 0
        %5206 = vmatprep.subr.bf16.mxu0 0
        %5207 = vmatpush1.bf16.msra.mxu0 0
        %5208 = vmatprep.subr.bf16.mxu0 0
        %5209 = vmatpush1.bf16.msra.mxu0 0
        %5210 = vmatprep.subr.bf16.mxu0 0
        %5211 = vmatpush1.bf16.msra.mxu0 0
        %5212 = vmatprep.subr.bf16.mxu0 0
        %5213 = vmatpush1.bf16.msra.mxu0 0
        %5214 = vmatprep.subr.bf16.mxu0 0
        %5215 = vmatpush1.bf16.msra.mxu0 0
        %5216 = vmatprep.subr.bf16.mxu0 0
        %5217 = vmatpush1.bf16.msra.mxu0 0
        %5218 = vmatprep.subr.bf16.mxu0 0
        %5219 = vmatpush1.bf16.msra.mxu0 0
        %5220 = vmatprep.mubr.bf16.mxu0 0
        %5221 = vmatmul.mubr.bf16.gmra.mrb[0].mxu0 %v5030
        %v5222 = vpop.f32.mrb[0].mxu0
        %v5223 = vadd.f32 %v5163, %v5222
        %v5224 = vpop.f32.mrb[0].mxu0
        %v5225 = vpop.f32.mrb[0].mxu0
        %v5226 = vadd.f32 %v5163, %v5225
        %v5227 = vpop.f32.mrb[0].mxu0
        %5228 = vmatprep.mubr.bf16.mxu0 0
        %5229 = vmatmul.mubr.bf16.gmra.mrb[0].mxu0 %v5033
        %v5230 = vpop.f32.mrb[0].mxu0
        %v5231 = vadd.f32 %v5163, %v5230
        %v5232 = vpop.f32.mrb[0].mxu0
        %v5233 = vpop.f32.mrb[0].mxu0
        %v5234 = vadd.f32 %v5163, %v5233
        %v5235 = vpop.f32.mrb[0].mxu0
        %5236 = vmatprep.mubr.bf16.mxu0 0
        %5237 = vmatmul.mubr.bf16.gmra.mrb[0].mxu0 %v5036
        %v5238 = vpop.f32.mrb[0].mxu0
        %v5239 = vadd.f32 %v5163, %v5238
        %v5240 = vpop.f32.mrb[0].mxu0
        %v5241 = vpop.f32.mrb[0].mxu0
        %v5242 = vadd.f32 %v5163, %v5241
        %v5243 = vpop.f32.mrb[0].mxu0
        %5244 = vmatprep.mubr.bf16.mxu0 0
        %5245 = vmatmul.mubr.bf16.gmra.mrb[0].mxu0 %v5039
        %v5246 = vpop.f32.mrb[0].mxu0
        %v5247 = vadd.f32 %v5163, %v5246
        %v5248 = vpop.f32.mrb[0].mxu0
        %v5249 = vpop.f32.mrb[0].mxu0
        %v5250 = vadd.f32 %v5163, %v5249
        %v5251 = vpop.f32.mrb[0].mxu0
        %5252 = vmatprep.mubr.bf16.mxu0 0
        %5253 = vmatmul.mubr.bf16.gmra.mrb[0].mxu0 %v5042
        %v5254 = vpop.f32.mrb[0].mxu0
        %v5255 = vadd.f32 %v5163, %v5254
        %v5256 = vpop.f32.mrb[0].mxu0
        %v5257 = vpop.f32.mrb[0].mxu0
        %v5258 = vadd.f32 %v5163, %v5257
        %v5259 = vpop.f32.mrb[0].mxu0
        %5260 = vmatprep.mubr.bf16.mxu0 0
        %5261 = vmatmul.mubr.bf16.gmra.mrb[0].mxu0 %v5045
        %v5262 = vpop.f32.mrb[0].mxu0
        %v5263 = vadd.f32 %v5163, %v5262
        %v5264 = vpop.f32.mrb[0].mxu0
        %v5265 = vpop.f32.mrb[0].mxu0
        %v5266 = vadd.f32 %v5163, %v5265
        %v5267 = vpop.f32.mrb[0].mxu0
        %5268 = vmatprep.mubr.bf16.mxu0 0
        %5269 = vmatmul.mubr.bf16.gmra.mrb[0].mxu0 %v5048
        %v5270 = vpop.f32.mrb[0].mxu0
        %v5271 = vadd.f32 %v5163, %v5270
        %v5272 = vpop.f32.mrb[0].mxu0
        %v5273 = vpop.f32.mrb[0].mxu0
        %v5274 = vadd.f32 %v5163, %v5273
        %v5275 = vpop.f32.mrb[0].mxu0
        %5276 = vmatprep.mubr.bf16.mxu0 0
        %5277 = vmatmul.mubr.bf16.gmra.mrb[0].mxu0 %v5051
        %v5278 = vpop.f32.mrb[0].mxu0
        %v5279 = vadd.f32 %v5163, %v5278
        %v5280 = vpop.f32.mrb[0].mxu0
        %v5281 = vpop.f32.mrb[0].mxu0
        %v5282 = vadd.f32 %v5163, %v5281
        %v5283 = vpop.f32.mrb[0].mxu0
        %5284 = vdwg.mxu0
        %v5285 = vmax.f32 %v5088, 0.0
        %v5286 = vmax.f32 %v5091, 0.0
        %v5287 = vmax.f32 %v5096, 0.0
        %v5288 = vmax.f32 %v5099, 0.0
        %v5289 = vmax.f32 %v5104, 0.0
        %v5290 = vmax.f32 %v5107, 0.0
        %v5291 = vmax.f32 %v5112, 0.0
        %v5292 = vmax.f32 %v5115, 0.0
        %v5293 = vmax.f32 %v5120, 0.0
        %v5294 = vmax.f32 %v5123, 0.0
        %v5295 = vmax.f32 %v5128, 0.0
        %v5296 = vmax.f32 %v5131, 0.0
        %v5297 = vmax.f32 %v5136, 0.0
        %v5298 = vmax.f32 %v5139, 0.0
        %v5299 = vmax.f32 %v5144, 0.0
        %v5300 = vmax.f32 %v5147, 0.0
        %v5301 = vmul.f32 %v5285, %v5223
        %v5302 = vmul.f32 %v5286, %v5226
        %v5303 = vmul.f32 %v5287, %v5231
        %v5304 = vmul.f32 %v5288, %v5234
        %v5305 = vmul.f32 %v5289, %v5239
        %v5306 = vmul.f32 %v5290, %v5242
        %v5307 = vmul.f32 %v5291, %v5247
        %v5308 = vmul.f32 %v5292, %v5250
        %v5309 = vmul.f32 %v5293, %v5255
        %v5310 = vmul.f32 %v5294, %v5258
        %v5311 = vmul.f32 %v5295, %v5263
        %v5312 = vmul.f32 %v5296, %v5266
        %v5313 = vmul.f32 %v5297, %v5271
        %v5314 = vmul.f32 %v5298, %v5274
        %v5315 = vmul.f32 %v5299, %v5279
        %v5316 = vmul.f32 %v5300, %v5282
        %5317 = vadd.xlane.f32.xlu0 %v5301
        %v5318 = vpop.xlane.xlu0 %5317
        %5319 = vadd.xlane.f32.xlu0 %v5302
        %v5320 = vpop.xlane.xlu0 %5319
        %5321 = vadd.xlane.f32.xlu0 %v5303
        %v5322 = vpop.xlane.xlu0 %5321
        %5323 = vadd.xlane.f32.xlu0 %v5304
        %v5324 = vpop.xlane.xlu0 %5323
        %5325 = vadd.xlane.f32.xlu0 %v5305
        %v5326 = vpop.xlane.xlu0 %5325
        %5327 = vadd.xlane.f32.xlu0 %v5306
        %v5328 = vpop.xlane.xlu0 %5327
        %5329 = vadd.xlane.f32.xlu0 %v5307
        %v5330 = vpop.xlane.xlu0 %5329
        %5331 = vadd.xlane.f32.xlu0 %v5308
        %v5332 = vpop.xlane.xlu0 %5331
        %5333 = vadd.xlane.f32.xlu0 %v5309
        %v5334 = vpop.xlane.xlu0 %5333
        %5335 = vadd.xlane.f32.xlu0 %v5310
        %v5336 = vpop.xlane.xlu0 %5335
        %5337 = vadd.xlane.f32.xlu0 %v5311
        %v5338 = vpop.xlane.xlu0 %5337
        %5339 = vadd.xlane.f32.xlu0 %v5312
        %v5340 = vpop.xlane.xlu0 %5339
        %5341 = vadd.xlane.f32.xlu0 %v5313
        %v5342 = vpop.xlane.xlu0 %5341
        %5343 = vadd.xlane.f32.xlu0 %v5314
        %v5344 = vpop.xlane.xlu0 %5343
        %5345 = vadd.xlane.f32.xlu0 %v5315
        %v5346 = vpop.xlane.xlu0 %5345
        %5347 = vadd.xlane.f32.xlu0 %v5316
        %v5348 = vpop.xlane.xlu0 %5347
        %v5349 = vrcp.pop 128.0
        %v5350 = vmul.f32 %v5318, %v5349
        %v5351 = vmul.f32 %v5320, %v5349
        %v5352 = vmul.f32 %v5322, %v5349
        %v5353 = vmul.f32 %v5324, %v5349
        %v5354 = vmul.f32 %v5326, %v5349
        %v5355 = vmul.f32 %v5328, %v5349
        %v5356 = vmul.f32 %v5330, %v5349
        %v5357 = vmul.f32 %v5332, %v5349
        %v5358 = vmul.f32 %v5334, %v5349
        %v5359 = vmul.f32 %v5336, %v5349
        %v5360 = vmul.f32 %v5338, %v5349
        %v5361 = vmul.f32 %v5340, %v5349
        %v5362 = vmul.f32 %v5342, %v5349
        %v5363 = vmul.f32 %v5344, %v5349
        %v5364 = vmul.f32 %v5346, %v5349
        %v5365 = vmul.f32 %v5348, %v5349
        %v5366 = vsub.f32 %v5301, %v5350
        %v5367 = vsub.f32 %v5302, %v5351
        %v5368 = vsub.f32 %v5303, %v5352
        %v5369 = vsub.f32 %v5304, %v5353
        %v5370 = vsub.f32 %v5305, %v5354
        %v5371 = vsub.f32 %v5306, %v5355
        %v5372 = vsub.f32 %v5307, %v5356
        %v5373 = vsub.f32 %v5308, %v5357
        %v5374 = vsub.f32 %v5309, %v5358
        %v5375 = vsub.f32 %v5310, %v5359
        %v5376 = vsub.f32 %v5311, %v5360
        %v5377 = vsub.f32 %v5312, %v5361
        %v5378 = vsub.f32 %v5313, %v5362
        %v5379 = vsub.f32 %v5314, %v5363
        %v5380 = vsub.f32 %v5315, %v5364
        %v5381 = vsub.f32 %v5316, %v5365
        %v5382 = vmul.f32 %v5366, %v5366
        %v5383 = vmul.f32 %v5367, %v5367
        %v5384 = vmul.f32 %v5368, %v5368
        %v5385 = vmul.f32 %v5369, %v5369
        %v5386 = vmul.f32 %v5370, %v5370
        %v5387 = vmul.f32 %v5371, %v5371
        %v5388 = vmul.f32 %v5372, %v5372
        %v5389 = vmul.f32 %v5373, %v5373
        %v5390 = vmul.f32 %v5374, %v5374
        %v5391 = vmul.f32 %v5375, %v5375
        %v5392 = vmul.f32 %v5376, %v5376
        %v5393 = vmul.f32 %v5377, %v5377
        %v5394 = vmul.f32 %v5378, %v5378
        %v5395 = vmul.f32 %v5379, %v5379
        %v5396 = vmul.f32 %v5380, %v5380
        %v5397 = vmul.f32 %v5381, %v5381
        %5398 = vadd.xlane.f32.xlu0 %v5382
        %v5399 = vpop.xlane.xlu0 %5398
        %5400 = vadd.xlane.f32.xlu0 %v5383
        %v5401 = vpop.xlane.xlu0 %5400
        %5402 = vadd.xlane.f32.xlu0 %v5384
        %v5403 = vpop.xlane.xlu0 %5402
        %5404 = vadd.xlane.f32.xlu0 %v5385
        %v5405 = vpop.xlane.xlu0 %5404
        %5406 = vadd.xlane.f32.xlu0 %v5386
        %v5407 = vpop.xlane.xlu0 %5406
        %5408 = vadd.xlane.f32.xlu0 %v5387
        %v5409 = vpop.xlane.xlu0 %5408
        %5410 = vadd.xlane.f32.xlu0 %v5388
        %v5411 = vpop.xlane.xlu0 %5410
        %5412 = vadd.xlane.f32.xlu0 %v5389
        %v5413 = vpop.xlane.xlu0 %5412
        %5414 = vadd.xlane.f32.xlu0 %v5390
        %v5415 = vpop.xlane.xlu0 %5414
        %5416 = vadd.xlane.f32.xlu0 %v5391
        %v5417 = vpop.xlane.xlu0 %5416
        %5418 = vadd.xlane.f32.xlu0 %v5392
        %v5419 = vpop.xlane.xlu0 %5418
        %5420 = vadd.xlane.f32.xlu0 %v5393
        %v5421 = vpop.xlane.xlu0 %5420
        %5422 = vadd.xlane.f32.xlu0 %v5394
        %v5423 = vpop.xlane.xlu0 %5422
        %5424 = vadd.xlane.f32.xlu0 %v5395
        %v5425 = vpop.xlane.xlu0 %5424
        %5426 = vadd.xlane.f32.xlu0 %v5396
        %v5427 = vpop.xlane.xlu0 %5426
        %5428 = vadd.xlane.f32.xlu0 %v5397
        %v5429 = vpop.xlane.xlu0 %5428
        %v5430 = vmul.f32 %v5399, %v5349
        %v5431 = vmul.f32 %v5401, %v5349
        %v5432 = vmul.f32 %v5403, %v5349
        %v5433 = vmul.f32 %v5405, %v5349
        %v5434 = vmul.f32 %v5407, %v5349
        %v5435 = vmul.f32 %v5409, %v5349
        %v5436 = vmul.f32 %v5411, %v5349
        %v5437 = vmul.f32 %v5413, %v5349
        %v5438 = vmul.f32 %v5415, %v5349
        %v5439 = vmul.f32 %v5417, %v5349
        %v5440 = vmul.f32 %v5419, %v5349
        %v5441 = vmul.f32 %v5421, %v5349
        %v5442 = vmul.f32 %v5423, %v5349
        %v5443 = vmul.f32 %v5425, %v5349
        %v5444 = vmul.f32 %v5427, %v5349
        %v5445 = vmul.f32 %v5429, %v5349
        %v5446 = vadd.f32 %v5430, 1e-05
        %v5447 = vadd.f32 %v5431, 1e-05
        %v5448 = vadd.f32 %v5432, 1e-05
        %v5449 = vadd.f32 %v5433, 1e-05
        %v5450 = vadd.f32 %v5434, 1e-05
        %v5451 = vadd.f32 %v5435, 1e-05
        %v5452 = vadd.f32 %v5436, 1e-05
        %v5453 = vadd.f32 %v5437, 1e-05
        %v5454 = vadd.f32 %v5438, 1e-05
        %v5455 = vadd.f32 %v5439, 1e-05
        %v5456 = vadd.f32 %v5440, 1e-05
        %v5457 = vadd.f32 %v5441, 1e-05
        %v5458 = vadd.f32 %v5442, 1e-05
        %v5459 = vadd.f32 %v5443, 1e-05
        %v5460 = vadd.f32 %v5444, 1e-05
        %v5461 = vadd.f32 %v5445, 1e-05
        %v5462 = vrsqrt.pop %v5446
        %v5463 = vrsqrt.pop %v5447
        %v5464 = vrsqrt.pop %v5448
        %v5465 = vrsqrt.pop %v5449
        %v5466 = vrsqrt.pop %v5450
        %v5467 = vrsqrt.pop %v5451
        %v5468 = vrsqrt.pop %v5452
        %v5469 = vrsqrt.pop %v5453
        %v5470 = vrsqrt.pop %v5454
        %v5471 = vrsqrt.pop %v5455
        %v5472 = vrsqrt.pop %v5456
        %v5473 = vrsqrt.pop %v5457
        %v5474 = vrsqrt.pop %v5458
        %v5475 = vrsqrt.pop %v5459
        %v5476 = vrsqrt.pop %v5460
        %v5477 = vrsqrt.pop %v5461
        %v5478 = vmul.f32 %v5366, %v5462
        %v5479 = vmul.f32 %v5367, %v5463
        %v5480 = vmul.f32 %v5368, %v5464
        %v5481 = vmul.f32 %v5369, %v5465
        %v5482 = vmul.f32 %v5370, %v5466
        %v5483 = vmul.f32 %v5371, %v5467
        %v5484 = vmul.f32 %v5372, %v5468
        %v5485 = vmul.f32 %v5373, %v5469
        %v5486 = vmul.f32 %v5374, %v5470
        %v5487 = vmul.f32 %v5375, %v5471
        %v5488 = vmul.f32 %v5376, %v5472
        %v5489 = vmul.f32 %v5377, %v5473
        %v5490 = vmul.f32 %v5378, %v5474
        %v5491 = vmul.f32 %v5379, %v5475
        %v5492 = vmul.f32 %v5380, %v5476
        %v5493 = vmul.f32 %v5381, %v5477
        %v5494 = vlaneseq
        %v5495 = vshrl.u32 %v5494, 7
        %v5496 = vsub.s32 2, %v5495
        %v5497 = vrot.slane %v567, %v5496
        %v5498 = vmul.f32 %v5478, %v5497
        %v5499 = vmul.f32 %v5479, %v5497
        %v5500 = vmul.f32 %v5480, %v5497
        %v5501 = vmul.f32 %v5481, %v5497
        %v5502 = vmul.f32 %v5482, %v5497
        %v5503 = vmul.f32 %v5483, %v5497
        %v5504 = vmul.f32 %v5484, %v5497
        %v5505 = vmul.f32 %v5485, %v5497
        %v5506 = vmul.f32 %v5486, %v5497
        %v5507 = vmul.f32 %v5487, %v5497
        %v5508 = vmul.f32 %v5488, %v5497
        %v5509 = vmul.f32 %v5489, %v5497
        %v5510 = vmul.f32 %v5490, %v5497
        %v5511 = vmul.f32 %v5491, %v5497
        %v5512 = vmul.f32 %v5492, %v5497
        %v5513 = vmul.f32 %v5493, %v5497
        %v5514 = vlaneseq
        %v5515 = vshrl.u32 %v5514, 7
        %v5516 = vsub.s32 3, %v5515
        %v5517 = vrot.slane %v567, %v5516
        %v5518 = vadd.f32 %v5498, %v5517
        %v5519 = vadd.f32 %v5499, %v5517
        %v5520 = vadd.f32 %v5500, %v5517
        %v5521 = vadd.f32 %v5501, %v5517
        %v5522 = vadd.f32 %v5502, %v5517
        %v5523 = vadd.f32 %v5503, %v5517
        %v5524 = vadd.f32 %v5504, %v5517
        %v5525 = vadd.f32 %v5505, %v5517
        %v5526 = vadd.f32 %v5506, %v5517
        %v5527 = vadd.f32 %v5507, %v5517
        %v5528 = vadd.f32 %v5508, %v5517
        %v5529 = vadd.f32 %v5509, %v5517
        %v5530 = vadd.f32 %v5510, %v5517
        %v5531 = vadd.f32 %v5511, %v5517
        %v5532 = vadd.f32 %v5512, %v5517
        %v5533 = vadd.f32 %v5513, %v5517
        %v5534 = vpack.c.bf16 %v5519, %v5518
        %v5535 = vpack.c.bf16 %v5521, %v5520
        %v5536 = vpack.c.bf16 %v5523, %v5522
        %v5537 = vpack.c.bf16 %v5525, %v5524
        %v5538 = vpack.c.bf16 %v5527, %v5526
        %v5539 = vpack.c.bf16 %v5529, %v5528
        %v5540 = vpack.c.bf16 %v5531, %v5530
        %v5541 = vpack.c.bf16 %v5533, %v5532
        %s5542 = smul.addr %s653, 4
        %s5543 = scalar_lea.vmem %s7, %s5542
        %v5544 = vld [vmem:[%s5543] sm:$0xf]
        %v5545 = vld [vmem:[%s5543 + $0x4] sm:$0xf]
        %v5546 = vld [vmem:[%s5543 + $0x8] sm:$0xf]
        %v5547 = vld [vmem:[%s5543 + $0xc] sm:$0xf]
        %v5548 = vld [vmem:[%s5543 + $0x10] sm:$0xf]
        %v5549 = vld [vmem:[%s5543 + $0x14] sm:$0xf]
        %v5550 = vld [vmem:[%s5543 + $0x18] sm:$0xf]
        %v5551 = vld [vmem:[%s5543 + $0x1c] sm:$0xf]
        %v5552 = vld [vmem:[%s5543 + $0x20] sm:$0xf]
        %v5553 = vld [vmem:[%s5543 + $0x24] sm:$0xf]
        %v5554 = vld [vmem:[%s5543 + $0x28] sm:$0xf]
        %v5555 = vld [vmem:[%s5543 + $0x2c] sm:$0xf]
        %v5556 = vld [vmem:[%s5543 + $0x30] sm:$0xf]
        %v5557 = vld [vmem:[%s5543 + $0x34] sm:$0xf]
        %v5558 = vld [vmem:[%s5543 + $0x38] sm:$0xf]
        %v5559 = vld [vmem:[%s5543 + $0x3c] sm:$0xf]
        %v5560 = vlaneseq
        %v5561 = vshrl.u32 %v5560, 7
        %v5562 = vsub.s32 3, %v5561
        %v5563 = vrot.slane %v564, %v5562
        %v5580 = vunpack.c.l.b16 %v5544
        %v5581 = vunpack.c.l.b16 %v5545
        %v5582 = vunpack.c.l.b16 %v5546
        %v5583 = vunpack.c.l.b16 %v5547
        %v5584 = vunpack.c.l.b16 %v5548
        %v5585 = vunpack.c.l.b16 %v5549
        %v5586 = vunpack.c.l.b16 %v5550
        %v5587 = vunpack.c.l.b16 %v5551
        %v5588 = vunpack.c.l.b16 %v5552
        %v5589 = vunpack.c.l.b16 %v5553
        %v5590 = vunpack.c.l.b16 %v5554
        %v5591 = vunpack.c.l.b16 %v5555
        %v5592 = vunpack.c.l.b16 %v5556
        %v5593 = vunpack.c.l.b16 %v5557
        %v5594 = vunpack.c.l.b16 %v5558
        %v5595 = vunpack.c.l.b16 %v5559
        %v5596 = vpack.c.b16 %v5581, %v5580
        %v5597 = vpack.c.b16 %v5583, %v5582
        %v5598 = vpack.c.b16 %v5585, %v5584
        %v5599 = vpack.c.b16 %v5587, %v5586
        %v5600 = vpack.c.b16 %v5589, %v5588
        %v5601 = vpack.c.b16 %v5591, %v5590
        %v5602 = vpack.c.b16 %v5593, %v5592
        %v5603 = vpack.c.b16 %v5595, %v5594
        %5612 = vmatprep.subr.bf16.mxu0 0
        %5613 = vmatpush1.bf16.msra.mxu0 %v5596
        %5614 = vmatprep.subr.bf16.mxu0 0
        %5615 = vmatpush1.bf16.msra.mxu0 %v5597
        %5616 = vmatprep.subr.bf16.mxu0 0
        %5617 = vmatpush1.bf16.msra.mxu0 %v5598
        %5618 = vmatprep.subr.bf16.mxu0 0
        %5619 = vmatpush1.bf16.msra.mxu0 %v5599
        %5620 = vmatprep.subr.bf16.mxu0 0
        %5621 = vmatpush1.bf16.msra.mxu0 %v5600
        %5622 = vmatprep.subr.bf16.mxu0 0
        %5623 = vmatpush1.bf16.msra.mxu0 %v5601
        %5624 = vmatprep.subr.bf16.mxu0 0
        %5625 = vmatpush1.bf16.msra.mxu0 %v5602
        %5626 = vmatprep.subr.bf16.mxu0 0
        %5627 = vmatpush1.bf16.msra.mxu0 %v5603
        %5628 = vmatprep.subr.bf16.mxu0 0
        %5629 = vmatpush1.bf16.msra.mxu0 0
        %5630 = vmatprep.subr.bf16.mxu0 0
        %5631 = vmatpush1.bf16.msra.mxu0 0
        %5632 = vmatprep.subr.bf16.mxu0 0
        %5633 = vmatpush1.bf16.msra.mxu0 0
        %5634 = vmatprep.subr.bf16.mxu0 0
        %5635 = vmatpush1.bf16.msra.mxu0 0
        %5636 = vmatprep.subr.bf16.mxu0 0
        %5637 = vmatpush1.bf16.msra.mxu0 0
        %5638 = vmatprep.subr.bf16.mxu0 0
        %5639 = vmatpush1.bf16.msra.mxu0 0
        %5640 = vmatprep.subr.bf16.mxu0 0
        %5641 = vmatpush1.bf16.msra.mxu0 0
        %5642 = vmatprep.subr.bf16.mxu0 0
        %5643 = vmatpush1.bf16.msra.mxu0 0
        %5644 = vmatprep.mubr.bf16.mxu0 0
        %5645 = vmatmul.mubr.bf16.gmra.mrb[0].mxu0 %v5534
        %v5646 = vpop.f32.mrb[0].mxu0
        %v5647 = vadd.f32 %v5563, %v5646
        %v5648 = vpop.f32.mrb[0].mxu0
        %v5649 = vpop.f32.mrb[0].mxu0
        %v5650 = vadd.f32 %v5563, %v5649
        %v5651 = vpop.f32.mrb[0].mxu0
        %5652 = vmatprep.mubr.bf16.mxu0 0
        %5653 = vmatmul.mubr.bf16.gmra.mrb[0].mxu0 %v5535
        %v5654 = vpop.f32.mrb[0].mxu0
        %v5655 = vadd.f32 %v5563, %v5654
        %v5656 = vpop.f32.mrb[0].mxu0
        %v5657 = vpop.f32.mrb[0].mxu0
        %v5658 = vadd.f32 %v5563, %v5657
        %v5659 = vpop.f32.mrb[0].mxu0
        %5660 = vmatprep.mubr.bf16.mxu0 0
        %5661 = vmatmul.mubr.bf16.gmra.mrb[0].mxu0 %v5536
        %v5662 = vpop.f32.mrb[0].mxu0
        %v5663 = vadd.f32 %v5563, %v5662
        %v5664 = vpop.f32.mrb[0].mxu0
        %v5665 = vpop.f32.mrb[0].mxu0
        %v5666 = vadd.f32 %v5563, %v5665
        %v5667 = vpop.f32.mrb[0].mxu0
        %5668 = vmatprep.mubr.bf16.mxu0 0
        %5669 = vmatmul.mubr.bf16.gmra.mrb[0].mxu0 %v5537
        %v5670 = vpop.f32.mrb[0].mxu0
        %v5671 = vadd.f32 %v5563, %v5670
        %v5672 = vpop.f32.mrb[0].mxu0
        %v5673 = vpop.f32.mrb[0].mxu0
        %v5674 = vadd.f32 %v5563, %v5673
        %v5675 = vpop.f32.mrb[0].mxu0
        %5676 = vmatprep.mubr.bf16.mxu0 0
        %5677 = vmatmul.mubr.bf16.gmra.mrb[0].mxu0 %v5538
        %v5678 = vpop.f32.mrb[0].mxu0
        %v5679 = vadd.f32 %v5563, %v5678
        %v5680 = vpop.f32.mrb[0].mxu0
        %v5681 = vpop.f32.mrb[0].mxu0
        %v5682 = vadd.f32 %v5563, %v5681
        %v5683 = vpop.f32.mrb[0].mxu0
        %5684 = vmatprep.mubr.bf16.mxu0 0
        %5685 = vmatmul.mubr.bf16.gmra.mrb[0].mxu0 %v5539
        %v5686 = vpop.f32.mrb[0].mxu0
        %v5687 = vadd.f32 %v5563, %v5686
        %v5688 = vpop.f32.mrb[0].mxu0
        %v5689 = vpop.f32.mrb[0].mxu0
        %v5690 = vadd.f32 %v5563, %v5689
        %v5691 = vpop.f32.mrb[0].mxu0
        %5692 = vmatprep.mubr.bf16.mxu0 0
        %5693 = vmatmul.mubr.bf16.gmra.mrb[0].mxu0 %v5540
        %v5694 = vpop.f32.mrb[0].mxu0
        %v5695 = vadd.f32 %v5563, %v5694
        %v5696 = vpop.f32.mrb[0].mxu0
        %v5697 = vpop.f32.mrb[0].mxu0
        %v5698 = vadd.f32 %v5563, %v5697
        %v5699 = vpop.f32.mrb[0].mxu0
        %5700 = vmatprep.mubr.bf16.mxu0 0
        %5701 = vmatmul.mubr.bf16.gmra.mrb[0].mxu0 %v5541
        %v5702 = vpop.f32.mrb[0].mxu0
        %v5703 = vadd.f32 %v5563, %v5702
        %v5704 = vpop.f32.mrb[0].mxu0
        %v5705 = vpop.f32.mrb[0].mxu0
        %v5706 = vadd.f32 %v5563, %v5705
        %v5707 = vpop.f32.mrb[0].mxu0
        %5708 = vdwg.mxu0
        %v5709 = vadd.f32 %v5647, %v4967
        %v5710 = vadd.f32 %v5650, %v4968
        %v5711 = vadd.f32 %v5655, %v4969
        %v5712 = vadd.f32 %v5658, %v4970
        %v5713 = vadd.f32 %v5663, %v4971
        %v5714 = vadd.f32 %v5666, %v4972
        %v5715 = vadd.f32 %v5671, %v4973
        %v5716 = vadd.f32 %v5674, %v4974
        %v5717 = vadd.f32 %v5679, %v4975
        %v5718 = vadd.f32 %v5682, %v4976
        %v5719 = vadd.f32 %v5687, %v4977
        %v5720 = vadd.f32 %v5690, %v4978
        %v5721 = vadd.f32 %v5695, %v4979
        %v5722 = vadd.f32 %v5698, %v4980
        %v5723 = vadd.f32 %v5703, %v4981
        %v5724 = vadd.f32 %v5706, %v4982
        %v5725 = vsel %vm718, %v5709, 0.0
        %5726 = vadd.xlane.f32.xlu0 %v5725
        %v5727 = vpop.xlane.xlu0 %5726
        %v5728 = vsel %vm718, %v5710, 0.0
        %5729 = vadd.xlane.f32.xlu0 %v5728
        %v5730 = vpop.xlane.xlu0 %5729
        %v5731 = vsel %vm718, %v5711, 0.0
        %5732 = vadd.xlane.f32.xlu0 %v5731
        %v5733 = vpop.xlane.xlu0 %5732
        %v5734 = vsel %vm718, %v5712, 0.0
        %5735 = vadd.xlane.f32.xlu0 %v5734
        %v5736 = vpop.xlane.xlu0 %5735
        %v5737 = vsel %vm718, %v5713, 0.0
        %5738 = vadd.xlane.f32.xlu0 %v5737
        %v5739 = vpop.xlane.xlu0 %5738
        %v5740 = vsel %vm718, %v5714, 0.0
        %5741 = vadd.xlane.f32.xlu0 %v5740
        %v5742 = vpop.xlane.xlu0 %5741
        %v5743 = vsel %vm718, %v5715, 0.0
        %5744 = vadd.xlane.f32.xlu0 %v5743
        %v5745 = vpop.xlane.xlu0 %5744
        %v5746 = vsel %vm718, %v5716, 0.0
        %5747 = vadd.xlane.f32.xlu0 %v5746
        %v5748 = vpop.xlane.xlu0 %5747
        %v5749 = vsel %vm718, %v5717, 0.0
        %5750 = vadd.xlane.f32.xlu0 %v5749
        %v5751 = vpop.xlane.xlu0 %5750
        %v5752 = vsel %vm718, %v5718, 0.0
        %5753 = vadd.xlane.f32.xlu0 %v5752
        %v5754 = vpop.xlane.xlu0 %5753
        %v5755 = vsel %vm718, %v5719, 0.0
        %5756 = vadd.xlane.f32.xlu0 %v5755
        %v5757 = vpop.xlane.xlu0 %5756
        %v5758 = vsel %vm718, %v5720, 0.0
        %5759 = vadd.xlane.f32.xlu0 %v5758
        %v5760 = vpop.xlane.xlu0 %5759
        %v5761 = vsel %vm718, %v5721, 0.0
        %5762 = vadd.xlane.f32.xlu0 %v5761
        %v5763 = vpop.xlane.xlu0 %5762
        %v5764 = vsel %vm718, %v5722, 0.0
        %5765 = vadd.xlane.f32.xlu0 %v5764
        %v5766 = vpop.xlane.xlu0 %5765
        %v5767 = vsel %vm718, %v5723, 0.0
        %5768 = vadd.xlane.f32.xlu0 %v5767
        %v5769 = vpop.xlane.xlu0 %5768
        %v5770 = vsel %vm718, %v5724, 0.0
        %5771 = vadd.xlane.f32.xlu0 %v5770
        %v5772 = vpop.xlane.xlu0 %5771
        %v5773 = vmul.f32 %v5727, %v4782
        %v5774 = vmul.f32 %v5730, %v4782
        %v5775 = vmul.f32 %v5733, %v4782
        %v5776 = vmul.f32 %v5736, %v4782
        %v5777 = vmul.f32 %v5739, %v4782
        %v5778 = vmul.f32 %v5742, %v4782
        %v5779 = vmul.f32 %v5745, %v4782
        %v5780 = vmul.f32 %v5748, %v4782
        %v5781 = vmul.f32 %v5751, %v4782
        %v5782 = vmul.f32 %v5754, %v4782
        %v5783 = vmul.f32 %v5757, %v4782
        %v5784 = vmul.f32 %v5760, %v4782
        %v5785 = vmul.f32 %v5763, %v4782
        %v5786 = vmul.f32 %v5766, %v4782
        %v5787 = vmul.f32 %v5769, %v4782
        %v5788 = vmul.f32 %v5772, %v4782
        %v5789 = vsub.f32 %v5709, %v5773
        %v5790 = vsub.f32 %v5710, %v5774
        %v5791 = vsub.f32 %v5711, %v5775
        %v5792 = vsub.f32 %v5712, %v5776
        %v5793 = vsub.f32 %v5713, %v5777
        %v5794 = vsub.f32 %v5714, %v5778
        %v5795 = vsub.f32 %v5715, %v5779
        %v5796 = vsub.f32 %v5716, %v5780
        %v5797 = vsub.f32 %v5717, %v5781
        %v5798 = vsub.f32 %v5718, %v5782
        %v5799 = vsub.f32 %v5719, %v5783
        %v5800 = vsub.f32 %v5720, %v5784
        %v5801 = vsub.f32 %v5721, %v5785
        %v5802 = vsub.f32 %v5722, %v5786
        %v5803 = vsub.f32 %v5723, %v5787
        %v5804 = vsub.f32 %v5724, %v5788
        %v5805 = vmul.f32 %v5789, %v5789
        %v5806 = vmul.f32 %v5790, %v5790
        %v5807 = vmul.f32 %v5791, %v5791
        %v5808 = vmul.f32 %v5792, %v5792
        %v5809 = vmul.f32 %v5793, %v5793
        %v5810 = vmul.f32 %v5794, %v5794
        %v5811 = vmul.f32 %v5795, %v5795
        %v5812 = vmul.f32 %v5796, %v5796
        %v5813 = vmul.f32 %v5797, %v5797
        %v5814 = vmul.f32 %v5798, %v5798
        %v5815 = vmul.f32 %v5799, %v5799
        %v5816 = vmul.f32 %v5800, %v5800
        %v5817 = vmul.f32 %v5801, %v5801
        %v5818 = vmul.f32 %v5802, %v5802
        %v5819 = vmul.f32 %v5803, %v5803
        %v5820 = vmul.f32 %v5804, %v5804
        %v5821 = vsel %vm718, %v5805, 0.0
        %5822 = vadd.xlane.f32.xlu0 %v5821
        %v5823 = vpop.xlane.xlu0 %5822
        %v5824 = vsel %vm718, %v5806, 0.0
        %5825 = vadd.xlane.f32.xlu0 %v5824
        %v5826 = vpop.xlane.xlu0 %5825
        %v5827 = vsel %vm718, %v5807, 0.0
        %5828 = vadd.xlane.f32.xlu0 %v5827
        %v5829 = vpop.xlane.xlu0 %5828
        %v5830 = vsel %vm718, %v5808, 0.0
        %5831 = vadd.xlane.f32.xlu0 %v5830
        %v5832 = vpop.xlane.xlu0 %5831
        %v5833 = vsel %vm718, %v5809, 0.0
        %5834 = vadd.xlane.f32.xlu0 %v5833
        %v5835 = vpop.xlane.xlu0 %5834
        %v5836 = vsel %vm718, %v5810, 0.0
        %5837 = vadd.xlane.f32.xlu0 %v5836
        %v5838 = vpop.xlane.xlu0 %5837
        %v5839 = vsel %vm718, %v5811, 0.0
        %5840 = vadd.xlane.f32.xlu0 %v5839
        %v5841 = vpop.xlane.xlu0 %5840
        %v5842 = vsel %vm718, %v5812, 0.0
        %5843 = vadd.xlane.f32.xlu0 %v5842
        %v5844 = vpop.xlane.xlu0 %5843
        %v5845 = vsel %vm718, %v5813, 0.0
        %5846 = vadd.xlane.f32.xlu0 %v5845
        %v5847 = vpop.xlane.xlu0 %5846
        %v5848 = vsel %vm718, %v5814, 0.0
        %5849 = vadd.xlane.f32.xlu0 %v5848
        %v5850 = vpop.xlane.xlu0 %5849
        %v5851 = vsel %vm718, %v5815, 0.0
        %5852 = vadd.xlane.f32.xlu0 %v5851
        %v5853 = vpop.xlane.xlu0 %5852
        %v5854 = vsel %vm718, %v5816, 0.0
        %5855 = vadd.xlane.f32.xlu0 %v5854
        %v5856 = vpop.xlane.xlu0 %5855
        %v5857 = vsel %vm718, %v5817, 0.0
        %5858 = vadd.xlane.f32.xlu0 %v5857
        %v5859 = vpop.xlane.xlu0 %5858
        %v5860 = vsel %vm718, %v5818, 0.0
        %5861 = vadd.xlane.f32.xlu0 %v5860
        %v5862 = vpop.xlane.xlu0 %5861
        %v5863 = vsel %vm718, %v5819, 0.0
        %5864 = vadd.xlane.f32.xlu0 %v5863
        %v5865 = vpop.xlane.xlu0 %5864
        %v5866 = vsel %vm718, %v5820, 0.0
        %5867 = vadd.xlane.f32.xlu0 %v5866
        %v5868 = vpop.xlane.xlu0 %5867
        %v5869 = vmul.f32 %v5823, %v4782
        %v5870 = vmul.f32 %v5826, %v4782
        %v5871 = vmul.f32 %v5829, %v4782
        %v5872 = vmul.f32 %v5832, %v4782
        %v5873 = vmul.f32 %v5835, %v4782
        %v5874 = vmul.f32 %v5838, %v4782
        %v5875 = vmul.f32 %v5841, %v4782
        %v5876 = vmul.f32 %v5844, %v4782
        %v5877 = vmul.f32 %v5847, %v4782
        %v5878 = vmul.f32 %v5850, %v4782
        %v5879 = vmul.f32 %v5853, %v4782
        %v5880 = vmul.f32 %v5856, %v4782
        %v5881 = vmul.f32 %v5859, %v4782
        %v5882 = vmul.f32 %v5862, %v4782
        %v5883 = vmul.f32 %v5865, %v4782
        %v5884 = vmul.f32 %v5868, %v4782
        %v5885 = vadd.f32 %v5869, 1e-05
        %v5886 = vadd.f32 %v5870, 1e-05
        %v5887 = vadd.f32 %v5871, 1e-05
        %v5888 = vadd.f32 %v5872, 1e-05
        %v5889 = vadd.f32 %v5873, 1e-05
        %v5890 = vadd.f32 %v5874, 1e-05
        %v5891 = vadd.f32 %v5875, 1e-05
        %v5892 = vadd.f32 %v5876, 1e-05
        %v5893 = vadd.f32 %v5877, 1e-05
        %v5894 = vadd.f32 %v5878, 1e-05
        %v5895 = vadd.f32 %v5879, 1e-05
        %v5896 = vadd.f32 %v5880, 1e-05
        %v5897 = vadd.f32 %v5881, 1e-05
        %v5898 = vadd.f32 %v5882, 1e-05
        %v5899 = vadd.f32 %v5883, 1e-05
        %v5900 = vadd.f32 %v5884, 1e-05
        %v5901 = vrsqrt.pop %v5885
        %v5902 = vrsqrt.pop %v5886
        %v5903 = vrsqrt.pop %v5887
        %v5904 = vrsqrt.pop %v5888
        %v5905 = vrsqrt.pop %v5889
        %v5906 = vrsqrt.pop %v5890
        %v5907 = vrsqrt.pop %v5891
        %v5908 = vrsqrt.pop %v5892
        %v5909 = vrsqrt.pop %v5893
        %v5910 = vrsqrt.pop %v5894
        %v5911 = vrsqrt.pop %v5895
        %v5912 = vrsqrt.pop %v5896
        %v5913 = vrsqrt.pop %v5897
        %v5914 = vrsqrt.pop %v5898
        %v5915 = vrsqrt.pop %v5899
        %v5916 = vrsqrt.pop %v5900
        %v5917 = vmul.f32 %v5789, %v5901
        %v5918 = vmul.f32 %v5790, %v5902
        %v5919 = vmul.f32 %v5791, %v5903
        %v5920 = vmul.f32 %v5792, %v5904
        %v5921 = vmul.f32 %v5793, %v5905
        %v5922 = vmul.f32 %v5794, %v5906
        %v5923 = vmul.f32 %v5795, %v5907
        %v5924 = vmul.f32 %v5796, %v5908
        %v5925 = vmul.f32 %v5797, %v5909
        %v5926 = vmul.f32 %v5798, %v5910
        %v5927 = vmul.f32 %v5799, %v5911
        %v5928 = vmul.f32 %v5800, %v5912
        %v5929 = vmul.f32 %v5801, %v5913
        %v5930 = vmul.f32 %v5802, %v5914
        %v5931 = vmul.f32 %v5803, %v5915
        %v5932 = vmul.f32 %v5804, %v5916
        %v5933 = vlaneseq
        %v5934 = vshrl.u32 %v5933, 7
        %v5935 = vsub.s32 4, %v5934
        %v5936 = vrot.slane %v564, %v5935
        %v5937 = vmul.f32 %v5917, %v5936
        %v5938 = vmul.f32 %v5918, %v5936
        %v5939 = vmul.f32 %v5919, %v5936
        %v5940 = vmul.f32 %v5920, %v5936
        %v5941 = vmul.f32 %v5921, %v5936
        %v5942 = vmul.f32 %v5922, %v5936
        %v5943 = vmul.f32 %v5923, %v5936
        %v5944 = vmul.f32 %v5924, %v5936
        %v5945 = vmul.f32 %v5925, %v5936
        %v5946 = vmul.f32 %v5926, %v5936
        %v5947 = vmul.f32 %v5927, %v5936
        %v5948 = vmul.f32 %v5928, %v5936
        %v5949 = vmul.f32 %v5929, %v5936
        %v5950 = vmul.f32 %v5930, %v5936
        %v5951 = vmul.f32 %v5931, %v5936
        %v5952 = vmul.f32 %v5932, %v5936
        %v5953 = vlaneseq
        %v5954 = vshrl.u32 %v5953, 7
        %v5955 = vsub.s32 5, %v5954
        %v5956 = vrot.slane %v564, %v5955
        %v5957 = vadd.f32 %v5937, %v5956
        %v5958 = vadd.f32 %v5938, %v5956
        %v5959 = vadd.f32 %v5939, %v5956
        %v5960 = vadd.f32 %v5940, %v5956
        %v5961 = vadd.f32 %v5941, %v5956
        %v5962 = vadd.f32 %v5942, %v5956
        %v5963 = vadd.f32 %v5943, %v5956
        %v5964 = vadd.f32 %v5944, %v5956
        %v5965 = vadd.f32 %v5945, %v5956
        %v5966 = vadd.f32 %v5946, %v5956
        %v5967 = vadd.f32 %v5947, %v5956
        %v5968 = vadd.f32 %v5948, %v5956
        %v5969 = vadd.f32 %v5949, %v5956
        %v5970 = vadd.f32 %v5950, %v5956
        %v5971 = vadd.f32 %v5951, %v5956
        %v5972 = vadd.f32 %v5952, %v5956
        %5973 = vst.msk [vmem:[%s500] sm:$0xff] %vm718, %v5957
        %5974 = vst.msk [vmem:[%s500 + $0x8] sm:$0xff] %vm718, %v5958
        %5975 = vst.msk [vmem:[%s500 + $0x10] sm:$0xff] %vm718, %v5959
        %5976 = vst.msk [vmem:[%s500 + $0x18] sm:$0xff] %vm718, %v5960
        %5977 = vst.msk [vmem:[%s500 + $0x20] sm:$0xff] %vm718, %v5961
        %5978 = vst.msk [vmem:[%s500 + $0x28] sm:$0xff] %vm718, %v5962
        %5979 = vst.msk [vmem:[%s500 + $0x30] sm:$0xff] %vm718, %v5963
        %5980 = vst.msk [vmem:[%s500 + $0x38] sm:$0xff] %vm718, %v5964
        %5981 = vst.msk [vmem:[%s500 + $0x40] sm:$0xff] %vm718, %v5965
        %5982 = vst.msk [vmem:[%s500 + $0x48] sm:$0xff] %vm718, %v5966
        %5983 = vst.msk [vmem:[%s500 + $0x50] sm:$0xff] %vm718, %v5967
        %5984 = vst.msk [vmem:[%s500 + $0x58] sm:$0xff] %vm718, %v5968
        %5985 = vst.msk [vmem:[%s500 + $0x60] sm:$0xff] %vm718, %v5969
        %5986 = vst.msk [vmem:[%s500 + $0x68] sm:$0xff] %vm718, %v5970
        %5987 = vst.msk [vmem:[%s500 + $0x70] sm:$0xff] %vm718, %v5971
        %5988 = vst.msk [vmem:[%s500 + $0x78] sm:$0xff] %vm718, %v5972
        %s5989 = sand.u32 %s369, 1
        %s5990 = scalar_lea.sflag [#allocation3], %s5989
        %s5991 = sand.u32 %s369, 1
        %s5992 = smul.addr %s5991, 128
        %s5993 = scalar_lea.vmem [#allocation2], %s5992
        // Predicated region
        $region85: #{transformer_forward.1} parent=79 // pred_check
          %p5994 = pneg %p379
        $region86: #{transformer_forward.1} parent=79 // pred_check_branch
          %5996 = sbr.rel (%p5994) target = $region88
        $region87: #{transformer_forward.1} parent=79 // pred_region
          %s5997 = smul.u32 16, %s33
          %s5999 = ssub.s32 2048, 2048
          %6000 = vsyncadd %s5990, %s5999
          %s6001 = smul.addr %s5997, 128
          %s6002 = scalar_lea.hbm %s15, %s6001
          %s6003 = sshll.u32 %s5993, 4
          %s6004 = int_to_ptr.vmem [resolvable:$true] %s6003
          %6009 = dma.vmem_to_hbm [thread:$0]  %s6004, 2048, %s6002, %s5990, 128, 128, 8
        $region88: #{transformer_forward.1} parent=79 // pred_fallthru
          _
      $region80: #{transformer_forward.1} parent=5 // pred_fallthru
        _
      %p6010 = scmp.le.s32.totalorder 2, %s24
      // Predicated region
      $region89: #{transformer_forward.1} parent=5 // pred_check
        %p6011 = pneg %p6010
      $region90: #{transformer_forward.1} parent=5 // pred_check_branch
        %6013 = sbr.rel (%p6011) target = $region92
      $region91: #{transformer_forward.1} parent=5 // pred_region
        %s6014 = ssub.s32 %s24, 2
        // Predicated region
        $region93: #{transformer_forward.1} parent=91 // pred_check
          %p6015 = pneg %p385
        $region94: #{transformer_forward.1} parent=91 // pred_check_branch
          %6017 = sbr.rel (%p6015) target = $region96
        $region95: #{transformer_forward.1} parent=91 // pred_region
          %s6018 = sand.u32 %s370, 1
          %s6019 = scalar_lea.sflag [#allocation3], %s6018
          %s6020 = sand.u32 %s370, 1
          %s6021 = smul.addr %s6020, 128
          %s6022 = scalar_lea.vmem [#allocation2], %s6021
          %6023 = dma.done %s6019, 2048
        $region96: #{transformer_forward.1} parent=91 // pred_fallthru
          _
      $region92: #{transformer_forward.1} parent=5 // pred_fallthru
        _
    $region6: #{transformer_forward.1} parent=1 // loop_footer
      %s28 = sadd.s32 1, %s24
    $region7: #{transformer_forward.1} parent=1 // loop_footer_branch
      %23 = sbr.rel target = $region3
    $region8: #{transformer_forward.1} parent=1 // loop_exit
      _
    %6024 = vsyncpa [#allocation3], 1
    %s6025 = scalar_lea.sflag [#allocation3], 1
    %6026 = vsyncpa %s6025, 1

</llo_original>
